<compile_context>
chip_gen: v5e
topology: v5e:2x2
jax: 0.10.0
libtpu: 0.0.40
codegen_flags: <defaults>
</compile_context>

<pallas_src>
import jax
import jax.numpy as jnp
from jax.experimental import pallas as pl
from jax.experimental.pallas import tpu as pltpu

_EPS = 1e-5      # nn.BatchNorm1d default eps
_C = 32          # conv channel count
_K = 5           # conv kernel size


def _group_sum(v):
    """(1,128) per-lane sums -> per-channel sums over the 4 batch lane-groups,
    replicated back to all 128 lanes (lane = b*32 + c)."""
    g = v[:, 0:32] + v[:, 32:64] + v[:, 64:96] + v[:, 96:128]
    return jnp.concatenate([g, g, g, g], axis=1)


def _rn_kernel(xp_ref, w1_ref, b1_ref, g1_ref, be1_ref,
               w2_ref, b2_ref, g2_ref, be2_ref,
               w0_ref, b0_ref, w1f_ref, b1f_ref, w2f_ref, b2f_ref,
               out_ref, act_scr, pool1_scr, pool2_scr, flat_scr):
    B = out_ref.shape[0]
    L1 = act_scr.shape[0]          # conv1 output length
    P1 = L1 // 5                   # after MaxPool1d(5)
    L2 = P1 - 2                    # conv2 output length
    P2 = L2 // 5                   # after MaxPool1d(5)

    if B * _C == 128:
        mask = None                # all lanes are valid (batch, channel) slots
    else:
        lane = jax.lax.broadcasted_iota(jnp.int32, (1, 128), 1)
        mask = (lane < B * _C).astype(jnp.float32)

    def bn_relu(h, n_valid, gamma, beta):
        # training-mode BatchNorm1d: biased batch stats over (batch, time) per channel, then ReLU
        hm = h if mask is None else h * mask
        mu = _group_sum(jnp.sum(hm, axis=0, keepdims=True)) * (1.0 / n_valid)
        d = h - mu
        sq = d * d if mask is None else (d * d) * mask
        var = _group_sum(jnp.sum(sq, axis=0, keepdims=True)) * (1.0 / n_valid)
        return jnp.maximum(d * jax.lax.rsqrt(var + _EPS) * gamma + beta, 0.0)

    def maxpool5(src_ref, n_out):
        # MaxPool1d(kernel=5, stride=5): 5 strided sublane loads + vectorized max
        pooled = src_ref[pl.ds(0, n_out, stride=5), :]
        for k in range(1, _K):
            pooled = jnp.maximum(pooled, src_ref[pl.ds(k, n_out, stride=5), :])
        return pooled

    # ---- layer1: Conv1d(1, 32, k=5, pad=1) as 5 shifted full-width FMAs -----------
    h1 = xp_ref[0:L1, :] * w1_ref[0:1, :]
    for k in range(1, _K):
        h1 = h1 + xp_ref[k:k + L1, :] * w1_ref[k:k + 1, :]
    h1 = bn_relu(h1 + b1_ref[...], float(B * L1), g1_ref[...], be1_ref[...])

    act_scr[0:L1, :] = h1
    p1 = maxpool5(act_scr, P1)                              # (P1, 128)

    # conv2 padded input: only rows 0 and P1+1 (the zero padding) are cleared
    pool1_scr[0:1, :] = jnp.zeros((1, 128), jnp.float32)
    pool1_scr[P1 + 1:P1 + 2, :] = jnp.zeros((1, 128), jnp.float32)
    pool1_scr[1:P1 + 1, :] = p1

    # ---- layer2: Conv1d(32, 32, k=5, pad=1) as 5 block-diagonal (L,128)@(128,128) matmuls
    h2 = jnp.dot(pool1_scr[0:L2, :], w2_ref[0], preferred_element_type=jnp.float32)
    for k in range(1, _K):
        h2 = h2 + jnp.dot(pool1_scr[k:k + L2, :], w2_ref[k],
                          preferred_element_type=jnp.float32)
    h2 = bn_relu(h2 + b2_ref[...], float(B * L2), g2_ref[...], be2_ref[...])

    act_scr[0:L2, :] = h2
    pool2_scr[0:P2, :] = maxpool5(act_scr, P2)              # (P2, 128)

    # ---- unpack packed lanes (P2, B*32) -> flat (B, P2*32), time-major features ---
    # (fc0 weight rows were permuted in the wrapper to match this ordering)
    for b in range(B):
        for j in range(P2):
            flat_scr[b:b + 1, _C * j:_C * (j + 1)] = \
                pool2_scr[j:j + 1, _C * b:_C * (b + 1)]

    # ---- head: fc0 -> ReLU -> fc1 -> ReLU -> fc2 -> sigmoid -----------------------
    h = jnp.dot(flat_scr[...], w0_ref[...], preferred_element_type=jnp.float32) + b0_ref[...]
    h = jnp.maximum(h, 0.0)
    h = jnp.dot(h, w1f_ref[...], preferred_element_type=jnp.float32) + b1f_ref[...]
    h = jnp.maximum(h, 0.0)
    z = jnp.dot(h, w2f_ref[...], preferred_element_type=jnp.float32) + b2f_ref[...]
    out_ref[...] = 1.0 / (1.0 + jnp.exp(-z))


def init_params(key):
    ks = jax.random.split(key, 10)
    p = {}
    p["conv1_w"] = 0.05 * jax.random.normal(ks[0], (32, 1, 5), jnp.float32)
    p["conv1_b"] = 0.05 * jax.random.normal(ks[1], (32,), jnp.float32)
    p["bn1_g"] = jnp.ones((32,), jnp.float32)
    p["bn1_b"] = jnp.zeros((32,), jnp.float32)
    p["conv2_w"] = 0.05 * jax.random.normal(ks[2], (32, 32, 5), jnp.float32)
    p["conv2_b"] = 0.05 * jax.random.normal(ks[3], (32,), jnp.float32)
    p["bn2_g"] = jnp.ones((32,), jnp.float32)
    p["bn2_b"] = jnp.zeros((32,), jnp.float32)
    p["fc0_w"] = 0.05 * jax.random.normal(ks[4], (500, 736), jnp.float32)
    p["fc0_b"] = 0.05 * jax.random.normal(ks[5], (500,), jnp.float32)
    p["fc1_w"] = 0.05 * jax.random.normal(ks[6], (200, 500), jnp.float32)
    p["fc1_b"] = 0.05 * jax.random.normal(ks[7], (200,), jnp.float32)
    p["fc2_w"] = 0.05 * jax.random.normal(ks[8], (1, 200), jnp.float32)
    p["fc2_b"] = 0.05 * jax.random.normal(ks[9], (1,), jnp.float32)
    return p


def relation_network_forward(x, p):
    # x: (B, L) float32; torch forward reshapes to (B, 1, L) (single input channel)
    x = x.reshape(-1, x.shape[-1]).astype(jnp.float32)
    B, L = x.shape
    L1 = L - 2            # conv1 out length (k=5, padding=1)
    P1 = L1 // 5          # after MaxPool1d(5)
    L2 = P1 - 2           # conv2 out length
    P2 = L2 // 5          # after MaxPool1d(5)
    assert _C * P2 == 736, "input length inconsistent with fc0 = Linear(736, 500)"
    assert 1 <= B <= 4, "this kernel packs batch*channels onto 128 lanes (B <= 4)"

    # glue: pack input as (T, 128) with lane = b*32 + c (value replicated over channels)
    xpad = jnp.pad(x, ((0, 0), (1, 1)))                   # (B, L+2)
    xp = jnp.repeat(xpad.T, _C, axis=1)                   # (L+2, B*32)
    if B * _C < 128:
        xp = jnp.pad(xp, ((0, 0), (0, 128 - B * _C)))

    # glue: pack parameters (pure index permutations / tiling, trace-time cheap)
    w1 = jnp.tile(p["conv1_w"][:, 0, :].T, (1, 4))        # (5,128): [k, b*32+c] = torch[c,0,k]
    b1 = jnp.tile(p["conv1_b"][None, :], (1, 4))          # (1,128)
    g1 = jnp.tile(p["bn1_g"][None, :], (1, 4))
    be1 = jnp.tile(p["bn1_b"][None, :], (1, 4))

    m2 = jnp.transpose(p["conv2_w"], (2, 1, 0))           # (5, c_in, c_out) = torch[c_out,c_in,k]
    eye4 = jnp.eye(4, dtype=jnp.float32)
    # block-diagonal per-tap weight: w2[k, 32a+i, 32b+o] = delta(a,b) * torch[o, i, k]
    w2 = (eye4[None, :, None, :, None] * m2[:, None, :, None, :]).reshape(_K, 128, 128)
    b2 = jnp.tile(p["conv2_b"][None, :], (1, 4))
    g2 = jnp.tile(p["bn2_g"][None, :], (1, 4))
    be2 = jnp.tile(p["bn2_b"][None, :], (1, 4))

    # fc0 rows permuted from torch's channel-major flatten (c*P2 + j) to the kernel's
    # time-major flatten (j*32 + c); fc1/fc2 just transposed, biases as rows.
    w0 = jnp.transpose(p["fc0_w"].reshape(500, _C, P2), (2, 1, 0)).reshape(_C * P2, 500)
    b0 = p["fc0_b"][None, :]
    w1f = p["fc1_w"].T
    b1f = p["fc1_b"][None, :]
    w2f = p["fc2_w"].T
    b2f = p["fc2_b"][None, :]

    vmem = pl.BlockSpec(memory_space=pltpu.MemorySpace.VMEM)
    out = pl.pallas_call(
        _rn_kernel,
        out_shape=jax.ShapeDtypeStruct((B, 1), jnp.float32),
        in_specs=[vmem] * 15,
        out_specs=vmem,
        scratch_shapes=[
            pltpu.VMEM((L1, 128), jnp.float32),        # conv activations (pooling source)
            pltpu.VMEM((P1 + 2, 128), jnp.float32),    # pool1 output + conv2 zero-padding rows
            pltpu.VMEM((P2, 128), jnp.float32),        # pool2 output (packed)
            pltpu.VMEM((B, _C * P2), jnp.float32),     # flat features for the FC head
        ],
    )(xp, w1, b1, g1, be1, w2, b2, g2, be2, w0, b0, w1f, b1f, w2f, b2f)
    return out


if __name__ == "__main__":
    key = jax.random.PRNGKey(0)
    pkey, xkey = jax.random.split(key)
    params = init_params(pkey)

    B, L = 4, 600   # 600 -> conv(598) -> pool(119) -> conv(117) -> pool(23); 32*23 = 736 == fc0 in
    x = jax.random.normal(xkey, (B, L), jnp.float32)

    y = relation_network_forward(x, params)
    y = jax.block_until_ready(y)
    assert y.shape == (B, 1)
    print("KERNEL_OK")
</pallas_src>

<mosaic_0001>
module attributes {stable_mosaic.version = 11 : i64} {
  func.func @_rn_kernel(%arg0: memref<602x128xf32, #tpu.memory_space<vmem>>, %arg1: memref<5x128xf32, #tpu.memory_space<vmem>>, %arg2: memref<1x128xf32, #tpu.memory_space<vmem>>, %arg3: memref<1x128xf32, #tpu.memory_space<vmem>>, %arg4: memref<1x128xf32, #tpu.memory_space<vmem>>, %arg5: memref<5x128x128xf32, #tpu.memory_space<vmem>>, %arg6: memref<1x128xf32, #tpu.memory_space<vmem>>, %arg7: memref<1x128xf32, #tpu.memory_space<vmem>>, %arg8: memref<1x128xf32, #tpu.memory_space<vmem>>, %arg9: memref<736x500xf32, #tpu.memory_space<vmem>>, %arg10: memref<1x500xf32, #tpu.memory_space<vmem>>, %arg11: memref<500x200xf32, #tpu.memory_space<vmem>>, %arg12: memref<1x200xf32, #tpu.memory_space<vmem>>, %arg13: memref<200x1xf32, #tpu.memory_space<vmem>>, %arg14: memref<1x1xf32, #tpu.memory_space<vmem>>, %arg15: memref<4x1xf32, #tpu.memory_space<vmem>>, %arg16: memref<598x128xf32, #tpu.memory_space<vmem>>, %arg17: memref<121x128xf32, #tpu.memory_space<vmem>>, %arg18: memref<23x128xf32, #tpu.memory_space<vmem>>, %arg19: memref<4x736xf32, #tpu.memory_space<vmem>>) attributes {dimension_semantics = [], scalar_prefetch = 0 : i64, scratch_operands = 4 : i64, tpu.core_type = #tpu.core_type<tc>} {
    %c0 = arith.constant 0 : index
    %c0_0 = arith.constant 0 : index
    %0 = vector.load %arg0[%c0, %c0_0] : memref<602x128xf32, #tpu.memory_space<vmem>>, vector<598x128xf32>
    %c0_1 = arith.constant 0 : index
    %c0_2 = arith.constant 0 : index
    %1 = vector.load %arg1[%c0_1, %c0_2] : memref<5x128xf32, #tpu.memory_space<vmem>>, vector<1x128xf32>
    %2 = vector.broadcast %1 : vector<1x128xf32> to vector<598x128xf32>
    %3 = arith.mulf %0, %2 : vector<598x128xf32>
    %c1 = arith.constant 1 : index
    %c0_3 = arith.constant 0 : index
    %4 = vector.load %arg0[%c1, %c0_3] : memref<602x128xf32, #tpu.memory_space<vmem>>, vector<598x128xf32>
    %c1_4 = arith.constant 1 : index
    %c0_5 = arith.constant 0 : index
    %5 = vector.load %arg1[%c1_4, %c0_5] : memref<5x128xf32, #tpu.memory_space<vmem>>, vector<1x128xf32>
    %6 = vector.broadcast %5 : vector<1x128xf32> to vector<598x128xf32>
    %7 = arith.mulf %4, %6 : vector<598x128xf32>
    %8 = arith.addf %3, %7 : vector<598x128xf32>
    %c2 = arith.constant 2 : index
    %c0_6 = arith.constant 0 : index
    %9 = vector.load %arg0[%c2, %c0_6] : memref<602x128xf32, #tpu.memory_space<vmem>>, vector<598x128xf32>
    %c2_7 = arith.constant 2 : index
    %c0_8 = arith.constant 0 : index
    %10 = vector.load %arg1[%c2_7, %c0_8] : memref<5x128xf32, #tpu.memory_space<vmem>>, vector<1x128xf32>
    %11 = vector.broadcast %10 : vector<1x128xf32> to vector<598x128xf32>
    %12 = arith.mulf %9, %11 : vector<598x128xf32>
    %13 = arith.addf %8, %12 : vector<598x128xf32>
    %c3 = arith.constant 3 : index
    %c0_9 = arith.constant 0 : index
    %14 = vector.load %arg0[%c3, %c0_9] : memref<602x128xf32, #tpu.memory_space<vmem>>, vector<598x128xf32>
    %c3_10 = arith.constant 3 : index
    %c0_11 = arith.constant 0 : index
    %15 = vector.load %arg1[%c3_10, %c0_11] : memref<5x128xf32, #tpu.memory_space<vmem>>, vector<1x128xf32>
    %16 = vector.broadcast %15 : vector<1x128xf32> to vector<598x128xf32>
    %17 = arith.mulf %14, %16 : vector<598x128xf32>
    %18 = arith.addf %13, %17 : vector<598x128xf32>
    %c4 = arith.constant 4 : index
    %c0_12 = arith.constant 0 : index
    %19 = vector.load %arg0[%c4, %c0_12] : memref<602x128xf32, #tpu.memory_space<vmem>>, vector<598x128xf32>
    %c4_13 = arith.constant 4 : index
    %c0_14 = arith.constant 0 : index
    %20 = vector.load %arg1[%c4_13, %c0_14] : memref<5x128xf32, #tpu.memory_space<vmem>>, vector<1x128xf32>
    %21 = vector.broadcast %20 : vector<1x128xf32> to vector<598x128xf32>
    %22 = arith.mulf %19, %21 : vector<598x128xf32>
    %23 = arith.addf %18, %22 : vector<598x128xf32>
    %c0_15 = arith.constant 0 : index
    %c0_16 = arith.constant 0 : index
    %24 = vector.load %arg2[%c0_15, %c0_16] : memref<1x128xf32, #tpu.memory_space<vmem>>, vector<1x128xf32>
    %25 = vector.broadcast %24 : vector<1x128xf32> to vector<598x128xf32>
    %26 = arith.addf %23, %25 : vector<598x128xf32>
    %c0_17 = arith.constant 0 : index
    %c0_18 = arith.constant 0 : index
    %27 = vector.load %arg3[%c0_17, %c0_18] : memref<1x128xf32, #tpu.memory_space<vmem>>, vector<1x128xf32>
    %c0_19 = arith.constant 0 : index
    %c0_20 = arith.constant 0 : index
    %28 = vector.load %arg4[%c0_19, %c0_20] : memref<1x128xf32, #tpu.memory_space<vmem>>, vector<1x128xf32>
    %cst = arith.constant dense<0.000000e+00> : vector<128xf32>
    %29 = vector.multi_reduction <add>, %26, %cst [0] : vector<598x128xf32> to vector<128xf32>
    %30 = vector.shape_cast %29 : vector<128xf32> to vector<1x128xf32>
    %31 = vector.extract_strided_slice %30 {offsets = [0, 0], sizes = [1, 32], strides = [1, 1]} : vector<1x128xf32> to vector<1x32xf32>
    %32 = vector.extract_strided_slice %30 {offsets = [0, 32], sizes = [1, 32], strides = [1, 1]} : vector<1x128xf32> to vector<1x32xf32>
    %33 = arith.addf %31, %32 : vector<1x32xf32>
    %34 = vector.extract_strided_slice %30 {offsets = [0, 64], sizes = [1, 32], strides = [1, 1]} : vector<1x128xf32> to vector<1x32xf32>
    %35 = arith.addf %33, %34 : vector<1x32xf32>
    %36 = vector.extract_strided_slice %30 {offsets = [0, 96], sizes = [1, 32], strides = [1, 1]} : vector<1x128xf32> to vector<1x32xf32>
    %37 = arith.addf %35, %36 : vector<1x32xf32>
    %38 = tpu.concatenate %37, %37, %37, %37 in 1 : vector<1x32xf32>, vector<1x32xf32>, vector<1x32xf32>, vector<1x32xf32> -> vector<1x128xf32>
    %cst_21 = arith.constant 4.18060197E-4 : f32
    %39 = vector.broadcast %cst_21 : f32 to vector<1x128xf32>
    %40 = arith.mulf %38, %39 : vector<1x128xf32>
    %41 = vector.broadcast %40 : vector<1x128xf32> to vector<598x128xf32>
    %42 = arith.subf %26, %41 : vector<598x128xf32>
    %43 = arith.mulf %42, %42 : vector<598x128xf32>
    %cst_22 = arith.constant dense<0.000000e+00> : vector<128xf32>
    %44 = vector.multi_reduction <add>, %43, %cst_22 [0] : vector<598x128xf32> to vector<128xf32>
    %45 = vector.shape_cast %44 : vector<128xf32> to vector<1x128xf32>
    %46 = vector.extract_strided_slice %45 {offsets = [0, 0], sizes = [1, 32], strides = [1, 1]} : vector<1x128xf32> to vector<1x32xf32>
    %47 = vector.extract_strided_slice %45 {offsets = [0, 32], sizes = [1, 32], strides = [1, 1]} : vector<1x128xf32> to vector<1x32xf32>
    %48 = arith.addf %46, %47 : vector<1x32xf32>
    %49 = vector.extract_strided_slice %45 {offsets = [0, 64], sizes = [1, 32], strides = [1, 1]} : vector<1x128xf32> to vector<1x32xf32>
    %50 = arith.addf %48, %49 : vector<1x32xf32>
    %51 = vector.extract_strided_slice %45 {offsets = [0, 96], sizes = [1, 32], strides = [1, 1]} : vector<1x128xf32> to vector<1x32xf32>
    %52 = arith.addf %50, %51 : vector<1x32xf32>
    %53 = tpu.concatenate %52, %52, %52, %52 in 1 : vector<1x32xf32>, vector<1x32xf32>, vector<1x32xf32>, vector<1x32xf32> -> vector<1x128xf32>
    %cst_23 = arith.constant 4.18060197E-4 : f32
    %54 = vector.broadcast %cst_23 : f32 to vector<1x128xf32>
    %55 = arith.mulf %53, %54 : vector<1x128xf32>
    %cst_24 = arith.constant 9.99999974E-6 : f32
    %56 = vector.broadcast %cst_24 : f32 to vector<1x128xf32>
    %57 = arith.addf %55, %56 : vector<1x128xf32>
    %58 = math.rsqrt %57 : vector<1x128xf32>
    %59 = vector.broadcast %58 : vector<1x128xf32> to vector<598x128xf32>
    %60 = arith.mulf %42, %59 : vector<598x128xf32>
    %61 = vector.broadcast %27 : vector<1x128xf32> to vector<598x128xf32>
    %62 = arith.mulf %60, %61 : vector<598x128xf32>
    %63 = vector.broadcast %28 : vector<1x128xf32> to vector<598x128xf32>
    %64 = arith.addf %62, %63 : vector<598x128xf32>
    %cst_25 = arith.constant 0.000000e+00 : f32
    %65 = vector.broadcast %cst_25 : f32 to vector<598x128xf32>
    %66 = arith.maximumf %64, %65 : vector<598x128xf32>
    %c0_26 = arith.constant 0 : index
    %c0_27 = arith.constant 0 : index
    %67 = vector.load %arg16[%c0_26, %c0_27] : memref<598x128xf32, #tpu.memory_space<vmem>>, vector<598x128xf32>
    tpu.vector_store %arg16[%c0_26, %c0_27], %66 {strides = array<i32>} : memref<598x128xf32, #tpu.memory_space<vmem>>, vector<598x128xf32>,
    %c0_28 = arith.constant 0 : index
    %c0_29 = arith.constant 0 : index
    %68 = tpu.strided_load %arg16[%c0_28, %c0_29] {strides = array<i32: 5, 1>} : memref<598x128xf32, #tpu.memory_space<vmem>>, vector<119x128xf32>
    %c1_30 = arith.constant 1 : index
    %c0_31 = arith.constant 0 : index
    %69 = tpu.strided_load %arg16[%c1_30, %c0_31] {strides = array<i32: 5, 1>} : memref<598x128xf32, #tpu.memory_space<vmem>>, vector<119x128xf32>
    %70 = arith.maximumf %68, %69 : vector<119x128xf32>
    %c2_32 = arith.constant 2 : index
    %c0_33 = arith.constant 0 : index
    %71 = tpu.strided_load %arg16[%c2_32, %c0_33] {strides = array<i32: 5, 1>} : memref<598x128xf32, #tpu.memory_space<vmem>>, vector<119x128xf32>
    %72 = arith.maximumf %70, %71 : vector<119x128xf32>
    %c3_34 = arith.constant 3 : index
    %c0_35 = arith.constant 0 : index
    %73 = tpu.strided_load %arg16[%c3_34, %c0_35] {strides = array<i32: 5, 1>} : memref<598x128xf32, #tpu.memory_space<vmem>>, vector<119x128xf32>
    %74 = arith.maximumf %72, %73 : vector<119x128xf32>
    %c4_36 = arith.constant 4 : index
    %c0_37 = arith.constant 0 : index
    %75 = tpu.strided_load %arg16[%c4_36, %c0_37] {strides = array<i32: 5, 1>} : memref<598x128xf32, #tpu.memory_space<vmem>>, vector<119x128xf32>
    %76 = arith.maximumf %74, %75 : vector<119x128xf32>
    %cst_38 = arith.constant 0.000000e+00 : f32
    %77 = vector.broadcast %cst_38 : f32 to vector<1x128xf32>
    %c0_39 = arith.constant 0 : index
    %c0_40 = arith.constant 0 : index
    %78 = vector.load %arg17[%c0_39, %c0_40] : memref<121x128xf32, #tpu.memory_space<vmem>>, vector<1x128xf32>
    tpu.vector_store %arg17[%c0_39, %c0_40], %77 {strides = array<i32>} : memref<121x128xf32, #tpu.memory_space<vmem>>, vector<1x128xf32>,
    %cst_41 = arith.constant 0.000000e+00 : f32
    %79 = vector.broadcast %cst_41 : f32 to vector<1x128xf32>
    %c120 = arith.constant 120 : index
    %c0_42 = arith.constant 0 : index
    %80 = vector.load %arg17[%c120, %c0_42] : memref<121x128xf32, #tpu.memory_space<vmem>>, vector<1x128xf32>
    tpu.vector_store %arg17[%c120, %c0_42], %79 {strides = array<i32>} : memref<121x128xf32, #tpu.memory_space<vmem>>, vector<1x128xf32>,
    %c1_43 = arith.constant 1 : index
    %c0_44 = arith.constant 0 : index
    %81 = vector.load %arg17[%c1_43, %c0_44] : memref<121x128xf32, #tpu.memory_space<vmem>>, vector<119x128xf32>
    tpu.vector_store %arg17[%c1_43, %c0_44], %76 {strides = array<i32>} : memref<121x128xf32, #tpu.memory_space<vmem>>, vector<119x128xf32>,
    %c0_45 = arith.constant 0 : index
    %c0_46 = arith.constant 0 : index
    %82 = vector.load %arg17[%c0_45, %c0_46] : memref<121x128xf32, #tpu.memory_space<vmem>>, vector<117x128xf32>
    %c0_47 = arith.constant 0 : index
    %c0_48 = arith.constant 0 : index
    %c0_49 = arith.constant 0 : index
    %83 = vector.load %arg5[%c0_47, %c0_48, %c0_49] : memref<5x128x128xf32, #tpu.memory_space<vmem>>, vector<1x128x128xf32>
    %84 = vector.shape_cast %83 : vector<1x128x128xf32> to vector<128x128xf32>
    %cst_50 = arith.constant dense<0.000000e+00> : vector<117x128xf32>
    %85 = tpu.matmul %82, %84, %cst_50 {dimension_numbers = #tpu.dot_dimension_numbers<[1], [0], [0], [1], [0, 0, 1, 1], [], []>} : vector<117x128xf32>, vector<128x128xf32>, vector<117x128xf32> -> vector<117x128xf32>
    %c1_51 = arith.constant 1 : index
    %c0_52 = arith.constant 0 : index
    %86 = vector.load %arg17[%c1_51, %c0_52] : memref<121x128xf32, #tpu.memory_space<vmem>>, vector<117x128xf32>
    %c1_53 = arith.constant 1 : index
    %c0_54 = arith.constant 0 : index
    %c0_55 = arith.constant 0 : index
    %87 = vector.load %arg5[%c1_53, %c0_54, %c0_55] : memref<5x128x128xf32, #tpu.memory_space<vmem>>, vector<1x128x128xf32>
    %88 = vector.shape_cast %87 : vector<1x128x128xf32> to vector<128x128xf32>
    %cst_56 = arith.constant dense<0.000000e+00> : vector<117x128xf32>
    %89 = tpu.matmul %86, %88, %cst_56 {dimension_numbers = #tpu.dot_dimension_numbers<[1], [0], [0], [1], [0, 0, 1, 1], [], []>} : vector<117x128xf32>, vector<128x128xf32>, vector<117x128xf32> -> vector<117x128xf32>
    %90 = arith.addf %85, %89 : vector<117x128xf32>
    %c2_57 = arith.constant 2 : index
    %c0_58 = arith.constant 0 : index
    %91 = vector.load %arg17[%c2_57, %c0_58] : memref<121x128xf32, #tpu.memory_space<vmem>>, vector<117x128xf32>
    %c2_59 = arith.constant 2 : index
    %c0_60 = arith.constant 0 : index
    %c0_61 = arith.constant 0 : index
    %92 = vector.load %arg5[%c2_59, %c0_60, %c0_61] : memref<5x128x128xf32, #tpu.memory_space<vmem>>, vector<1x128x128xf32>
    %93 = vector.shape_cast %92 : vector<1x128x128xf32> to vector<128x128xf32>
    %cst_62 = arith.constant dense<0.000000e+00> : vector<117x128xf32>
    %94 = tpu.matmul %91, %93, %cst_62 {dimension_numbers = #tpu.dot_dimension_numbers<[1], [0], [0], [1], [0, 0, 1, 1], [], []>} : vector<117x128xf32>, vector<128x128xf32>, vector<117x128xf32> -> vector<117x128xf32>
    %95 = arith.addf %90, %94 : vector<117x128xf32>
    %c3_63 = arith.constant 3 : index
    %c0_64 = arith.constant 0 : index
    %96 = vector.load %arg17[%c3_63, %c0_64] : memref<121x128xf32, #tpu.memory_space<vmem>>, vector<117x128xf32>
    %c3_65 = arith.constant 3 : index
    %c0_66 = arith.constant 0 : index
    %c0_67 = arith.constant 0 : index
    %97 = vector.load %arg5[%c3_65, %c0_66, %c0_67] : memref<5x128x128xf32, #tpu.memory_space<vmem>>, vector<1x128x128xf32>
    %98 = vector.shape_cast %97 : vector<1x128x128xf32> to vector<128x128xf32>
    %cst_68 = arith.constant dense<0.000000e+00> : vector<117x128xf32>
    %99 = tpu.matmul %96, %98, %cst_68 {dimension_numbers = #tpu.dot_dimension_numbers<[1], [0], [0], [1], [0, 0, 1, 1], [], []>} : vector<117x128xf32>, vector<128x128xf32>, vector<117x128xf32> -> vector<117x128xf32>
    %100 = arith.addf %95, %99 : vector<117x128xf32>
    %c4_69 = arith.constant 4 : index
    %c0_70 = arith.constant 0 : index
    %101 = vector.load %arg17[%c4_69, %c0_70] : memref<121x128xf32, #tpu.memory_space<vmem>>, vector<117x128xf32>
    %c4_71 = arith.constant 4 : index
    %c0_72 = arith.constant 0 : index
    %c0_73 = arith.constant 0 : index
    %102 = vector.load %arg5[%c4_71, %c0_72, %c0_73] : memref<5x128x128xf32, #tpu.memory_space<vmem>>, vector<1x128x128xf32>
    %103 = vector.shape_cast %102 : vector<1x128x128xf32> to vector<128x128xf32>
    %cst_74 = arith.constant dense<0.000000e+00> : vector<117x128xf32>
    %104 = tpu.matmul %101, %103, %cst_74 {dimension_numbers = #tpu.dot_dimension_numbers<[1], [0], [0], [1], [0, 0, 1, 1], [], []>} : vector<117x128xf32>, vector<128x128xf32>, vector<117x128xf32> -> vector<117x128xf32>
    %105 = arith.addf %100, %104 : vector<117x128xf32>
    %c0_75 = arith.constant 0 : index
    %c0_76 = arith.constant 0 : index
    %106 = vector.load %arg6[%c0_75, %c0_76] : memref<1x128xf32, #tpu.memory_space<vmem>>, vector<1x128xf32>
    %107 = vector.broadcast %106 : vector<1x128xf32> to vector<117x128xf32>
    %108 = arith.addf %105, %107 : vector<117x128xf32>
    %c0_77 = arith.constant 0 : index
    %c0_78 = arith.constant 0 : index
    %109 = vector.load %arg7[%c0_77, %c0_78] : memref<1x128xf32, #tpu.memory_space<vmem>>, vector<1x128xf32>
    %c0_79 = arith.constant 0 : index
    %c0_80 = arith.constant 0 : index
    %110 = vector.load %arg8[%c0_79, %c0_80] : memref<1x128xf32, #tpu.memory_space<vmem>>, vector<1x128xf32>
    %cst_81 = arith.constant dense<0.000000e+00> : vector<128xf32>
    %111 = vector.multi_reduction <add>, %108, %cst_81 [0] : vector<117x128xf32> to vector<128xf32>
    %112 = vector.shape_cast %111 : vector<128xf32> to vector<1x128xf32>
    %113 = vector.extract_strided_slice %112 {offsets = [0, 0], sizes = [1, 32], strides = [1, 1]} : vector<1x128xf32> to vector<1x32xf32>
    %114 = vector.extract_strided_slice %112 {offsets = [0, 32], sizes = [1, 32], strides = [1, 1]} : vector<1x128xf32> to vector<1x32xf32>
    %115 = arith.addf %113, %114 : vector<1x32xf32>
    %116 = vector.extract_strided_slice %112 {offsets = [0, 64], sizes = [1, 32], strides = [1, 1]} : vector<1x128xf32> to vector<1x32xf32>
    %117 = arith.addf %115, %116 : vector<1x32xf32>
    %118 = vector.extract_strided_slice %112 {offsets = [0, 96], sizes = [1, 32], strides = [1, 1]} : vector<1x128xf32> to vector<1x32xf32>
    %119 = arith.addf %117, %118 : vector<1x32xf32>
    %120 = tpu.concatenate %119, %119, %119, %119 in 1 : vector<1x32xf32>, vector<1x32xf32>, vector<1x32xf32>, vector<1x32xf32> -> vector<1x128xf32>
    %cst_82 = arith.constant 0.00213675224 : f32
    %121 = vector.broadcast %cst_82 : f32 to vector<1x128xf32>
    %122 = arith.mulf %120, %121 : vector<1x128xf32>
    %123 = vector.broadcast %122 : vector<1x128xf32> to vector<117x128xf32>
    %124 = arith.subf %108, %123 : vector<117x128xf32>
    %125 = arith.mulf %124, %124 : vector<117x128xf32>
    %cst_83 = arith.constant dense<0.000000e+00> : vector<128xf32>
    %126 = vector.multi_reduction <add>, %125, %cst_83 [0] : vector<117x128xf32> to vector<128xf32>
    %127 = vector.shape_cast %126 : vector<128xf32> to vector<1x128xf32>
    %128 = vector.extract_strided_slice %127 {offsets = [0, 0], sizes = [1, 32], strides = [1, 1]} : vector<1x128xf32> to vector<1x32xf32>
    %129 = vector.extract_strided_slice %127 {offsets = [0, 32], sizes = [1, 32], strides = [1, 1]} : vector<1x128xf32> to vector<1x32xf32>
    %130 = arith.addf %128, %129 : vector<1x32xf32>
    %131 = vector.extract_strided_slice %127 {offsets = [0, 64], sizes = [1, 32], strides = [1, 1]} : vector<1x128xf32> to vector<1x32xf32>
    %132 = arith.addf %130, %131 : vector<1x32xf32>
    %133 = vector.extract_strided_slice %127 {offsets = [0, 96], sizes = [1, 32], strides = [1, 1]} : vector<1x128xf32> to vector<1x32xf32>
    %134 = arith.addf %132, %133 : vector<1x32xf32>
    %135 = tpu.concatenate %134, %134, %134, %134 in 1 : vector<1x32xf32>, vector<1x32xf32>, vector<1x32xf32>, vector<1x32xf32> -> vector<1x128xf32>
    %cst_84 = arith.constant 0.00213675224 : f32
    %136 = vector.broadcast %cst_84 : f32 to vector<1x128xf32>
    %137 = arith.mulf %135, %136 : vector<1x128xf32>
    %cst_85 = arith.constant 9.99999974E-6 : f32
    %138 = vector.broadcast %cst_85 : f32 to vector<1x128xf32>
    %139 = arith.addf %137, %138 : vector<1x128xf32>
    %140 = math.rsqrt %139 : vector<1x128xf32>
    %141 = vector.broadcast %140 : vector<1x128xf32> to vector<117x128xf32>
    %142 = arith.mulf %124, %141 : vector<117x128xf32>
    %143 = vector.broadcast %109 : vector<1x128xf32> to vector<117x128xf32>
    %144 = arith.mulf %142, %143 : vector<117x128xf32>
    %145 = vector.broadcast %110 : vector<1x128xf32> to vector<117x128xf32>
    %146 = arith.addf %144, %145 : vector<117x128xf32>
    %cst_86 = arith.constant 0.000000e+00 : f32
    %147 = vector.broadcast %cst_86 : f32 to vector<117x128xf32>
    %148 = arith.maximumf %146, %147 : vector<117x128xf32>
    %c0_87 = arith.constant 0 : index
    %c0_88 = arith.constant 0 : index
    %149 = vector.load %arg16[%c0_87, %c0_88] : memref<598x128xf32, #tpu.memory_space<vmem>>, vector<117x128xf32>
    tpu.vector_store %arg16[%c0_87, %c0_88], %148 {strides = array<i32>} : memref<598x128xf32, #tpu.memory_space<vmem>>, vector<117x128xf32>,
    %c0_89 = arith.constant 0 : index
    %c0_90 = arith.constant 0 : index
    %150 = tpu.strided_load %arg16[%c0_89, %c0_90] {strides = array<i32: 5, 1>} : memref<598x128xf32, #tpu.memory_space<vmem>>, vector<23x128xf32>
    %c1_91 = arith.constant 1 : index
    %c0_92 = arith.constant 0 : index
    %151 = tpu.strided_load %arg16[%c1_91, %c0_92] {strides = array<i32: 5, 1>} : memref<598x128xf32, #tpu.memory_space<vmem>>, vector<23x128xf32>
    %152 = arith.maximumf %150, %151 : vector<23x128xf32>
    %c2_93 = arith.constant 2 : index
    %c0_94 = arith.constant 0 : index
    %153 = tpu.strided_load %arg16[%c2_93, %c0_94] {strides = array<i32: 5, 1>} : memref<598x128xf32, #tpu.memory_space<vmem>>, vector<23x128xf32>
    %154 = arith.maximumf %152, %153 : vector<23x128xf32>
    %c3_95 = arith.constant 3 : index
    %c0_96 = arith.constant 0 : index
    %155 = tpu.strided_load %arg16[%c3_95, %c0_96] {strides = array<i32: 5, 1>} : memref<598x128xf32, #tpu.memory_space<vmem>>, vector<23x128xf32>
    %156 = arith.maximumf %154, %155 : vector<23x128xf32>
    %c4_97 = arith.constant 4 : index
    %c0_98 = arith.constant 0 : index
    %157 = tpu.strided_load %arg16[%c4_97, %c0_98] {strides = array<i32: 5, 1>} : memref<598x128xf32, #tpu.memory_space<vmem>>, vector<23x128xf32>
    %158 = arith.maximumf %156, %157 : vector<23x128xf32>
    %c0_99 = arith.constant 0 : index
    %c0_100 = arith.constant 0 : index
    %159 = vector.load %arg18[%c0_99, %c0_100] : memref<23x128xf32, #tpu.memory_space<vmem>>, vector<23x128xf32>
    tpu.vector_store %arg18[%c0_99, %c0_100], %158 {strides = array<i32>} : memref<23x128xf32, #tpu.memory_space<vmem>>, vector<23x128xf32>,
    %c0_101 = arith.constant 0 : index
    %c0_102 = arith.constant 0 : index
    %160 = vector.load %arg18[%c0_101, %c0_102] : memref<23x128xf32, #tpu.memory_space<vmem>>, vector<1x32xf32>
    %c0_103 = arith.constant 0 : index
    %c0_104 = arith.constant 0 : index
    %161 = vector.load %arg19[%c0_103, %c0_104] : memref<4x736xf32, #tpu.memory_space<vmem>>, vector<1x32xf32>
    tpu.vector_store %arg19[%c0_103, %c0_104], %160 {strides = array<i32>} : memref<4x736xf32, #tpu.memory_space<vmem>>, vector<1x32xf32>,
    %c1_105 = arith.constant 1 : index
    %c0_106 = arith.constant 0 : index
    %162 = vector.load %arg18[%c1_105, %c0_106] : memref<23x128xf32, #tpu.memory_space<vmem>>, vector<1x32xf32>
    %c0_107 = arith.constant 0 : index
    %c32 = arith.constant 32 : index
    %163 = vector.load %arg19[%c0_107, %c32] : memref<4x736xf32, #tpu.memory_space<vmem>>, vector<1x32xf32>
    tpu.vector_store %arg19[%c0_107, %c32], %162 {strides = array<i32>} : memref<4x736xf32, #tpu.memory_space<vmem>>, vector<1x32xf32>,
    %c2_108 = arith.constant 2 : index
    %c0_109 = arith.constant 0 : index
    %164 = vector.load %arg18[%c2_108, %c0_109] : memref<23x128xf32, #tpu.memory_space<vmem>>, vector<1x32xf32>
    %c0_110 = arith.constant 0 : index
    %c64 = arith.constant 64 : index
    %165 = vector.load %arg19[%c0_110, %c64] : memref<4x736xf32, #tpu.memory_space<vmem>>, vector<1x32xf32>
    tpu.vector_store %arg19[%c0_110, %c64], %164 {strides = array<i32>} : memref<4x736xf32, #tpu.memory_space<vmem>>, vector<1x32xf32>,
    %c3_111 = arith.constant 3 : index
    %c0_112 = arith.constant 0 : index
    %166 = vector.load %arg18[%c3_111, %c0_112] : memref<23x128xf32, #tpu.memory_space<vmem>>, vector<1x32xf32>
    %c0_113 = arith.constant 0 : index
    %c96 = arith.constant 96 : index
    %167 = vector.load %arg19[%c0_113, %c96] : memref<4x736xf32, #tpu.memory_space<vmem>>, vector<1x32xf32>
    tpu.vector_store %arg19[%c0_113, %c96], %166 {strides = array<i32>} : memref<4x736xf32, #tpu.memory_space<vmem>>, vector<1x32xf32>,
    %c4_114 = arith.constant 4 : index
    %c0_115 = arith.constant 0 : index
    %168 = vector.load %arg18[%c4_114, %c0_115] : memref<23x128xf32, #tpu.memory_space<vmem>>, vector<1x32xf32>
    %c0_116 = arith.constant 0 : index
    %c128 = arith.constant 128 : index
    %169 = vector.load %arg19[%c0_116, %c128] : memref<4x736xf32, #tpu.memory_space<vmem>>, vector<1x32xf32>
    tpu.vector_store %arg19[%c0_116, %c128], %168 {strides = array<i32>} : memref<4x736xf32, #tpu.memory_space<vmem>>, vector<1x32xf32>,
    %c5 = arith.constant 5 : index
    %c0_117 = arith.constant 0 : index
    %170 = vector.load %arg18[%c5, %c0_117] : memref<23x128xf32, #tpu.memory_space<vmem>>, vector<1x32xf32>
    %c0_118 = arith.constant 0 : index
    %c160 = arith.constant 160 : index
    %171 = vector.load %arg19[%c0_118, %c160] : memref<4x736xf32, #tpu.memory_space<vmem>>, vector<1x32xf32>
    tpu.vector_store %arg19[%c0_118, %c160], %170 {strides = array<i32>} : memref<4x736xf32, #tpu.memory_space<vmem>>, vector<1x32xf32>,
    %c6 = arith.constant 6 : index
    %c0_119 = arith.constant 0 : index
    %172 = vector.load %arg18[%c6, %c0_119] : memref<23x128xf32, #tpu.memory_space<vmem>>, vector<1x32xf32>
    %c0_120 = arith.constant 0 : index
    %c192 = arith.constant 192 : index
    %173 = vector.load %arg19[%c0_120, %c192] : memref<4x736xf32, #tpu.memory_space<vmem>>, vector<1x32xf32>
    tpu.vector_store %arg19[%c0_120, %c192], %172 {strides = array<i32>} : memref<4x736xf32, #tpu.memory_space<vmem>>, vector<1x32xf32>,
    %c7 = arith.constant 7 : index
    %c0_121 = arith.constant 0 : index
    %174 = vector.load %arg18[%c7, %c0_121] : memref<23x128xf32, #tpu.memory_space<vmem>>, vector<1x32xf32>
    %c0_122 = arith.constant 0 : index
    %c224 = arith.constant 224 : index
    %175 = vector.load %arg19[%c0_122, %c224] : memref<4x736xf32, #tpu.memory_space<vmem>>, vector<1x32xf32>
    tpu.vector_store %arg19[%c0_122, %c224], %174 {strides = array<i32>} : memref<4x736xf32, #tpu.memory_space<vmem>>, vector<1x32xf32>,
    %c8 = arith.constant 8 : index
    %c0_123 = arith.constant 0 : index
    %176 = vector.load %arg18[%c8, %c0_123] : memref<23x128xf32, #tpu.memory_space<vmem>>, vector<1x32xf32>
    %c0_124 = arith.constant 0 : index
    %c256 = arith.constant 256 : index
    %177 = vector.load %arg19[%c0_124, %c256] : memref<4x736xf32, #tpu.memory_space<vmem>>, vector<1x32xf32>
    tpu.vector_store %arg19[%c0_124, %c256], %176 {strides = array<i32>} : memref<4x736xf32, #tpu.memory_space<vmem>>, vector<1x32xf32>,
    %c9 = arith.constant 9 : index
    %c0_125 = arith.constant 0 : index
    %178 = vector.load %arg18[%c9, %c0_125] : memref<23x128xf32, #tpu.memory_space<vmem>>, vector<1x32xf32>
    %c0_126 = arith.constant 0 : index
    %c288 = arith.constant 288 : index
    %179 = vector.load %arg19[%c0_126, %c288] : memref<4x736xf32, #tpu.memory_space<vmem>>, vector<1x32xf32>
    tpu.vector_store %arg19[%c0_126, %c288], %178 {strides = array<i32>} : memref<4x736xf32, #tpu.memory_space<vmem>>, vector<1x32xf32>,
    %c10 = arith.constant 10 : index
    %c0_127 = arith.constant 0 : index
    %180 = vector.load %arg18[%c10, %c0_127] : memref<23x128xf32, #tpu.memory_space<vmem>>, vector<1x32xf32>
    %c0_128 = arith.constant 0 : index
    %c320 = arith.constant 320 : index
    %181 = vector.load %arg19[%c0_128, %c320] : memref<4x736xf32, #tpu.memory_space<vmem>>, vector<1x32xf32>
    tpu.vector_store %arg19[%c0_128, %c320], %180 {strides = array<i32>} : memref<4x736xf32, #tpu.memory_space<vmem>>, vector<1x32xf32>,
    %c11 = arith.constant 11 : index
    %c0_129 = arith.constant 0 : index
    %182 = vector.load %arg18[%c11, %c0_129] : memref<23x128xf32, #tpu.memory_space<vmem>>, vector<1x32xf32>
    %c0_130 = arith.constant 0 : index
    %c352 = arith.constant 352 : index
    %183 = vector.load %arg19[%c0_130, %c352] : memref<4x736xf32, #tpu.memory_space<vmem>>, vector<1x32xf32>
    tpu.vector_store %arg19[%c0_130, %c352], %182 {strides = array<i32>} : memref<4x736xf32, #tpu.memory_space<vmem>>, vector<1x32xf32>,
    %c12 = arith.constant 12 : index
    %c0_131 = arith.constant 0 : index
    %184 = vector.load %arg18[%c12, %c0_131] : memref<23x128xf32, #tpu.memory_space<vmem>>, vector<1x32xf32>
    %c0_132 = arith.constant 0 : index
    %c384 = arith.constant 384 : index
    %185 = vector.load %arg19[%c0_132, %c384] : memref<4x736xf32, #tpu.memory_space<vmem>>, vector<1x32xf32>
    tpu.vector_store %arg19[%c0_132, %c384], %184 {strides = array<i32>} : memref<4x736xf32, #tpu.memory_space<vmem>>, vector<1x32xf32>,
    %c13 = arith.constant 13 : index
    %c0_133 = arith.constant 0 : index
    %186 = vector.load %arg18[%c13, %c0_133] : memref<23x128xf32, #tpu.memory_space<vmem>>, vector<1x32xf32>
    %c0_134 = arith.constant 0 : index
    %c416 = arith.constant 416 : index
    %187 = vector.load %arg19[%c0_134, %c416] : memref<4x736xf32, #tpu.memory_space<vmem>>, vector<1x32xf32>
    tpu.vector_store %arg19[%c0_134, %c416], %186 {strides = array<i32>} : memref<4x736xf32, #tpu.memory_space<vmem>>, vector<1x32xf32>,
    %c14 = arith.constant 14 : index
    %c0_135 = arith.constant 0 : index
    %188 = vector.load %arg18[%c14, %c0_135] : memref<23x128xf32, #tpu.memory_space<vmem>>, vector<1x32xf32>
    %c0_136 = arith.constant 0 : index
    %c448 = arith.constant 448 : index
    %189 = vector.load %arg19[%c0_136, %c448] : memref<4x736xf32, #tpu.memory_space<vmem>>, vector<1x32xf32>
    tpu.vector_store %arg19[%c0_136, %c448], %188 {strides = array<i32>} : memref<4x736xf32, #tpu.memory_space<vmem>>, vector<1x32xf32>,
    %c15 = arith.constant 15 : index
    %c0_137 = arith.constant 0 : index
    %190 = vector.load %arg18[%c15, %c0_137] : memref<23x128xf32, #tpu.memory_space<vmem>>, vector<1x32xf32>
    %c0_138 = arith.constant 0 : index
    %c480 = arith.constant 480 : index
    %191 = vector.load %arg19[%c0_138, %c480] : memref<4x736xf32, #tpu.memory_space<vmem>>, vector<1x32xf32>
    tpu.vector_store %arg19[%c0_138, %c480], %190 {strides = array<i32>} : memref<4x736xf32, #tpu.memory_space<vmem>>, vector<1x32xf32>,
    %c16 = arith.constant 16 : index
    %c0_139 = arith.constant 0 : index
    %192 = vector.load %arg18[%c16, %c0_139] : memref<23x128xf32, #tpu.memory_space<vmem>>, vector<1x32xf32>
    %c0_140 = arith.constant 0 : index
    %c512 = arith.constant 512 : index
    %193 = vector.load %arg19[%c0_140, %c512] : memref<4x736xf32, #tpu.memory_space<vmem>>, vector<1x32xf32>
    tpu.vector_store %arg19[%c0_140, %c512], %192 {strides = array<i32>} : memref<4x736xf32, #tpu.memory_space<vmem>>, vector<1x32xf32>,
    %c17 = arith.constant 17 : index
    %c0_141 = arith.constant 0 : index
    %194 = vector.load %arg18[%c17, %c0_141] : memref<23x128xf32, #tpu.memory_space<vmem>>, vector<1x32xf32>
    %c0_142 = arith.constant 0 : index
    %c544 = arith.constant 544 : index
    %195 = vector.load %arg19[%c0_142, %c544] : memref<4x736xf32, #tpu.memory_space<vmem>>, vector<1x32xf32>
    tpu.vector_store %arg19[%c0_142, %c544], %194 {strides = array<i32>} : memref<4x736xf32, #tpu.memory_space<vmem>>, vector<1x32xf32>,
    %c18 = arith.constant 18 : index
    %c0_143 = arith.constant 0 : index
    %196 = vector.load %arg18[%c18, %c0_143] : memref<23x128xf32, #tpu.memory_space<vmem>>, vector<1x32xf32>
    %c0_144 = arith.constant 0 : index
    %c576 = arith.constant 576 : index
    %197 = vector.load %arg19[%c0_144, %c576] : memref<4x736xf32, #tpu.memory_space<vmem>>, vector<1x32xf32>
    tpu.vector_store %arg19[%c0_144, %c576], %196 {strides = array<i32>} : memref<4x736xf32, #tpu.memory_space<vmem>>, vector<1x32xf32>,
    %c19 = arith.constant 19 : index
    %c0_145 = arith.constant 0 : index
    %198 = vector.load %arg18[%c19, %c0_145] : memref<23x128xf32, #tpu.memory_space<vmem>>, vector<1x32xf32>
    %c0_146 = arith.constant 0 : index
    %c608 = arith.constant 608 : index
    %199 = vector.load %arg19[%c0_146, %c608] : memref<4x736xf32, #tpu.memory_space<vmem>>, vector<1x32xf32>
    tpu.vector_store %arg19[%c0_146, %c608], %198 {strides = array<i32>} : memref<4x736xf32, #tpu.memory_space<vmem>>, vector<1x32xf32>,
    %c20 = arith.constant 20 : index
    %c0_147 = arith.constant 0 : index
    %200 = vector.load %arg18[%c20, %c0_147] : memref<23x128xf32, #tpu.memory_space<vmem>>, vector<1x32xf32>
    %c0_148 = arith.constant 0 : index
    %c640 = arith.constant 640 : index
    %201 = vector.load %arg19[%c0_148, %c640] : memref<4x736xf32, #tpu.memory_space<vmem>>, vector<1x32xf32>
    tpu.vector_store %arg19[%c0_148, %c640], %200 {strides = array<i32>} : memref<4x736xf32, #tpu.memory_space<vmem>>, vector<1x32xf32>,
    %c21 = arith.constant 21 : index
    %c0_149 = arith.constant 0 : index
    %202 = vector.load %arg18[%c21, %c0_149] : memref<23x128xf32, #tpu.memory_space<vmem>>, vector<1x32xf32>
    %c0_150 = arith.constant 0 : index
    %c672 = arith.constant 672 : index
    %203 = vector.load %arg19[%c0_150, %c672] : memref<4x736xf32, #tpu.memory_space<vmem>>, vector<1x32xf32>
    tpu.vector_store %arg19[%c0_150, %c672], %202 {strides = array<i32>} : memref<4x736xf32, #tpu.memory_space<vmem>>, vector<1x32xf32>,
    %c22 = arith.constant 22 : index
    %c0_151 = arith.constant 0 : index
    %204 = vector.load %arg18[%c22, %c0_151] : memref<23x128xf32, #tpu.memory_space<vmem>>, vector<1x32xf32>
    %c0_152 = arith.constant 0 : index
    %c704 = arith.constant 704 : index
    %205 = vector.load %arg19[%c0_152, %c704] : memref<4x736xf32, #tpu.memory_space<vmem>>, vector<1x32xf32>
    tpu.vector_store %arg19[%c0_152, %c704], %204 {strides = array<i32>} : memref<4x736xf32, #tpu.memory_space<vmem>>, vector<1x32xf32>,
    %c0_153 = arith.constant 0 : index
    %c32_154 = arith.constant 32 : index
    %206 = vector.load %arg18[%c0_153, %c32_154] : memref<23x128xf32, #tpu.memory_space<vmem>>, vector<1x32xf32>
    %c1_155 = arith.constant 1 : index
    %c0_156 = arith.constant 0 : index
    %207 = vector.load %arg19[%c1_155, %c0_156] : memref<4x736xf32, #tpu.memory_space<vmem>>, vector<1x32xf32>
    tpu.vector_store %arg19[%c1_155, %c0_156], %206 {strides = array<i32>} : memref<4x736xf32, #tpu.memory_space<vmem>>, vector<1x32xf32>,
    %c1_157 = arith.constant 1 : index
    %c32_158 = arith.constant 32 : index
    %208 = vector.load %arg18[%c1_157, %c32_158] : memref<23x128xf32, #tpu.memory_space<vmem>>, vector<1x32xf32>
    %c1_159 = arith.constant 1 : index
    %c32_160 = arith.constant 32 : index
    %209 = vector.load %arg19[%c1_159, %c32_160] : memref<4x736xf32, #tpu.memory_space<vmem>>, vector<1x32xf32>
    tpu.vector_store %arg19[%c1_159, %c32_160], %208 {strides = array<i32>} : memref<4x736xf32, #tpu.memory_space<vmem>>, vector<1x32xf32>,
    %c2_161 = arith.constant 2 : index
    %c32_162 = arith.constant 32 : index
    %210 = vector.load %arg18[%c2_161, %c32_162] : memref<23x128xf32, #tpu.memory_space<vmem>>, vector<1x32xf32>
    %c1_163 = arith.constant 1 : index
    %c64_164 = arith.constant 64 : index
    %211 = vector.load %arg19[%c1_163, %c64_164] : memref<4x736xf32, #tpu.memory_space<vmem>>, vector<1x32xf32>
    tpu.vector_store %arg19[%c1_163, %c64_164], %210 {strides = array<i32>} : memref<4x736xf32, #tpu.memory_space<vmem>>, vector<1x32xf32>,
    %c3_165 = arith.constant 3 : index
    %c32_166 = arith.constant 32 : index
    %212 = vector.load %arg18[%c3_165, %c32_166] : memref<23x128xf32, #tpu.memory_space<vmem>>, vector<1x32xf32>
    %c1_167 = arith.constant 1 : index
    %c96_168 = arith.constant 96 : index
    %213 = vector.load %arg19[%c1_167, %c96_168] : memref<4x736xf32, #tpu.memory_space<vmem>>, vector<1x32xf32>
    tpu.vector_store %arg19[%c1_167, %c96_168], %212 {strides = array<i32>} : memref<4x736xf32, #tpu.memory_space<vmem>>, vector<1x32xf32>,
    %c4_169 = arith.constant 4 : index
    %c32_170 = arith.constant 32 : index
    %214 = vector.load %arg18[%c4_169, %c32_170] : memref<23x128xf32, #tpu.memory_space<vmem>>, vector<1x32xf32>
    %c1_171 = arith.constant 1 : index
    %c128_172 = arith.constant 128 : index
    %215 = vector.load %arg19[%c1_171, %c128_172] : memref<4x736xf32, #tpu.memory_space<vmem>>, vector<1x32xf32>
    tpu.vector_store %arg19[%c1_171, %c128_172], %214 {strides = array<i32>} : memref<4x736xf32, #tpu.memory_space<vmem>>, vector<1x32xf32>,
    %c5_173 = arith.constant 5 : index
    %c32_174 = arith.constant 32 : index
    %216 = vector.load %arg18[%c5_173, %c32_174] : memref<23x128xf32, #tpu.memory_space<vmem>>, vector<1x32xf32>
    %c1_175 = arith.constant 1 : index
    %c160_176 = arith.constant 160 : index
    %217 = vector.load %arg19[%c1_175, %c160_176] : memref<4x736xf32, #tpu.memory_space<vmem>>, vector<1x32xf32>
    tpu.vector_store %arg19[%c1_175, %c160_176], %216 {strides = array<i32>} : memref<4x736xf32, #tpu.memory_space<vmem>>, vector<1x32xf32>,
    %c6_177 = arith.constant 6 : index
    %c32_178 = arith.constant 32 : index
    %218 = vector.load %arg18[%c6_177, %c32_178] : memref<23x128xf32, #tpu.memory_space<vmem>>, vector<1x32xf32>
    %c1_179 = arith.constant 1 : index
    %c192_180 = arith.constant 192 : index
    %219 = vector.load %arg19[%c1_179, %c192_180] : memref<4x736xf32, #tpu.memory_space<vmem>>, vector<1x32xf32>
    tpu.vector_store %arg19[%c1_179, %c192_180], %218 {strides = array<i32>} : memref<4x736xf32, #tpu.memory_space<vmem>>, vector<1x32xf32>,
    %c7_181 = arith.constant 7 : index
    %c32_182 = arith.constant 32 : index
    %220 = vector.load %arg18[%c7_181, %c32_182] : memref<23x128xf32, #tpu.memory_space<vmem>>, vector<1x32xf32>
    %c1_183 = arith.constant 1 : index
    %c224_184 = arith.constant 224 : index
    %221 = vector.load %arg19[%c1_183, %c224_184] : memref<4x736xf32, #tpu.memory_space<vmem>>, vector<1x32xf32>
    tpu.vector_store %arg19[%c1_183, %c224_184], %220 {strides = array<i32>} : memref<4x736xf32, #tpu.memory_space<vmem>>, vector<1x32xf32>,
    %c8_185 = arith.constant 8 : index
    %c32_186 = arith.constant 32 : index
    %222 = vector.load %arg18[%c8_185, %c32_186] : memref<23x128xf32, #tpu.memory_space<vmem>>, vector<1x32xf32>
    %c1_187 = arith.constant 1 : index
    %c256_188 = arith.constant 256 : index
    %223 = vector.load %arg19[%c1_187, %c256_188] : memref<4x736xf32, #tpu.memory_space<vmem>>, vector<1x32xf32>
    tpu.vector_store %arg19[%c1_187, %c256_188], %222 {strides = array<i32>} : memref<4x736xf32, #tpu.memory_space<vmem>>, vector<1x32xf32>,
    %c9_189 = arith.constant 9 : index
    %c32_190 = arith.constant 32 : index
    %224 = vector.load %arg18[%c9_189, %c32_190] : memref<23x128xf32, #tpu.memory_space<vmem>>, vector<1x32xf32>
    %c1_191 = arith.constant 1 : index
    %c288_192 = arith.constant 288 : index
    %225 = vector.load %arg19[%c1_191, %c288_192] : memref<4x736xf32, #tpu.memory_space<vmem>>, vector<1x32xf32>
    tpu.vector_store %arg19[%c1_191, %c288_192], %224 {strides = array<i32>} : memref<4x736xf32, #tpu.memory_space<vmem>>, vector<1x32xf32>,
    %c10_193 = arith.constant 10 : index
    %c32_194 = arith.constant 32 : index
    %226 = vector.load %arg18[%c10_193, %c32_194] : memref<23x128xf32, #tpu.memory_space<vmem>>, vector<1x32xf32>
    %c1_195 = arith.constant 1 : index
    %c320_196 = arith.constant 320 : index
    %227 = vector.load %arg19[%c1_195, %c320_196] : memref<4x736xf32, #tpu.memory_space<vmem>>, vector<1x32xf32>
    tpu.vector_store %arg19[%c1_195, %c320_196], %226 {strides = array<i32>} : memref<4x736xf32, #tpu.memory_space<vmem>>, vector<1x32xf32>,
    %c11_197 = arith.constant 11 : index
    %c32_198 = arith.constant 32 : index
    %228 = vector.load %arg18[%c11_197, %c32_198] : memref<23x128xf32, #tpu.memory_space<vmem>>, vector<1x32xf32>
    %c1_199 = arith.constant 1 : index
    %c352_200 = arith.constant 352 : index
    %229 = vector.load %arg19[%c1_199, %c352_200] : memref<4x736xf32, #tpu.memory_space<vmem>>, vector<1x32xf32>
    tpu.vector_store %arg19[%c1_199, %c352_200], %228 {strides = array<i32>} : memref<4x736xf32, #tpu.memory_space<vmem>>, vector<1x32xf32>,
    %c12_201 = arith.constant 12 : index
    %c32_202 = arith.constant 32 : index
    %230 = vector.load %arg18[%c12_201, %c32_202] : memref<23x128xf32, #tpu.memory_space<vmem>>, vector<1x32xf32>
    %c1_203 = arith.constant 1 : index
    %c384_204 = arith.constant 384 : index
    %231 = vector.load %arg19[%c1_203, %c384_204] : memref<4x736xf32, #tpu.memory_space<vmem>>, vector<1x32xf32>
    tpu.vector_store %arg19[%c1_203, %c384_204], %230 {strides = array<i32>} : memref<4x736xf32, #tpu.memory_space<vmem>>, vector<1x32xf32>,
    %c13_205 = arith.constant 13 : index
    %c32_206 = arith.constant 32 : index
    %232 = vector.load %arg18[%c13_205, %c32_206] : memref<23x128xf32, #tpu.memory_space<vmem>>, vector<1x32xf32>
    %c1_207 = arith.constant 1 : index
    %c416_208 = arith.constant 416 : index
    %233 = vector.load %arg19[%c1_207, %c416_208] : memref<4x736xf32, #tpu.memory_space<vmem>>, vector<1x32xf32>
    tpu.vector_store %arg19[%c1_207, %c416_208], %232 {strides = array<i32>} : memref<4x736xf32, #tpu.memory_space<vmem>>, vector<1x32xf32>,
    %c14_209 = arith.constant 14 : index
    %c32_210 = arith.constant 32 : index
    %234 = vector.load %arg18[%c14_209, %c32_210] : memref<23x128xf32, #tpu.memory_space<vmem>>, vector<1x32xf32>
    %c1_211 = arith.constant 1 : index
    %c448_212 = arith.constant 448 : index
    %235 = vector.load %arg19[%c1_211, %c448_212] : memref<4x736xf32, #tpu.memory_space<vmem>>, vector<1x32xf32>
    tpu.vector_store %arg19[%c1_211, %c448_212], %234 {strides = array<i32>} : memref<4x736xf32, #tpu.memory_space<vmem>>, vector<1x32xf32>,
    %c15_213 = arith.constant 15 : index
    %c32_214 = arith.constant 32 : index
    %236 = vector.load %arg18[%c15_213, %c32_214] : memref<23x128xf32, #tpu.memory_space<vmem>>, vector<1x32xf32>
    %c1_215 = arith.constant 1 : index
    %c480_216 = arith.constant 480 : index
    %237 = vector.load %arg19[%c1_215, %c480_216] : memref<4x736xf32, #tpu.memory_space<vmem>>, vector<1x32xf32>
    tpu.vector_store %arg19[%c1_215, %c480_216], %236 {strides = array<i32>} : memref<4x736xf32, #tpu.memory_space<vmem>>, vector<1x32xf32>,
    %c16_217 = arith.constant 16 : index
    %c32_218 = arith.constant 32 : index
    %238 = vector.load %arg18[%c16_217, %c32_218] : memref<23x128xf32, #tpu.memory_space<vmem>>, vector<1x32xf32>
    %c1_219 = arith.constant 1 : index
    %c512_220 = arith.constant 512 : index
    %239 = vector.load %arg19[%c1_219, %c512_220] : memref<4x736xf32, #tpu.memory_space<vmem>>, vector<1x32xf32>
    tpu.vector_store %arg19[%c1_219, %c512_220], %238 {strides = array<i32>} : memref<4x736xf32, #tpu.memory_space<vmem>>, vector<1x32xf32>,
    %c17_221 = arith.constant 17 : index
    %c32_222 = arith.constant 32 : index
    %240 = vector.load %arg18[%c17_221, %c32_222] : memref<23x128xf32, #tpu.memory_space<vmem>>, vector<1x32xf32>
    %c1_223 = arith.constant 1 : index
    %c544_224 = arith.constant 544 : index
    %241 = vector.load %arg19[%c1_223, %c544_224] : memref<4x736xf32, #tpu.memory_space<vmem>>, vector<1x32xf32>
    tpu.vector_store %arg19[%c1_223, %c544_224], %240 {strides = array<i32>} : memref<4x736xf32, #tpu.memory_space<vmem>>, vector<1x32xf32>,
    %c18_225 = arith.constant 18 : index
    %c32_226 = arith.constant 32 : index
    %242 = vector.load %arg18[%c18_225, %c32_226] : memref<23x128xf32, #tpu.memory_space<vmem>>, vector<1x32xf32>
    %c1_227 = arith.constant 1 : index
    %c576_228 = arith.constant 576 : index
    %243 = vector.load %arg19[%c1_227, %c576_228] : memref<4x736xf32, #tpu.memory_space<vmem>>, vector<1x32xf32>
    tpu.vector_store %arg19[%c1_227, %c576_228], %242 {strides = array<i32>} : memref<4x736xf32, #tpu.memory_space<vmem>>, vector<1x32xf32>,
    %c19_229 = arith.constant 19 : index
    %c32_230 = arith.constant 32 : index
    %244 = vector.load %arg18[%c19_229, %c32_230] : memref<23x128xf32, #tpu.memory_space<vmem>>, vector<1x32xf32>
    %c1_231 = arith.constant 1 : index
    %c608_232 = arith.constant 608 : index
    %245 = vector.load %arg19[%c1_231, %c608_232] : memref<4x736xf32, #tpu.memory_space<vmem>>, vector<1x32xf32>
    tpu.vector_store %arg19[%c1_231, %c608_232], %244 {strides = array<i32>} : memref<4x736xf32, #tpu.memory_space<vmem>>, vector<1x32xf32>,
    %c20_233 = arith.constant 20 : index
    %c32_234 = arith.constant 32 : index
    %246 = vector.load %arg18[%c20_233, %c32_234] : memref<23x128xf32, #tpu.memory_space<vmem>>, vector<1x32xf32>
    %c1_235 = arith.constant 1 : index
    %c640_236 = arith.constant 640 : index
    %247 = vector.load %arg19[%c1_235, %c640_236] : memref<4x736xf32, #tpu.memory_space<vmem>>, vector<1x32xf32>
    tpu.vector_store %arg19[%c1_235, %c640_236], %246 {strides = array<i32>} : memref<4x736xf32, #tpu.memory_space<vmem>>, vector<1x32xf32>,
    %c21_237 = arith.constant 21 : index
    %c32_238 = arith.constant 32 : index
    %248 = vector.load %arg18[%c21_237, %c32_238] : memref<23x128xf32, #tpu.memory_space<vmem>>, vector<1x32xf32>
    %c1_239 = arith.constant 1 : index
    %c672_240 = arith.constant 672 : index
    %249 = vector.load %arg19[%c1_239, %c672_240] : memref<4x736xf32, #tpu.memory_space<vmem>>, vector<1x32xf32>
    tpu.vector_store %arg19[%c1_239, %c672_240], %248 {strides = array<i32>} : memref<4x736xf32, #tpu.memory_space<vmem>>, vector<1x32xf32>,
    %c22_241 = arith.constant 22 : index
    %c32_242 = arith.constant 32 : index
    %250 = vector.load %arg18[%c22_241, %c32_242] : memref<23x128xf32, #tpu.memory_space<vmem>>, vector<1x32xf32>
    %c1_243 = arith.constant 1 : index
    %c704_244 = arith.constant 704 : index
    %251 = vector.load %arg19[%c1_243, %c704_244] : memref<4x736xf32, #tpu.memory_space<vmem>>, vector<1x32xf32>
    tpu.vector_store %arg19[%c1_243, %c704_244], %250 {strides = array<i32>} : memref<4x736xf32, #tpu.memory_space<vmem>>, vector<1x32xf32>,
    %c0_245 = arith.constant 0 : index
    %c64_246 = arith.constant 64 : index
    %252 = vector.load %arg18[%c0_245, %c64_246] : memref<23x128xf32, #tpu.memory_space<vmem>>, vector<1x32xf32>
    %c2_247 = arith.constant 2 : index
    %c0_248 = arith.constant 0 : index
    %253 = vector.load %arg19[%c2_247, %c0_248] : memref<4x736xf32, #tpu.memory_space<vmem>>, vector<1x32xf32>
    tpu.vector_store %arg19[%c2_247, %c0_248], %252 {strides = array<i32>} : memref<4x736xf32, #tpu.memory_space<vmem>>, vector<1x32xf32>,
    %c1_249 = arith.constant 1 : index
    %c64_250 = arith.constant 64 : index
    %254 = vector.load %arg18[%c1_249, %c64_250] : memref<23x128xf32, #tpu.memory_space<vmem>>, vector<1x32xf32>
    %c2_251 = arith.constant 2 : index
    %c32_252 = arith.constant 32 : index
    %255 = vector.load %arg19[%c2_251, %c32_252] : memref<4x736xf32, #tpu.memory_space<vmem>>, vector<1x32xf32>
    tpu.vector_store %arg19[%c2_251, %c32_252], %254 {strides = array<i32>} : memref<4x736xf32, #tpu.memory_space<vmem>>, vector<1x32xf32>,
    %c2_253 = arith.constant 2 : index
    %c64_254 = arith.constant 64 : index
    %256 = vector.load %arg18[%c2_253, %c64_254] : memref<23x128xf32, #tpu.memory_space<vmem>>, vector<1x32xf32>
    %c2_255 = arith.constant 2 : index
    %c64_256 = arith.constant 64 : index
    %257 = vector.load %arg19[%c2_255, %c64_256] : memref<4x736xf32, #tpu.memory_space<vmem>>, vector<1x32xf32>
    tpu.vector_store %arg19[%c2_255, %c64_256], %256 {strides = array<i32>} : memref<4x736xf32, #tpu.memory_space<vmem>>, vector<1x32xf32>,
    %c3_257 = arith.constant 3 : index
    %c64_258 = arith.constant 64 : index
    %258 = vector.load %arg18[%c3_257, %c64_258] : memref<23x128xf32, #tpu.memory_space<vmem>>, vector<1x32xf32>
    %c2_259 = arith.constant 2 : index
    %c96_260 = arith.constant 96 : index
    %259 = vector.load %arg19[%c2_259, %c96_260] : memref<4x736xf32, #tpu.memory_space<vmem>>, vector<1x32xf32>
    tpu.vector_store %arg19[%c2_259, %c96_260], %258 {strides = array<i32>} : memref<4x736xf32, #tpu.memory_space<vmem>>, vector<1x32xf32>,
    %c4_261 = arith.constant 4 : index
    %c64_262 = arith.constant 64 : index
    %260 = vector.load %arg18[%c4_261, %c64_262] : memref<23x128xf32, #tpu.memory_space<vmem>>, vector<1x32xf32>
    %c2_263 = arith.constant 2 : index
    %c128_264 = arith.constant 128 : index
    %261 = vector.load %arg19[%c2_263, %c128_264] : memref<4x736xf32, #tpu.memory_space<vmem>>, vector<1x32xf32>
    tpu.vector_store %arg19[%c2_263, %c128_264], %260 {strides = array<i32>} : memref<4x736xf32, #tpu.memory_space<vmem>>, vector<1x32xf32>,
    %c5_265 = arith.constant 5 : index
    %c64_266 = arith.constant 64 : index
    %262 = vector.load %arg18[%c5_265, %c64_266] : memref<23x128xf32, #tpu.memory_space<vmem>>, vector<1x32xf32>
    %c2_267 = arith.constant 2 : index
    %c160_268 = arith.constant 160 : index
    %263 = vector.load %arg19[%c2_267, %c160_268] : memref<4x736xf32, #tpu.memory_space<vmem>>, vector<1x32xf32>
    tpu.vector_store %arg19[%c2_267, %c160_268], %262 {strides = array<i32>} : memref<4x736xf32, #tpu.memory_space<vmem>>, vector<1x32xf32>,
    %c6_269 = arith.constant 6 : index
    %c64_270 = arith.constant 64 : index
    %264 = vector.load %arg18[%c6_269, %c64_270] : memref<23x128xf32, #tpu.memory_space<vmem>>, vector<1x32xf32>
    %c2_271 = arith.constant 2 : index
    %c192_272 = arith.constant 192 : index
    %265 = vector.load %arg19[%c2_271, %c192_272] : memref<4x736xf32, #tpu.memory_space<vmem>>, vector<1x32xf32>
    tpu.vector_store %arg19[%c2_271, %c192_272], %264 {strides = array<i32>} : memref<4x736xf32, #tpu.memory_space<vmem>>, vector<1x32xf32>,
    %c7_273 = arith.constant 7 : index
    %c64_274 = arith.constant 64 : index
    %266 = vector.load %arg18[%c7_273, %c64_274] : memref<23x128xf32, #tpu.memory_space<vmem>>, vector<1x32xf32>
    %c2_275 = arith.constant 2 : index
    %c224_276 = arith.constant 224 : index
    %267 = vector.load %arg19[%c2_275, %c224_276] : memref<4x736xf32, #tpu.memory_space<vmem>>, vector<1x32xf32>
    tpu.vector_store %arg19[%c2_275, %c224_276], %266 {strides = array<i32>} : memref<4x736xf32, #tpu.memory_space<vmem>>, vector<1x32xf32>,
    %c8_277 = arith.constant 8 : index
    %c64_278 = arith.constant 64 : index
    %268 = vector.load %arg18[%c8_277, %c64_278] : memref<23x128xf32, #tpu.memory_space<vmem>>, vector<1x32xf32>
    %c2_279 = arith.constant 2 : index
    %c256_280 = arith.constant 256 : index
    %269 = vector.load %arg19[%c2_279, %c256_280] : memref<4x736xf32, #tpu.memory_space<vmem>>, vector<1x32xf32>
    tpu.vector_store %arg19[%c2_279, %c256_280], %268 {strides = array<i32>} : memref<4x736xf32, #tpu.memory_space<vmem>>, vector<1x32xf32>,
    %c9_281 = arith.constant 9 : index
    %c64_282 = arith.constant 64 : index
    %270 = vector.load %arg18[%c9_281, %c64_282] : memref<23x128xf32, #tpu.memory_space<vmem>>, vector<1x32xf32>
    %c2_283 = arith.constant 2 : index
    %c288_284 = arith.constant 288 : index
    %271 = vector.load %arg19[%c2_283, %c288_284] : memref<4x736xf32, #tpu.memory_space<vmem>>, vector<1x32xf32>
    tpu.vector_store %arg19[%c2_283, %c288_284], %270 {strides = array<i32>} : memref<4x736xf32, #tpu.memory_space<vmem>>, vector<1x32xf32>,
    %c10_285 = arith.constant 10 : index
    %c64_286 = arith.constant 64 : index
    %272 = vector.load %arg18[%c10_285, %c64_286] : memref<23x128xf32, #tpu.memory_space<vmem>>, vector<1x32xf32>
    %c2_287 = arith.constant 2 : index
    %c320_288 = arith.constant 320 : index
    %273 = vector.load %arg19[%c2_287, %c320_288] : memref<4x736xf32, #tpu.memory_space<vmem>>, vector<1x32xf32>
    tpu.vector_store %arg19[%c2_287, %c320_288], %272 {strides = array<i32>} : memref<4x736xf32, #tpu.memory_space<vmem>>, vector<1x32xf32>,
    %c11_289 = arith.constant 11 : index
    %c64_290 = arith.constant 64 : index
    %274 = vector.load %arg18[%c11_289, %c64_290] : memref<23x128xf32, #tpu.memory_space<vmem>>, vector<1x32xf32>
    %c2_291 = arith.constant 2 : index
    %c352_292 = arith.constant 352 : index
    %275 = vector.load %arg19[%c2_291, %c352_292] : memref<4x736xf32, #tpu.memory_space<vmem>>, vector<1x32xf32>
    tpu.vector_store %arg19[%c2_291, %c352_292], %274 {strides = array<i32>} : memref<4x736xf32, #tpu.memory_space<vmem>>, vector<1x32xf32>,
    %c12_293 = arith.constant 12 : index
    %c64_294 = arith.constant 64 : index
    %276 = vector.load %arg18[%c12_293, %c64_294] : memref<23x128xf32, #tpu.memory_space<vmem>>, vector<1x32xf32>
    %c2_295 = arith.constant 2 : index
    %c384_296 = arith.constant 384 : index
    %277 = vector.load %arg19[%c2_295, %c384_296] : memref<4x736xf32, #tpu.memory_space<vmem>>, vector<1x32xf32>
    tpu.vector_store %arg19[%c2_295, %c384_296], %276 {strides = array<i32>} : memref<4x736xf32, #tpu.memory_space<vmem>>, vector<1x32xf32>,
    %c13_297 = arith.constant 13 : index
    %c64_298 = arith.constant 64 : index
    %278 = vector.load %arg18[%c13_297, %c64_298] : memref<23x128xf32, #tpu.memory_space<vmem>>, vector<1x32xf32>
    %c2_299 = arith.constant 2 : index
    %c416_300 = arith.constant 416 : index
    %279 = vector.load %arg19[%c2_299, %c416_300] : memref<4x736xf32, #tpu.memory_space<vmem>>, vector<1x32xf32>
    tpu.vector_store %arg19[%c2_299, %c416_300], %278 {strides = array<i32>} : memref<4x736xf32, #tpu.memory_space<vmem>>, vector<1x32xf32>,
    %c14_301 = arith.constant 14 : index
    %c64_302 = arith.constant 64 : index
    %280 = vector.load %arg18[%c14_301, %c64_302] : memref<23x128xf32, #tpu.memory_space<vmem>>, vector<1x32xf32>
    %c2_303 = arith.constant 2 : index
    %c448_304 = arith.constant 448 : index
    %281 = vector.load %arg19[%c2_303, %c448_304] : memref<4x736xf32, #tpu.memory_space<vmem>>, vector<1x32xf32>
    tpu.vector_store %arg19[%c2_303, %c448_304], %280 {strides = array<i32>} : memref<4x736xf32, #tpu.memory_space<vmem>>, vector<1x32xf32>,
    %c15_305 = arith.constant 15 : index
    %c64_306 = arith.constant 64 : index
    %282 = vector.load %arg18[%c15_305, %c64_306] : memref<23x128xf32, #tpu.memory_space<vmem>>, vector<1x32xf32>
    %c2_307 = arith.constant 2 : index
    %c480_308 = arith.constant 480 : index
    %283 = vector.load %arg19[%c2_307, %c480_308] : memref<4x736xf32, #tpu.memory_space<vmem>>, vector<1x32xf32>
    tpu.vector_store %arg19[%c2_307, %c480_308], %282 {strides = array<i32>} : memref<4x736xf32, #tpu.memory_space<vmem>>, vector<1x32xf32>,
    %c16_309 = arith.constant 16 : index
    %c64_310 = arith.constant 64 : index
    %284 = vector.load %arg18[%c16_309, %c64_310] : memref<23x128xf32, #tpu.memory_space<vmem>>, vector<1x32xf32>
    %c2_311 = arith.constant 2 : index
    %c512_312 = arith.constant 512 : index
    %285 = vector.load %arg19[%c2_311, %c512_312] : memref<4x736xf32, #tpu.memory_space<vmem>>, vector<1x32xf32>
    tpu.vector_store %arg19[%c2_311, %c512_312], %284 {strides = array<i32>} : memref<4x736xf32, #tpu.memory_space<vmem>>, vector<1x32xf32>,
    %c17_313 = arith.constant 17 : index
    %c64_314 = arith.constant 64 : index
    %286 = vector.load %arg18[%c17_313, %c64_314] : memref<23x128xf32, #tpu.memory_space<vmem>>, vector<1x32xf32>
    %c2_315 = arith.constant 2 : index
    %c544_316 = arith.constant 544 : index
    %287 = vector.load %arg19[%c2_315, %c544_316] : memref<4x736xf32, #tpu.memory_space<vmem>>, vector<1x32xf32>
    tpu.vector_store %arg19[%c2_315, %c544_316], %286 {strides = array<i32>} : memref<4x736xf32, #tpu.memory_space<vmem>>, vector<1x32xf32>,
    %c18_317 = arith.constant 18 : index
    %c64_318 = arith.constant 64 : index
    %288 = vector.load %arg18[%c18_317, %c64_318] : memref<23x128xf32, #tpu.memory_space<vmem>>, vector<1x32xf32>
    %c2_319 = arith.constant 2 : index
    %c576_320 = arith.constant 576 : index
    %289 = vector.load %arg19[%c2_319, %c576_320] : memref<4x736xf32, #tpu.memory_space<vmem>>, vector<1x32xf32>
    tpu.vector_store %arg19[%c2_319, %c576_320], %288 {strides = array<i32>} : memref<4x736xf32, #tpu.memory_space<vmem>>, vector<1x32xf32>,
    %c19_321 = arith.constant 19 : index
    %c64_322 = arith.constant 64 : index
    %290 = vector.load %arg18[%c19_321, %c64_322] : memref<23x128xf32, #tpu.memory_space<vmem>>, vector<1x32xf32>
    %c2_323 = arith.constant 2 : index
    %c608_324 = arith.constant 608 : index
    %291 = vector.load %arg19[%c2_323, %c608_324] : memref<4x736xf32, #tpu.memory_space<vmem>>, vector<1x32xf32>
    tpu.vector_store %arg19[%c2_323, %c608_324], %290 {strides = array<i32>} : memref<4x736xf32, #tpu.memory_space<vmem>>, vector<1x32xf32>,
    %c20_325 = arith.constant 20 : index
    %c64_326 = arith.constant 64 : index
    %292 = vector.load %arg18[%c20_325, %c64_326] : memref<23x128xf32, #tpu.memory_space<vmem>>, vector<1x32xf32>
    %c2_327 = arith.constant 2 : index
    %c640_328 = arith.constant 640 : index
    %293 = vector.load %arg19[%c2_327, %c640_328] : memref<4x736xf32, #tpu.memory_space<vmem>>, vector<1x32xf32>
    tpu.vector_store %arg19[%c2_327, %c640_328], %292 {strides = array<i32>} : memref<4x736xf32, #tpu.memory_space<vmem>>, vector<1x32xf32>,
    %c21_329 = arith.constant 21 : index
    %c64_330 = arith.constant 64 : index
    %294 = vector.load %arg18[%c21_329, %c64_330] : memref<23x128xf32, #tpu.memory_space<vmem>>, vector<1x32xf32>
    %c2_331 = arith.constant 2 : index
    %c672_332 = arith.constant 672 : index
    %295 = vector.load %arg19[%c2_331, %c672_332] : memref<4x736xf32, #tpu.memory_space<vmem>>, vector<1x32xf32>
    tpu.vector_store %arg19[%c2_331, %c672_332], %294 {strides = array<i32>} : memref<4x736xf32, #tpu.memory_space<vmem>>, vector<1x32xf32>,
    %c22_333 = arith.constant 22 : index
    %c64_334 = arith.constant 64 : index
    %296 = vector.load %arg18[%c22_333, %c64_334] : memref<23x128xf32, #tpu.memory_space<vmem>>, vector<1x32xf32>
    %c2_335 = arith.constant 2 : index
    %c704_336 = arith.constant 704 : index
    %297 = vector.load %arg19[%c2_335, %c704_336] : memref<4x736xf32, #tpu.memory_space<vmem>>, vector<1x32xf32>
    tpu.vector_store %arg19[%c2_335, %c704_336], %296 {strides = array<i32>} : memref<4x736xf32, #tpu.memory_space<vmem>>, vector<1x32xf32>,
    %c0_337 = arith.constant 0 : index
    %c96_338 = arith.constant 96 : index
    %298 = vector.load %arg18[%c0_337, %c96_338] : memref<23x128xf32, #tpu.memory_space<vmem>>, vector<1x32xf32>
    %c3_339 = arith.constant 3 : index
    %c0_340 = arith.constant 0 : index
    %299 = vector.load %arg19[%c3_339, %c0_340] : memref<4x736xf32, #tpu.memory_space<vmem>>, vector<1x32xf32>
    tpu.vector_store %arg19[%c3_339, %c0_340], %298 {strides = array<i32>} : memref<4x736xf32, #tpu.memory_space<vmem>>, vector<1x32xf32>,
    %c1_341 = arith.constant 1 : index
    %c96_342 = arith.constant 96 : index
    %300 = vector.load %arg18[%c1_341, %c96_342] : memref<23x128xf32, #tpu.memory_space<vmem>>, vector<1x32xf32>
    %c3_343 = arith.constant 3 : index
    %c32_344 = arith.constant 32 : index
    %301 = vector.load %arg19[%c3_343, %c32_344] : memref<4x736xf32, #tpu.memory_space<vmem>>, vector<1x32xf32>
    tpu.vector_store %arg19[%c3_343, %c32_344], %300 {strides = array<i32>} : memref<4x736xf32, #tpu.memory_space<vmem>>, vector<1x32xf32>,
    %c2_345 = arith.constant 2 : index
    %c96_346 = arith.constant 96 : index
    %302 = vector.load %arg18[%c2_345, %c96_346] : memref<23x128xf32, #tpu.memory_space<vmem>>, vector<1x32xf32>
    %c3_347 = arith.constant 3 : index
    %c64_348 = arith.constant 64 : index
    %303 = vector.load %arg19[%c3_347, %c64_348] : memref<4x736xf32, #tpu.memory_space<vmem>>, vector<1x32xf32>
    tpu.vector_store %arg19[%c3_347, %c64_348], %302 {strides = array<i32>} : memref<4x736xf32, #tpu.memory_space<vmem>>, vector<1x32xf32>,
    %c3_349 = arith.constant 3 : index
    %c96_350 = arith.constant 96 : index
    %304 = vector.load %arg18[%c3_349, %c96_350] : memref<23x128xf32, #tpu.memory_space<vmem>>, vector<1x32xf32>
    %c3_351 = arith.constant 3 : index
    %c96_352 = arith.constant 96 : index
    %305 = vector.load %arg19[%c3_351, %c96_352] : memref<4x736xf32, #tpu.memory_space<vmem>>, vector<1x32xf32>
    tpu.vector_store %arg19[%c3_351, %c96_352], %304 {strides = array<i32>} : memref<4x736xf32, #tpu.memory_space<vmem>>, vector<1x32xf32>,
    %c4_353 = arith.constant 4 : index
    %c96_354 = arith.constant 96 : index
    %306 = vector.load %arg18[%c4_353, %c96_354] : memref<23x128xf32, #tpu.memory_space<vmem>>, vector<1x32xf32>
    %c3_355 = arith.constant 3 : index
    %c128_356 = arith.constant 128 : index
    %307 = vector.load %arg19[%c3_355, %c128_356] : memref<4x736xf32, #tpu.memory_space<vmem>>, vector<1x32xf32>
    tpu.vector_store %arg19[%c3_355, %c128_356], %306 {strides = array<i32>} : memref<4x736xf32, #tpu.memory_space<vmem>>, vector<1x32xf32>,
    %c5_357 = arith.constant 5 : index
    %c96_358 = arith.constant 96 : index
    %308 = vector.load %arg18[%c5_357, %c96_358] : memref<23x128xf32, #tpu.memory_space<vmem>>, vector<1x32xf32>
    %c3_359 = arith.constant 3 : index
    %c160_360 = arith.constant 160 : index
    %309 = vector.load %arg19[%c3_359, %c160_360] : memref<4x736xf32, #tpu.memory_space<vmem>>, vector<1x32xf32>
    tpu.vector_store %arg19[%c3_359, %c160_360], %308 {strides = array<i32>} : memref<4x736xf32, #tpu.memory_space<vmem>>, vector<1x32xf32>,
    %c6_361 = arith.constant 6 : index
    %c96_362 = arith.constant 96 : index
    %310 = vector.load %arg18[%c6_361, %c96_362] : memref<23x128xf32, #tpu.memory_space<vmem>>, vector<1x32xf32>
    %c3_363 = arith.constant 3 : index
    %c192_364 = arith.constant 192 : index
    %311 = vector.load %arg19[%c3_363, %c192_364] : memref<4x736xf32, #tpu.memory_space<vmem>>, vector<1x32xf32>
    tpu.vector_store %arg19[%c3_363, %c192_364], %310 {strides = array<i32>} : memref<4x736xf32, #tpu.memory_space<vmem>>, vector<1x32xf32>,
    %c7_365 = arith.constant 7 : index
    %c96_366 = arith.constant 96 : index
    %312 = vector.load %arg18[%c7_365, %c96_366] : memref<23x128xf32, #tpu.memory_space<vmem>>, vector<1x32xf32>
    %c3_367 = arith.constant 3 : index
    %c224_368 = arith.constant 224 : index
    %313 = vector.load %arg19[%c3_367, %c224_368] : memref<4x736xf32, #tpu.memory_space<vmem>>, vector<1x32xf32>
    tpu.vector_store %arg19[%c3_367, %c224_368], %312 {strides = array<i32>} : memref<4x736xf32, #tpu.memory_space<vmem>>, vector<1x32xf32>,
    %c8_369 = arith.constant 8 : index
    %c96_370 = arith.constant 96 : index
    %314 = vector.load %arg18[%c8_369, %c96_370] : memref<23x128xf32, #tpu.memory_space<vmem>>, vector<1x32xf32>
    %c3_371 = arith.constant 3 : index
    %c256_372 = arith.constant 256 : index
    %315 = vector.load %arg19[%c3_371, %c256_372] : memref<4x736xf32, #tpu.memory_space<vmem>>, vector<1x32xf32>
    tpu.vector_store %arg19[%c3_371, %c256_372], %314 {strides = array<i32>} : memref<4x736xf32, #tpu.memory_space<vmem>>, vector<1x32xf32>,
    %c9_373 = arith.constant 9 : index
    %c96_374 = arith.constant 96 : index
    %316 = vector.load %arg18[%c9_373, %c96_374] : memref<23x128xf32, #tpu.memory_space<vmem>>, vector<1x32xf32>
    %c3_375 = arith.constant 3 : index
    %c288_376 = arith.constant 288 : index
    %317 = vector.load %arg19[%c3_375, %c288_376] : memref<4x736xf32, #tpu.memory_space<vmem>>, vector<1x32xf32>
    tpu.vector_store %arg19[%c3_375, %c288_376], %316 {strides = array<i32>} : memref<4x736xf32, #tpu.memory_space<vmem>>, vector<1x32xf32>,
    %c10_377 = arith.constant 10 : index
    %c96_378 = arith.constant 96 : index
    %318 = vector.load %arg18[%c10_377, %c96_378] : memref<23x128xf32, #tpu.memory_space<vmem>>, vector<1x32xf32>
    %c3_379 = arith.constant 3 : index
    %c320_380 = arith.constant 320 : index
    %319 = vector.load %arg19[%c3_379, %c320_380] : memref<4x736xf32, #tpu.memory_space<vmem>>, vector<1x32xf32>
    tpu.vector_store %arg19[%c3_379, %c320_380], %318 {strides = array<i32>} : memref<4x736xf32, #tpu.memory_space<vmem>>, vector<1x32xf32>,
    %c11_381 = arith.constant 11 : index
    %c96_382 = arith.constant 96 : index
    %320 = vector.load %arg18[%c11_381, %c96_382] : memref<23x128xf32, #tpu.memory_space<vmem>>, vector<1x32xf32>
    %c3_383 = arith.constant 3 : index
    %c352_384 = arith.constant 352 : index
    %321 = vector.load %arg19[%c3_383, %c352_384] : memref<4x736xf32, #tpu.memory_space<vmem>>, vector<1x32xf32>
    tpu.vector_store %arg19[%c3_383, %c352_384], %320 {strides = array<i32>} : memref<4x736xf32, #tpu.memory_space<vmem>>, vector<1x32xf32>,
    %c12_385 = arith.constant 12 : index
    %c96_386 = arith.constant 96 : index
    %322 = vector.load %arg18[%c12_385, %c96_386] : memref<23x128xf32, #tpu.memory_space<vmem>>, vector<1x32xf32>
    %c3_387 = arith.constant 3 : index
    %c384_388 = arith.constant 384 : index
    %323 = vector.load %arg19[%c3_387, %c384_388] : memref<4x736xf32, #tpu.memory_space<vmem>>, vector<1x32xf32>
    tpu.vector_store %arg19[%c3_387, %c384_388], %322 {strides = array<i32>} : memref<4x736xf32, #tpu.memory_space<vmem>>, vector<1x32xf32>,
    %c13_389 = arith.constant 13 : index
    %c96_390 = arith.constant 96 : index
    %324 = vector.load %arg18[%c13_389, %c96_390] : memref<23x128xf32, #tpu.memory_space<vmem>>, vector<1x32xf32>
    %c3_391 = arith.constant 3 : index
    %c416_392 = arith.constant 416 : index
    %325 = vector.load %arg19[%c3_391, %c416_392] : memref<4x736xf32, #tpu.memory_space<vmem>>, vector<1x32xf32>
    tpu.vector_store %arg19[%c3_391, %c416_392], %324 {strides = array<i32>} : memref<4x736xf32, #tpu.memory_space<vmem>>, vector<1x32xf32>,
    %c14_393 = arith.constant 14 : index
    %c96_394 = arith.constant 96 : index
    %326 = vector.load %arg18[%c14_393, %c96_394] : memref<23x128xf32, #tpu.memory_space<vmem>>, vector<1x32xf32>
    %c3_395 = arith.constant 3 : index
    %c448_396 = arith.constant 448 : index
    %327 = vector.load %arg19[%c3_395, %c448_396] : memref<4x736xf32, #tpu.memory_space<vmem>>, vector<1x32xf32>
    tpu.vector_store %arg19[%c3_395, %c448_396], %326 {strides = array<i32>} : memref<4x736xf32, #tpu.memory_space<vmem>>, vector<1x32xf32>,
    %c15_397 = arith.constant 15 : index
    %c96_398 = arith.constant 96 : index
    %328 = vector.load %arg18[%c15_397, %c96_398] : memref<23x128xf32, #tpu.memory_space<vmem>>, vector<1x32xf32>
    %c3_399 = arith.constant 3 : index
    %c480_400 = arith.constant 480 : index
    %329 = vector.load %arg19[%c3_399, %c480_400] : memref<4x736xf32, #tpu.memory_space<vmem>>, vector<1x32xf32>
    tpu.vector_store %arg19[%c3_399, %c480_400], %328 {strides = array<i32>} : memref<4x736xf32, #tpu.memory_space<vmem>>, vector<1x32xf32>,
    %c16_401 = arith.constant 16 : index
    %c96_402 = arith.constant 96 : index
    %330 = vector.load %arg18[%c16_401, %c96_402] : memref<23x128xf32, #tpu.memory_space<vmem>>, vector<1x32xf32>
    %c3_403 = arith.constant 3 : index
    %c512_404 = arith.constant 512 : index
    %331 = vector.load %arg19[%c3_403, %c512_404] : memref<4x736xf32, #tpu.memory_space<vmem>>, vector<1x32xf32>
    tpu.vector_store %arg19[%c3_403, %c512_404], %330 {strides = array<i32>} : memref<4x736xf32, #tpu.memory_space<vmem>>, vector<1x32xf32>,
    %c17_405 = arith.constant 17 : index
    %c96_406 = arith.constant 96 : index
    %332 = vector.load %arg18[%c17_405, %c96_406] : memref<23x128xf32, #tpu.memory_space<vmem>>, vector<1x32xf32>
    %c3_407 = arith.constant 3 : index
    %c544_408 = arith.constant 544 : index
    %333 = vector.load %arg19[%c3_407, %c544_408] : memref<4x736xf32, #tpu.memory_space<vmem>>, vector<1x32xf32>
    tpu.vector_store %arg19[%c3_407, %c544_408], %332 {strides = array<i32>} : memref<4x736xf32, #tpu.memory_space<vmem>>, vector<1x32xf32>,
    %c18_409 = arith.constant 18 : index
    %c96_410 = arith.constant 96 : index
    %334 = vector.load %arg18[%c18_409, %c96_410] : memref<23x128xf32, #tpu.memory_space<vmem>>, vector<1x32xf32>
    %c3_411 = arith.constant 3 : index
    %c576_412 = arith.constant 576 : index
    %335 = vector.load %arg19[%c3_411, %c576_412] : memref<4x736xf32, #tpu.memory_space<vmem>>, vector<1x32xf32>
    tpu.vector_store %arg19[%c3_411, %c576_412], %334 {strides = array<i32>} : memref<4x736xf32, #tpu.memory_space<vmem>>, vector<1x32xf32>,
    %c19_413 = arith.constant 19 : index
    %c96_414 = arith.constant 96 : index
    %336 = vector.load %arg18[%c19_413, %c96_414] : memref<23x128xf32, #tpu.memory_space<vmem>>, vector<1x32xf32>
    %c3_415 = arith.constant 3 : index
    %c608_416 = arith.constant 608 : index
    %337 = vector.load %arg19[%c3_415, %c608_416] : memref<4x736xf32, #tpu.memory_space<vmem>>, vector<1x32xf32>
    tpu.vector_store %arg19[%c3_415, %c608_416], %336 {strides = array<i32>} : memref<4x736xf32, #tpu.memory_space<vmem>>, vector<1x32xf32>,
    %c20_417 = arith.constant 20 : index
    %c96_418 = arith.constant 96 : index
    %338 = vector.load %arg18[%c20_417, %c96_418] : memref<23x128xf32, #tpu.memory_space<vmem>>, vector<1x32xf32>
    %c3_419 = arith.constant 3 : index
    %c640_420 = arith.constant 640 : index
    %339 = vector.load %arg19[%c3_419, %c640_420] : memref<4x736xf32, #tpu.memory_space<vmem>>, vector<1x32xf32>
    tpu.vector_store %arg19[%c3_419, %c640_420], %338 {strides = array<i32>} : memref<4x736xf32, #tpu.memory_space<vmem>>, vector<1x32xf32>,
    %c21_421 = arith.constant 21 : index
    %c96_422 = arith.constant 96 : index
    %340 = vector.load %arg18[%c21_421, %c96_422] : memref<23x128xf32, #tpu.memory_space<vmem>>, vector<1x32xf32>
    %c3_423 = arith.constant 3 : index
    %c672_424 = arith.constant 672 : index
    %341 = vector.load %arg19[%c3_423, %c672_424] : memref<4x736xf32, #tpu.memory_space<vmem>>, vector<1x32xf32>
    tpu.vector_store %arg19[%c3_423, %c672_424], %340 {strides = array<i32>} : memref<4x736xf32, #tpu.memory_space<vmem>>, vector<1x32xf32>,
    %c22_425 = arith.constant 22 : index
    %c96_426 = arith.constant 96 : index
    %342 = vector.load %arg18[%c22_425, %c96_426] : memref<23x128xf32, #tpu.memory_space<vmem>>, vector<1x32xf32>
    %c3_427 = arith.constant 3 : index
    %c704_428 = arith.constant 704 : index
    %343 = vector.load %arg19[%c3_427, %c704_428] : memref<4x736xf32, #tpu.memory_space<vmem>>, vector<1x32xf32>
    tpu.vector_store %arg19[%c3_427, %c704_428], %342 {strides = array<i32>} : memref<4x736xf32, #tpu.memory_space<vmem>>, vector<1x32xf32>,
    %c0_429 = arith.constant 0 : index
    %c0_430 = arith.constant 0 : index
    %344 = vector.load %arg19[%c0_429, %c0_430] : memref<4x736xf32, #tpu.memory_space<vmem>>, vector<4x736xf32>
    %c0_431 = arith.constant 0 : index
    %c0_432 = arith.constant 0 : index
    %345 = vector.load %arg9[%c0_431, %c0_432] : memref<736x500xf32, #tpu.memory_space<vmem>>, vector<736x500xf32>
    %cst_433 = arith.constant dense<0.000000e+00> : vector<4x500xf32>
    %346 = tpu.matmul %344, %345, %cst_433 {dimension_numbers = #tpu.dot_dimension_numbers<[1], [0], [0], [1], [0, 0, 1, 1], [], []>} : vector<4x736xf32>, vector<736x500xf32>, vector<4x500xf32> -> vector<4x500xf32>
    %c0_434 = arith.constant 0 : index
    %c0_435 = arith.constant 0 : index
    %347 = vector.load %arg10[%c0_434, %c0_435] : memref<1x500xf32, #tpu.memory_space<vmem>>, vector<1x500xf32>
    %348 = vector.broadcast %347 : vector<1x500xf32> to vector<4x500xf32>
    %349 = arith.addf %346, %348 : vector<4x500xf32>
    %cst_436 = arith.constant 0.000000e+00 : f32
    %350 = vector.broadcast %cst_436 : f32 to vector<4x500xf32>
    %351 = arith.maximumf %349, %350 : vector<4x500xf32>
    %c0_437 = arith.constant 0 : index
    %c0_438 = arith.constant 0 : index
    %352 = vector.load %arg11[%c0_437, %c0_438] : memref<500x200xf32, #tpu.memory_space<vmem>>, vector<500x200xf32>
    %cst_439 = arith.constant dense<0.000000e+00> : vector<4x200xf32>
    %353 = tpu.matmul %351, %352, %cst_439 {dimension_numbers = #tpu.dot_dimension_numbers<[1], [0], [0], [1], [0, 0, 1, 1], [], []>} : vector<4x500xf32>, vector<500x200xf32>, vector<4x200xf32> -> vector<4x200xf32>
    %c0_440 = arith.constant 0 : index
    %c0_441 = arith.constant 0 : index
    %354 = vector.load %arg12[%c0_440, %c0_441] : memref<1x200xf32, #tpu.memory_space<vmem>>, vector<1x200xf32>
    %355 = vector.broadcast %354 : vector<1x200xf32> to vector<4x200xf32>
    %356 = arith.addf %353, %355 : vector<4x200xf32>
    %cst_442 = arith.constant 0.000000e+00 : f32
    %357 = vector.broadcast %cst_442 : f32 to vector<4x200xf32>
    %358 = arith.maximumf %356, %357 : vector<4x200xf32>
    %c0_443 = arith.constant 0 : index
    %c0_444 = arith.constant 0 : index
    %359 = vector.load %arg13[%c0_443, %c0_444] : memref<200x1xf32, #tpu.memory_space<vmem>>, vector<200x1xf32>
    %cst_445 = arith.constant dense<0.000000e+00> : vector<4x1xf32>
    %360 = tpu.matmul %358, %359, %cst_445 {dimension_numbers = #tpu.dot_dimension_numbers<[1], [0], [0], [1], [0, 0, 1, 1], [], []>} : vector<4x200xf32>, vector<200x1xf32>, vector<4x1xf32> -> vector<4x1xf32>
    %c0_446 = arith.constant 0 : index
    %c0_447 = arith.constant 0 : index
    %361 = vector.load %arg14[%c0_446, %c0_447] : memref<1x1xf32, #tpu.memory_space<vmem>>, vector<1x1xf32>
    %362 = vector.broadcast %361 : vector<1x1xf32> to vector<4x1xf32>
    %363 = arith.addf %360, %362 : vector<4x1xf32>
    %cst_448 = arith.constant 0.000000e+00 : f32
    %364 = vector.broadcast %cst_448 : f32 to vector<4x1xf32>
    %365 = arith.subf %364, %363 : vector<4x1xf32>
    %366 = math.exp %365 : vector<4x1xf32>
    %cst_449 = arith.constant 1.000000e+00 : f32
    %367 = vector.broadcast %cst_449 : f32 to vector<4x1xf32>
    %368 = arith.addf %367, %366 : vector<4x1xf32>
    %cst_450 = arith.constant 1.000000e+00 : f32
    %369 = vector.broadcast %cst_450 : f32 to vector<4x1xf32>
    %370 = arith.divf %369, %368 : vector<4x1xf32>
    %c0_451 = arith.constant 0 : index
    %c0_452 = arith.constant 0 : index
    %371 = vector.load %arg15[%c0_451, %c0_452] : memref<4x1xf32, #tpu.memory_space<vmem>>, vector<4x1xf32>
    tpu.vector_store %arg15[%c0_451, %c0_452], %370 {strides = array<i32>} : memref<4x1xf32, #tpu.memory_space<vmem>>, vector<4x1xf32>,
    return
  }
}

</mosaic_0001>

<llo_original>
// kernel: tpu_custom_call.1
$region0: #{tpu_custom_call.1}
  #allocation0 [shape = 'u32[]', space=smem, size = 0x4, offset = 0x4, fixed_abs, tag = 'smem constant byte address 0x4 - core index']
  #allocation1 [shape = 'u32[72,128]{1,0:T(1,128)}', space=vmem, size = 0x9000, scoped, tag = 'internal scratch']
  #allocation2 [shape = 'f32[598,128]{1,0:T(8,128)}', space=vmem, size = 0x4b000, scoped, tag = 'scratch operand']
  #allocation3 [shape = 'f32[121,128]{1,0:T(8,128)}', space=vmem, size = 0x10000, scoped, tag = 'scratch operand']
  #allocation4 [shape = 'f32[23,128]{1,0:T(8,128)}', space=vmem, size = 0x3000, scoped, tag = 'scratch operand']
  #allocation5 [shape = 'f32[4,736]{1,0:T(4,128)}', space=vmem, size = 0x3000, scoped, tag = 'scratch operand']
  #allocation6 [shape = 'f32[1,1]{1,0:T(1,128)S(1)}', space=vmem, size = 0x200, scoped, tag = 'scoped memory for tpu_custom_call.1']
  %s0 = inlined_call_operand.hbm [shape: f32[602,128], index: 0, kind: input, shape index: {}]
  %s1 = inlined_call_operand.hbm [shape: f32[5,128], index: 1, kind: input, shape index: {}]
  %s2 = inlined_call_operand.hbm [shape: f32[1,128], index: 2, kind: input, shape index: {}]
  %s3 = inlined_call_operand.hbm [shape: f32[1,128], index: 3, kind: input, shape index: {}]
  %s4 = inlined_call_operand.hbm [shape: f32[1,128], index: 4, kind: input, shape index: {}]
  %s5 = inlined_call_operand.hbm [shape: f32[5,128,128], index: 5, kind: input, shape index: {}]
  %s6 = inlined_call_operand.hbm [shape: f32[1,128], index: 6, kind: input, shape index: {}]
  %s7 = inlined_call_operand.hbm [shape: f32[1,128], index: 7, kind: input, shape index: {}]
  %s8 = inlined_call_operand.hbm [shape: f32[1,128], index: 8, kind: input, shape index: {}]
  %s9 = inlined_call_operand.hbm [shape: f32[736,500], index: 9, kind: input, shape index: {}]
  %s10 = inlined_call_operand.hbm [shape: f32[1,500], index: 10, kind: input, shape index: {}]
  %s11 = inlined_call_operand.vmem [shape: f32[500,200], index: 11, kind: input, shape index: {}]
  %s12 = inlined_call_operand.hbm [shape: f32[1,200], index: 12, kind: input, shape index: {}]
  %s13 = inlined_call_operand.vmem [shape: f32[200,1], index: 13, kind: input, shape index: {}]
  %s14 = inlined_call_operand.<no memory space> [shape: f32[1,1], index: 14, kind: input, shape index: {}]
  %s15 = inlined_call_operand.vmem [shape: f32[4,1], index: 15, kind: output, shape index: {}]
  %s16 = sld [smem:[#allocation0]]
  $region118: #{tpu_custom_call.1} parent=0
    _
  %s18 = ssub.s32 1, %s16
  %s19 = scalar_select 0, %s18, %s16
  %v20 = vstv %s14
  %21 = vst [vmem:[#allocation6] sm:$0x1] %v20
  $region1: #{tpu_custom_call.1} parent=0
    #allocation7 [shape = 'u8[311296]{0}', space=vmem, size = 0x4c000, scoped, tag = 'input window, operand 0, single buffered']
    #allocation8 [shape = 's32[1]{0}', space=sflag, size = 0x4, scoped, tag = 'scoped memory for tpu_custom_call.1']
    #allocation9 [shape = 'u8[4096]{0}', space=vmem, size = 0x1000, scoped, tag = 'input window, operand 1, single buffered']
    #allocation10 [shape = 's32[1]{0}', space=sflag, size = 0x4, scoped, tag = 'scoped memory for tpu_custom_call.1']
    #allocation11 [shape = 'u8[512]{0}', space=vmem, size = 0x400, scoped, tag = 'input window, operand 2, single buffered']
    #allocation12 [shape = 'u8[512]{0}', space=vmem, size = 0x400, scoped, tag = 'input window, operand 3, single buffered']
    #allocation13 [shape = 's32[1]{0}', space=sflag, size = 0x4, scoped, tag = 'scoped memory for tpu_custom_call.1']
    #allocation14 [shape = 'u8[512]{0}', space=vmem, size = 0x400, scoped, tag = 'input window, operand 4, single buffered']
    #allocation15 [shape = 'u8[327680]{0}', space=vmem, size = 0x50000, scoped, tag = 'input window, operand 5, single buffered']
    #allocation16 [shape = 's32[1]{0}', space=sflag, size = 0x4, scoped, tag = 'scoped memory for tpu_custom_call.1']
    #allocation17 [shape = 'u8[512]{0}', space=vmem, size = 0x400, scoped, tag = 'input window, operand 6, single buffered']
    #allocation18 [shape = 'u8[512]{0}', space=vmem, size = 0x400, scoped, tag = 'input window, operand 7, single buffered']
    #allocation19 [shape = 's32[1]{0}', space=sflag, size = 0x4, scoped, tag = 'scoped memory for tpu_custom_call.1']
    #allocation20 [shape = 'u8[512]{0}', space=vmem, size = 0x400, scoped, tag = 'input window, operand 8, single buffered']
    #allocation21 [shape = 'u8[1507328]{0}', space=vmem, size = 0x170000, scoped, tag = 'input window, operand 9, single buffered']
    #allocation22 [shape = 's32[1]{0}', space=sflag, size = 0x4, scoped, tag = 'scoped memory for tpu_custom_call.1']
    #allocation23 [shape = 'u8[2048]{0}', space=vmem, size = 0x800, scoped, tag = 'input window, operand 10, single buffered']
    #allocation24 [shape = 'u8[1024]{0}', space=vmem, size = 0x400, scoped, tag = 'input window, operand 12, single buffered']
    #allocation25 [shape = 's32[1]{0}', space=sflag, size = 0x4, scoped, tag = 'scoped memory for tpu_custom_call.1']
    %22 = vsyncpa [#allocation8], 0
    %23 = vsyncpa [#allocation10], 0
    %24 = vsyncpa [#allocation13], 0
    %25 = vsyncpa [#allocation16], 0
    %26 = vsyncpa [#allocation19], 0
    %27 = vsyncpa [#allocation22], 0
    %28 = vsyncpa [#allocation25], 0
    // Predicated region
    $region2: #{tpu_custom_call.1} parent=1 // pred_check
      _
    $region3: #{tpu_custom_call.1} parent=1 // pred_check_branch
      %30 = sbr.rel (0) target = $region5
    $region4: #{tpu_custom_call.1} parent=1 // pred_region
      %32 = vsyncadd [#allocation8], 0
      %s33 = sshll.u32 %s0, 4
      %s34 = int_to_ptr.hbm [resolvable:$true] %s33
      %s35 = sshll.u32 [#allocation7], 4
      %s36 = int_to_ptr.vmem [resolvable:$true] %s35
      %41 = dma.hbm_to_vmem [thread:$0]  %s34, 9728, %s36, [#allocation8], 128, 128, 8
    $region5: #{tpu_custom_call.1} parent=1 // pred_fallthru
      _
    // Predicated region
    $region6: #{tpu_custom_call.1} parent=1 // pred_check
      _
    $region7: #{tpu_custom_call.1} parent=1 // pred_check_branch
      %43 = sbr.rel (0) target = $region9
    $region8: #{tpu_custom_call.1} parent=1 // pred_region
      %45 = vsyncadd [#allocation10], 0
      %s47 = sshll.u32 %s1, 4
      %s48 = int_to_ptr.hbm [resolvable:$true] %s47
      %s49 = sshll.u32 [#allocation9], 4
      %s50 = int_to_ptr.vmem [resolvable:$true] %s49
      %52 = dma.hbm_to_vmem [thread:$0]  %s48, 128, %s50, [#allocation10]
    $region9: #{tpu_custom_call.1} parent=1 // pred_fallthru
      _
    // Predicated region
    $region10: #{tpu_custom_call.1} parent=1 // pred_check
      _
    $region11: #{tpu_custom_call.1} parent=1 // pred_check_branch
      %54 = sbr.rel (0) target = $region13
    $region12: #{tpu_custom_call.1} parent=1 // pred_region
      %56 = vsyncadd [#allocation10], 0
      %s58 = sshll.u32 %s2, 4
      %s59 = int_to_ptr.hbm [resolvable:$true] %s58
      %s60 = sshll.u32 [#allocation11], 4
      %s61 = int_to_ptr.vmem [resolvable:$true] %s60
      %63 = dma.hbm_to_vmem [thread:$0]  %s59, 16, %s61, [#allocation10]
    $region13: #{tpu_custom_call.1} parent=1 // pred_fallthru
      _
    // Predicated region
    $region14: #{tpu_custom_call.1} parent=1 // pred_check
      _
    $region15: #{tpu_custom_call.1} parent=1 // pred_check_branch
      %65 = sbr.rel (0) target = $region17
    $region16: #{tpu_custom_call.1} parent=1 // pred_region
      %67 = vsyncadd [#allocation13], 0
      %s69 = sshll.u32 %s3, 4
      %s70 = int_to_ptr.hbm [resolvable:$true] %s69
      %s71 = sshll.u32 [#allocation12], 4
      %s72 = int_to_ptr.vmem [resolvable:$true] %s71
      %74 = dma.hbm_to_vmem [thread:$0]  %s70, 16, %s72, [#allocation13]
    $region17: #{tpu_custom_call.1} parent=1 // pred_fallthru
      _
    // Predicated region
    $region18: #{tpu_custom_call.1} parent=1 // pred_check
      _
    $region19: #{tpu_custom_call.1} parent=1 // pred_check_branch
      %76 = sbr.rel (0) target = $region21
    $region20: #{tpu_custom_call.1} parent=1 // pred_region
      %78 = vsyncadd [#allocation13], 0
      %s80 = sshll.u32 %s4, 4
      %s81 = int_to_ptr.hbm [resolvable:$true] %s80
      %s82 = sshll.u32 [#allocation14], 4
      %s83 = int_to_ptr.vmem [resolvable:$true] %s82
      %85 = dma.hbm_to_vmem [thread:$0]  %s81, 16, %s83, [#allocation13]
    $region21: #{tpu_custom_call.1} parent=1 // pred_fallthru
      _
    // Predicated region
    $region22: #{tpu_custom_call.1} parent=1 // pred_check
      _
    $region23: #{tpu_custom_call.1} parent=1 // pred_check_branch
      %87 = sbr.rel (0) target = $region25
    $region24: #{tpu_custom_call.1} parent=1 // pred_region
      %89 = vsyncadd [#allocation16], 0
      %s90 = sshll.u32 %s5, 4
      %s91 = int_to_ptr.hbm [resolvable:$true] %s90
      %s92 = sshll.u32 [#allocation15], 4
      %s93 = int_to_ptr.vmem [resolvable:$true] %s92
      %98 = dma.hbm_to_vmem [thread:$0]  %s91, 10240, %s93, [#allocation16], 128, 128, 8
    $region25: #{tpu_custom_call.1} parent=1 // pred_fallthru
      _
    // Predicated region
    $region26: #{tpu_custom_call.1} parent=1 // pred_check
      _
    $region27: #{tpu_custom_call.1} parent=1 // pred_check_branch
      %100 = sbr.rel (0) target = $region29
    $region28: #{tpu_custom_call.1} parent=1 // pred_region
      %102 = vsyncadd [#allocation16], 0
      %s104 = sshll.u32 %s6, 4
      %s105 = int_to_ptr.hbm [resolvable:$true] %s104
      %s106 = sshll.u32 [#allocation17], 4
      %s107 = int_to_ptr.vmem [resolvable:$true] %s106
      %109 = dma.hbm_to_vmem [thread:$0]  %s105, 16, %s107, [#allocation16]
    $region29: #{tpu_custom_call.1} parent=1 // pred_fallthru
      _
    // Predicated region
    $region30: #{tpu_custom_call.1} parent=1 // pred_check
      _
    $region31: #{tpu_custom_call.1} parent=1 // pred_check_branch
      %111 = sbr.rel (0) target = $region33
    $region32: #{tpu_custom_call.1} parent=1 // pred_region
      %113 = vsyncadd [#allocation19], 0
      %s115 = sshll.u32 %s7, 4
      %s116 = int_to_ptr.hbm [resolvable:$true] %s115
      %s117 = sshll.u32 [#allocation18], 4
      %s118 = int_to_ptr.vmem [resolvable:$true] %s117
      %120 = dma.hbm_to_vmem [thread:$0]  %s116, 16, %s118, [#allocation19]
    $region33: #{tpu_custom_call.1} parent=1 // pred_fallthru
      _
    // Predicated region
    $region34: #{tpu_custom_call.1} parent=1 // pred_check
      _
    $region35: #{tpu_custom_call.1} parent=1 // pred_check_branch
      %122 = sbr.rel (0) target = $region37
    $region36: #{tpu_custom_call.1} parent=1 // pred_region
      %124 = vsyncadd [#allocation19], 0
      %s126 = sshll.u32 %s8, 4
      %s127 = int_to_ptr.hbm [resolvable:$true] %s126
      %s128 = sshll.u32 [#allocation20], 4
      %s129 = int_to_ptr.vmem [resolvable:$true] %s128
      %131 = dma.hbm_to_vmem [thread:$0]  %s127, 16, %s129, [#allocation19]
    $region37: #{tpu_custom_call.1} parent=1 // pred_fallthru
      _
    // Predicated region
    $region38: #{tpu_custom_call.1} parent=1 // pred_check
      _
    $region39: #{tpu_custom_call.1} parent=1 // pred_check_branch
      %133 = sbr.rel (0) target = $region41
    $region40: #{tpu_custom_call.1} parent=1 // pred_region
      %135 = vsyncadd [#allocation22], 0
      %s136 = sshll.u32 %s9, 4
      %s137 = int_to_ptr.hbm [resolvable:$true] %s136
      %s138 = sshll.u32 [#allocation21], 4
      %s139 = int_to_ptr.vmem [resolvable:$true] %s138
      %144 = dma.hbm_to_vmem [thread:$0]  %s137, 47104, %s139, [#allocation22], 512, 512, 32
    $region41: #{tpu_custom_call.1} parent=1 // pred_fallthru
      _
    // Predicated region
    $region42: #{tpu_custom_call.1} parent=1 // pred_check
      _
    $region43: #{tpu_custom_call.1} parent=1 // pred_check_branch
      %146 = sbr.rel (0) target = $region45
    $region44: #{tpu_custom_call.1} parent=1 // pred_region
      %148 = vsyncadd [#allocation22], 0
      %s150 = sshll.u32 %s10, 4
      %s151 = int_to_ptr.hbm [resolvable:$true] %s150
      %s152 = sshll.u32 [#allocation23], 4
      %s153 = int_to_ptr.vmem [resolvable:$true] %s152
      %155 = dma.hbm_to_vmem [thread:$0]  %s151, 64, %s153, [#allocation22]
    $region45: #{tpu_custom_call.1} parent=1 // pred_fallthru
      _
    // Predicated region
    $region46: #{tpu_custom_call.1} parent=1 // pred_check
      _
    $region47: #{tpu_custom_call.1} parent=1 // pred_check_branch
      %157 = sbr.rel (0) target = $region49
    $region48: #{tpu_custom_call.1} parent=1 // pred_region
      _
    $region49: #{tpu_custom_call.1} parent=1 // pred_fallthru
      _
    // Predicated region
    $region50: #{tpu_custom_call.1} parent=1 // pred_check
      _
    $region51: #{tpu_custom_call.1} parent=1 // pred_check_branch
      %159 = sbr.rel (0) target = $region53
    $region52: #{tpu_custom_call.1} parent=1 // pred_region
      %161 = vsyncadd [#allocation25], 0
      %s163 = sshll.u32 %s12, 4
      %s164 = int_to_ptr.hbm [resolvable:$true] %s163
      %s165 = sshll.u32 [#allocation24], 4
      %s166 = int_to_ptr.vmem [resolvable:$true] %s165
      %168 = dma.hbm_to_vmem [thread:$0]  %s164, 32, %s166, [#allocation25]
    $region53: #{tpu_custom_call.1} parent=1 // pred_fallthru
      _
    // Predicated region
    $region54: #{tpu_custom_call.1} parent=1 // pred_check
      _
    $region55: #{tpu_custom_call.1} parent=1 // pred_check_branch
      %170 = sbr.rel (0) target = $region57
    $region56: #{tpu_custom_call.1} parent=1 // pred_region
      _
    $region57: #{tpu_custom_call.1} parent=1 // pred_fallthru
      _
    // Predicated region
    $region58: #{tpu_custom_call.1} parent=1 // pred_check
      _
    $region59: #{tpu_custom_call.1} parent=1 // pred_check_branch
      %172 = sbr.rel (0) target = $region61
    $region60: #{tpu_custom_call.1} parent=1 // pred_region
      _
    $region61: #{tpu_custom_call.1} parent=1 // pred_fallthru
      _
    // Predicated region
    $region62: #{tpu_custom_call.1} parent=1 // pred_check
      _
    $region63: #{tpu_custom_call.1} parent=1 // pred_check_branch
      %174 = sbr.rel (0) target = $region65
    $region64: #{tpu_custom_call.1} parent=1 // pred_region
      %176 = dma.done [#allocation8], 9728
    $region65: #{tpu_custom_call.1} parent=1 // pred_fallthru
      _
    // Predicated region
    $region66: #{tpu_custom_call.1} parent=1 // pred_check
      _
    $region67: #{tpu_custom_call.1} parent=1 // pred_check_branch
      %178 = sbr.rel (0) target = $region69
    $region68: #{tpu_custom_call.1} parent=1 // pred_region
      %180 = dma.done [#allocation10], 128
    $region69: #{tpu_custom_call.1} parent=1 // pred_fallthru
      _
    // Predicated region
    $region70: #{tpu_custom_call.1} parent=1 // pred_check
      _
    $region71: #{tpu_custom_call.1} parent=1 // pred_check_branch
      %182 = sbr.rel (0) target = $region73
    $region72: #{tpu_custom_call.1} parent=1 // pred_region
      %184 = dma.done [#allocation10], 16
    $region73: #{tpu_custom_call.1} parent=1 // pred_fallthru
      _
    // Predicated region
    $region74: #{tpu_custom_call.1} parent=1 // pred_check
      _
    $region75: #{tpu_custom_call.1} parent=1 // pred_check_branch
      %186 = sbr.rel (0) target = $region77
    $region76: #{tpu_custom_call.1} parent=1 // pred_region
      %188 = dma.done [#allocation13], 16
    $region77: #{tpu_custom_call.1} parent=1 // pred_fallthru
      _
    // Predicated region
    $region78: #{tpu_custom_call.1} parent=1 // pred_check
      _
    $region79: #{tpu_custom_call.1} parent=1 // pred_check_branch
      %190 = sbr.rel (0) target = $region81
    $region80: #{tpu_custom_call.1} parent=1 // pred_region
      %192 = dma.done [#allocation13], 16
    $region81: #{tpu_custom_call.1} parent=1 // pred_fallthru
      _
    // Predicated region
    $region82: #{tpu_custom_call.1} parent=1 // pred_check
      _
    $region83: #{tpu_custom_call.1} parent=1 // pred_check_branch
      %194 = sbr.rel (0) target = $region85
    $region84: #{tpu_custom_call.1} parent=1 // pred_region
      %196 = dma.done [#allocation16], 10240
    $region85: #{tpu_custom_call.1} parent=1 // pred_fallthru
      _
    // Predicated region
    $region86: #{tpu_custom_call.1} parent=1 // pred_check
      _
    $region87: #{tpu_custom_call.1} parent=1 // pred_check_branch
      %198 = sbr.rel (0) target = $region89
    $region88: #{tpu_custom_call.1} parent=1 // pred_region
      %200 = dma.done [#allocation16], 16
    $region89: #{tpu_custom_call.1} parent=1 // pred_fallthru
      _
    // Predicated region
    $region90: #{tpu_custom_call.1} parent=1 // pred_check
      _
    $region91: #{tpu_custom_call.1} parent=1 // pred_check_branch
      %202 = sbr.rel (0) target = $region93
    $region92: #{tpu_custom_call.1} parent=1 // pred_region
      %204 = dma.done [#allocation19], 16
    $region93: #{tpu_custom_call.1} parent=1 // pred_fallthru
      _
    // Predicated region
    $region94: #{tpu_custom_call.1} parent=1 // pred_check
      _
    $region95: #{tpu_custom_call.1} parent=1 // pred_check_branch
      %206 = sbr.rel (0) target = $region97
    $region96: #{tpu_custom_call.1} parent=1 // pred_region
      %208 = dma.done [#allocation19], 16
    $region97: #{tpu_custom_call.1} parent=1 // pred_fallthru
      _
    // Predicated region
    $region98: #{tpu_custom_call.1} parent=1 // pred_check
      _
    $region99: #{tpu_custom_call.1} parent=1 // pred_check_branch
      %210 = sbr.rel (0) target = $region101
    $region100: #{tpu_custom_call.1} parent=1 // pred_region
      %212 = dma.done [#allocation22], 47104
    $region101: #{tpu_custom_call.1} parent=1 // pred_fallthru
      _
    // Predicated region
    $region102: #{tpu_custom_call.1} parent=1 // pred_check
      _
    $region103: #{tpu_custom_call.1} parent=1 // pred_check_branch
      %214 = sbr.rel (0) target = $region105
    $region104: #{tpu_custom_call.1} parent=1 // pred_region
      %216 = dma.done [#allocation22], 64
    $region105: #{tpu_custom_call.1} parent=1 // pred_fallthru
      _
    // Predicated region
    $region106: #{tpu_custom_call.1} parent=1 // pred_check
      _
    $region107: #{tpu_custom_call.1} parent=1 // pred_check_branch
      %218 = sbr.rel (0) target = $region109
    $region108: #{tpu_custom_call.1} parent=1 // pred_region
      %220 = dma.done [#allocation25], 32
    $region109: #{tpu_custom_call.1} parent=1 // pred_fallthru
      _
    %v221 = vld [vmem:[#allocation7] sm:$0xff]
    %v222 = vld [vmem:[#allocation7 + $0x8] sm:$0xff]
    %v223 = vld [vmem:[#allocation7 + $0x10] sm:$0xff]
    %v224 = vld [vmem:[#allocation7 + $0x18] sm:$0xff]
    %v225 = vld [vmem:[#allocation7 + $0x20] sm:$0xff]
    %v226 = vld [vmem:[#allocation7 + $0x28] sm:$0xff]
    %v227 = vld [vmem:[#allocation7 + $0x30] sm:$0xff]
    %v228 = vld [vmem:[#allocation7 + $0x38] sm:$0xff]
    %v229 = vld [vmem:[#allocation7 + $0x40] sm:$0xff]
    %v230 = vld [vmem:[#allocation7 + $0x48] sm:$0xff]
    %v231 = vld [vmem:[#allocation7 + $0x50] sm:$0xff]
    %v232 = vld [vmem:[#allocation7 + $0x58] sm:$0xff]
    %v233 = vld [vmem:[#allocation7 + $0x60] sm:$0xff]
    %v234 = vld [vmem:[#allocation7 + $0x68] sm:$0xff]
    %v235 = vld [vmem:[#allocation7 + $0x70] sm:$0xff]
    %v236 = vld [vmem:[#allocation7 + $0x78] sm:$0xff]
    %v237 = vld [vmem:[#allocation7 + $0x80] sm:$0xff]
    %v238 = vld [vmem:[#allocation7 + $0x88] sm:$0xff]
    %v239 = vld [vmem:[#allocation7 + $0x90] sm:$0xff]
    %v240 = vld [vmem:[#allocation7 + $0x98] sm:$0xff]
    %v241 = vld [vmem:[#allocation7 + $0xa0] sm:$0xff]
    %v242 = vld [vmem:[#allocation7 + $0xa8] sm:$0xff]
    %v243 = vld [vmem:[#allocation7 + $0xb0] sm:$0xff]
    %v244 = vld [vmem:[#allocation7 + $0xb8] sm:$0xff]
    %v245 = vld [vmem:[#allocation7 + $0xc0] sm:$0xff]
    %v246 = vld [vmem:[#allocation7 + $0xc8] sm:$0xff]
    %v247 = vld [vmem:[#allocation7 + $0xd0] sm:$0xff]
    %v248 = vld [vmem:[#allocation7 + $0xd8] sm:$0xff]
    %v249 = vld [vmem:[#allocation7 + $0xe0] sm:$0xff]
    %v250 = vld [vmem:[#allocation7 + $0xe8] sm:$0xff]
    %v251 = vld [vmem:[#allocation7 + $0xf0] sm:$0xff]
    %v252 = vld [vmem:[#allocation7 + $0xf8] sm:$0xff]
    %v253 = vld [vmem:[#allocation7 + $0x100] sm:$0xff]
    %v254 = vld [vmem:[#allocation7 + $0x108] sm:$0xff]
    %v255 = vld [vmem:[#allocation7 + $0x110] sm:$0xff]
    %v256 = vld [vmem:[#allocation7 + $0x118] sm:$0xff]
    %v257 = vld [vmem:[#allocation7 + $0x120] sm:$0xff]
    %v258 = vld [vmem:[#allocation7 + $0x128] sm:$0xff]
    %v259 = vld [vmem:[#allocation7 + $0x130] sm:$0xff]
    %v260 = vld [vmem:[#allocation7 + $0x138] sm:$0xff]
    %v261 = vld [vmem:[#allocation7 + $0x140] sm:$0xff]
    %v262 = vld [vmem:[#allocation7 + $0x148] sm:$0xff]
    %v263 = vld [vmem:[#allocation7 + $0x150] sm:$0xff]
    %v264 = vld [vmem:[#allocation7 + $0x158] sm:$0xff]
    %v265 = vld [vmem:[#allocation7 + $0x160] sm:$0xff]
    %v266 = vld [vmem:[#allocation7 + $0x168] sm:$0xff]
    %v267 = vld [vmem:[#allocation7 + $0x170] sm:$0xff]
    %v268 = vld [vmem:[#allocation7 + $0x178] sm:$0xff]
    %v269 = vld [vmem:[#allocation7 + $0x180] sm:$0xff]
    %v270 = vld [vmem:[#allocation7 + $0x188] sm:$0xff]
    %v271 = vld [vmem:[#allocation7 + $0x190] sm:$0xff]
    %v272 = vld [vmem:[#allocation7 + $0x198] sm:$0xff]
    %v273 = vld [vmem:[#allocation7 + $0x1a0] sm:$0xff]
    %v274 = vld [vmem:[#allocation7 + $0x1a8] sm:$0xff]
    %v275 = vld [vmem:[#allocation7 + $0x1b0] sm:$0xff]
    %v276 = vld [vmem:[#allocation7 + $0x1b8] sm:$0xff]
    %v277 = vld [vmem:[#allocation7 + $0x1c0] sm:$0xff]
    %v278 = vld [vmem:[#allocation7 + $0x1c8] sm:$0xff]
    %v279 = vld [vmem:[#allocation7 + $0x1d0] sm:$0xff]
    %v280 = vld [vmem:[#allocation7 + $0x1d8] sm:$0xff]
    %v281 = vld [vmem:[#allocation7 + $0x1e0] sm:$0xff]
    %v282 = vld [vmem:[#allocation7 + $0x1e8] sm:$0xff]
    %v283 = vld [vmem:[#allocation7 + $0x1f0] sm:$0xff]
    %v284 = vld [vmem:[#allocation7 + $0x1f8] sm:$0xff]
    %v285 = vld [vmem:[#allocation7 + $0x200] sm:$0xff]
    %v286 = vld [vmem:[#allocation7 + $0x208] sm:$0xff]
    %v287 = vld [vmem:[#allocation7 + $0x210] sm:$0xff]
    %v288 = vld [vmem:[#allocation7 + $0x218] sm:$0xff]
    %v289 = vld [vmem:[#allocation7 + $0x220] sm:$0xff]
    %v290 = vld [vmem:[#allocation7 + $0x228] sm:$0xff]
    %v291 = vld [vmem:[#allocation7 + $0x230] sm:$0xff]
    %v292 = vld [vmem:[#allocation7 + $0x238] sm:$0xff]
    %v293 = vld [vmem:[#allocation7 + $0x240] sm:$0xff]
    %v294 = vld [vmem:[#allocation7 + $0x248] sm:$0xff]
    %v295 = vld [vmem:[#allocation7 + $0x250] sm:$0x3f]
    %v296 = vld [vmem:[#allocation9] sm:$0x1]
    %v297 = vperm.slane %v296, 0
    %v298 = vmul.f32 %v221, %v297
    %v299 = vmul.f32 %v222, %v297
    %v300 = vmul.f32 %v223, %v297
    %v301 = vmul.f32 %v224, %v297
    %v302 = vmul.f32 %v225, %v297
    %v303 = vmul.f32 %v226, %v297
    %v304 = vmul.f32 %v227, %v297
    %v305 = vmul.f32 %v228, %v297
    %v306 = vmul.f32 %v229, %v297
    %v307 = vmul.f32 %v230, %v297
    %v308 = vmul.f32 %v231, %v297
    %v309 = vmul.f32 %v232, %v297
    %v310 = vmul.f32 %v233, %v297
    %v311 = vmul.f32 %v234, %v297
    %v312 = vmul.f32 %v235, %v297
    %v313 = vmul.f32 %v236, %v297
    %v314 = vmul.f32 %v237, %v297
    %v315 = vmul.f32 %v238, %v297
    %v316 = vmul.f32 %v239, %v297
    %v317 = vmul.f32 %v240, %v297
    %v318 = vmul.f32 %v241, %v297
    %v319 = vmul.f32 %v242, %v297
    %v320 = vmul.f32 %v243, %v297
    %v321 = vmul.f32 %v244, %v297
    %v322 = vmul.f32 %v245, %v297
    %v323 = vmul.f32 %v246, %v297
    %v324 = vmul.f32 %v247, %v297
    %v325 = vmul.f32 %v248, %v297
    %v326 = vmul.f32 %v249, %v297
    %v327 = vmul.f32 %v250, %v297
    %v328 = vmul.f32 %v251, %v297
    %v329 = vmul.f32 %v252, %v297
    %v330 = vmul.f32 %v253, %v297
    %v331 = vmul.f32 %v254, %v297
    %v332 = vmul.f32 %v255, %v297
    %v333 = vmul.f32 %v256, %v297
    %v334 = vmul.f32 %v257, %v297
    %v335 = vmul.f32 %v258, %v297
    %v336 = vmul.f32 %v259, %v297
    %v337 = vmul.f32 %v260, %v297
    %v338 = vmul.f32 %v261, %v297
    %v339 = vmul.f32 %v262, %v297
    %v340 = vmul.f32 %v263, %v297
    %v341 = vmul.f32 %v264, %v297
    %v342 = vmul.f32 %v265, %v297
    %v343 = vmul.f32 %v266, %v297
    %v344 = vmul.f32 %v267, %v297
    %v345 = vmul.f32 %v268, %v297
    %v346 = vmul.f32 %v269, %v297
    %v347 = vmul.f32 %v270, %v297
    %v348 = vmul.f32 %v271, %v297
    %v349 = vmul.f32 %v272, %v297
    %v350 = vmul.f32 %v273, %v297
    %v351 = vmul.f32 %v274, %v297
    %v352 = vmul.f32 %v275, %v297
    %v353 = vmul.f32 %v276, %v297
    %v354 = vmul.f32 %v277, %v297
    %v355 = vmul.f32 %v278, %v297
    %v356 = vmul.f32 %v279, %v297
    %v357 = vmul.f32 %v280, %v297
    %v358 = vmul.f32 %v281, %v297
    %v359 = vmul.f32 %v282, %v297
    %v360 = vmul.f32 %v283, %v297
    %v361 = vmul.f32 %v284, %v297
    %v362 = vmul.f32 %v285, %v297
    %v363 = vmul.f32 %v286, %v297
    %v364 = vmul.f32 %v287, %v297
    %v365 = vmul.f32 %v288, %v297
    %v366 = vmul.f32 %v289, %v297
    %v367 = vmul.f32 %v290, %v297
    %v368 = vmul.f32 %v291, %v297
    %v369 = vmul.f32 %v292, %v297
    %v370 = vmul.f32 %v293, %v297
    %v371 = vmul.f32 %v294, %v297
    %v372 = vmul.f32 %v295, %v297
    %v373 = vld [vmem:[#allocation7 + $0x1] sm:$0xff]
    %v374 = vld [vmem:[#allocation7 + $0x9] sm:$0xff]
    %v375 = vld [vmem:[#allocation7 + $0x11] sm:$0xff]
    %v376 = vld [vmem:[#allocation7 + $0x19] sm:$0xff]
    %v377 = vld [vmem:[#allocation7 + $0x21] sm:$0xff]
    %v378 = vld [vmem:[#allocation7 + $0x29] sm:$0xff]
    %v379 = vld [vmem:[#allocation7 + $0x31] sm:$0xff]
    %v380 = vld [vmem:[#allocation7 + $0x39] sm:$0xff]
    %v381 = vld [vmem:[#allocation7 + $0x41] sm:$0xff]
    %v382 = vld [vmem:[#allocation7 + $0x49] sm:$0xff]
    %v383 = vld [vmem:[#allocation7 + $0x51] sm:$0xff]
    %v384 = vld [vmem:[#allocation7 + $0x59] sm:$0xff]
    %v385 = vld [vmem:[#allocation7 + $0x61] sm:$0xff]
    %v386 = vld [vmem:[#allocation7 + $0x69] sm:$0xff]
    %v387 = vld [vmem:[#allocation7 + $0x71] sm:$0xff]
    %v388 = vld [vmem:[#allocation7 + $0x79] sm:$0xff]
    %v389 = vld [vmem:[#allocation7 + $0x81] sm:$0xff]
    %v390 = vld [vmem:[#allocation7 + $0x89] sm:$0xff]
    %v391 = vld [vmem:[#allocation7 + $0x91] sm:$0xff]
    %v392 = vld [vmem:[#allocation7 + $0x99] sm:$0xff]
    %v393 = vld [vmem:[#allocation7 + $0xa1] sm:$0xff]
    %v394 = vld [vmem:[#allocation7 + $0xa9] sm:$0xff]
    %v395 = vld [vmem:[#allocation7 + $0xb1] sm:$0xff]
    %v396 = vld [vmem:[#allocation7 + $0xb9] sm:$0xff]
    %v397 = vld [vmem:[#allocation7 + $0xc1] sm:$0xff]
    %v398 = vld [vmem:[#allocation7 + $0xc9] sm:$0xff]
    %v399 = vld [vmem:[#allocation7 + $0xd1] sm:$0xff]
    %v400 = vld [vmem:[#allocation7 + $0xd9] sm:$0xff]
    %v401 = vld [vmem:[#allocation7 + $0xe1] sm:$0xff]
    %v402 = vld [vmem:[#allocation7 + $0xe9] sm:$0xff]
    %v403 = vld [vmem:[#allocation7 + $0xf1] sm:$0xff]
    %v404 = vld [vmem:[#allocation7 + $0xf9] sm:$0xff]
    %v405 = vld [vmem:[#allocation7 + $0x101] sm:$0xff]
    %v406 = vld [vmem:[#allocation7 + $0x109] sm:$0xff]
    %v407 = vld [vmem:[#allocation7 + $0x111] sm:$0xff]
    %v408 = vld [vmem:[#allocation7 + $0x119] sm:$0xff]
    %v409 = vld [vmem:[#allocation7 + $0x121] sm:$0xff]
    %v410 = vld [vmem:[#allocation7 + $0x129] sm:$0xff]
    %v411 = vld [vmem:[#allocation7 + $0x131] sm:$0xff]
    %v412 = vld [vmem:[#allocation7 + $0x139] sm:$0xff]
    %v413 = vld [vmem:[#allocation7 + $0x141] sm:$0xff]
    %v414 = vld [vmem:[#allocation7 + $0x149] sm:$0xff]
    %v415 = vld [vmem:[#allocation7 + $0x151] sm:$0xff]
    %v416 = vld [vmem:[#allocation7 + $0x159] sm:$0xff]
    %v417 = vld [vmem:[#allocation7 + $0x161] sm:$0xff]
    %v418 = vld [vmem:[#allocation7 + $0x169] sm:$0xff]
    %v419 = vld [vmem:[#allocation7 + $0x171] sm:$0xff]
    %v420 = vld [vmem:[#allocation7 + $0x179] sm:$0xff]
    %v421 = vld [vmem:[#allocation7 + $0x181] sm:$0xff]
    %v422 = vld [vmem:[#allocation7 + $0x189] sm:$0xff]
    %v423 = vld [vmem:[#allocation7 + $0x191] sm:$0xff]
    %v424 = vld [vmem:[#allocation7 + $0x199] sm:$0xff]
    %v425 = vld [vmem:[#allocation7 + $0x1a1] sm:$0xff]
    %v426 = vld [vmem:[#allocation7 + $0x1a9] sm:$0xff]
    %v427 = vld [vmem:[#allocation7 + $0x1b1] sm:$0xff]
    %v428 = vld [vmem:[#allocation7 + $0x1b9] sm:$0xff]
    %v429 = vld [vmem:[#allocation7 + $0x1c1] sm:$0xff]
    %v430 = vld [vmem:[#allocation7 + $0x1c9] sm:$0xff]
    %v431 = vld [vmem:[#allocation7 + $0x1d1] sm:$0xff]
    %v432 = vld [vmem:[#allocation7 + $0x1d9] sm:$0xff]
    %v433 = vld [vmem:[#allocation7 + $0x1e1] sm:$0xff]
    %v434 = vld [vmem:[#allocation7 + $0x1e9] sm:$0xff]
    %v435 = vld [vmem:[#allocation7 + $0x1f1] sm:$0xff]
    %v436 = vld [vmem:[#allocation7 + $0x1f9] sm:$0xff]
    %v437 = vld [vmem:[#allocation7 + $0x201] sm:$0xff]
    %v438 = vld [vmem:[#allocation7 + $0x209] sm:$0xff]
    %v439 = vld [vmem:[#allocation7 + $0x211] sm:$0xff]
    %v440 = vld [vmem:[#allocation7 + $0x219] sm:$0xff]
    %v441 = vld [vmem:[#allocation7 + $0x221] sm:$0xff]
    %v442 = vld [vmem:[#allocation7 + $0x229] sm:$0xff]
    %v443 = vld [vmem:[#allocation7 + $0x231] sm:$0xff]
    %v444 = vld [vmem:[#allocation7 + $0x239] sm:$0xff]
    %v445 = vld [vmem:[#allocation7 + $0x241] sm:$0xff]
    %v446 = vld [vmem:[#allocation7 + $0x249] sm:$0xff]
    %v447 = vld [vmem:[#allocation7 + $0x251] sm:$0x3f]
    %v448 = vld [vmem:[#allocation9 + $0x1] sm:$0x1]
    %v449 = vperm.slane %v448, 0
    %v450 = vmul.f32 %v373, %v449
    %v451 = vmul.f32 %v374, %v449
    %v452 = vmul.f32 %v375, %v449
    %v453 = vmul.f32 %v376, %v449
    %v454 = vmul.f32 %v377, %v449
    %v455 = vmul.f32 %v378, %v449
    %v456 = vmul.f32 %v379, %v449
    %v457 = vmul.f32 %v380, %v449
    %v458 = vmul.f32 %v381, %v449
    %v459 = vmul.f32 %v382, %v449
    %v460 = vmul.f32 %v383, %v449
    %v461 = vmul.f32 %v384, %v449
    %v462 = vmul.f32 %v385, %v449
    %v463 = vmul.f32 %v386, %v449
    %v464 = vmul.f32 %v387, %v449
    %v465 = vmul.f32 %v388, %v449
    %v466 = vmul.f32 %v389, %v449
    %v467 = vmul.f32 %v390, %v449
    %v468 = vmul.f32 %v391, %v449
    %v469 = vmul.f32 %v392, %v449
    %v470 = vmul.f32 %v393, %v449
    %v471 = vmul.f32 %v394, %v449
    %v472 = vmul.f32 %v395, %v449
    %v473 = vmul.f32 %v396, %v449
    %v474 = vmul.f32 %v397, %v449
    %v475 = vmul.f32 %v398, %v449
    %v476 = vmul.f32 %v399, %v449
    %v477 = vmul.f32 %v400, %v449
    %v478 = vmul.f32 %v401, %v449
    %v479 = vmul.f32 %v402, %v449
    %v480 = vmul.f32 %v403, %v449
    %v481 = vmul.f32 %v404, %v449
    %v482 = vmul.f32 %v405, %v449
    %v483 = vmul.f32 %v406, %v449
    %v484 = vmul.f32 %v407, %v449
    %v485 = vmul.f32 %v408, %v449
    %v486 = vmul.f32 %v409, %v449
    %v487 = vmul.f32 %v410, %v449
    %v488 = vmul.f32 %v411, %v449
    %v489 = vmul.f32 %v412, %v449
    %v490 = vmul.f32 %v413, %v449
    %v491 = vmul.f32 %v414, %v449
    %v492 = vmul.f32 %v415, %v449
    %v493 = vmul.f32 %v416, %v449
    %v494 = vmul.f32 %v417, %v449
    %v495 = vmul.f32 %v418, %v449
    %v496 = vmul.f32 %v419, %v449
    %v497 = vmul.f32 %v420, %v449
    %v498 = vmul.f32 %v421, %v449
    %v499 = vmul.f32 %v422, %v449
    %v500 = vmul.f32 %v423, %v449
    %v501 = vmul.f32 %v424, %v449
    %v502 = vmul.f32 %v425, %v449
    %v503 = vmul.f32 %v426, %v449
    %v504 = vmul.f32 %v427, %v449
    %v505 = vmul.f32 %v428, %v449
    %v506 = vmul.f32 %v429, %v449
    %v507 = vmul.f32 %v430, %v449
    %v508 = vmul.f32 %v431, %v449
    %v509 = vmul.f32 %v432, %v449
    %v510 = vmul.f32 %v433, %v449
    %v511 = vmul.f32 %v434, %v449
    %v512 = vmul.f32 %v435, %v449
    %v513 = vmul.f32 %v436, %v449
    %v514 = vmul.f32 %v437, %v449
    %v515 = vmul.f32 %v438, %v449
    %v516 = vmul.f32 %v439, %v449
    %v517 = vmul.f32 %v440, %v449
    %v518 = vmul.f32 %v441, %v449
    %v519 = vmul.f32 %v442, %v449
    %v520 = vmul.f32 %v443, %v449
    %v521 = vmul.f32 %v444, %v449
    %v522 = vmul.f32 %v445, %v449
    %v523 = vmul.f32 %v446, %v449
    %v524 = vmul.f32 %v447, %v449
    %v525 = vadd.f32 %v298, %v450
    %v526 = vadd.f32 %v299, %v451
    %v527 = vadd.f32 %v300, %v452
    %v528 = vadd.f32 %v301, %v453
    %v529 = vadd.f32 %v302, %v454
    %v530 = vadd.f32 %v303, %v455
    %v531 = vadd.f32 %v304, %v456
    %v532 = vadd.f32 %v305, %v457
    %v533 = vadd.f32 %v306, %v458
    %v534 = vadd.f32 %v307, %v459
    %v535 = vadd.f32 %v308, %v460
    %v536 = vadd.f32 %v309, %v461
    %v537 = vadd.f32 %v310, %v462
    %v538 = vadd.f32 %v311, %v463
    %v539 = vadd.f32 %v312, %v464
    %v540 = vadd.f32 %v313, %v465
    %v541 = vadd.f32 %v314, %v466
    %v542 = vadd.f32 %v315, %v467
    %v543 = vadd.f32 %v316, %v468
    %v544 = vadd.f32 %v317, %v469
    %v545 = vadd.f32 %v318, %v470
    %v546 = vadd.f32 %v319, %v471
    %v547 = vadd.f32 %v320, %v472
    %v548 = vadd.f32 %v321, %v473
    %v549 = vadd.f32 %v322, %v474
    %v550 = vadd.f32 %v323, %v475
    %v551 = vadd.f32 %v324, %v476
    %v552 = vadd.f32 %v325, %v477
    %v553 = vadd.f32 %v326, %v478
    %v554 = vadd.f32 %v327, %v479
    %v555 = vadd.f32 %v328, %v480
    %v556 = vadd.f32 %v329, %v481
    %v557 = vadd.f32 %v330, %v482
    %v558 = vadd.f32 %v331, %v483
    %v559 = vadd.f32 %v332, %v484
    %v560 = vadd.f32 %v333, %v485
    %v561 = vadd.f32 %v334, %v486
    %v562 = vadd.f32 %v335, %v487
    %v563 = vadd.f32 %v336, %v488
    %v564 = vadd.f32 %v337, %v489
    %v565 = vadd.f32 %v338, %v490
    %v566 = vadd.f32 %v339, %v491
    %v567 = vadd.f32 %v340, %v492
    %v568 = vadd.f32 %v341, %v493
    %v569 = vadd.f32 %v342, %v494
    %v570 = vadd.f32 %v343, %v495
    %v571 = vadd.f32 %v344, %v496
    %v572 = vadd.f32 %v345, %v497
    %v573 = vadd.f32 %v346, %v498
    %v574 = vadd.f32 %v347, %v499
    %v575 = vadd.f32 %v348, %v500
    %v576 = vadd.f32 %v349, %v501
    %v577 = vadd.f32 %v350, %v502
    %v578 = vadd.f32 %v351, %v503
    %v579 = vadd.f32 %v352, %v504
    %v580 = vadd.f32 %v353, %v505
    %v581 = vadd.f32 %v354, %v506
    %v582 = vadd.f32 %v355, %v507
    %v583 = vadd.f32 %v356, %v508
    %v584 = vadd.f32 %v357, %v509
    %v585 = vadd.f32 %v358, %v510
    %v586 = vadd.f32 %v359, %v511
    %v587 = vadd.f32 %v360, %v512
    %v588 = vadd.f32 %v361, %v513
    %v589 = vadd.f32 %v362, %v514
    %v590 = vadd.f32 %v363, %v515
    %v591 = vadd.f32 %v364, %v516
    %v592 = vadd.f32 %v365, %v517
    %v593 = vadd.f32 %v366, %v518
    %v594 = vadd.f32 %v367, %v519
    %v595 = vadd.f32 %v368, %v520
    %v596 = vadd.f32 %v369, %v521
    %v597 = vadd.f32 %v370, %v522
    %v598 = vadd.f32 %v371, %v523
    %v599 = vadd.f32 %v372, %v524
    %v600 = vld [vmem:[#allocation7 + $0x2] sm:$0xff]
    %v601 = vld [vmem:[#allocation7 + $0xa] sm:$0xff]
    %v602 = vld [vmem:[#allocation7 + $0x12] sm:$0xff]
    %v603 = vld [vmem:[#allocation7 + $0x1a] sm:$0xff]
    %v604 = vld [vmem:[#allocation7 + $0x22] sm:$0xff]
    %v605 = vld [vmem:[#allocation7 + $0x2a] sm:$0xff]
    %v606 = vld [vmem:[#allocation7 + $0x32] sm:$0xff]
    %v607 = vld [vmem:[#allocation7 + $0x3a] sm:$0xff]
    %v608 = vld [vmem:[#allocation7 + $0x42] sm:$0xff]
    %v609 = vld [vmem:[#allocation7 + $0x4a] sm:$0xff]
    %v610 = vld [vmem:[#allocation7 + $0x52] sm:$0xff]
    %v611 = vld [vmem:[#allocation7 + $0x5a] sm:$0xff]
    %v612 = vld [vmem:[#allocation7 + $0x62] sm:$0xff]
    %v613 = vld [vmem:[#allocation7 + $0x6a] sm:$0xff]
    %v614 = vld [vmem:[#allocation7 + $0x72] sm:$0xff]
    %v615 = vld [vmem:[#allocation7 + $0x7a] sm:$0xff]
    %v616 = vld [vmem:[#allocation7 + $0x82] sm:$0xff]
    %v617 = vld [vmem:[#allocation7 + $0x8a] sm:$0xff]
    %v618 = vld [vmem:[#allocation7 + $0x92] sm:$0xff]
    %v619 = vld [vmem:[#allocation7 + $0x9a] sm:$0xff]
    %v620 = vld [vmem:[#allocation7 + $0xa2] sm:$0xff]
    %v621 = vld [vmem:[#allocation7 + $0xaa] sm:$0xff]
    %v622 = vld [vmem:[#allocation7 + $0xb2] sm:$0xff]
    %v623 = vld [vmem:[#allocation7 + $0xba] sm:$0xff]
    %v624 = vld [vmem:[#allocation7 + $0xc2] sm:$0xff]
    %v625 = vld [vmem:[#allocation7 + $0xca] sm:$0xff]
    %v626 = vld [vmem:[#allocation7 + $0xd2] sm:$0xff]
    %v627 = vld [vmem:[#allocation7 + $0xda] sm:$0xff]
    %v628 = vld [vmem:[#allocation7 + $0xe2] sm:$0xff]
    %v629 = vld [vmem:[#allocation7 + $0xea] sm:$0xff]
    %v630 = vld [vmem:[#allocation7 + $0xf2] sm:$0xff]
    %v631 = vld [vmem:[#allocation7 + $0xfa] sm:$0xff]
    %v632 = vld [vmem:[#allocation7 + $0x102] sm:$0xff]
    %v633 = vld [vmem:[#allocation7 + $0x10a] sm:$0xff]
    %v634 = vld [vmem:[#allocation7 + $0x112] sm:$0xff]
    %v635 = vld [vmem:[#allocation7 + $0x11a] sm:$0xff]
    %v636 = vld [vmem:[#allocation7 + $0x122] sm:$0xff]
    %v637 = vld [vmem:[#allocation7 + $0x12a] sm:$0xff]
    %v638 = vld [vmem:[#allocation7 + $0x132] sm:$0xff]
    %v639 = vld [vmem:[#allocation7 + $0x13a] sm:$0xff]
    %v640 = vld [vmem:[#allocation7 + $0x142] sm:$0xff]
    %v641 = vld [vmem:[#allocation7 + $0x14a] sm:$0xff]
    %v642 = vld [vmem:[#allocation7 + $0x152] sm:$0xff]
    %v643 = vld [vmem:[#allocation7 + $0x15a] sm:$0xff]
    %v644 = vld [vmem:[#allocation7 + $0x162] sm:$0xff]
    %v645 = vld [vmem:[#allocation7 + $0x16a] sm:$0xff]
    %v646 = vld [vmem:[#allocation7 + $0x172] sm:$0xff]
    %v647 = vld [vmem:[#allocation7 + $0x17a] sm:$0xff]
    %v648 = vld [vmem:[#allocation7 + $0x182] sm:$0xff]
    %v649 = vld [vmem:[#allocation7 + $0x18a] sm:$0xff]
    %v650 = vld [vmem:[#allocation7 + $0x192] sm:$0xff]
    %v651 = vld [vmem:[#allocation7 + $0x19a] sm:$0xff]
    %v652 = vld [vmem:[#allocation7 + $0x1a2] sm:$0xff]
    %v653 = vld [vmem:[#allocation7 + $0x1aa] sm:$0xff]
    %v654 = vld [vmem:[#allocation7 + $0x1b2] sm:$0xff]
    %v655 = vld [vmem:[#allocation7 + $0x1ba] sm:$0xff]
    %v656 = vld [vmem:[#allocation7 + $0x1c2] sm:$0xff]
    %v657 = vld [vmem:[#allocation7 + $0x1ca] sm:$0xff]
    %v658 = vld [vmem:[#allocation7 + $0x1d2] sm:$0xff]
    %v659 = vld [vmem:[#allocation7 + $0x1da] sm:$0xff]
    %v660 = vld [vmem:[#allocation7 + $0x1e2] sm:$0xff]
    %v661 = vld [vmem:[#allocation7 + $0x1ea] sm:$0xff]
    %v662 = vld [vmem:[#allocation7 + $0x1f2] sm:$0xff]
    %v663 = vld [vmem:[#allocation7 + $0x1fa] sm:$0xff]
    %v664 = vld [vmem:[#allocation7 + $0x202] sm:$0xff]
    %v665 = vld [vmem:[#allocation7 + $0x20a] sm:$0xff]
    %v666 = vld [vmem:[#allocation7 + $0x212] sm:$0xff]
    %v667 = vld [vmem:[#allocation7 + $0x21a] sm:$0xff]
    %v668 = vld [vmem:[#allocation7 + $0x222] sm:$0xff]
    %v669 = vld [vmem:[#allocation7 + $0x22a] sm:$0xff]
    %v670 = vld [vmem:[#allocation7 + $0x232] sm:$0xff]
    %v671 = vld [vmem:[#allocation7 + $0x23a] sm:$0xff]
    %v672 = vld [vmem:[#allocation7 + $0x242] sm:$0xff]
    %v673 = vld [vmem:[#allocation7 + $0x24a] sm:$0xff]
    %v674 = vld [vmem:[#allocation7 + $0x252] sm:$0x3f]
    %v675 = vld [vmem:[#allocation9 + $0x2] sm:$0x1]
    %v676 = vperm.slane %v675, 0
    %v677 = vmul.f32 %v600, %v676
    %v678 = vmul.f32 %v601, %v676
    %v679 = vmul.f32 %v602, %v676
    %v680 = vmul.f32 %v603, %v676
    %v681 = vmul.f32 %v604, %v676
    %v682 = vmul.f32 %v605, %v676
    %v683 = vmul.f32 %v606, %v676
    %v684 = vmul.f32 %v607, %v676
    %v685 = vmul.f32 %v608, %v676
    %v686 = vmul.f32 %v609, %v676
    %v687 = vmul.f32 %v610, %v676
    %v688 = vmul.f32 %v611, %v676
    %v689 = vmul.f32 %v612, %v676
    %v690 = vmul.f32 %v613, %v676
    %v691 = vmul.f32 %v614, %v676
    %v692 = vmul.f32 %v615, %v676
    %v693 = vmul.f32 %v616, %v676
    %v694 = vmul.f32 %v617, %v676
    %v695 = vmul.f32 %v618, %v676
    %v696 = vmul.f32 %v619, %v676
    %v697 = vmul.f32 %v620, %v676
    %v698 = vmul.f32 %v621, %v676
    %v699 = vmul.f32 %v622, %v676
    %v700 = vmul.f32 %v623, %v676
    %v701 = vmul.f32 %v624, %v676
    %v702 = vmul.f32 %v625, %v676
    %v703 = vmul.f32 %v626, %v676
    %v704 = vmul.f32 %v627, %v676
    %v705 = vmul.f32 %v628, %v676
    %v706 = vmul.f32 %v629, %v676
    %v707 = vmul.f32 %v630, %v676
    %v708 = vmul.f32 %v631, %v676
    %v709 = vmul.f32 %v632, %v676
    %v710 = vmul.f32 %v633, %v676
    %v711 = vmul.f32 %v634, %v676
    %v712 = vmul.f32 %v635, %v676
    %v713 = vmul.f32 %v636, %v676
    %v714 = vmul.f32 %v637, %v676
    %v715 = vmul.f32 %v638, %v676
    %v716 = vmul.f32 %v639, %v676
    %v717 = vmul.f32 %v640, %v676
    %v718 = vmul.f32 %v641, %v676
    %v719 = vmul.f32 %v642, %v676
    %v720 = vmul.f32 %v643, %v676
    %v721 = vmul.f32 %v644, %v676
    %v722 = vmul.f32 %v645, %v676
    %v723 = vmul.f32 %v646, %v676
    %v724 = vmul.f32 %v647, %v676
    %v725 = vmul.f32 %v648, %v676
    %v726 = vmul.f32 %v649, %v676
    %v727 = vmul.f32 %v650, %v676
    %v728 = vmul.f32 %v651, %v676
    %v729 = vmul.f32 %v652, %v676
    %v730 = vmul.f32 %v653, %v676
    %v731 = vmul.f32 %v654, %v676
    %v732 = vmul.f32 %v655, %v676
    %v733 = vmul.f32 %v656, %v676
    %v734 = vmul.f32 %v657, %v676
    %v735 = vmul.f32 %v658, %v676
    %v736 = vmul.f32 %v659, %v676
    %v737 = vmul.f32 %v660, %v676
    %v738 = vmul.f32 %v661, %v676
    %v739 = vmul.f32 %v662, %v676
    %v740 = vmul.f32 %v663, %v676
    %v741 = vmul.f32 %v664, %v676
    %v742 = vmul.f32 %v665, %v676
    %v743 = vmul.f32 %v666, %v676
    %v744 = vmul.f32 %v667, %v676
    %v745 = vmul.f32 %v668, %v676
    %v746 = vmul.f32 %v669, %v676
    %v747 = vmul.f32 %v670, %v676
    %v748 = vmul.f32 %v671, %v676
    %v749 = vmul.f32 %v672, %v676
    %v750 = vmul.f32 %v673, %v676
    %v751 = vmul.f32 %v674, %v676
    %v752 = vadd.f32 %v525, %v677
    %v753 = vadd.f32 %v526, %v678
    %v754 = vadd.f32 %v527, %v679
    %v755 = vadd.f32 %v528, %v680
    %v756 = vadd.f32 %v529, %v681
    %v757 = vadd.f32 %v530, %v682
    %v758 = vadd.f32 %v531, %v683
    %v759 = vadd.f32 %v532, %v684
    %v760 = vadd.f32 %v533, %v685
    %v761 = vadd.f32 %v534, %v686
    %v762 = vadd.f32 %v535, %v687
    %v763 = vadd.f32 %v536, %v688
    %v764 = vadd.f32 %v537, %v689
    %v765 = vadd.f32 %v538, %v690
    %v766 = vadd.f32 %v539, %v691
    %v767 = vadd.f32 %v540, %v692
    %v768 = vadd.f32 %v541, %v693
    %v769 = vadd.f32 %v542, %v694
    %v770 = vadd.f32 %v543, %v695
    %v771 = vadd.f32 %v544, %v696
    %v772 = vadd.f32 %v545, %v697
    %v773 = vadd.f32 %v546, %v698
    %v774 = vadd.f32 %v547, %v699
    %v775 = vadd.f32 %v548, %v700
    %v776 = vadd.f32 %v549, %v701
    %v777 = vadd.f32 %v550, %v702
    %v778 = vadd.f32 %v551, %v703
    %v779 = vadd.f32 %v552, %v704
    %v780 = vadd.f32 %v553, %v705
    %v781 = vadd.f32 %v554, %v706
    %v782 = vadd.f32 %v555, %v707
    %v783 = vadd.f32 %v556, %v708
    %v784 = vadd.f32 %v557, %v709
    %v785 = vadd.f32 %v558, %v710
    %v786 = vadd.f32 %v559, %v711
    %v787 = vadd.f32 %v560, %v712
    %v788 = vadd.f32 %v561, %v713
    %v789 = vadd.f32 %v562, %v714
    %v790 = vadd.f32 %v563, %v715
    %v791 = vadd.f32 %v564, %v716
    %v792 = vadd.f32 %v565, %v717
    %v793 = vadd.f32 %v566, %v718
    %v794 = vadd.f32 %v567, %v719
    %v795 = vadd.f32 %v568, %v720
    %v796 = vadd.f32 %v569, %v721
    %v797 = vadd.f32 %v570, %v722
    %v798 = vadd.f32 %v571, %v723
    %v799 = vadd.f32 %v572, %v724
    %v800 = vadd.f32 %v573, %v725
    %v801 = vadd.f32 %v574, %v726
    %v802 = vadd.f32 %v575, %v727
    %v803 = vadd.f32 %v576, %v728
    %v804 = vadd.f32 %v577, %v729
    %v805 = vadd.f32 %v578, %v730
    %v806 = vadd.f32 %v579, %v731
    %v807 = vadd.f32 %v580, %v732
    %v808 = vadd.f32 %v581, %v733
    %v809 = vadd.f32 %v582, %v734
    %v810 = vadd.f32 %v583, %v735
    %v811 = vadd.f32 %v584, %v736
    %v812 = vadd.f32 %v585, %v737
    %v813 = vadd.f32 %v586, %v738
    %v814 = vadd.f32 %v587, %v739
    %v815 = vadd.f32 %v588, %v740
    %v816 = vadd.f32 %v589, %v741
    %v817 = vadd.f32 %v590, %v742
    %v818 = vadd.f32 %v591, %v743
    %v819 = vadd.f32 %v592, %v744
    %v820 = vadd.f32 %v593, %v745
    %v821 = vadd.f32 %v594, %v746
    %v822 = vadd.f32 %v595, %v747
    %v823 = vadd.f32 %v596, %v748
    %v824 = vadd.f32 %v597, %v749
    %v825 = vadd.f32 %v598, %v750
    %v826 = vadd.f32 %v599, %v751
    %v827 = vld [vmem:[#allocation7 + $0x3] sm:$0xff]
    %v828 = vld [vmem:[#allocation7 + $0xb] sm:$0xff]
    %v829 = vld [vmem:[#allocation7 + $0x13] sm:$0xff]
    %v830 = vld [vmem:[#allocation7 + $0x1b] sm:$0xff]
    %v831 = vld [vmem:[#allocation7 + $0x23] sm:$0xff]
    %v832 = vld [vmem:[#allocation7 + $0x2b] sm:$0xff]
    %v833 = vld [vmem:[#allocation7 + $0x33] sm:$0xff]
    %v834 = vld [vmem:[#allocation7 + $0x3b] sm:$0xff]
    %v835 = vld [vmem:[#allocation7 + $0x43] sm:$0xff]
    %v836 = vld [vmem:[#allocation7 + $0x4b] sm:$0xff]
    %v837 = vld [vmem:[#allocation7 + $0x53] sm:$0xff]
    %v838 = vld [vmem:[#allocation7 + $0x5b] sm:$0xff]
    %v839 = vld [vmem:[#allocation7 + $0x63] sm:$0xff]
    %v840 = vld [vmem:[#allocation7 + $0x6b] sm:$0xff]
    %v841 = vld [vmem:[#allocation7 + $0x73] sm:$0xff]
    %v842 = vld [vmem:[#allocation7 + $0x7b] sm:$0xff]
    %v843 = vld [vmem:[#allocation7 + $0x83] sm:$0xff]
    %v844 = vld [vmem:[#allocation7 + $0x8b] sm:$0xff]
    %v845 = vld [vmem:[#allocation7 + $0x93] sm:$0xff]
    %v846 = vld [vmem:[#allocation7 + $0x9b] sm:$0xff]
    %v847 = vld [vmem:[#allocation7 + $0xa3] sm:$0xff]
    %v848 = vld [vmem:[#allocation7 + $0xab] sm:$0xff]
    %v849 = vld [vmem:[#allocation7 + $0xb3] sm:$0xff]
    %v850 = vld [vmem:[#allocation7 + $0xbb] sm:$0xff]
    %v851 = vld [vmem:[#allocation7 + $0xc3] sm:$0xff]
    %v852 = vld [vmem:[#allocation7 + $0xcb] sm:$0xff]
    %v853 = vld [vmem:[#allocation7 + $0xd3] sm:$0xff]
    %v854 = vld [vmem:[#allocation7 + $0xdb] sm:$0xff]
    %v855 = vld [vmem:[#allocation7 + $0xe3] sm:$0xff]
    %v856 = vld [vmem:[#allocation7 + $0xeb] sm:$0xff]
    %v857 = vld [vmem:[#allocation7 + $0xf3] sm:$0xff]
    %v858 = vld [vmem:[#allocation7 + $0xfb] sm:$0xff]
    %v859 = vld [vmem:[#allocation7 + $0x103] sm:$0xff]
    %v860 = vld [vmem:[#allocation7 + $0x10b] sm:$0xff]
    %v861 = vld [vmem:[#allocation7 + $0x113] sm:$0xff]
    %v862 = vld [vmem:[#allocation7 + $0x11b] sm:$0xff]
    %v863 = vld [vmem:[#allocation7 + $0x123] sm:$0xff]
    %v864 = vld [vmem:[#allocation7 + $0x12b] sm:$0xff]
    %v865 = vld [vmem:[#allocation7 + $0x133] sm:$0xff]
    %v866 = vld [vmem:[#allocation7 + $0x13b] sm:$0xff]
    %v867 = vld [vmem:[#allocation7 + $0x143] sm:$0xff]
    %v868 = vld [vmem:[#allocation7 + $0x14b] sm:$0xff]
    %v869 = vld [vmem:[#allocation7 + $0x153] sm:$0xff]
    %v870 = vld [vmem:[#allocation7 + $0x15b] sm:$0xff]
    %v871 = vld [vmem:[#allocation7 + $0x163] sm:$0xff]
    %v872 = vld [vmem:[#allocation7 + $0x16b] sm:$0xff]
    %v873 = vld [vmem:[#allocation7 + $0x173] sm:$0xff]
    %v874 = vld [vmem:[#allocation7 + $0x17b] sm:$0xff]
    %v875 = vld [vmem:[#allocation7 + $0x183] sm:$0xff]
    %v876 = vld [vmem:[#allocation7 + $0x18b] sm:$0xff]
    %v877 = vld [vmem:[#allocation7 + $0x193] sm:$0xff]
    %v878 = vld [vmem:[#allocation7 + $0x19b] sm:$0xff]
    %v879 = vld [vmem:[#allocation7 + $0x1a3] sm:$0xff]
    %v880 = vld [vmem:[#allocation7 + $0x1ab] sm:$0xff]
    %v881 = vld [vmem:[#allocation7 + $0x1b3] sm:$0xff]
    %v882 = vld [vmem:[#allocation7 + $0x1bb] sm:$0xff]
    %v883 = vld [vmem:[#allocation7 + $0x1c3] sm:$0xff]
    %v884 = vld [vmem:[#allocation7 + $0x1cb] sm:$0xff]
    %v885 = vld [vmem:[#allocation7 + $0x1d3] sm:$0xff]
    %v886 = vld [vmem:[#allocation7 + $0x1db] sm:$0xff]
    %v887 = vld [vmem:[#allocation7 + $0x1e3] sm:$0xff]
    %v888 = vld [vmem:[#allocation7 + $0x1eb] sm:$0xff]
    %v889 = vld [vmem:[#allocation7 + $0x1f3] sm:$0xff]
    %v890 = vld [vmem:[#allocation7 + $0x1fb] sm:$0xff]
    %v891 = vld [vmem:[#allocation7 + $0x203] sm:$0xff]
    %v892 = vld [vmem:[#allocation7 + $0x20b] sm:$0xff]
    %v893 = vld [vmem:[#allocation7 + $0x213] sm:$0xff]
    %v894 = vld [vmem:[#allocation7 + $0x21b] sm:$0xff]
    %v895 = vld [vmem:[#allocation7 + $0x223] sm:$0xff]
    %v896 = vld [vmem:[#allocation7 + $0x22b] sm:$0xff]
    %v897 = vld [vmem:[#allocation7 + $0x233] sm:$0xff]
    %v898 = vld [vmem:[#allocation7 + $0x23b] sm:$0xff]
    %v899 = vld [vmem:[#allocation7 + $0x243] sm:$0xff]
    %v900 = vld [vmem:[#allocation7 + $0x24b] sm:$0xff]
    %v901 = vld [vmem:[#allocation7 + $0x253] sm:$0x3f]
    %v902 = vld [vmem:[#allocation9 + $0x3] sm:$0x1]
    %v903 = vperm.slane %v902, 0
    %v904 = vmul.f32 %v827, %v903
    %v905 = vmul.f32 %v828, %v903
    %v906 = vmul.f32 %v829, %v903
    %v907 = vmul.f32 %v830, %v903
    %v908 = vmul.f32 %v831, %v903
    %v909 = vmul.f32 %v832, %v903
    %v910 = vmul.f32 %v833, %v903
    %v911 = vmul.f32 %v834, %v903
    %v912 = vmul.f32 %v835, %v903
    %v913 = vmul.f32 %v836, %v903
    %v914 = vmul.f32 %v837, %v903
    %v915 = vmul.f32 %v838, %v903
    %v916 = vmul.f32 %v839, %v903
    %v917 = vmul.f32 %v840, %v903
    %v918 = vmul.f32 %v841, %v903
    %v919 = vmul.f32 %v842, %v903
    %v920 = vmul.f32 %v843, %v903
    %v921 = vmul.f32 %v844, %v903
    %v922 = vmul.f32 %v845, %v903
    %v923 = vmul.f32 %v846, %v903
    %v924 = vmul.f32 %v847, %v903
    %v925 = vmul.f32 %v848, %v903
    %v926 = vmul.f32 %v849, %v903
    %v927 = vmul.f32 %v850, %v903
    %v928 = vmul.f32 %v851, %v903
    %v929 = vmul.f32 %v852, %v903
    %v930 = vmul.f32 %v853, %v903
    %v931 = vmul.f32 %v854, %v903
    %v932 = vmul.f32 %v855, %v903
    %v933 = vmul.f32 %v856, %v903
    %v934 = vmul.f32 %v857, %v903
    %v935 = vmul.f32 %v858, %v903
    %v936 = vmul.f32 %v859, %v903
    %v937 = vmul.f32 %v860, %v903
    %v938 = vmul.f32 %v861, %v903
    %v939 = vmul.f32 %v862, %v903
    %v940 = vmul.f32 %v863, %v903
    %v941 = vmul.f32 %v864, %v903
    %v942 = vmul.f32 %v865, %v903
    %v943 = vmul.f32 %v866, %v903
    %v944 = vmul.f32 %v867, %v903
    %v945 = vmul.f32 %v868, %v903
    %v946 = vmul.f32 %v869, %v903
    %v947 = vmul.f32 %v870, %v903
    %v948 = vmul.f32 %v871, %v903
    %v949 = vmul.f32 %v872, %v903
    %v950 = vmul.f32 %v873, %v903
    %v951 = vmul.f32 %v874, %v903
    %v952 = vmul.f32 %v875, %v903
    %v953 = vmul.f32 %v876, %v903
    %v954 = vmul.f32 %v877, %v903
    %v955 = vmul.f32 %v878, %v903
    %v956 = vmul.f32 %v879, %v903
    %v957 = vmul.f32 %v880, %v903
    %v958 = vmul.f32 %v881, %v903
    %v959 = vmul.f32 %v882, %v903
    %v960 = vmul.f32 %v883, %v903
    %v961 = vmul.f32 %v884, %v903
    %v962 = vmul.f32 %v885, %v903
    %v963 = vmul.f32 %v886, %v903
    %v964 = vmul.f32 %v887, %v903
    %v965 = vmul.f32 %v888, %v903
    %v966 = vmul.f32 %v889, %v903
    %v967 = vmul.f32 %v890, %v903
    %v968 = vmul.f32 %v891, %v903
    %v969 = vmul.f32 %v892, %v903
    %v970 = vmul.f32 %v893, %v903
    %v971 = vmul.f32 %v894, %v903
    %v972 = vmul.f32 %v895, %v903
    %v973 = vmul.f32 %v896, %v903
    %v974 = vmul.f32 %v897, %v903
    %v975 = vmul.f32 %v898, %v903
    %v976 = vmul.f32 %v899, %v903
    %v977 = vmul.f32 %v900, %v903
    %v978 = vmul.f32 %v901, %v903
    %v979 = vadd.f32 %v752, %v904
    %v980 = vadd.f32 %v753, %v905
    %v981 = vadd.f32 %v754, %v906
    %v982 = vadd.f32 %v755, %v907
    %v983 = vadd.f32 %v756, %v908
    %v984 = vadd.f32 %v757, %v909
    %v985 = vadd.f32 %v758, %v910
    %v986 = vadd.f32 %v759, %v911
    %v987 = vadd.f32 %v760, %v912
    %v988 = vadd.f32 %v761, %v913
    %v989 = vadd.f32 %v762, %v914
    %v990 = vadd.f32 %v763, %v915
    %v991 = vadd.f32 %v764, %v916
    %v992 = vadd.f32 %v765, %v917
    %v993 = vadd.f32 %v766, %v918
    %v994 = vadd.f32 %v767, %v919
    %v995 = vadd.f32 %v768, %v920
    %v996 = vadd.f32 %v769, %v921
    %v997 = vadd.f32 %v770, %v922
    %v998 = vadd.f32 %v771, %v923
    %v999 = vadd.f32 %v772, %v924
    %v1000 = vadd.f32 %v773, %v925
    %v1001 = vadd.f32 %v774, %v926
    %v1002 = vadd.f32 %v775, %v927
    %v1003 = vadd.f32 %v776, %v928
    %v1004 = vadd.f32 %v777, %v929
    %v1005 = vadd.f32 %v778, %v930
    %v1006 = vadd.f32 %v779, %v931
    %v1007 = vadd.f32 %v780, %v932
    %v1008 = vadd.f32 %v781, %v933
    %v1009 = vadd.f32 %v782, %v934
    %v1010 = vadd.f32 %v783, %v935
    %v1011 = vadd.f32 %v784, %v936
    %v1012 = vadd.f32 %v785, %v937
    %v1013 = vadd.f32 %v786, %v938
    %v1014 = vadd.f32 %v787, %v939
    %v1015 = vadd.f32 %v788, %v940
    %v1016 = vadd.f32 %v789, %v941
    %v1017 = vadd.f32 %v790, %v942
    %v1018 = vadd.f32 %v791, %v943
    %v1019 = vadd.f32 %v792, %v944
    %v1020 = vadd.f32 %v793, %v945
    %v1021 = vadd.f32 %v794, %v946
    %v1022 = vadd.f32 %v795, %v947
    %v1023 = vadd.f32 %v796, %v948
    %v1024 = vadd.f32 %v797, %v949
    %v1025 = vadd.f32 %v798, %v950
    %v1026 = vadd.f32 %v799, %v951
    %v1027 = vadd.f32 %v800, %v952
    %v1028 = vadd.f32 %v801, %v953
    %v1029 = vadd.f32 %v802, %v954
    %v1030 = vadd.f32 %v803, %v955
    %v1031 = vadd.f32 %v804, %v956
    %v1032 = vadd.f32 %v805, %v957
    %v1033 = vadd.f32 %v806, %v958
    %v1034 = vadd.f32 %v807, %v959
    %v1035 = vadd.f32 %v808, %v960
    %v1036 = vadd.f32 %v809, %v961
    %v1037 = vadd.f32 %v810, %v962
    %v1038 = vadd.f32 %v811, %v963
    %v1039 = vadd.f32 %v812, %v964
    %v1040 = vadd.f32 %v813, %v965
    %v1041 = vadd.f32 %v814, %v966
    %v1042 = vadd.f32 %v815, %v967
    %v1043 = vadd.f32 %v816, %v968
    %v1044 = vadd.f32 %v817, %v969
    %v1045 = vadd.f32 %v818, %v970
    %v1046 = vadd.f32 %v819, %v971
    %v1047 = vadd.f32 %v820, %v972
    %v1048 = vadd.f32 %v821, %v973
    %v1049 = vadd.f32 %v822, %v974
    %v1050 = vadd.f32 %v823, %v975
    %v1051 = vadd.f32 %v824, %v976
    %v1052 = vadd.f32 %v825, %v977
    %v1053 = vadd.f32 %v826, %v978
    %v1054 = vld [vmem:[#allocation7 + $0x4] sm:$0xff]
    %v1055 = vld [vmem:[#allocation7 + $0xc] sm:$0xff]
    %v1056 = vld [vmem:[#allocation7 + $0x14] sm:$0xff]
    %v1057 = vld [vmem:[#allocation7 + $0x1c] sm:$0xff]
    %v1058 = vld [vmem:[#allocation7 + $0x24] sm:$0xff]
    %v1059 = vld [vmem:[#allocation7 + $0x2c] sm:$0xff]
    %v1060 = vld [vmem:[#allocation7 + $0x34] sm:$0xff]
    %v1061 = vld [vmem:[#allocation7 + $0x3c] sm:$0xff]
    %v1062 = vld [vmem:[#allocation7 + $0x44] sm:$0xff]
    %v1063 = vld [vmem:[#allocation7 + $0x4c] sm:$0xff]
    %v1064 = vld [vmem:[#allocation7 + $0x54] sm:$0xff]
    %v1065 = vld [vmem:[#allocation7 + $0x5c] sm:$0xff]
    %v1066 = vld [vmem:[#allocation7 + $0x64] sm:$0xff]
    %v1067 = vld [vmem:[#allocation7 + $0x6c] sm:$0xff]
    %v1068 = vld [vmem:[#allocation7 + $0x74] sm:$0xff]
    %v1069 = vld [vmem:[#allocation7 + $0x7c] sm:$0xff]
    %v1070 = vld [vmem:[#allocation7 + $0x84] sm:$0xff]
    %v1071 = vld [vmem:[#allocation7 + $0x8c] sm:$0xff]
    %v1072 = vld [vmem:[#allocation7 + $0x94] sm:$0xff]
    %v1073 = vld [vmem:[#allocation7 + $0x9c] sm:$0xff]
    %v1074 = vld [vmem:[#allocation7 + $0xa4] sm:$0xff]
    %v1075 = vld [vmem:[#allocation7 + $0xac] sm:$0xff]
    %v1076 = vld [vmem:[#allocation7 + $0xb4] sm:$0xff]
    %v1077 = vld [vmem:[#allocation7 + $0xbc] sm:$0xff]
    %v1078 = vld [vmem:[#allocation7 + $0xc4] sm:$0xff]
    %v1079 = vld [vmem:[#allocation7 + $0xcc] sm:$0xff]
    %v1080 = vld [vmem:[#allocation7 + $0xd4] sm:$0xff]
    %v1081 = vld [vmem:[#allocation7 + $0xdc] sm:$0xff]
    %v1082 = vld [vmem:[#allocation7 + $0xe4] sm:$0xff]
    %v1083 = vld [vmem:[#allocation7 + $0xec] sm:$0xff]
    %v1084 = vld [vmem:[#allocation7 + $0xf4] sm:$0xff]
    %v1085 = vld [vmem:[#allocation7 + $0xfc] sm:$0xff]
    %v1086 = vld [vmem:[#allocation7 + $0x104] sm:$0xff]
    %v1087 = vld [vmem:[#allocation7 + $0x10c] sm:$0xff]
    %v1088 = vld [vmem:[#allocation7 + $0x114] sm:$0xff]
    %v1089 = vld [vmem:[#allocation7 + $0x11c] sm:$0xff]
    %v1090 = vld [vmem:[#allocation7 + $0x124] sm:$0xff]
    %v1091 = vld [vmem:[#allocation7 + $0x12c] sm:$0xff]
    %v1092 = vld [vmem:[#allocation7 + $0x134] sm:$0xff]
    %v1093 = vld [vmem:[#allocation7 + $0x13c] sm:$0xff]
    %v1094 = vld [vmem:[#allocation7 + $0x144] sm:$0xff]
    %v1095 = vld [vmem:[#allocation7 + $0x14c] sm:$0xff]
    %v1096 = vld [vmem:[#allocation7 + $0x154] sm:$0xff]
    %v1097 = vld [vmem:[#allocation7 + $0x15c] sm:$0xff]
    %v1098 = vld [vmem:[#allocation7 + $0x164] sm:$0xff]
    %v1099 = vld [vmem:[#allocation7 + $0x16c] sm:$0xff]
    %v1100 = vld [vmem:[#allocation7 + $0x174] sm:$0xff]
    %v1101 = vld [vmem:[#allocation7 + $0x17c] sm:$0xff]
    %v1102 = vld [vmem:[#allocation7 + $0x184] sm:$0xff]
    %v1103 = vld [vmem:[#allocation7 + $0x18c] sm:$0xff]
    %v1104 = vld [vmem:[#allocation7 + $0x194] sm:$0xff]
    %v1105 = vld [vmem:[#allocation7 + $0x19c] sm:$0xff]
    %v1106 = vld [vmem:[#allocation7 + $0x1a4] sm:$0xff]
    %v1107 = vld [vmem:[#allocation7 + $0x1ac] sm:$0xff]
    %v1108 = vld [vmem:[#allocation7 + $0x1b4] sm:$0xff]
    %v1109 = vld [vmem:[#allocation7 + $0x1bc] sm:$0xff]
    %v1110 = vld [vmem:[#allocation7 + $0x1c4] sm:$0xff]
    %v1111 = vld [vmem:[#allocation7 + $0x1cc] sm:$0xff]
    %v1112 = vld [vmem:[#allocation7 + $0x1d4] sm:$0xff]
    %v1113 = vld [vmem:[#allocation7 + $0x1dc] sm:$0xff]
    %v1114 = vld [vmem:[#allocation7 + $0x1e4] sm:$0xff]
    %v1115 = vld [vmem:[#allocation7 + $0x1ec] sm:$0xff]
    %v1116 = vld [vmem:[#allocation7 + $0x1f4] sm:$0xff]
    %v1117 = vld [vmem:[#allocation7 + $0x1fc] sm:$0xff]
    %v1118 = vld [vmem:[#allocation7 + $0x204] sm:$0xff]
    %v1119 = vld [vmem:[#allocation7 + $0x20c] sm:$0xff]
    %v1120 = vld [vmem:[#allocation7 + $0x214] sm:$0xff]
    %v1121 = vld [vmem:[#allocation7 + $0x21c] sm:$0xff]
    %v1122 = vld [vmem:[#allocation7 + $0x224] sm:$0xff]
    %v1123 = vld [vmem:[#allocation7 + $0x22c] sm:$0xff]
    %v1124 = vld [vmem:[#allocation7 + $0x234] sm:$0xff]
    %v1125 = vld [vmem:[#allocation7 + $0x23c] sm:$0xff]
    %v1126 = vld [vmem:[#allocation7 + $0x244] sm:$0xff]
    %v1127 = vld [vmem:[#allocation7 + $0x24c] sm:$0xff]
    %v1128 = vld [vmem:[#allocation7 + $0x254] sm:$0x3f]
    %v1129 = vld [vmem:[#allocation9 + $0x4] sm:$0x1]
    %v1130 = vperm.slane %v1129, 0
    %v1131 = vmul.f32 %v1054, %v1130
    %v1132 = vmul.f32 %v1055, %v1130
    %v1133 = vmul.f32 %v1056, %v1130
    %v1134 = vmul.f32 %v1057, %v1130
    %v1135 = vmul.f32 %v1058, %v1130
    %v1136 = vmul.f32 %v1059, %v1130
    %v1137 = vmul.f32 %v1060, %v1130
    %v1138 = vmul.f32 %v1061, %v1130
    %v1139 = vmul.f32 %v1062, %v1130
    %v1140 = vmul.f32 %v1063, %v1130
    %v1141 = vmul.f32 %v1064, %v1130
    %v1142 = vmul.f32 %v1065, %v1130
    %v1143 = vmul.f32 %v1066, %v1130
    %v1144 = vmul.f32 %v1067, %v1130
    %v1145 = vmul.f32 %v1068, %v1130
    %v1146 = vmul.f32 %v1069, %v1130
    %v1147 = vmul.f32 %v1070, %v1130
    %v1148 = vmul.f32 %v1071, %v1130
    %v1149 = vmul.f32 %v1072, %v1130
    %v1150 = vmul.f32 %v1073, %v1130
    %v1151 = vmul.f32 %v1074, %v1130
    %v1152 = vmul.f32 %v1075, %v1130
    %v1153 = vmul.f32 %v1076, %v1130
    %v1154 = vmul.f32 %v1077, %v1130
    %v1155 = vmul.f32 %v1078, %v1130
    %v1156 = vmul.f32 %v1079, %v1130
    %v1157 = vmul.f32 %v1080, %v1130
    %v1158 = vmul.f32 %v1081, %v1130
    %v1159 = vmul.f32 %v1082, %v1130
    %v1160 = vmul.f32 %v1083, %v1130
    %v1161 = vmul.f32 %v1084, %v1130
    %v1162 = vmul.f32 %v1085, %v1130
    %v1163 = vmul.f32 %v1086, %v1130
    %v1164 = vmul.f32 %v1087, %v1130
    %v1165 = vmul.f32 %v1088, %v1130
    %v1166 = vmul.f32 %v1089, %v1130
    %v1167 = vmul.f32 %v1090, %v1130
    %v1168 = vmul.f32 %v1091, %v1130
    %v1169 = vmul.f32 %v1092, %v1130
    %v1170 = vmul.f32 %v1093, %v1130
    %v1171 = vmul.f32 %v1094, %v1130
    %v1172 = vmul.f32 %v1095, %v1130
    %v1173 = vmul.f32 %v1096, %v1130
    %v1174 = vmul.f32 %v1097, %v1130
    %v1175 = vmul.f32 %v1098, %v1130
    %v1176 = vmul.f32 %v1099, %v1130
    %v1177 = vmul.f32 %v1100, %v1130
    %v1178 = vmul.f32 %v1101, %v1130
    %v1179 = vmul.f32 %v1102, %v1130
    %v1180 = vmul.f32 %v1103, %v1130
    %v1181 = vmul.f32 %v1104, %v1130
    %v1182 = vmul.f32 %v1105, %v1130
    %v1183 = vmul.f32 %v1106, %v1130
    %v1184 = vmul.f32 %v1107, %v1130
    %v1185 = vmul.f32 %v1108, %v1130
    %v1186 = vmul.f32 %v1109, %v1130
    %v1187 = vmul.f32 %v1110, %v1130
    %v1188 = vmul.f32 %v1111, %v1130
    %v1189 = vmul.f32 %v1112, %v1130
    %v1190 = vmul.f32 %v1113, %v1130
    %v1191 = vmul.f32 %v1114, %v1130
    %v1192 = vmul.f32 %v1115, %v1130
    %v1193 = vmul.f32 %v1116, %v1130
    %v1194 = vmul.f32 %v1117, %v1130
    %v1195 = vmul.f32 %v1118, %v1130
    %v1196 = vmul.f32 %v1119, %v1130
    %v1197 = vmul.f32 %v1120, %v1130
    %v1198 = vmul.f32 %v1121, %v1130
    %v1199 = vmul.f32 %v1122, %v1130
    %v1200 = vmul.f32 %v1123, %v1130
    %v1201 = vmul.f32 %v1124, %v1130
    %v1202 = vmul.f32 %v1125, %v1130
    %v1203 = vmul.f32 %v1126, %v1130
    %v1204 = vmul.f32 %v1127, %v1130
    %v1205 = vmul.f32 %v1128, %v1130
    %v1206 = vadd.f32 %v979, %v1131
    %v1207 = vadd.f32 %v980, %v1132
    %v1208 = vadd.f32 %v981, %v1133
    %v1209 = vadd.f32 %v982, %v1134
    %v1210 = vadd.f32 %v983, %v1135
    %v1211 = vadd.f32 %v984, %v1136
    %v1212 = vadd.f32 %v985, %v1137
    %v1213 = vadd.f32 %v986, %v1138
    %v1214 = vadd.f32 %v987, %v1139
    %v1215 = vadd.f32 %v988, %v1140
    %v1216 = vadd.f32 %v989, %v1141
    %v1217 = vadd.f32 %v990, %v1142
    %v1218 = vadd.f32 %v991, %v1143
    %v1219 = vadd.f32 %v992, %v1144
    %v1220 = vadd.f32 %v993, %v1145
    %v1221 = vadd.f32 %v994, %v1146
    %v1222 = vadd.f32 %v995, %v1147
    %v1223 = vadd.f32 %v996, %v1148
    %v1224 = vadd.f32 %v997, %v1149
    %v1225 = vadd.f32 %v998, %v1150
    %v1226 = vadd.f32 %v999, %v1151
    %v1227 = vadd.f32 %v1000, %v1152
    %v1228 = vadd.f32 %v1001, %v1153
    %v1229 = vadd.f32 %v1002, %v1154
    %v1230 = vadd.f32 %v1003, %v1155
    %v1231 = vadd.f32 %v1004, %v1156
    %v1232 = vadd.f32 %v1005, %v1157
    %v1233 = vadd.f32 %v1006, %v1158
    %v1234 = vadd.f32 %v1007, %v1159
    %v1235 = vadd.f32 %v1008, %v1160
    %v1236 = vadd.f32 %v1009, %v1161
    %v1237 = vadd.f32 %v1010, %v1162
    %v1238 = vadd.f32 %v1011, %v1163
    %v1239 = vadd.f32 %v1012, %v1164
    %v1240 = vadd.f32 %v1013, %v1165
    %v1241 = vadd.f32 %v1014, %v1166
    %v1242 = vadd.f32 %v1015, %v1167
    %v1243 = vadd.f32 %v1016, %v1168
    %v1244 = vadd.f32 %v1017, %v1169
    %v1245 = vadd.f32 %v1018, %v1170
    %v1246 = vadd.f32 %v1019, %v1171
    %v1247 = vadd.f32 %v1020, %v1172
    %v1248 = vadd.f32 %v1021, %v1173
    %v1249 = vadd.f32 %v1022, %v1174
    %v1250 = vadd.f32 %v1023, %v1175
    %v1251 = vadd.f32 %v1024, %v1176
    %v1252 = vadd.f32 %v1025, %v1177
    %v1253 = vadd.f32 %v1026, %v1178
    %v1254 = vadd.f32 %v1027, %v1179
    %v1255 = vadd.f32 %v1028, %v1180
    %v1256 = vadd.f32 %v1029, %v1181
    %v1257 = vadd.f32 %v1030, %v1182
    %v1258 = vadd.f32 %v1031, %v1183
    %v1259 = vadd.f32 %v1032, %v1184
    %v1260 = vadd.f32 %v1033, %v1185
    %v1261 = vadd.f32 %v1034, %v1186
    %v1262 = vadd.f32 %v1035, %v1187
    %v1263 = vadd.f32 %v1036, %v1188
    %v1264 = vadd.f32 %v1037, %v1189
    %v1265 = vadd.f32 %v1038, %v1190
    %v1266 = vadd.f32 %v1039, %v1191
    %v1267 = vadd.f32 %v1040, %v1192
    %v1268 = vadd.f32 %v1041, %v1193
    %v1269 = vadd.f32 %v1042, %v1194
    %v1270 = vadd.f32 %v1043, %v1195
    %v1271 = vadd.f32 %v1044, %v1196
    %v1272 = vadd.f32 %v1045, %v1197
    %v1273 = vadd.f32 %v1046, %v1198
    %v1274 = vadd.f32 %v1047, %v1199
    %v1275 = vadd.f32 %v1048, %v1200
    %v1276 = vadd.f32 %v1049, %v1201
    %v1277 = vadd.f32 %v1050, %v1202
    %v1278 = vadd.f32 %v1051, %v1203
    %v1279 = vadd.f32 %v1052, %v1204
    %v1280 = vadd.f32 %v1053, %v1205
    %v1281 = vld [vmem:[#allocation11] sm:$0x1]
    %v1283 = vperm.slane %v1281, 0
    %v1285 = vadd.f32 %v1206, %v1283
    %v1286 = vadd.f32 %v1207, %v1283
    %v1287 = vadd.f32 %v1208, %v1283
    %v1288 = vadd.f32 %v1209, %v1283
    %v1289 = vadd.f32 %v1210, %v1283
    %v1290 = vadd.f32 %v1211, %v1283
    %v1291 = vadd.f32 %v1212, %v1283
    %v1292 = vadd.f32 %v1213, %v1283
    %v1293 = vadd.f32 %v1214, %v1283
    %v1294 = vadd.f32 %v1215, %v1283
    %v1295 = vadd.f32 %v1216, %v1283
    %v1296 = vadd.f32 %v1217, %v1283
    %v1297 = vadd.f32 %v1218, %v1283
    %v1298 = vadd.f32 %v1219, %v1283
    %v1299 = vadd.f32 %v1220, %v1283
    %v1300 = vadd.f32 %v1221, %v1283
    %v1301 = vadd.f32 %v1222, %v1283
    %v1302 = vadd.f32 %v1223, %v1283
    %v1303 = vadd.f32 %v1224, %v1283
    %v1304 = vadd.f32 %v1225, %v1283
    %v1305 = vadd.f32 %v1226, %v1283
    %v1306 = vadd.f32 %v1227, %v1283
    %v1307 = vadd.f32 %v1228, %v1283
    %v1308 = vadd.f32 %v1229, %v1283
    %v1309 = vadd.f32 %v1230, %v1283
    %v1310 = vadd.f32 %v1231, %v1283
    %v1311 = vadd.f32 %v1232, %v1283
    %v1312 = vadd.f32 %v1233, %v1283
    %v1313 = vadd.f32 %v1234, %v1283
    %v1314 = vadd.f32 %v1235, %v1283
    %v1315 = vadd.f32 %v1236, %v1283
    %v1316 = vadd.f32 %v1237, %v1283
    %v1317 = vadd.f32 %v1238, %v1283
    %v1318 = vadd.f32 %v1239, %v1283
    %v1319 = vadd.f32 %v1240, %v1283
    %v1320 = vadd.f32 %v1241, %v1283
    %v1321 = vadd.f32 %v1242, %v1283
    %v1322 = vadd.f32 %v1243, %v1283
    %v1323 = vadd.f32 %v1244, %v1283
    %v1324 = vadd.f32 %v1245, %v1283
    %v1325 = vadd.f32 %v1246, %v1283
    %v1326 = vadd.f32 %v1247, %v1283
    %v1327 = vadd.f32 %v1248, %v1283
    %v1328 = vadd.f32 %v1249, %v1283
    %v1329 = vadd.f32 %v1250, %v1283
    %v1330 = vadd.f32 %v1251, %v1283
    %v1331 = vadd.f32 %v1252, %v1283
    %v1332 = vadd.f32 %v1253, %v1283
    %v1333 = vadd.f32 %v1254, %v1283
    %v1334 = vadd.f32 %v1255, %v1283
    %v1335 = vadd.f32 %v1256, %v1283
    %v1336 = vadd.f32 %v1257, %v1283
    %v1337 = vadd.f32 %v1258, %v1283
    %v1338 = vadd.f32 %v1259, %v1283
    %v1339 = vadd.f32 %v1260, %v1283
    %v1340 = vadd.f32 %v1261, %v1283
    %v1341 = vadd.f32 %v1262, %v1283
    %v1342 = vadd.f32 %v1263, %v1283
    %v1343 = vadd.f32 %v1264, %v1283
    %v1344 = vadd.f32 %v1265, %v1283
    %v1345 = vadd.f32 %v1266, %v1283
    %v1346 = vadd.f32 %v1267, %v1283
    %v1347 = vadd.f32 %v1268, %v1283
    %v1348 = vadd.f32 %v1269, %v1283
    %v1349 = vadd.f32 %v1270, %v1283
    %v1350 = vadd.f32 %v1271, %v1283
    %v1351 = vadd.f32 %v1272, %v1283
    %v1352 = vadd.f32 %v1273, %v1283
    %v1353 = vadd.f32 %v1274, %v1283
    %v1354 = vadd.f32 %v1275, %v1283
    %v1355 = vadd.f32 %v1276, %v1283
    %v1356 = vadd.f32 %v1277, %v1283
    %v1357 = vadd.f32 %v1278, %v1283
    %v1358 = vadd.f32 %v1279, %v1283
    %v1359 = vadd.f32 %v1280, %v1283
    %v1360 = vld [vmem:[#allocation12] sm:$0x1]
    %v1361 = vld [vmem:[#allocation14] sm:$0x1]
    %v1362 = vadd.f32 %v1285, %v1286
    %v1363 = vadd.f32 %v1362, %v1287
    %v1364 = vadd.f32 %v1363, %v1288
    %v1365 = vadd.f32 %v1364, %v1289
    %v1366 = vadd.f32 %v1365, %v1290
    %v1367 = vadd.f32 %v1366, %v1291
    %v1368 = vadd.f32 %v1367, %v1292
    %v1369 = vadd.f32 %v1368, %v1293
    %v1370 = vadd.f32 %v1369, %v1294
    %v1371 = vadd.f32 %v1370, %v1295
    %v1372 = vadd.f32 %v1371, %v1296
    %v1373 = vadd.f32 %v1372, %v1297
    %v1374 = vadd.f32 %v1373, %v1298
    %v1375 = vadd.f32 %v1374, %v1299
    %v1376 = vadd.f32 %v1375, %v1300
    %v1377 = vadd.f32 %v1376, %v1301
    %v1378 = vadd.f32 %v1377, %v1302
    %v1379 = vadd.f32 %v1378, %v1303
    %v1380 = vadd.f32 %v1379, %v1304
    %v1381 = vadd.f32 %v1380, %v1305
    %v1382 = vadd.f32 %v1381, %v1306
    %v1383 = vadd.f32 %v1382, %v1307
    %v1384 = vadd.f32 %v1383, %v1308
    %v1385 = vadd.f32 %v1384, %v1309
    %v1386 = vadd.f32 %v1385, %v1310
    %v1387 = vadd.f32 %v1386, %v1311
    %v1388 = vadd.f32 %v1387, %v1312
    %v1389 = vadd.f32 %v1388, %v1313
    %v1390 = vadd.f32 %v1389, %v1314
    %v1391 = vadd.f32 %v1390, %v1315
    %v1392 = vadd.f32 %v1391, %v1316
    %v1393 = vadd.f32 %v1392, %v1317
    %v1394 = vadd.f32 %v1393, %v1318
    %v1395 = vadd.f32 %v1394, %v1319
    %v1396 = vadd.f32 %v1395, %v1320
    %v1397 = vadd.f32 %v1396, %v1321
    %v1398 = vadd.f32 %v1397, %v1322
    %v1399 = vadd.f32 %v1398, %v1323
    %v1400 = vadd.f32 %v1399, %v1324
    %v1401 = vadd.f32 %v1400, %v1325
    %v1402 = vadd.f32 %v1401, %v1326
    %v1403 = vadd.f32 %v1402, %v1327
    %v1404 = vadd.f32 %v1403, %v1328
    %v1405 = vadd.f32 %v1404, %v1329
    %v1406 = vadd.f32 %v1405, %v1330
    %v1407 = vadd.f32 %v1406, %v1331
    %v1408 = vadd.f32 %v1407, %v1332
    %v1409 = vadd.f32 %v1408, %v1333
    %v1410 = vadd.f32 %v1409, %v1334
    %v1411 = vadd.f32 %v1410, %v1335
    %v1412 = vadd.f32 %v1411, %v1336
    %v1413 = vadd.f32 %v1412, %v1337
    %v1414 = vadd.f32 %v1413, %v1338
    %v1415 = vadd.f32 %v1414, %v1339
    %v1416 = vadd.f32 %v1415, %v1340
    %v1417 = vadd.f32 %v1416, %v1341
    %v1418 = vadd.f32 %v1417, %v1342
    %v1419 = vadd.f32 %v1418, %v1343
    %v1420 = vadd.f32 %v1419, %v1344
    %v1421 = vadd.f32 %v1420, %v1345
    %v1422 = vadd.f32 %v1421, %v1346
    %v1423 = vadd.f32 %v1422, %v1347
    %v1424 = vadd.f32 %v1423, %v1348
    %v1425 = vadd.f32 %v1424, %v1349
    %v1426 = vadd.f32 %v1425, %v1350
    %v1427 = vadd.f32 %v1426, %v1351
    %v1428 = vadd.f32 %v1427, %v1352
    %v1429 = vadd.f32 %v1428, %v1353
    %v1430 = vadd.f32 %v1429, %v1354
    %v1431 = vadd.f32 %v1430, %v1355
    %v1432 = vadd.f32 %v1431, %v1356
    %v1433 = vadd.f32 %v1432, %v1357
    %v1434 = vadd.f32 %v1433, %v1358
    %vm1435 = vcmask 1045504
    %v1436 = vsel %vm1435, %v1359, 0.0
    %v1437 = vadd.f32 %v1434, %v1436
    %v1438 = vrot.slane %v1437, 4
    %v1439 = vadd.f32 %v1437, %v1438
    %v1440 = vrot.slane %v1439, 2
    %v1441 = vadd.f32 %v1439, %v1440
    %v1442 = vrot.slane %v1441, 1
    %v1443 = vadd.f32 %v1441, %v1442
    %1445 = vrot.lane.b32.xlu0 %v1443, 96
    %v1446 = vpop.permute.xlu0 %1445
    %v1448 = vadd.f32 %v1443, %v1446
    %1449 = vrot.lane.b32.xlu0 %v1443, 64
    %v1450 = vpop.permute.xlu0 %1449
    %v1452 = vadd.f32 %v1448, %v1450
    %1453 = vrot.lane.b32.xlu0 %v1443, 32
    %v1454 = vpop.permute.xlu0 %1453
    %v1456 = vadd.f32 %v1452, %v1454
    %1458 = vrot.lane.b32.xlu0 %v1456, 32
    %v1459 = vpop.permute.xlu0 %1458
    %1461 = vrot.lane.b32.xlu0 %v1456, 64
    %v1462 = vpop.permute.xlu0 %1461
    %1464 = vrot.lane.b32.xlu0 %v1456, 96
    %v1465 = vpop.permute.xlu0 %1464
    %vm1467 = vcmask 261120
    %v1468 = vsel %vm1467, %v1456, %v1459
    %vm1469 = vcmask 523264
    %v1470 = vsel %vm1469, %v1468, %v1462
    %vm1471 = vcmask 785408
    %v1472 = vsel %vm1471, %v1470, %v1465
    %v1473 = vmul.f32 %v1472, 0.0004180602
    %v1474 = vperm.slane %v1473, 0
    %v1475 = vsub.f32 %v1285, %v1474
    %v1476 = vsub.f32 %v1286, %v1474
    %v1477 = vsub.f32 %v1287, %v1474
    %v1478 = vsub.f32 %v1288, %v1474
    %v1479 = vsub.f32 %v1289, %v1474
    %v1480 = vsub.f32 %v1290, %v1474
    %v1481 = vsub.f32 %v1291, %v1474
    %v1482 = vsub.f32 %v1292, %v1474
    %v1483 = vsub.f32 %v1293, %v1474
    %v1484 = vsub.f32 %v1294, %v1474
    %v1485 = vsub.f32 %v1295, %v1474
    %v1486 = vsub.f32 %v1296, %v1474
    %v1487 = vsub.f32 %v1297, %v1474
    %v1488 = vsub.f32 %v1298, %v1474
    %v1489 = vsub.f32 %v1299, %v1474
    %v1490 = vsub.f32 %v1300, %v1474
    %v1491 = vsub.f32 %v1301, %v1474
    %v1492 = vsub.f32 %v1302, %v1474
    %v1493 = vsub.f32 %v1303, %v1474
    %v1494 = vsub.f32 %v1304, %v1474
    %v1495 = vsub.f32 %v1305, %v1474
    %v1496 = vsub.f32 %v1306, %v1474
    %v1497 = vsub.f32 %v1307, %v1474
    %v1498 = vsub.f32 %v1308, %v1474
    %v1499 = vsub.f32 %v1309, %v1474
    %v1500 = vsub.f32 %v1310, %v1474
    %v1501 = vsub.f32 %v1311, %v1474
    %v1502 = vsub.f32 %v1312, %v1474
    %v1503 = vsub.f32 %v1313, %v1474
    %v1504 = vsub.f32 %v1314, %v1474
    %v1505 = vsub.f32 %v1315, %v1474
    %v1506 = vsub.f32 %v1316, %v1474
    %v1507 = vsub.f32 %v1317, %v1474
    %v1508 = vsub.f32 %v1318, %v1474
    %v1509 = vsub.f32 %v1319, %v1474
    %v1510 = vsub.f32 %v1320, %v1474
    %v1511 = vsub.f32 %v1321, %v1474
    %v1512 = vsub.f32 %v1322, %v1474
    %v1513 = vsub.f32 %v1323, %v1474
    %v1514 = vsub.f32 %v1324, %v1474
    %v1515 = vsub.f32 %v1325, %v1474
    %v1516 = vsub.f32 %v1326, %v1474
    %v1517 = vsub.f32 %v1327, %v1474
    %v1518 = vsub.f32 %v1328, %v1474
    %v1519 = vsub.f32 %v1329, %v1474
    %v1520 = vsub.f32 %v1330, %v1474
    %v1521 = vsub.f32 %v1331, %v1474
    %v1522 = vsub.f32 %v1332, %v1474
    %v1523 = vsub.f32 %v1333, %v1474
    %v1524 = vsub.f32 %v1334, %v1474
    %v1525 = vsub.f32 %v1335, %v1474
    %v1526 = vsub.f32 %v1336, %v1474
    %v1527 = vsub.f32 %v1337, %v1474
    %v1528 = vsub.f32 %v1338, %v1474
    %v1529 = vsub.f32 %v1339, %v1474
    %v1530 = vsub.f32 %v1340, %v1474
    %v1531 = vsub.f32 %v1341, %v1474
    %v1532 = vsub.f32 %v1342, %v1474
    %v1533 = vsub.f32 %v1343, %v1474
    %v1534 = vsub.f32 %v1344, %v1474
    %v1535 = vsub.f32 %v1345, %v1474
    %v1536 = vsub.f32 %v1346, %v1474
    %v1537 = vsub.f32 %v1347, %v1474
    %v1538 = vsub.f32 %v1348, %v1474
    %v1539 = vsub.f32 %v1349, %v1474
    %v1540 = vsub.f32 %v1350, %v1474
    %v1541 = vsub.f32 %v1351, %v1474
    %v1542 = vsub.f32 %v1352, %v1474
    %v1543 = vsub.f32 %v1353, %v1474
    %v1544 = vsub.f32 %v1354, %v1474
    %v1545 = vsub.f32 %v1355, %v1474
    %v1546 = vsub.f32 %v1356, %v1474
    %v1547 = vsub.f32 %v1357, %v1474
    %v1548 = vsub.f32 %v1358, %v1474
    %v1549 = vsub.f32 %v1359, %v1474
    %v1550 = vmul.f32 %v1475, %v1475
    %v1551 = vmul.f32 %v1476, %v1476
    %v1552 = vmul.f32 %v1477, %v1477
    %v1553 = vmul.f32 %v1478, %v1478
    %v1554 = vmul.f32 %v1479, %v1479
    %v1555 = vmul.f32 %v1480, %v1480
    %v1556 = vmul.f32 %v1481, %v1481
    %v1557 = vmul.f32 %v1482, %v1482
    %v1558 = vmul.f32 %v1483, %v1483
    %v1559 = vmul.f32 %v1484, %v1484
    %v1560 = vmul.f32 %v1485, %v1485
    %v1561 = vmul.f32 %v1486, %v1486
    %v1562 = vmul.f32 %v1487, %v1487
    %v1563 = vmul.f32 %v1488, %v1488
    %v1564 = vmul.f32 %v1489, %v1489
    %v1565 = vmul.f32 %v1490, %v1490
    %v1566 = vmul.f32 %v1491, %v1491
    %v1567 = vmul.f32 %v1492, %v1492
    %v1568 = vmul.f32 %v1493, %v1493
    %v1569 = vmul.f32 %v1494, %v1494
    %v1570 = vmul.f32 %v1495, %v1495
    %v1571 = vmul.f32 %v1496, %v1496
    %v1572 = vmul.f32 %v1497, %v1497
    %v1573 = vmul.f32 %v1498, %v1498
    %v1574 = vmul.f32 %v1499, %v1499
    %v1575 = vmul.f32 %v1500, %v1500
    %v1576 = vmul.f32 %v1501, %v1501
    %v1577 = vmul.f32 %v1502, %v1502
    %v1578 = vmul.f32 %v1503, %v1503
    %v1579 = vmul.f32 %v1504, %v1504
    %v1580 = vmul.f32 %v1505, %v1505
    %v1581 = vmul.f32 %v1506, %v1506
    %v1582 = vmul.f32 %v1507, %v1507
    %v1583 = vmul.f32 %v1508, %v1508
    %v1584 = vmul.f32 %v1509, %v1509
    %v1585 = vmul.f32 %v1510, %v1510
    %v1586 = vmul.f32 %v1511, %v1511
    %v1587 = vmul.f32 %v1512, %v1512
    %v1588 = vmul.f32 %v1513, %v1513
    %v1589 = vmul.f32 %v1514, %v1514
    %v1590 = vmul.f32 %v1515, %v1515
    %v1591 = vmul.f32 %v1516, %v1516
    %v1592 = vmul.f32 %v1517, %v1517
    %v1593 = vmul.f32 %v1518, %v1518
    %v1594 = vmul.f32 %v1519, %v1519
    %v1595 = vmul.f32 %v1520, %v1520
    %v1596 = vmul.f32 %v1521, %v1521
    %v1597 = vmul.f32 %v1522, %v1522
    %v1598 = vmul.f32 %v1523, %v1523
    %v1599 = vmul.f32 %v1524, %v1524
    %v1600 = vmul.f32 %v1525, %v1525
    %v1601 = vmul.f32 %v1526, %v1526
    %v1602 = vmul.f32 %v1527, %v1527
    %v1603 = vmul.f32 %v1528, %v1528
    %v1604 = vmul.f32 %v1529, %v1529
    %v1605 = vmul.f32 %v1530, %v1530
    %v1606 = vmul.f32 %v1531, %v1531
    %v1607 = vmul.f32 %v1532, %v1532
    %v1608 = vmul.f32 %v1533, %v1533
    %v1609 = vmul.f32 %v1534, %v1534
    %v1610 = vmul.f32 %v1535, %v1535
    %v1611 = vmul.f32 %v1536, %v1536
    %v1612 = vmul.f32 %v1537, %v1537
    %v1613 = vmul.f32 %v1538, %v1538
    %v1614 = vmul.f32 %v1539, %v1539
    %v1615 = vmul.f32 %v1540, %v1540
    %v1616 = vmul.f32 %v1541, %v1541
    %v1617 = vmul.f32 %v1542, %v1542
    %v1618 = vmul.f32 %v1543, %v1543
    %v1619 = vmul.f32 %v1544, %v1544
    %v1620 = vmul.f32 %v1545, %v1545
    %v1621 = vmul.f32 %v1546, %v1546
    %v1622 = vmul.f32 %v1547, %v1547
    %v1623 = vmul.f32 %v1548, %v1548
    %v1624 = vmul.f32 %v1549, %v1549
    %v1625 = vadd.f32 %v1550, %v1551
    %v1626 = vadd.f32 %v1625, %v1552
    %v1627 = vadd.f32 %v1626, %v1553
    %v1628 = vadd.f32 %v1627, %v1554
    %v1629 = vadd.f32 %v1628, %v1555
    %v1630 = vadd.f32 %v1629, %v1556
    %v1631 = vadd.f32 %v1630, %v1557
    %v1632 = vadd.f32 %v1631, %v1558
    %v1633 = vadd.f32 %v1632, %v1559
    %v1634 = vadd.f32 %v1633, %v1560
    %v1635 = vadd.f32 %v1634, %v1561
    %v1636 = vadd.f32 %v1635, %v1562
    %v1637 = vadd.f32 %v1636, %v1563
    %v1638 = vadd.f32 %v1637, %v1564
    %v1639 = vadd.f32 %v1638, %v1565
    %v1640 = vadd.f32 %v1639, %v1566
    %v1641 = vadd.f32 %v1640, %v1567
    %v1642 = vadd.f32 %v1641, %v1568
    %v1643 = vadd.f32 %v1642, %v1569
    %v1644 = vadd.f32 %v1643, %v1570
    %v1645 = vadd.f32 %v1644, %v1571
    %v1646 = vadd.f32 %v1645, %v1572
    %v1647 = vadd.f32 %v1646, %v1573
    %v1648 = vadd.f32 %v1647, %v1574
    %v1649 = vadd.f32 %v1648, %v1575
    %v1650 = vadd.f32 %v1649, %v1576
    %v1651 = vadd.f32 %v1650, %v1577
    %v1652 = vadd.f32 %v1651, %v1578
    %v1653 = vadd.f32 %v1652, %v1579
    %v1654 = vadd.f32 %v1653, %v1580
    %v1655 = vadd.f32 %v1654, %v1581
    %v1656 = vadd.f32 %v1655, %v1582
    %v1657 = vadd.f32 %v1656, %v1583
    %v1658 = vadd.f32 %v1657, %v1584
    %v1659 = vadd.f32 %v1658, %v1585
    %v1660 = vadd.f32 %v1659, %v1586
    %v1661 = vadd.f32 %v1660, %v1587
    %v1662 = vadd.f32 %v1661, %v1588
    %v1663 = vadd.f32 %v1662, %v1589
    %v1664 = vadd.f32 %v1663, %v1590
    %v1665 = vadd.f32 %v1664, %v1591
    %v1666 = vadd.f32 %v1665, %v1592
    %v1667 = vadd.f32 %v1666, %v1593
    %v1668 = vadd.f32 %v1667, %v1594
    %v1669 = vadd.f32 %v1668, %v1595
    %v1670 = vadd.f32 %v1669, %v1596
    %v1671 = vadd.f32 %v1670, %v1597
    %v1672 = vadd.f32 %v1671, %v1598
    %v1673 = vadd.f32 %v1672, %v1599
    %v1674 = vadd.f32 %v1673, %v1600
    %v1675 = vadd.f32 %v1674, %v1601
    %v1676 = vadd.f32 %v1675, %v1602
    %v1677 = vadd.f32 %v1676, %v1603
    %v1678 = vadd.f32 %v1677, %v1604
    %v1679 = vadd.f32 %v1678, %v1605
    %v1680 = vadd.f32 %v1679, %v1606
    %v1681 = vadd.f32 %v1680, %v1607
    %v1682 = vadd.f32 %v1681, %v1608
    %v1683 = vadd.f32 %v1682, %v1609
    %v1684 = vadd.f32 %v1683, %v1610
    %v1685 = vadd.f32 %v1684, %v1611
    %v1686 = vadd.f32 %v1685, %v1612
    %v1687 = vadd.f32 %v1686, %v1613
    %v1688 = vadd.f32 %v1687, %v1614
    %v1689 = vadd.f32 %v1688, %v1615
    %v1690 = vadd.f32 %v1689, %v1616
    %v1691 = vadd.f32 %v1690, %v1617
    %v1692 = vadd.f32 %v1691, %v1618
    %v1693 = vadd.f32 %v1692, %v1619
    %v1694 = vadd.f32 %v1693, %v1620
    %v1695 = vadd.f32 %v1694, %v1621
    %v1696 = vadd.f32 %v1695, %v1622
    %v1697 = vadd.f32 %v1696, %v1623
    %v1698 = vsel %vm1435, %v1624, 0.0
    %v1699 = vadd.f32 %v1697, %v1698
    %v1700 = vrot.slane %v1699, 4
    %v1701 = vadd.f32 %v1699, %v1700
    %v1702 = vrot.slane %v1701, 2
    %v1703 = vadd.f32 %v1701, %v1702
    %v1704 = vrot.slane %v1703, 1
    %v1705 = vadd.f32 %v1703, %v1704
    %1707 = vrot.lane.b32.xlu0 %v1705, 96
    %v1708 = vpop.permute.xlu0 %1707
    %v1710 = vadd.f32 %v1705, %v1708
    %1711 = vrot.lane.b32.xlu0 %v1705, 64
    %v1712 = vpop.permute.xlu0 %1711
    %v1714 = vadd.f32 %v1710, %v1712
    %1715 = vrot.lane.b32.xlu0 %v1705, 32
    %v1716 = vpop.permute.xlu0 %1715
    %v1718 = vadd.f32 %v1714, %v1716
    %1720 = vrot.lane.b32.xlu0 %v1718, 32
    %v1721 = vpop.permute.xlu0 %1720
    %1723 = vrot.lane.b32.xlu0 %v1718, 64
    %v1724 = vpop.permute.xlu0 %1723
    %1726 = vrot.lane.b32.xlu0 %v1718, 96
    %v1727 = vpop.permute.xlu0 %1726
    %v1729 = vsel %vm1467, %v1718, %v1721
    %v1730 = vsel %vm1469, %v1729, %v1724
    %v1731 = vsel %vm1471, %v1730, %v1727
    %v1732 = vmul.f32 %v1731, 0.0004180602
    %v1733 = vadd.f32 %v1732, 1e-05
    %v1734 = vrsqrt.pop %v1733
    %v1735 = vmul.f32 %v1734, %v1733
    %v1736 = vmul.f32 %v1735, %v1734
    %v1737 = vmul.f32 0.5, %v1736
    %v1738 = vsub.f32 1.5, %v1737
    %v1739 = vmul.f32 %v1734, %v1738
    %vm1740 = vweird.f32 %v1733
    %vm1741 = vweird.f32 %v1734
    %vm1742 = vmor %vm1740, %vm1741
    %v1743 = vsel %vm1742, %v1734, %v1739
    %v1744 = vperm.slane %v1743, 0
    %v1745 = vmul.f32 %v1475, %v1744
    %v1746 = vmul.f32 %v1476, %v1744
    %v1747 = vmul.f32 %v1477, %v1744
    %v1748 = vmul.f32 %v1478, %v1744
    %v1749 = vmul.f32 %v1479, %v1744
    %v1750 = vmul.f32 %v1480, %v1744
    %v1751 = vmul.f32 %v1481, %v1744
    %v1752 = vmul.f32 %v1482, %v1744
    %v1753 = vmul.f32 %v1483, %v1744
    %v1754 = vmul.f32 %v1484, %v1744
    %v1755 = vmul.f32 %v1485, %v1744
    %v1756 = vmul.f32 %v1486, %v1744
    %v1757 = vmul.f32 %v1487, %v1744
    %v1758 = vmul.f32 %v1488, %v1744
    %v1759 = vmul.f32 %v1489, %v1744
    %v1760 = vmul.f32 %v1490, %v1744
    %v1761 = vmul.f32 %v1491, %v1744
    %v1762 = vmul.f32 %v1492, %v1744
    %v1763 = vmul.f32 %v1493, %v1744
    %v1764 = vmul.f32 %v1494, %v1744
    %v1765 = vmul.f32 %v1495, %v1744
    %v1766 = vmul.f32 %v1496, %v1744
    %v1767 = vmul.f32 %v1497, %v1744
    %v1768 = vmul.f32 %v1498, %v1744
    %v1769 = vmul.f32 %v1499, %v1744
    %v1770 = vmul.f32 %v1500, %v1744
    %v1771 = vmul.f32 %v1501, %v1744
    %v1772 = vmul.f32 %v1502, %v1744
    %v1773 = vmul.f32 %v1503, %v1744
    %v1774 = vmul.f32 %v1504, %v1744
    %v1775 = vmul.f32 %v1505, %v1744
    %v1776 = vmul.f32 %v1506, %v1744
    %v1777 = vmul.f32 %v1507, %v1744
    %v1778 = vmul.f32 %v1508, %v1744
    %v1779 = vmul.f32 %v1509, %v1744
    %v1780 = vmul.f32 %v1510, %v1744
    %v1781 = vmul.f32 %v1511, %v1744
    %v1782 = vmul.f32 %v1512, %v1744
    %v1783 = vmul.f32 %v1513, %v1744
    %v1784 = vmul.f32 %v1514, %v1744
    %v1785 = vmul.f32 %v1515, %v1744
    %v1786 = vmul.f32 %v1516, %v1744
    %v1787 = vmul.f32 %v1517, %v1744
    %v1788 = vmul.f32 %v1518, %v1744
    %v1789 = vmul.f32 %v1519, %v1744
    %v1790 = vmul.f32 %v1520, %v1744
    %v1791 = vmul.f32 %v1521, %v1744
    %v1792 = vmul.f32 %v1522, %v1744
    %v1793 = vmul.f32 %v1523, %v1744
    %v1794 = vmul.f32 %v1524, %v1744
    %v1795 = vmul.f32 %v1525, %v1744
    %v1796 = vmul.f32 %v1526, %v1744
    %v1797 = vmul.f32 %v1527, %v1744
    %v1798 = vmul.f32 %v1528, %v1744
    %v1799 = vmul.f32 %v1529, %v1744
    %v1800 = vmul.f32 %v1530, %v1744
    %v1801 = vmul.f32 %v1531, %v1744
    %v1802 = vmul.f32 %v1532, %v1744
    %v1803 = vmul.f32 %v1533, %v1744
    %v1804 = vmul.f32 %v1534, %v1744
    %v1805 = vmul.f32 %v1535, %v1744
    %v1806 = vmul.f32 %v1536, %v1744
    %v1807 = vmul.f32 %v1537, %v1744
    %v1808 = vmul.f32 %v1538, %v1744
    %v1809 = vmul.f32 %v1539, %v1744
    %v1810 = vmul.f32 %v1540, %v1744
    %v1811 = vmul.f32 %v1541, %v1744
    %v1812 = vmul.f32 %v1542, %v1744
    %v1813 = vmul.f32 %v1543, %v1744
    %v1814 = vmul.f32 %v1544, %v1744
    %v1815 = vmul.f32 %v1545, %v1744
    %v1816 = vmul.f32 %v1546, %v1744
    %v1817 = vmul.f32 %v1547, %v1744
    %v1818 = vmul.f32 %v1548, %v1744
    %v1819 = vmul.f32 %v1549, %v1744
    %v1821 = vperm.slane %v1360, 0
    %v1823 = vmul.f32 %v1745, %v1821
    %v1824 = vmul.f32 %v1746, %v1821
    %v1825 = vmul.f32 %v1747, %v1821
    %v1826 = vmul.f32 %v1748, %v1821
    %v1827 = vmul.f32 %v1749, %v1821
    %v1828 = vmul.f32 %v1750, %v1821
    %v1829 = vmul.f32 %v1751, %v1821
    %v1830 = vmul.f32 %v1752, %v1821
    %v1831 = vmul.f32 %v1753, %v1821
    %v1832 = vmul.f32 %v1754, %v1821
    %v1833 = vmul.f32 %v1755, %v1821
    %v1834 = vmul.f32 %v1756, %v1821
    %v1835 = vmul.f32 %v1757, %v1821
    %v1836 = vmul.f32 %v1758, %v1821
    %v1837 = vmul.f32 %v1759, %v1821
    %v1838 = vmul.f32 %v1760, %v1821
    %v1839 = vmul.f32 %v1761, %v1821
    %v1840 = vmul.f32 %v1762, %v1821
    %v1841 = vmul.f32 %v1763, %v1821
    %v1842 = vmul.f32 %v1764, %v1821
    %v1843 = vmul.f32 %v1765, %v1821
    %v1844 = vmul.f32 %v1766, %v1821
    %v1845 = vmul.f32 %v1767, %v1821
    %v1846 = vmul.f32 %v1768, %v1821
    %v1847 = vmul.f32 %v1769, %v1821
    %v1848 = vmul.f32 %v1770, %v1821
    %v1849 = vmul.f32 %v1771, %v1821
    %v1850 = vmul.f32 %v1772, %v1821
    %v1851 = vmul.f32 %v1773, %v1821
    %v1852 = vmul.f32 %v1774, %v1821
    %v1853 = vmul.f32 %v1775, %v1821
    %v1854 = vmul.f32 %v1776, %v1821
    %v1855 = vmul.f32 %v1777, %v1821
    %v1856 = vmul.f32 %v1778, %v1821
    %v1857 = vmul.f32 %v1779, %v1821
    %v1858 = vmul.f32 %v1780, %v1821
    %v1859 = vmul.f32 %v1781, %v1821
    %v1860 = vmul.f32 %v1782, %v1821
    %v1861 = vmul.f32 %v1783, %v1821
    %v1862 = vmul.f32 %v1784, %v1821
    %v1863 = vmul.f32 %v1785, %v1821
    %v1864 = vmul.f32 %v1786, %v1821
    %v1865 = vmul.f32 %v1787, %v1821
    %v1866 = vmul.f32 %v1788, %v1821
    %v1867 = vmul.f32 %v1789, %v1821
    %v1868 = vmul.f32 %v1790, %v1821
    %v1869 = vmul.f32 %v1791, %v1821
    %v1870 = vmul.f32 %v1792, %v1821
    %v1871 = vmul.f32 %v1793, %v1821
    %v1872 = vmul.f32 %v1794, %v1821
    %v1873 = vmul.f32 %v1795, %v1821
    %v1874 = vmul.f32 %v1796, %v1821
    %v1875 = vmul.f32 %v1797, %v1821
    %v1876 = vmul.f32 %v1798, %v1821
    %v1877 = vmul.f32 %v1799, %v1821
    %v1878 = vmul.f32 %v1800, %v1821
    %v1879 = vmul.f32 %v1801, %v1821
    %v1880 = vmul.f32 %v1802, %v1821
    %v1881 = vmul.f32 %v1803, %v1821
    %v1882 = vmul.f32 %v1804, %v1821
    %v1883 = vmul.f32 %v1805, %v1821
    %v1884 = vmul.f32 %v1806, %v1821
    %v1885 = vmul.f32 %v1807, %v1821
    %v1886 = vmul.f32 %v1808, %v1821
    %v1887 = vmul.f32 %v1809, %v1821
    %v1888 = vmul.f32 %v1810, %v1821
    %v1889 = vmul.f32 %v1811, %v1821
    %v1890 = vmul.f32 %v1812, %v1821
    %v1891 = vmul.f32 %v1813, %v1821
    %v1892 = vmul.f32 %v1814, %v1821
    %v1893 = vmul.f32 %v1815, %v1821
    %v1894 = vmul.f32 %v1816, %v1821
    %v1895 = vmul.f32 %v1817, %v1821
    %v1896 = vmul.f32 %v1818, %v1821
    %v1897 = vmul.f32 %v1819, %v1821
    %v1899 = vperm.slane %v1361, 0
    %v1901 = vadd.f32 %v1823, %v1899
    %v1902 = vadd.f32 %v1824, %v1899
    %v1903 = vadd.f32 %v1825, %v1899
    %v1904 = vadd.f32 %v1826, %v1899
    %v1905 = vadd.f32 %v1827, %v1899
    %v1906 = vadd.f32 %v1828, %v1899
    %v1907 = vadd.f32 %v1829, %v1899
    %v1908 = vadd.f32 %v1830, %v1899
    %v1909 = vadd.f32 %v1831, %v1899
    %v1910 = vadd.f32 %v1832, %v1899
    %v1911 = vadd.f32 %v1833, %v1899
    %v1912 = vadd.f32 %v1834, %v1899
    %v1913 = vadd.f32 %v1835, %v1899
    %v1914 = vadd.f32 %v1836, %v1899
    %v1915 = vadd.f32 %v1837, %v1899
    %v1916 = vadd.f32 %v1838, %v1899
    %v1917 = vadd.f32 %v1839, %v1899
    %v1918 = vadd.f32 %v1840, %v1899
    %v1919 = vadd.f32 %v1841, %v1899
    %v1920 = vadd.f32 %v1842, %v1899
    %v1921 = vadd.f32 %v1843, %v1899
    %v1922 = vadd.f32 %v1844, %v1899
    %v1923 = vadd.f32 %v1845, %v1899
    %v1924 = vadd.f32 %v1846, %v1899
    %v1925 = vadd.f32 %v1847, %v1899
    %v1926 = vadd.f32 %v1848, %v1899
    %v1927 = vadd.f32 %v1849, %v1899
    %v1928 = vadd.f32 %v1850, %v1899
    %v1929 = vadd.f32 %v1851, %v1899
    %v1930 = vadd.f32 %v1852, %v1899
    %v1931 = vadd.f32 %v1853, %v1899
    %v1932 = vadd.f32 %v1854, %v1899
    %v1933 = vadd.f32 %v1855, %v1899
    %v1934 = vadd.f32 %v1856, %v1899
    %v1935 = vadd.f32 %v1857, %v1899
    %v1936 = vadd.f32 %v1858, %v1899
    %v1937 = vadd.f32 %v1859, %v1899
    %v1938 = vadd.f32 %v1860, %v1899
    %v1939 = vadd.f32 %v1861, %v1899
    %v1940 = vadd.f32 %v1862, %v1899
    %v1941 = vadd.f32 %v1863, %v1899
    %v1942 = vadd.f32 %v1864, %v1899
    %v1943 = vadd.f32 %v1865, %v1899
    %v1944 = vadd.f32 %v1866, %v1899
    %v1945 = vadd.f32 %v1867, %v1899
    %v1946 = vadd.f32 %v1868, %v1899
    %v1947 = vadd.f32 %v1869, %v1899
    %v1948 = vadd.f32 %v1870, %v1899
    %v1949 = vadd.f32 %v1871, %v1899
    %v1950 = vadd.f32 %v1872, %v1899
    %v1951 = vadd.f32 %v1873, %v1899
    %v1952 = vadd.f32 %v1874, %v1899
    %v1953 = vadd.f32 %v1875, %v1899
    %v1954 = vadd.f32 %v1876, %v1899
    %v1955 = vadd.f32 %v1877, %v1899
    %v1956 = vadd.f32 %v1878, %v1899
    %v1957 = vadd.f32 %v1879, %v1899
    %v1958 = vadd.f32 %v1880, %v1899
    %v1959 = vadd.f32 %v1881, %v1899
    %v1960 = vadd.f32 %v1882, %v1899
    %v1961 = vadd.f32 %v1883, %v1899
    %v1962 = vadd.f32 %v1884, %v1899
    %v1963 = vadd.f32 %v1885, %v1899
    %v1964 = vadd.f32 %v1886, %v1899
    %v1965 = vadd.f32 %v1887, %v1899
    %v1966 = vadd.f32 %v1888, %v1899
    %v1967 = vadd.f32 %v1889, %v1899
    %v1968 = vadd.f32 %v1890, %v1899
    %v1969 = vadd.f32 %v1891, %v1899
    %v1970 = vadd.f32 %v1892, %v1899
    %v1971 = vadd.f32 %v1893, %v1899
    %v1972 = vadd.f32 %v1894, %v1899
    %v1973 = vadd.f32 %v1895, %v1899
    %v1974 = vadd.f32 %v1896, %v1899
    %v1975 = vadd.f32 %v1897, %v1899
    %v1976 = vmax.f32 %v1901, 0.0
    %v1977 = vmax.f32 %v1902, 0.0
    %v1978 = vmax.f32 %v1903, 0.0
    %v1979 = vmax.f32 %v1904, 0.0
    %v1980 = vmax.f32 %v1905, 0.0
    %v1981 = vmax.f32 %v1906, 0.0
    %v1982 = vmax.f32 %v1907, 0.0
    %v1983 = vmax.f32 %v1908, 0.0
    %v1984 = vmax.f32 %v1909, 0.0
    %v1985 = vmax.f32 %v1910, 0.0
    %v1986 = vmax.f32 %v1911, 0.0
    %v1987 = vmax.f32 %v1912, 0.0
    %v1988 = vmax.f32 %v1913, 0.0
    %v1989 = vmax.f32 %v1914, 0.0
    %v1990 = vmax.f32 %v1915, 0.0
    %v1991 = vmax.f32 %v1916, 0.0
    %v1992 = vmax.f32 %v1917, 0.0
    %v1993 = vmax.f32 %v1918, 0.0
    %v1994 = vmax.f32 %v1919, 0.0
    %v1995 = vmax.f32 %v1920, 0.0
    %v1996 = vmax.f32 %v1921, 0.0
    %v1997 = vmax.f32 %v1922, 0.0
    %v1998 = vmax.f32 %v1923, 0.0
    %v1999 = vmax.f32 %v1924, 0.0
    %v2000 = vmax.f32 %v1925, 0.0
    %v2001 = vmax.f32 %v1926, 0.0
    %v2002 = vmax.f32 %v1927, 0.0
    %v2003 = vmax.f32 %v1928, 0.0
    %v2004 = vmax.f32 %v1929, 0.0
    %v2005 = vmax.f32 %v1930, 0.0
    %v2006 = vmax.f32 %v1931, 0.0
    %v2007 = vmax.f32 %v1932, 0.0
    %v2008 = vmax.f32 %v1933, 0.0
    %v2009 = vmax.f32 %v1934, 0.0
    %v2010 = vmax.f32 %v1935, 0.0
    %v2011 = vmax.f32 %v1936, 0.0
    %v2012 = vmax.f32 %v1937, 0.0
    %v2013 = vmax.f32 %v1938, 0.0
    %v2014 = vmax.f32 %v1939, 0.0
    %v2015 = vmax.f32 %v1940, 0.0
    %v2016 = vmax.f32 %v1941, 0.0
    %v2017 = vmax.f32 %v1942, 0.0
    %v2018 = vmax.f32 %v1943, 0.0
    %v2019 = vmax.f32 %v1944, 0.0
    %v2020 = vmax.f32 %v1945, 0.0
    %v2021 = vmax.f32 %v1946, 0.0
    %v2022 = vmax.f32 %v1947, 0.0
    %v2023 = vmax.f32 %v1948, 0.0
    %v2024 = vmax.f32 %v1949, 0.0
    %v2025 = vmax.f32 %v1950, 0.0
    %v2026 = vmax.f32 %v1951, 0.0
    %v2027 = vmax.f32 %v1952, 0.0
    %v2028 = vmax.f32 %v1953, 0.0
    %v2029 = vmax.f32 %v1954, 0.0
    %v2030 = vmax.f32 %v1955, 0.0
    %v2031 = vmax.f32 %v1956, 0.0
    %v2032 = vmax.f32 %v1957, 0.0
    %v2033 = vmax.f32 %v1958, 0.0
    %v2034 = vmax.f32 %v1959, 0.0
    %v2035 = vmax.f32 %v1960, 0.0
    %v2036 = vmax.f32 %v1961, 0.0
    %v2037 = vmax.f32 %v1962, 0.0
    %v2038 = vmax.f32 %v1963, 0.0
    %v2039 = vmax.f32 %v1964, 0.0
    %v2040 = vmax.f32 %v1965, 0.0
    %v2041 = vmax.f32 %v1966, 0.0
    %v2042 = vmax.f32 %v1967, 0.0
    %v2043 = vmax.f32 %v1968, 0.0
    %v2044 = vmax.f32 %v1969, 0.0
    %v2045 = vmax.f32 %v1970, 0.0
    %v2046 = vmax.f32 %v1971, 0.0
    %v2047 = vmax.f32 %v1972, 0.0
    %v2048 = vmax.f32 %v1973, 0.0
    %v2049 = vmax.f32 %v1974, 0.0
    %v2050 = vmax.f32 %v1975, 0.0
    %2051 = vst [vmem:[#allocation2] sm:$0xff] %v1976
    %2052 = vst [vmem:[#allocation2 + $0x8] sm:$0xff] %v1977
    %2053 = vst [vmem:[#allocation2 + $0x10] sm:$0xff] %v1978
    %2054 = vst [vmem:[#allocation2 + $0x18] sm:$0xff] %v1979
    %2055 = vst [vmem:[#allocation2 + $0x20] sm:$0xff] %v1980
    %2056 = vst [vmem:[#allocation2 + $0x28] sm:$0xff] %v1981
    %2057 = vst [vmem:[#allocation2 + $0x30] sm:$0xff] %v1982
    %2058 = vst [vmem:[#allocation2 + $0x38] sm:$0xff] %v1983
    %2059 = vst [vmem:[#allocation2 + $0x40] sm:$0xff] %v1984
    %2060 = vst [vmem:[#allocation2 + $0x48] sm:$0xff] %v1985
    %2061 = vst [vmem:[#allocation2 + $0x50] sm:$0xff] %v1986
    %2062 = vst [vmem:[#allocation2 + $0x58] sm:$0xff] %v1987
    %2063 = vst [vmem:[#allocation2 + $0x60] sm:$0xff] %v1988
    %2064 = vst [vmem:[#allocation2 + $0x68] sm:$0xff] %v1989
    %2065 = vst [vmem:[#allocation2 + $0x70] sm:$0xff] %v1990
    %2066 = vst [vmem:[#allocation2 + $0x78] sm:$0xff] %v1991
    %2067 = vst [vmem:[#allocation2 + $0x80] sm:$0xff] %v1992
    %2068 = vst [vmem:[#allocation2 + $0x88] sm:$0xff] %v1993
    %2069 = vst [vmem:[#allocation2 + $0x90] sm:$0xff] %v1994
    %2070 = vst [vmem:[#allocation2 + $0x98] sm:$0xff] %v1995
    %2071 = vst [vmem:[#allocation2 + $0xa0] sm:$0xff] %v1996
    %2072 = vst [vmem:[#allocation2 + $0xa8] sm:$0xff] %v1997
    %2073 = vst [vmem:[#allocation2 + $0xb0] sm:$0xff] %v1998
    %2074 = vst [vmem:[#allocation2 + $0xb8] sm:$0xff] %v1999
    %2075 = vst [vmem:[#allocation2 + $0xc0] sm:$0xff] %v2000
    %2076 = vst [vmem:[#allocation2 + $0xc8] sm:$0xff] %v2001
    %2077 = vst [vmem:[#allocation2 + $0xd0] sm:$0xff] %v2002
    %2078 = vst [vmem:[#allocation2 + $0xd8] sm:$0xff] %v2003
    %2079 = vst [vmem:[#allocation2 + $0xe0] sm:$0xff] %v2004
    %2080 = vst [vmem:[#allocation2 + $0xe8] sm:$0xff] %v2005
    %2081 = vst [vmem:[#allocation2 + $0xf0] sm:$0xff] %v2006
    %2082 = vst [vmem:[#allocation2 + $0xf8] sm:$0xff] %v2007
    %2083 = vst [vmem:[#allocation2 + $0x100] sm:$0xff] %v2008
    %2084 = vst [vmem:[#allocation2 + $0x108] sm:$0xff] %v2009
    %2085 = vst [vmem:[#allocation2 + $0x110] sm:$0xff] %v2010
    %2086 = vst [vmem:[#allocation2 + $0x118] sm:$0xff] %v2011
    %2087 = vst [vmem:[#allocation2 + $0x120] sm:$0xff] %v2012
    %2088 = vst [vmem:[#allocation2 + $0x128] sm:$0xff] %v2013
    %2089 = vst [vmem:[#allocation2 + $0x130] sm:$0xff] %v2014
    %2090 = vst [vmem:[#allocation2 + $0x138] sm:$0xff] %v2015
    %2091 = vst [vmem:[#allocation2 + $0x140] sm:$0xff] %v2016
    %2092 = vst [vmem:[#allocation2 + $0x148] sm:$0xff] %v2017
    %2093 = vst [vmem:[#allocation2 + $0x150] sm:$0xff] %v2018
    %2094 = vst [vmem:[#allocation2 + $0x158] sm:$0xff] %v2019
    %2095 = vst [vmem:[#allocation2 + $0x160] sm:$0xff] %v2020
    %2096 = vst [vmem:[#allocation2 + $0x168] sm:$0xff] %v2021
    %2097 = vst [vmem:[#allocation2 + $0x170] sm:$0xff] %v2022
    %2098 = vst [vmem:[#allocation2 + $0x178] sm:$0xff] %v2023
    %2099 = vst [vmem:[#allocation2 + $0x180] sm:$0xff] %v2024
    %2100 = vst [vmem:[#allocation2 + $0x188] sm:$0xff] %v2025
    %2101 = vst [vmem:[#allocation2 + $0x190] sm:$0xff] %v2026
    %2102 = vst [vmem:[#allocation2 + $0x198] sm:$0xff] %v2027
    %2103 = vst [vmem:[#allocation2 + $0x1a0] sm:$0xff] %v2028
    %2104 = vst [vmem:[#allocation2 + $0x1a8] sm:$0xff] %v2029
    %2105 = vst [vmem:[#allocation2 + $0x1b0] sm:$0xff] %v2030
    %2106 = vst [vmem:[#allocation2 + $0x1b8] sm:$0xff] %v2031
    %2107 = vst [vmem:[#allocation2 + $0x1c0] sm:$0xff] %v2032
    %2108 = vst [vmem:[#allocation2 + $0x1c8] sm:$0xff] %v2033
    %2109 = vst [vmem:[#allocation2 + $0x1d0] sm:$0xff] %v2034
    %2110 = vst [vmem:[#allocation2 + $0x1d8] sm:$0xff] %v2035
    %2111 = vst [vmem:[#allocation2 + $0x1e0] sm:$0xff] %v2036
    %2112 = vst [vmem:[#allocation2 + $0x1e8] sm:$0xff] %v2037
    %2113 = vst [vmem:[#allocation2 + $0x1f0] sm:$0xff] %v2038
    %2114 = vst [vmem:[#allocation2 + $0x1f8] sm:$0xff] %v2039
    %2115 = vst [vmem:[#allocation2 + $0x200] sm:$0xff] %v2040
    %2116 = vst [vmem:[#allocation2 + $0x208] sm:$0xff] %v2041
    %2117 = vst [vmem:[#allocation2 + $0x210] sm:$0xff] %v2042
    %2118 = vst [vmem:[#allocation2 + $0x218] sm:$0xff] %v2043
    %2119 = vst [vmem:[#allocation2 + $0x220] sm:$0xff] %v2044
    %2120 = vst [vmem:[#allocation2 + $0x228] sm:$0xff] %v2045
    %2121 = vst [vmem:[#allocation2 + $0x230] sm:$0xff] %v2046
    %2122 = vst [vmem:[#allocation2 + $0x238] sm:$0xff] %v2047
    %2123 = vst [vmem:[#allocation2 + $0x240] sm:$0xff] %v2048
    %2124 = vst [vmem:[#allocation2 + $0x248] sm:$0xff] %v2049
    %2125 = vst [vmem:[#allocation2 + $0x250] sm:$0x3f] %v2050
    %v2126 = vld [vmem:[#allocation2] ss:$5 sm:$0xff]
    %s2127 = scalar_lea.vmem [#allocation2], 40
    %v2128 = vld [vmem:[%s2127] ss:$5 sm:$0xff]
    %s2129 = scalar_lea.vmem [#allocation2], 80
    %v2130 = vld [vmem:[%s2129] ss:$5 sm:$0xff]
    %s2131 = scalar_lea.vmem [#allocation2], 120
    %v2132 = vld [vmem:[%s2131] ss:$5 sm:$0xff]
    %s2133 = scalar_lea.vmem [#allocation2], 160
    %v2134 = vld [vmem:[%s2133] ss:$5 sm:$0xff]
    %s2135 = scalar_lea.vmem [#allocation2], 200
    %v2136 = vld [vmem:[%s2135] ss:$5 sm:$0xff]
    %s2137 = scalar_lea.vmem [#allocation2], 240
    %v2138 = vld [vmem:[%s2137] ss:$5 sm:$0xff]
    %s2139 = scalar_lea.vmem [#allocation2], 280
    %v2140 = vld [vmem:[%s2139] ss:$5 sm:$0xff]
    %s2141 = scalar_lea.vmem [#allocation2], 320
    %v2142 = vld [vmem:[%s2141] ss:$5 sm:$0xff]
    %s2143 = scalar_lea.vmem [#allocation2], 360
    %v2144 = vld [vmem:[%s2143] ss:$5 sm:$0xff]
    %s2145 = scalar_lea.vmem [#allocation2], 400
    %v2146 = vld [vmem:[%s2145] ss:$5 sm:$0xff]
    %s2147 = scalar_lea.vmem [#allocation2], 440
    %v2148 = vld [vmem:[%s2147] ss:$5 sm:$0xff]
    %s2149 = scalar_lea.vmem [#allocation2], 480
    %v2150 = vld [vmem:[%s2149] ss:$5 sm:$0xff]
    %s2151 = scalar_lea.vmem [#allocation2], 520
    %v2152 = vld [vmem:[%s2151] ss:$5 sm:$0xff]
    %s2153 = scalar_lea.vmem [#allocation2], 560
    %v2154 = vld [vmem:[%s2153] ss:$5 sm:$0x7f]
    %s2155 = scalar_lea.vmem [#allocation2], 1
    %v2156 = vld [vmem:[%s2155] ss:$5 sm:$0xff]
    %s2157 = scalar_lea.vmem [#allocation2], 41
    %v2158 = vld [vmem:[%s2157] ss:$5 sm:$0xff]
    %s2159 = scalar_lea.vmem [#allocation2], 81
    %v2160 = vld [vmem:[%s2159] ss:$5 sm:$0xff]
    %s2161 = scalar_lea.vmem [#allocation2], 121
    %v2162 = vld [vmem:[%s2161] ss:$5 sm:$0xff]
    %s2163 = scalar_lea.vmem [#allocation2], 161
    %v2164 = vld [vmem:[%s2163] ss:$5 sm:$0xff]
    %s2165 = scalar_lea.vmem [#allocation2], 201
    %v2166 = vld [vmem:[%s2165] ss:$5 sm:$0xff]
    %s2167 = scalar_lea.vmem [#allocation2], 241
    %v2168 = vld [vmem:[%s2167] ss:$5 sm:$0xff]
    %s2169 = scalar_lea.vmem [#allocation2], 281
    %v2170 = vld [vmem:[%s2169] ss:$5 sm:$0xff]
    %s2171 = scalar_lea.vmem [#allocation2], 321
    %v2172 = vld [vmem:[%s2171] ss:$5 sm:$0xff]
    %s2173 = scalar_lea.vmem [#allocation2], 361
    %v2174 = vld [vmem:[%s2173] ss:$5 sm:$0xff]
    %s2175 = scalar_lea.vmem [#allocation2], 401
    %v2176 = vld [vmem:[%s2175] ss:$5 sm:$0xff]
    %s2177 = scalar_lea.vmem [#allocation2], 441
    %v2178 = vld [vmem:[%s2177] ss:$5 sm:$0xff]
    %s2179 = scalar_lea.vmem [#allocation2], 481
    %v2180 = vld [vmem:[%s2179] ss:$5 sm:$0xff]
    %s2181 = scalar_lea.vmem [#allocation2], 521
    %v2182 = vld [vmem:[%s2181] ss:$5 sm:$0xff]
    %s2183 = scalar_lea.vmem [#allocation2], 561
    %v2184 = vld [vmem:[%s2183] ss:$5 sm:$0x7f]
    %v2185 = vmax.f32 %v2126, %v2156
    %v2186 = vmax.f32 %v2128, %v2158
    %v2187 = vmax.f32 %v2130, %v2160
    %v2188 = vmax.f32 %v2132, %v2162
    %v2189 = vmax.f32 %v2134, %v2164
    %v2190 = vmax.f32 %v2136, %v2166
    %v2191 = vmax.f32 %v2138, %v2168
    %v2192 = vmax.f32 %v2140, %v2170
    %v2193 = vmax.f32 %v2142, %v2172
    %v2194 = vmax.f32 %v2144, %v2174
    %v2195 = vmax.f32 %v2146, %v2176
    %v2196 = vmax.f32 %v2148, %v2178
    %v2197 = vmax.f32 %v2150, %v2180
    %v2198 = vmax.f32 %v2152, %v2182
    %v2199 = vmax.f32 %v2154, %v2184
    %s2200 = scalar_lea.vmem [#allocation2], 2
    %v2201 = vld [vmem:[%s2200] ss:$5 sm:$0xff]
    %s2202 = scalar_lea.vmem [#allocation2], 42
    %v2203 = vld [vmem:[%s2202] ss:$5 sm:$0xff]
    %s2204 = scalar_lea.vmem [#allocation2], 82
    %v2205 = vld [vmem:[%s2204] ss:$5 sm:$0xff]
    %s2206 = scalar_lea.vmem [#allocation2], 122
    %v2207 = vld [vmem:[%s2206] ss:$5 sm:$0xff]
    %s2208 = scalar_lea.vmem [#allocation2], 162
    %v2209 = vld [vmem:[%s2208] ss:$5 sm:$0xff]
    %s2210 = scalar_lea.vmem [#allocation2], 202
    %v2211 = vld [vmem:[%s2210] ss:$5 sm:$0xff]
    %s2212 = scalar_lea.vmem [#allocation2], 242
    %v2213 = vld [vmem:[%s2212] ss:$5 sm:$0xff]
    %s2214 = scalar_lea.vmem [#allocation2], 282
    %v2215 = vld [vmem:[%s2214] ss:$5 sm:$0xff]
    %s2216 = scalar_lea.vmem [#allocation2], 322
    %v2217 = vld [vmem:[%s2216] ss:$5 sm:$0xff]
    %s2218 = scalar_lea.vmem [#allocation2], 362
    %v2219 = vld [vmem:[%s2218] ss:$5 sm:$0xff]
    %s2220 = scalar_lea.vmem [#allocation2], 402
    %v2221 = vld [vmem:[%s2220] ss:$5 sm:$0xff]
    %s2222 = scalar_lea.vmem [#allocation2], 442
    %v2223 = vld [vmem:[%s2222] ss:$5 sm:$0xff]
    %s2224 = scalar_lea.vmem [#allocation2], 482
    %v2225 = vld [vmem:[%s2224] ss:$5 sm:$0xff]
    %s2226 = scalar_lea.vmem [#allocation2], 522
    %v2227 = vld [vmem:[%s2226] ss:$5 sm:$0xff]
    %s2228 = scalar_lea.vmem [#allocation2], 562
    %v2229 = vld [vmem:[%s2228] ss:$5 sm:$0x7f]
    %v2230 = vmax.f32 %v2185, %v2201
    %v2231 = vmax.f32 %v2186, %v2203
    %v2232 = vmax.f32 %v2187, %v2205
    %v2233 = vmax.f32 %v2188, %v2207
    %v2234 = vmax.f32 %v2189, %v2209
    %v2235 = vmax.f32 %v2190, %v2211
    %v2236 = vmax.f32 %v2191, %v2213
    %v2237 = vmax.f32 %v2192, %v2215
    %v2238 = vmax.f32 %v2193, %v2217
    %v2239 = vmax.f32 %v2194, %v2219
    %v2240 = vmax.f32 %v2195, %v2221
    %v2241 = vmax.f32 %v2196, %v2223
    %v2242 = vmax.f32 %v2197, %v2225
    %v2243 = vmax.f32 %v2198, %v2227
    %v2244 = vmax.f32 %v2199, %v2229
    %s2245 = scalar_lea.vmem [#allocation2], 3
    %v2246 = vld [vmem:[%s2245] ss:$5 sm:$0xff]
    %s2247 = scalar_lea.vmem [#allocation2], 43
    %v2248 = vld [vmem:[%s2247] ss:$5 sm:$0xff]
    %s2249 = scalar_lea.vmem [#allocation2], 83
    %v2250 = vld [vmem:[%s2249] ss:$5 sm:$0xff]
    %s2251 = scalar_lea.vmem [#allocation2], 123
    %v2252 = vld [vmem:[%s2251] ss:$5 sm:$0xff]
    %s2253 = scalar_lea.vmem [#allocation2], 163
    %v2254 = vld [vmem:[%s2253] ss:$5 sm:$0xff]
    %s2255 = scalar_lea.vmem [#allocation2], 203
    %v2256 = vld [vmem:[%s2255] ss:$5 sm:$0xff]
    %s2257 = scalar_lea.vmem [#allocation2], 243
    %v2258 = vld [vmem:[%s2257] ss:$5 sm:$0xff]
    %s2259 = scalar_lea.vmem [#allocation2], 283
    %v2260 = vld [vmem:[%s2259] ss:$5 sm:$0xff]
    %s2261 = scalar_lea.vmem [#allocation2], 323
    %v2262 = vld [vmem:[%s2261] ss:$5 sm:$0xff]
    %s2263 = scalar_lea.vmem [#allocation2], 363
    %v2264 = vld [vmem:[%s2263] ss:$5 sm:$0xff]
    %s2265 = scalar_lea.vmem [#allocation2], 403
    %v2266 = vld [vmem:[%s2265] ss:$5 sm:$0xff]
    %s2267 = scalar_lea.vmem [#allocation2], 443
    %v2268 = vld [vmem:[%s2267] ss:$5 sm:$0xff]
    %s2269 = scalar_lea.vmem [#allocation2], 483
    %v2270 = vld [vmem:[%s2269] ss:$5 sm:$0xff]
    %s2271 = scalar_lea.vmem [#allocation2], 523
    %v2272 = vld [vmem:[%s2271] ss:$5 sm:$0xff]
    %s2273 = scalar_lea.vmem [#allocation2], 563
    %v2274 = vld [vmem:[%s2273] ss:$5 sm:$0x7f]
    %v2275 = vmax.f32 %v2230, %v2246
    %v2276 = vmax.f32 %v2231, %v2248
    %v2277 = vmax.f32 %v2232, %v2250
    %v2278 = vmax.f32 %v2233, %v2252
    %v2279 = vmax.f32 %v2234, %v2254
    %v2280 = vmax.f32 %v2235, %v2256
    %v2281 = vmax.f32 %v2236, %v2258
    %v2282 = vmax.f32 %v2237, %v2260
    %v2283 = vmax.f32 %v2238, %v2262
    %v2284 = vmax.f32 %v2239, %v2264
    %v2285 = vmax.f32 %v2240, %v2266
    %v2286 = vmax.f32 %v2241, %v2268
    %v2287 = vmax.f32 %v2242, %v2270
    %v2288 = vmax.f32 %v2243, %v2272
    %v2289 = vmax.f32 %v2244, %v2274
    %s2290 = scalar_lea.vmem [#allocation2], 4
    %v2291 = vld [vmem:[%s2290] ss:$5 sm:$0xff]
    %s2292 = scalar_lea.vmem [#allocation2], 44
    %v2293 = vld [vmem:[%s2292] ss:$5 sm:$0xff]
    %s2294 = scalar_lea.vmem [#allocation2], 84
    %v2295 = vld [vmem:[%s2294] ss:$5 sm:$0xff]
    %s2296 = scalar_lea.vmem [#allocation2], 124
    %v2297 = vld [vmem:[%s2296] ss:$5 sm:$0xff]
    %s2298 = scalar_lea.vmem [#allocation2], 164
    %v2299 = vld [vmem:[%s2298] ss:$5 sm:$0xff]
    %s2300 = scalar_lea.vmem [#allocation2], 204
    %v2301 = vld [vmem:[%s2300] ss:$5 sm:$0xff]
    %s2302 = scalar_lea.vmem [#allocation2], 244
    %v2303 = vld [vmem:[%s2302] ss:$5 sm:$0xff]
    %s2304 = scalar_lea.vmem [#allocation2], 284
    %v2305 = vld [vmem:[%s2304] ss:$5 sm:$0xff]
    %s2306 = scalar_lea.vmem [#allocation2], 324
    %v2307 = vld [vmem:[%s2306] ss:$5 sm:$0xff]
    %s2308 = scalar_lea.vmem [#allocation2], 364
    %v2309 = vld [vmem:[%s2308] ss:$5 sm:$0xff]
    %s2310 = scalar_lea.vmem [#allocation2], 404
    %v2311 = vld [vmem:[%s2310] ss:$5 sm:$0xff]
    %s2312 = scalar_lea.vmem [#allocation2], 444
    %v2313 = vld [vmem:[%s2312] ss:$5 sm:$0xff]
    %s2314 = scalar_lea.vmem [#allocation2], 484
    %v2315 = vld [vmem:[%s2314] ss:$5 sm:$0xff]
    %s2316 = scalar_lea.vmem [#allocation2], 524
    %v2317 = vld [vmem:[%s2316] ss:$5 sm:$0xff]
    %s2318 = scalar_lea.vmem [#allocation2], 564
    %v2319 = vld [vmem:[%s2318] ss:$5 sm:$0x7f]
    %v2320 = vmax.f32 %v2275, %v2291
    %v2321 = vmax.f32 %v2276, %v2293
    %v2322 = vmax.f32 %v2277, %v2295
    %v2323 = vmax.f32 %v2278, %v2297
    %v2324 = vmax.f32 %v2279, %v2299
    %v2325 = vmax.f32 %v2280, %v2301
    %v2326 = vmax.f32 %v2281, %v2303
    %v2327 = vmax.f32 %v2282, %v2305
    %v2328 = vmax.f32 %v2283, %v2307
    %v2329 = vmax.f32 %v2284, %v2309
    %v2330 = vmax.f32 %v2285, %v2311
    %v2331 = vmax.f32 %v2286, %v2313
    %v2332 = vmax.f32 %v2287, %v2315
    %v2333 = vmax.f32 %v2288, %v2317
    %v2334 = vmax.f32 %v2289, %v2319
    %2335 = vst [vmem:[#allocation3] sm:$0x1] 0.0
    %2336 = vst [vmem:[#allocation3 + $0x78] sm:$0x1] 0.0
    %2337 = vst [vmem:[#allocation3 + $0x1] sm:$0xff] %v2320
    %2338 = vst [vmem:[#allocation3 + $0x9] sm:$0xff] %v2321
    %2339 = vst [vmem:[#allocation3 + $0x11] sm:$0xff] %v2322
    %2340 = vst [vmem:[#allocation3 + $0x19] sm:$0xff] %v2323
    %2341 = vst [vmem:[#allocation3 + $0x21] sm:$0xff] %v2324
    %2342 = vst [vmem:[#allocation3 + $0x29] sm:$0xff] %v2325
    %2343 = vst [vmem:[#allocation3 + $0x31] sm:$0xff] %v2326
    %2344 = vst [vmem:[#allocation3 + $0x39] sm:$0xff] %v2327
    %2345 = vst [vmem:[#allocation3 + $0x41] sm:$0xff] %v2328
    %2346 = vst [vmem:[#allocation3 + $0x49] sm:$0xff] %v2329
    %2347 = vst [vmem:[#allocation3 + $0x51] sm:$0xff] %v2330
    %2348 = vst [vmem:[#allocation3 + $0x59] sm:$0xff] %v2331
    %2349 = vst [vmem:[#allocation3 + $0x61] sm:$0xff] %v2332
    %2350 = vst [vmem:[#allocation3 + $0x69] sm:$0xff] %v2333
    %2351 = vst [vmem:[#allocation3 + $0x71] sm:$0x7f] %v2334
    %v2352 = vld [vmem:[#allocation3] sm:$0xff]
    %v2353 = vld [vmem:[#allocation3 + $0x8] sm:$0xff]
    %v2354 = vld [vmem:[#allocation3 + $0x10] sm:$0xff]
    %v2355 = vld [vmem:[#allocation3 + $0x18] sm:$0xff]
    %v2356 = vld [vmem:[#allocation3 + $0x20] sm:$0xff]
    %v2357 = vld [vmem:[#allocation3 + $0x28] sm:$0xff]
    %v2358 = vld [vmem:[#allocation3 + $0x30] sm:$0xff]
    %v2359 = vld [vmem:[#allocation3 + $0x38] sm:$0xff]
    %v2360 = vld [vmem:[#allocation3 + $0x40] sm:$0xff]
    %v2361 = vld [vmem:[#allocation3 + $0x48] sm:$0xff]
    %v2362 = vld [vmem:[#allocation3 + $0x50] sm:$0xff]
    %v2363 = vld [vmem:[#allocation3 + $0x58] sm:$0xff]
    %v2364 = vld [vmem:[#allocation3 + $0x60] sm:$0xff]
    %v2365 = vld [vmem:[#allocation3 + $0x68] sm:$0xff]
    %v2366 = vld [vmem:[#allocation3 + $0x70] sm:$0x1f]
    %v2367 = vld [vmem:[#allocation15] sm:$0xff]
    %v2368 = vld [vmem:[#allocation15 + $0x8] sm:$0xff]
    %v2369 = vld [vmem:[#allocation15 + $0x10] sm:$0xff]
    %v2370 = vld [vmem:[#allocation15 + $0x18] sm:$0xff]
    %v2371 = vld [vmem:[#allocation15 + $0x20] sm:$0xff]
    %v2372 = vld [vmem:[#allocation15 + $0x28] sm:$0xff]
    %v2373 = vld [vmem:[#allocation15 + $0x30] sm:$0xff]
    %v2374 = vld [vmem:[#allocation15 + $0x38] sm:$0xff]
    %v2375 = vld [vmem:[#allocation15 + $0x40] sm:$0xff]
    %v2376 = vld [vmem:[#allocation15 + $0x48] sm:$0xff]
    %v2377 = vld [vmem:[#allocation15 + $0x50] sm:$0xff]
    %v2378 = vld [vmem:[#allocation15 + $0x58] sm:$0xff]
    %v2379 = vld [vmem:[#allocation15 + $0x60] sm:$0xff]
    %v2380 = vld [vmem:[#allocation15 + $0x68] sm:$0xff]
    %v2381 = vld [vmem:[#allocation15 + $0x70] sm:$0xff]
    %v2382 = vld [vmem:[#allocation15 + $0x78] sm:$0xff]
    %v2383 = vld [vmem:[#allocation3 + $0x1] sm:$0xff]
    %v2384 = vld [vmem:[#allocation3 + $0x9] sm:$0xff]
    %v2385 = vld [vmem:[#allocation3 + $0x11] sm:$0xff]
    %v2386 = vld [vmem:[#allocation3 + $0x19] sm:$0xff]
    %v2387 = vld [vmem:[#allocation3 + $0x21] sm:$0xff]
    %v2388 = vld [vmem:[#allocation3 + $0x29] sm:$0xff]
    %v2389 = vld [vmem:[#allocation3 + $0x31] sm:$0xff]
    %v2390 = vld [vmem:[#allocation3 + $0x39] sm:$0xff]
    %v2391 = vld [vmem:[#allocation3 + $0x41] sm:$0xff]
    %v2392 = vld [vmem:[#allocation3 + $0x49] sm:$0xff]
    %v2393 = vld [vmem:[#allocation3 + $0x51] sm:$0xff]
    %v2394 = vld [vmem:[#allocation3 + $0x59] sm:$0xff]
    %v2395 = vld [vmem:[#allocation3 + $0x61] sm:$0xff]
    %v2396 = vld [vmem:[#allocation3 + $0x69] sm:$0xff]
    %v2397 = vld [vmem:[#allocation3 + $0x71] sm:$0x1f]
    %s2398 = scalar_lea.vmem [#allocation15], 128
    %v2399 = vld [vmem:[%s2398] sm:$0xff]
    %v2400 = vld [vmem:[%s2398 + $0x8] sm:$0xff]
    %v2401 = vld [vmem:[%s2398 + $0x10] sm:$0xff]
    %v2402 = vld [vmem:[%s2398 + $0x18] sm:$0xff]
    %v2403 = vld [vmem:[%s2398 + $0x20] sm:$0xff]
    %v2404 = vld [vmem:[%s2398 + $0x28] sm:$0xff]
    %v2405 = vld [vmem:[%s2398 + $0x30] sm:$0xff]
    %v2406 = vld [vmem:[%s2398 + $0x38] sm:$0xff]
    %v2407 = vld [vmem:[%s2398 + $0x40] sm:$0xff]
    %v2408 = vld [vmem:[%s2398 + $0x48] sm:$0xff]
    %v2409 = vld [vmem:[%s2398 + $0x50] sm:$0xff]
    %v2410 = vld [vmem:[%s2398 + $0x58] sm:$0xff]
    %v2411 = vld [vmem:[%s2398 + $0x60] sm:$0xff]
    %v2412 = vld [vmem:[%s2398 + $0x68] sm:$0xff]
    %v2413 = vld [vmem:[%s2398 + $0x70] sm:$0xff]
    %v2414 = vld [vmem:[%s2398 + $0x78] sm:$0xff]
    %2415 = vmatpush.msra.mxu0 %v2414
    %2416 = vmatpush.msra.mxu0 %v2413
    %2417 = vmatpush.msra.mxu0 %v2412
    %2418 = vmatpush.msra.mxu0 %v2411
    %2419 = vmatpush.msra.mxu0 %v2410
    %2420 = vmatpush.msra.mxu0 %v2409
    %2421 = vmatpush.msra.mxu0 %v2408
    %2422 = vmatpush.msra.mxu0 %v2407
    %2423 = vmatpush.msra.mxu0 %v2406
    %2424 = vmatpush.msra.mxu0 %v2405
    %2425 = vmatpush.msra.mxu0 %v2404
    %2426 = vmatpush.msra.mxu0 %v2403
    %2427 = vmatpush.msra.mxu0 %v2402
    %2428 = vmatpush.msra.mxu0 %v2401
    %2429 = vmatpush.msra.mxu0 %v2400
    %2430 = vmatpush.msra.mxu0 %v2399
    %2431 = vmatmul.f32.gmra.mxu0 %v2383
    %v2432 = vpop.f32.mrf.mxu0
    %v2433 = vadd.f32 0.0, %v2432
    %2434 = vmatmul.f32.gmra.mxu0 %v2384
    %v2435 = vpop.f32.mrf.mxu0
    %v2436 = vadd.f32 0.0, %v2435
    %2437 = vmatmul.f32.gmra.mxu0 %v2385
    %v2438 = vpop.f32.mrf.mxu0
    %v2439 = vadd.f32 0.0, %v2438
    %2440 = vmatmul.f32.gmra.mxu0 %v2386
    %v2441 = vpop.f32.mrf.mxu0
    %v2442 = vadd.f32 0.0, %v2441
    %2443 = vmatmul.f32.gmra.mxu0 %v2387
    %v2444 = vpop.f32.mrf.mxu0
    %v2445 = vadd.f32 0.0, %v2444
    %2446 = vmatmul.f32.gmra.mxu0 %v2388
    %v2447 = vpop.f32.mrf.mxu0
    %v2448 = vadd.f32 0.0, %v2447
    %2449 = vmatmul.f32.gmra.mxu0 %v2389
    %v2450 = vpop.f32.mrf.mxu0
    %v2451 = vadd.f32 0.0, %v2450
    %2452 = vmatmul.f32.gmra.mxu0 %v2390
    %v2453 = vpop.f32.mrf.mxu0
    %v2454 = vadd.f32 0.0, %v2453
    %2455 = vmatmul.f32.gmra.mxu0 %v2391
    %v2456 = vpop.f32.mrf.mxu0
    %v2457 = vadd.f32 0.0, %v2456
    %2458 = vmatmul.f32.gmra.mxu0 %v2392
    %v2459 = vpop.f32.mrf.mxu0
    %v2460 = vadd.f32 0.0, %v2459
    %2461 = vmatmul.f32.gmra.mxu0 %v2393
    %v2462 = vpop.f32.mrf.mxu0
    %v2463 = vadd.f32 0.0, %v2462
    %2464 = vmatmul.f32.gmra.mxu0 %v2394
    %v2465 = vpop.f32.mrf.mxu0
    %v2466 = vadd.f32 0.0, %v2465
    %2467 = vmatmul.f32.gmra.mxu0 %v2395
    %v2468 = vpop.f32.mrf.mxu0
    %v2469 = vadd.f32 0.0, %v2468
    %2470 = vmatmul.f32.gmra.mxu0 %v2396
    %v2471 = vpop.f32.mrf.mxu0
    %v2472 = vadd.f32 0.0, %v2471
    %2473 = vmatmul.f32.gmra.mxu0 %v2397
    %v2474 = vpop.f32.mrf.mxu0
    %v2475 = vadd.f32 0.0, %v2474
    %2476 = vdwg.mxu0
    %2477 = vmatpush.msra.mxu0 %v2382
    %2478 = vmatpush.msra.mxu0 %v2381
    %2479 = vmatpush.msra.mxu0 %v2380
    %2480 = vmatpush.msra.mxu0 %v2379
    %2481 = vmatpush.msra.mxu0 %v2378
    %2482 = vmatpush.msra.mxu0 %v2377
    %2483 = vmatpush.msra.mxu0 %v2376
    %2484 = vmatpush.msra.mxu0 %v2375
    %2485 = vmatpush.msra.mxu0 %v2374
    %2486 = vmatpush.msra.mxu0 %v2373
    %2487 = vmatpush.msra.mxu0 %v2372
    %2488 = vmatpush.msra.mxu0 %v2371
    %2489 = vmatpush.msra.mxu0 %v2370
    %2490 = vmatpush.msra.mxu0 %v2369
    %2491 = vmatpush.msra.mxu0 %v2368
    %2492 = vmatpush.msra.mxu0 %v2367
    %2493 = vmatmul.f32.gmra.mxu0 %v2352
    %v2494 = vpop.f32.mrf.mxu0
    %v2495 = vadd.f32 %v2433, %v2494
    %2496 = vmatmul.f32.gmra.mxu0 %v2353
    %v2497 = vpop.f32.mrf.mxu0
    %v2498 = vadd.f32 %v2436, %v2497
    %2499 = vmatmul.f32.gmra.mxu0 %v2354
    %v2500 = vpop.f32.mrf.mxu0
    %v2501 = vadd.f32 %v2439, %v2500
    %2502 = vmatmul.f32.gmra.mxu0 %v2355
    %v2503 = vpop.f32.mrf.mxu0
    %v2504 = vadd.f32 %v2442, %v2503
    %2505 = vmatmul.f32.gmra.mxu0 %v2356
    %v2506 = vpop.f32.mrf.mxu0
    %v2507 = vadd.f32 %v2445, %v2506
    %2508 = vmatmul.f32.gmra.mxu0 %v2357
    %v2509 = vpop.f32.mrf.mxu0
    %v2510 = vadd.f32 %v2448, %v2509
    %2511 = vmatmul.f32.gmra.mxu0 %v2358
    %v2512 = vpop.f32.mrf.mxu0
    %v2513 = vadd.f32 %v2451, %v2512
    %2514 = vmatmul.f32.gmra.mxu0 %v2359
    %v2515 = vpop.f32.mrf.mxu0
    %v2516 = vadd.f32 %v2454, %v2515
    %2517 = vmatmul.f32.gmra.mxu0 %v2360
    %v2518 = vpop.f32.mrf.mxu0
    %v2519 = vadd.f32 %v2457, %v2518
    %2520 = vmatmul.f32.gmra.mxu0 %v2361
    %v2521 = vpop.f32.mrf.mxu0
    %v2522 = vadd.f32 %v2460, %v2521
    %2523 = vmatmul.f32.gmra.mxu0 %v2362
    %v2524 = vpop.f32.mrf.mxu0
    %v2525 = vadd.f32 %v2463, %v2524
    %2526 = vmatmul.f32.gmra.mxu0 %v2363
    %v2527 = vpop.f32.mrf.mxu0
    %v2528 = vadd.f32 %v2466, %v2527
    %2529 = vmatmul.f32.gmra.mxu0 %v2364
    %v2530 = vpop.f32.mrf.mxu0
    %v2531 = vadd.f32 %v2469, %v2530
    %2532 = vmatmul.f32.gmra.mxu0 %v2365
    %v2533 = vpop.f32.mrf.mxu0
    %v2534 = vadd.f32 %v2472, %v2533
    %2535 = vmatmul.f32.gmra.mxu0 %v2366
    %v2536 = vpop.f32.mrf.mxu0
    %v2537 = vadd.f32 %v2475, %v2536
    %2538 = vdwg.mxu0
    %v2539 = vld [vmem:[#allocation3 + $0x2] sm:$0xff]
    %v2540 = vld [vmem:[#allocation3 + $0xa] sm:$0xff]
    %v2541 = vld [vmem:[#allocation3 + $0x12] sm:$0xff]
    %v2542 = vld [vmem:[#allocation3 + $0x1a] sm:$0xff]
    %v2543 = vld [vmem:[#allocation3 + $0x22] sm:$0xff]
    %v2544 = vld [vmem:[#allocation3 + $0x2a] sm:$0xff]
    %v2545 = vld [vmem:[#allocation3 + $0x32] sm:$0xff]
    %v2546 = vld [vmem:[#allocation3 + $0x3a] sm:$0xff]
    %v2547 = vld [vmem:[#allocation3 + $0x42] sm:$0xff]
    %v2548 = vld [vmem:[#allocation3 + $0x4a] sm:$0xff]
    %v2549 = vld [vmem:[#allocation3 + $0x52] sm:$0xff]
    %v2550 = vld [vmem:[#allocation3 + $0x5a] sm:$0xff]
    %v2551 = vld [vmem:[#allocation3 + $0x62] sm:$0xff]
    %v2552 = vld [vmem:[#allocation3 + $0x6a] sm:$0xff]
    %v2553 = vld [vmem:[#allocation3 + $0x72] sm:$0x1f]
    %s2554 = scalar_lea.vmem [#allocation15], 256
    %v2555 = vld [vmem:[%s2554] sm:$0xff]
    %v2556 = vld [vmem:[%s2554 + $0x8] sm:$0xff]
    %v2557 = vld [vmem:[%s2554 + $0x10] sm:$0xff]
    %v2558 = vld [vmem:[%s2554 + $0x18] sm:$0xff]
    %v2559 = vld [vmem:[%s2554 + $0x20] sm:$0xff]
    %v2560 = vld [vmem:[%s2554 + $0x28] sm:$0xff]
    %v2561 = vld [vmem:[%s2554 + $0x30] sm:$0xff]
    %v2562 = vld [vmem:[%s2554 + $0x38] sm:$0xff]
    %v2563 = vld [vmem:[%s2554 + $0x40] sm:$0xff]
    %v2564 = vld [vmem:[%s2554 + $0x48] sm:$0xff]
    %v2565 = vld [vmem:[%s2554 + $0x50] sm:$0xff]
    %v2566 = vld [vmem:[%s2554 + $0x58] sm:$0xff]
    %v2567 = vld [vmem:[%s2554 + $0x60] sm:$0xff]
    %v2568 = vld [vmem:[%s2554 + $0x68] sm:$0xff]
    %v2569 = vld [vmem:[%s2554 + $0x70] sm:$0xff]
    %v2570 = vld [vmem:[%s2554 + $0x78] sm:$0xff]
    %2571 = vmatpush.msra.mxu0 %v2570
    %2572 = vmatpush.msra.mxu0 %v2569
    %2573 = vmatpush.msra.mxu0 %v2568
    %2574 = vmatpush.msra.mxu0 %v2567
    %2575 = vmatpush.msra.mxu0 %v2566
    %2576 = vmatpush.msra.mxu0 %v2565
    %2577 = vmatpush.msra.mxu0 %v2564
    %2578 = vmatpush.msra.mxu0 %v2563
    %2579 = vmatpush.msra.mxu0 %v2562
    %2580 = vmatpush.msra.mxu0 %v2561
    %2581 = vmatpush.msra.mxu0 %v2560
    %2582 = vmatpush.msra.mxu0 %v2559
    %2583 = vmatpush.msra.mxu0 %v2558
    %2584 = vmatpush.msra.mxu0 %v2557
    %2585 = vmatpush.msra.mxu0 %v2556
    %2586 = vmatpush.msra.mxu0 %v2555
    %2587 = vmatmul.f32.gmra.mxu0 %v2539
    %v2588 = vpop.f32.mrf.mxu0
    %v2589 = vadd.f32 0.0, %v2588
    %2590 = vmatmul.f32.gmra.mxu0 %v2540
    %v2591 = vpop.f32.mrf.mxu0
    %v2592 = vadd.f32 0.0, %v2591
    %2593 = vmatmul.f32.gmra.mxu0 %v2541
    %v2594 = vpop.f32.mrf.mxu0
    %v2595 = vadd.f32 0.0, %v2594
    %2596 = vmatmul.f32.gmra.mxu0 %v2542
    %v2597 = vpop.f32.mrf.mxu0
    %v2598 = vadd.f32 0.0, %v2597
    %2599 = vmatmul.f32.gmra.mxu0 %v2543
    %v2600 = vpop.f32.mrf.mxu0
    %v2601 = vadd.f32 0.0, %v2600
    %2602 = vmatmul.f32.gmra.mxu0 %v2544
    %v2603 = vpop.f32.mrf.mxu0
    %v2604 = vadd.f32 0.0, %v2603
    %2605 = vmatmul.f32.gmra.mxu0 %v2545
    %v2606 = vpop.f32.mrf.mxu0
    %v2607 = vadd.f32 0.0, %v2606
    %2608 = vmatmul.f32.gmra.mxu0 %v2546
    %v2609 = vpop.f32.mrf.mxu0
    %v2610 = vadd.f32 0.0, %v2609
    %2611 = vmatmul.f32.gmra.mxu0 %v2547
    %v2612 = vpop.f32.mrf.mxu0
    %v2613 = vadd.f32 0.0, %v2612
    %2614 = vmatmul.f32.gmra.mxu0 %v2548
    %v2615 = vpop.f32.mrf.mxu0
    %v2616 = vadd.f32 0.0, %v2615
    %2617 = vmatmul.f32.gmra.mxu0 %v2549
    %v2618 = vpop.f32.mrf.mxu0
    %v2619 = vadd.f32 0.0, %v2618
    %2620 = vmatmul.f32.gmra.mxu0 %v2550
    %v2621 = vpop.f32.mrf.mxu0
    %v2622 = vadd.f32 0.0, %v2621
    %2623 = vmatmul.f32.gmra.mxu0 %v2551
    %v2624 = vpop.f32.mrf.mxu0
    %v2625 = vadd.f32 0.0, %v2624
    %2626 = vmatmul.f32.gmra.mxu0 %v2552
    %v2627 = vpop.f32.mrf.mxu0
    %v2628 = vadd.f32 0.0, %v2627
    %2629 = vmatmul.f32.gmra.mxu0 %v2553
    %v2630 = vpop.f32.mrf.mxu0
    %v2631 = vadd.f32 0.0, %v2630
    %2632 = vdwg.mxu0
    %v2633 = vadd.f32 %v2495, %v2589
    %v2634 = vadd.f32 %v2498, %v2592
    %v2635 = vadd.f32 %v2501, %v2595
    %v2636 = vadd.f32 %v2504, %v2598
    %v2637 = vadd.f32 %v2507, %v2601
    %v2638 = vadd.f32 %v2510, %v2604
    %v2639 = vadd.f32 %v2513, %v2607
    %v2640 = vadd.f32 %v2516, %v2610
    %v2641 = vadd.f32 %v2519, %v2613
    %v2642 = vadd.f32 %v2522, %v2616
    %v2643 = vadd.f32 %v2525, %v2619
    %v2644 = vadd.f32 %v2528, %v2622
    %v2645 = vadd.f32 %v2531, %v2625
    %v2646 = vadd.f32 %v2534, %v2628
    %v2647 = vadd.f32 %v2537, %v2631
    %v2648 = vld [vmem:[#allocation3 + $0x3] sm:$0xff]
    %v2649 = vld [vmem:[#allocation3 + $0xb] sm:$0xff]
    %v2650 = vld [vmem:[#allocation3 + $0x13] sm:$0xff]
    %v2651 = vld [vmem:[#allocation3 + $0x1b] sm:$0xff]
    %v2652 = vld [vmem:[#allocation3 + $0x23] sm:$0xff]
    %v2653 = vld [vmem:[#allocation3 + $0x2b] sm:$0xff]
    %v2654 = vld [vmem:[#allocation3 + $0x33] sm:$0xff]
    %v2655 = vld [vmem:[#allocation3 + $0x3b] sm:$0xff]
    %v2656 = vld [vmem:[#allocation3 + $0x43] sm:$0xff]
    %v2657 = vld [vmem:[#allocation3 + $0x4b] sm:$0xff]
    %v2658 = vld [vmem:[#allocation3 + $0x53] sm:$0xff]
    %v2659 = vld [vmem:[#allocation3 + $0x5b] sm:$0xff]
    %v2660 = vld [vmem:[#allocation3 + $0x63] sm:$0xff]
    %v2661 = vld [vmem:[#allocation3 + $0x6b] sm:$0xff]
    %v2662 = vld [vmem:[#allocation3 + $0x73] sm:$0x1f]
    %s2663 = scalar_lea.vmem [#allocation15], 384
    %v2664 = vld [vmem:[%s2663] sm:$0xff]
    %v2665 = vld [vmem:[%s2663 + $0x8] sm:$0xff]
    %v2666 = vld [vmem:[%s2663 + $0x10] sm:$0xff]
    %v2667 = vld [vmem:[%s2663 + $0x18] sm:$0xff]
    %v2668 = vld [vmem:[%s2663 + $0x20] sm:$0xff]
    %v2669 = vld [vmem:[%s2663 + $0x28] sm:$0xff]
    %v2670 = vld [vmem:[%s2663 + $0x30] sm:$0xff]
    %v2671 = vld [vmem:[%s2663 + $0x38] sm:$0xff]
    %v2672 = vld [vmem:[%s2663 + $0x40] sm:$0xff]
    %v2673 = vld [vmem:[%s2663 + $0x48] sm:$0xff]
    %v2674 = vld [vmem:[%s2663 + $0x50] sm:$0xff]
    %v2675 = vld [vmem:[%s2663 + $0x58] sm:$0xff]
    %v2676 = vld [vmem:[%s2663 + $0x60] sm:$0xff]
    %v2677 = vld [vmem:[%s2663 + $0x68] sm:$0xff]
    %v2678 = vld [vmem:[%s2663 + $0x70] sm:$0xff]
    %v2679 = vld [vmem:[%s2663 + $0x78] sm:$0xff]
    %2680 = vmatpush.msra.mxu0 %v2679
    %2681 = vmatpush.msra.mxu0 %v2678
    %2682 = vmatpush.msra.mxu0 %v2677
    %2683 = vmatpush.msra.mxu0 %v2676
    %2684 = vmatpush.msra.mxu0 %v2675
    %2685 = vmatpush.msra.mxu0 %v2674
    %2686 = vmatpush.msra.mxu0 %v2673
    %2687 = vmatpush.msra.mxu0 %v2672
    %2688 = vmatpush.msra.mxu0 %v2671
    %2689 = vmatpush.msra.mxu0 %v2670
    %2690 = vmatpush.msra.mxu0 %v2669
    %2691 = vmatpush.msra.mxu0 %v2668
    %2692 = vmatpush.msra.mxu0 %v2667
    %2693 = vmatpush.msra.mxu0 %v2666
    %2694 = vmatpush.msra.mxu0 %v2665
    %2695 = vmatpush.msra.mxu0 %v2664
    %2696 = vmatmul.f32.gmra.mxu0 %v2648
    %v2697 = vpop.f32.mrf.mxu0
    %v2698 = vadd.f32 0.0, %v2697
    %2699 = vmatmul.f32.gmra.mxu0 %v2649
    %v2700 = vpop.f32.mrf.mxu0
    %v2701 = vadd.f32 0.0, %v2700
    %2702 = vmatmul.f32.gmra.mxu0 %v2650
    %v2703 = vpop.f32.mrf.mxu0
    %v2704 = vadd.f32 0.0, %v2703
    %2705 = vmatmul.f32.gmra.mxu0 %v2651
    %v2706 = vpop.f32.mrf.mxu0
    %v2707 = vadd.f32 0.0, %v2706
    %2708 = vmatmul.f32.gmra.mxu0 %v2652
    %v2709 = vpop.f32.mrf.mxu0
    %v2710 = vadd.f32 0.0, %v2709
    %2711 = vmatmul.f32.gmra.mxu0 %v2653
    %v2712 = vpop.f32.mrf.mxu0
    %v2713 = vadd.f32 0.0, %v2712
    %2714 = vmatmul.f32.gmra.mxu0 %v2654
    %v2715 = vpop.f32.mrf.mxu0
    %v2716 = vadd.f32 0.0, %v2715
    %2717 = vmatmul.f32.gmra.mxu0 %v2655
    %v2718 = vpop.f32.mrf.mxu0
    %v2719 = vadd.f32 0.0, %v2718
    %2720 = vmatmul.f32.gmra.mxu0 %v2656
    %v2721 = vpop.f32.mrf.mxu0
    %v2722 = vadd.f32 0.0, %v2721
    %2723 = vmatmul.f32.gmra.mxu0 %v2657
    %v2724 = vpop.f32.mrf.mxu0
    %v2725 = vadd.f32 0.0, %v2724
    %2726 = vmatmul.f32.gmra.mxu0 %v2658
    %v2727 = vpop.f32.mrf.mxu0
    %v2728 = vadd.f32 0.0, %v2727
    %2729 = vmatmul.f32.gmra.mxu0 %v2659
    %v2730 = vpop.f32.mrf.mxu0
    %v2731 = vadd.f32 0.0, %v2730
    %2732 = vmatmul.f32.gmra.mxu0 %v2660
    %v2733 = vpop.f32.mrf.mxu0
    %v2734 = vadd.f32 0.0, %v2733
    %2735 = vmatmul.f32.gmra.mxu0 %v2661
    %v2736 = vpop.f32.mrf.mxu0
    %v2737 = vadd.f32 0.0, %v2736
    %2738 = vmatmul.f32.gmra.mxu0 %v2662
    %v2739 = vpop.f32.mrf.mxu0
    %v2740 = vadd.f32 0.0, %v2739
    %2741 = vdwg.mxu0
    %v2742 = vadd.f32 %v2633, %v2698
    %v2743 = vadd.f32 %v2634, %v2701
    %v2744 = vadd.f32 %v2635, %v2704
    %v2745 = vadd.f32 %v2636, %v2707
    %v2746 = vadd.f32 %v2637, %v2710
    %v2747 = vadd.f32 %v2638, %v2713
    %v2748 = vadd.f32 %v2639, %v2716
    %v2749 = vadd.f32 %v2640, %v2719
    %v2750 = vadd.f32 %v2641, %v2722
    %v2751 = vadd.f32 %v2642, %v2725
    %v2752 = vadd.f32 %v2643, %v2728
    %v2753 = vadd.f32 %v2644, %v2731
    %v2754 = vadd.f32 %v2645, %v2734
    %v2755 = vadd.f32 %v2646, %v2737
    %v2756 = vadd.f32 %v2647, %v2740
    %v2757 = vld [vmem:[#allocation3 + $0x4] sm:$0xff]
    %v2758 = vld [vmem:[#allocation3 + $0xc] sm:$0xff]
    %v2759 = vld [vmem:[#allocation3 + $0x14] sm:$0xff]
    %v2760 = vld [vmem:[#allocation3 + $0x1c] sm:$0xff]
    %v2761 = vld [vmem:[#allocation3 + $0x24] sm:$0xff]
    %v2762 = vld [vmem:[#allocation3 + $0x2c] sm:$0xff]
    %v2763 = vld [vmem:[#allocation3 + $0x34] sm:$0xff]
    %v2764 = vld [vmem:[#allocation3 + $0x3c] sm:$0xff]
    %v2765 = vld [vmem:[#allocation3 + $0x44] sm:$0xff]
    %v2766 = vld [vmem:[#allocation3 + $0x4c] sm:$0xff]
    %v2767 = vld [vmem:[#allocation3 + $0x54] sm:$0xff]
    %v2768 = vld [vmem:[#allocation3 + $0x5c] sm:$0xff]
    %v2769 = vld [vmem:[#allocation3 + $0x64] sm:$0xff]
    %v2770 = vld [vmem:[#allocation3 + $0x6c] sm:$0xff]
    %v2771 = vld [vmem:[#allocation3 + $0x74] sm:$0x1f]
    %s2772 = scalar_lea.vmem [#allocation15], 512
    %v2773 = vld [vmem:[%s2772] sm:$0xff]
    %v2774 = vld [vmem:[%s2772 + $0x8] sm:$0xff]
    %v2775 = vld [vmem:[%s2772 + $0x10] sm:$0xff]
    %v2776 = vld [vmem:[%s2772 + $0x18] sm:$0xff]
    %v2777 = vld [vmem:[%s2772 + $0x20] sm:$0xff]
    %v2778 = vld [vmem:[%s2772 + $0x28] sm:$0xff]
    %v2779 = vld [vmem:[%s2772 + $0x30] sm:$0xff]
    %v2780 = vld [vmem:[%s2772 + $0x38] sm:$0xff]
    %v2781 = vld [vmem:[%s2772 + $0x40] sm:$0xff]
    %v2782 = vld [vmem:[%s2772 + $0x48] sm:$0xff]
    %v2783 = vld [vmem:[%s2772 + $0x50] sm:$0xff]
    %v2784 = vld [vmem:[%s2772 + $0x58] sm:$0xff]
    %v2785 = vld [vmem:[%s2772 + $0x60] sm:$0xff]
    %v2786 = vld [vmem:[%s2772 + $0x68] sm:$0xff]
    %v2787 = vld [vmem:[%s2772 + $0x70] sm:$0xff]
    %v2788 = vld [vmem:[%s2772 + $0x78] sm:$0xff]
    %2789 = vmatpush.msra.mxu0 %v2788
    %2790 = vmatpush.msra.mxu0 %v2787
    %2791 = vmatpush.msra.mxu0 %v2786
    %2792 = vmatpush.msra.mxu0 %v2785
    %2793 = vmatpush.msra.mxu0 %v2784
    %2794 = vmatpush.msra.mxu0 %v2783
    %2795 = vmatpush.msra.mxu0 %v2782
    %2796 = vmatpush.msra.mxu0 %v2781
    %2797 = vmatpush.msra.mxu0 %v2780
    %2798 = vmatpush.msra.mxu0 %v2779
    %2799 = vmatpush.msra.mxu0 %v2778
    %2800 = vmatpush.msra.mxu0 %v2777
    %2801 = vmatpush.msra.mxu0 %v2776
    %2802 = vmatpush.msra.mxu0 %v2775
    %2803 = vmatpush.msra.mxu0 %v2774
    %2804 = vmatpush.msra.mxu0 %v2773
    %2805 = vmatmul.f32.gmra.mxu0 %v2757
    %v2806 = vpop.f32.mrf.mxu0
    %v2807 = vadd.f32 0.0, %v2806
    %2808 = vmatmul.f32.gmra.mxu0 %v2758
    %v2809 = vpop.f32.mrf.mxu0
    %v2810 = vadd.f32 0.0, %v2809
    %2811 = vmatmul.f32.gmra.mxu0 %v2759
    %v2812 = vpop.f32.mrf.mxu0
    %v2813 = vadd.f32 0.0, %v2812
    %2814 = vmatmul.f32.gmra.mxu0 %v2760
    %v2815 = vpop.f32.mrf.mxu0
    %v2816 = vadd.f32 0.0, %v2815
    %2817 = vmatmul.f32.gmra.mxu0 %v2761
    %v2818 = vpop.f32.mrf.mxu0
    %v2819 = vadd.f32 0.0, %v2818
    %2820 = vmatmul.f32.gmra.mxu0 %v2762
    %v2821 = vpop.f32.mrf.mxu0
    %v2822 = vadd.f32 0.0, %v2821
    %2823 = vmatmul.f32.gmra.mxu0 %v2763
    %v2824 = vpop.f32.mrf.mxu0
    %v2825 = vadd.f32 0.0, %v2824
    %2826 = vmatmul.f32.gmra.mxu0 %v2764
    %v2827 = vpop.f32.mrf.mxu0
    %v2828 = vadd.f32 0.0, %v2827
    %2829 = vmatmul.f32.gmra.mxu0 %v2765
    %v2830 = vpop.f32.mrf.mxu0
    %v2831 = vadd.f32 0.0, %v2830
    %2832 = vmatmul.f32.gmra.mxu0 %v2766
    %v2833 = vpop.f32.mrf.mxu0
    %v2834 = vadd.f32 0.0, %v2833
    %2835 = vmatmul.f32.gmra.mxu0 %v2767
    %v2836 = vpop.f32.mrf.mxu0
    %v2837 = vadd.f32 0.0, %v2836
    %2838 = vmatmul.f32.gmra.mxu0 %v2768
    %v2839 = vpop.f32.mrf.mxu0
    %v2840 = vadd.f32 0.0, %v2839
    %2841 = vmatmul.f32.gmra.mxu0 %v2769
    %v2842 = vpop.f32.mrf.mxu0
    %v2843 = vadd.f32 0.0, %v2842
    %2844 = vmatmul.f32.gmra.mxu0 %v2770
    %v2845 = vpop.f32.mrf.mxu0
    %v2846 = vadd.f32 0.0, %v2845
    %2847 = vmatmul.f32.gmra.mxu0 %v2771
    %v2848 = vpop.f32.mrf.mxu0
    %v2849 = vadd.f32 0.0, %v2848
    %2850 = vdwg.mxu0
    %v2851 = vadd.f32 %v2742, %v2807
    %v2852 = vadd.f32 %v2743, %v2810
    %v2853 = vadd.f32 %v2744, %v2813
    %v2854 = vadd.f32 %v2745, %v2816
    %v2855 = vadd.f32 %v2746, %v2819
    %v2856 = vadd.f32 %v2747, %v2822
    %v2857 = vadd.f32 %v2748, %v2825
    %v2858 = vadd.f32 %v2749, %v2828
    %v2859 = vadd.f32 %v2750, %v2831
    %v2860 = vadd.f32 %v2751, %v2834
    %v2861 = vadd.f32 %v2752, %v2837
    %v2862 = vadd.f32 %v2753, %v2840
    %v2863 = vadd.f32 %v2754, %v2843
    %v2864 = vadd.f32 %v2755, %v2846
    %v2865 = vadd.f32 %v2756, %v2849
    %v2866 = vld [vmem:[#allocation17] sm:$0x1]
    %v2868 = vperm.slane %v2866, 0
    %v2870 = vadd.f32 %v2851, %v2868
    %v2871 = vadd.f32 %v2852, %v2868
    %v2872 = vadd.f32 %v2853, %v2868
    %v2873 = vadd.f32 %v2854, %v2868
    %v2874 = vadd.f32 %v2855, %v2868
    %v2875 = vadd.f32 %v2856, %v2868
    %v2876 = vadd.f32 %v2857, %v2868
    %v2877 = vadd.f32 %v2858, %v2868
    %v2878 = vadd.f32 %v2859, %v2868
    %v2879 = vadd.f32 %v2860, %v2868
    %v2880 = vadd.f32 %v2861, %v2868
    %v2881 = vadd.f32 %v2862, %v2868
    %v2882 = vadd.f32 %v2863, %v2868
    %v2883 = vadd.f32 %v2864, %v2868
    %v2884 = vadd.f32 %v2865, %v2868
    %v2885 = vld [vmem:[#allocation18] sm:$0x1]
    %v2886 = vld [vmem:[#allocation20] sm:$0x1]
    %v2887 = vadd.f32 %v2870, %v2871
    %v2888 = vadd.f32 %v2887, %v2872
    %v2889 = vadd.f32 %v2888, %v2873
    %v2890 = vadd.f32 %v2889, %v2874
    %v2891 = vadd.f32 %v2890, %v2875
    %v2892 = vadd.f32 %v2891, %v2876
    %v2893 = vadd.f32 %v2892, %v2877
    %v2894 = vadd.f32 %v2893, %v2878
    %v2895 = vadd.f32 %v2894, %v2879
    %v2896 = vadd.f32 %v2895, %v2880
    %v2897 = vadd.f32 %v2896, %v2881
    %v2898 = vadd.f32 %v2897, %v2882
    %v2899 = vadd.f32 %v2898, %v2883
    %vm2900 = vcmask 1044480
    %v2901 = vsel %vm2900, %v2884, 0.0
    %v2902 = vadd.f32 %v2899, %v2901
    %v2903 = vrot.slane %v2902, 4
    %v2904 = vadd.f32 %v2902, %v2903
    %v2905 = vrot.slane %v2904, 2
    %v2906 = vadd.f32 %v2904, %v2905
    %v2907 = vrot.slane %v2906, 1
    %v2908 = vadd.f32 %v2906, %v2907
    %2910 = vrot.lane.b32.xlu0 %v2908, 96
    %v2911 = vpop.permute.xlu0 %2910
    %v2913 = vadd.f32 %v2908, %v2911
    %2914 = vrot.lane.b32.xlu0 %v2908, 64
    %v2915 = vpop.permute.xlu0 %2914
    %v2917 = vadd.f32 %v2913, %v2915
    %2918 = vrot.lane.b32.xlu0 %v2908, 32
    %v2919 = vpop.permute.xlu0 %2918
    %v2921 = vadd.f32 %v2917, %v2919
    %2923 = vrot.lane.b32.xlu0 %v2921, 32
    %v2924 = vpop.permute.xlu0 %2923
    %2926 = vrot.lane.b32.xlu0 %v2921, 64
    %v2927 = vpop.permute.xlu0 %2926
    %2929 = vrot.lane.b32.xlu0 %v2921, 96
    %v2930 = vpop.permute.xlu0 %2929
    %v2932 = vsel %vm1467, %v2921, %v2924
    %v2933 = vsel %vm1469, %v2932, %v2927
    %v2934 = vsel %vm1471, %v2933, %v2930
    %v2935 = vmul.f32 %v2934, 0.0021367522
    %v2936 = vperm.slane %v2935, 0
    %v2937 = vsub.f32 %v2870, %v2936
    %v2938 = vsub.f32 %v2871, %v2936
    %v2939 = vsub.f32 %v2872, %v2936
    %v2940 = vsub.f32 %v2873, %v2936
    %v2941 = vsub.f32 %v2874, %v2936
    %v2942 = vsub.f32 %v2875, %v2936
    %v2943 = vsub.f32 %v2876, %v2936
    %v2944 = vsub.f32 %v2877, %v2936
    %v2945 = vsub.f32 %v2878, %v2936
    %v2946 = vsub.f32 %v2879, %v2936
    %v2947 = vsub.f32 %v2880, %v2936
    %v2948 = vsub.f32 %v2881, %v2936
    %v2949 = vsub.f32 %v2882, %v2936
    %v2950 = vsub.f32 %v2883, %v2936
    %v2951 = vsub.f32 %v2884, %v2936
    %v2952 = vmul.f32 %v2937, %v2937
    %v2953 = vmul.f32 %v2938, %v2938
    %v2954 = vmul.f32 %v2939, %v2939
    %v2955 = vmul.f32 %v2940, %v2940
    %v2956 = vmul.f32 %v2941, %v2941
    %v2957 = vmul.f32 %v2942, %v2942
    %v2958 = vmul.f32 %v2943, %v2943
    %v2959 = vmul.f32 %v2944, %v2944
    %v2960 = vmul.f32 %v2945, %v2945
    %v2961 = vmul.f32 %v2946, %v2946
    %v2962 = vmul.f32 %v2947, %v2947
    %v2963 = vmul.f32 %v2948, %v2948
    %v2964 = vmul.f32 %v2949, %v2949
    %v2965 = vmul.f32 %v2950, %v2950
    %v2966 = vmul.f32 %v2951, %v2951
    %v2967 = vadd.f32 %v2952, %v2953
    %v2968 = vadd.f32 %v2967, %v2954
    %v2969 = vadd.f32 %v2968, %v2955
    %v2970 = vadd.f32 %v2969, %v2956
    %v2971 = vadd.f32 %v2970, %v2957
    %v2972 = vadd.f32 %v2971, %v2958
    %v2973 = vadd.f32 %v2972, %v2959
    %v2974 = vadd.f32 %v2973, %v2960
    %v2975 = vadd.f32 %v2974, %v2961
    %v2976 = vadd.f32 %v2975, %v2962
    %v2977 = vadd.f32 %v2976, %v2963
    %v2978 = vadd.f32 %v2977, %v2964
    %v2979 = vadd.f32 %v2978, %v2965
    %v2980 = vsel %vm2900, %v2966, 0.0
    %v2981 = vadd.f32 %v2979, %v2980
    %v2982 = vrot.slane %v2981, 4
    %v2983 = vadd.f32 %v2981, %v2982
    %v2984 = vrot.slane %v2983, 2
    %v2985 = vadd.f32 %v2983, %v2984
    %v2986 = vrot.slane %v2985, 1
    %v2987 = vadd.f32 %v2985, %v2986
    %2989 = vrot.lane.b32.xlu0 %v2987, 96
    %v2990 = vpop.permute.xlu0 %2989
    %v2992 = vadd.f32 %v2987, %v2990
    %2993 = vrot.lane.b32.xlu0 %v2987, 64
    %v2994 = vpop.permute.xlu0 %2993
    %v2996 = vadd.f32 %v2992, %v2994
    %2997 = vrot.lane.b32.xlu0 %v2987, 32
    %v2998 = vpop.permute.xlu0 %2997
    %v3000 = vadd.f32 %v2996, %v2998
    %3002 = vrot.lane.b32.xlu0 %v3000, 32
    %v3003 = vpop.permute.xlu0 %3002
    %3005 = vrot.lane.b32.xlu0 %v3000, 64
    %v3006 = vpop.permute.xlu0 %3005
    %3008 = vrot.lane.b32.xlu0 %v3000, 96
    %v3009 = vpop.permute.xlu0 %3008
    %v3011 = vsel %vm1467, %v3000, %v3003
    %v3012 = vsel %vm1469, %v3011, %v3006
    %v3013 = vsel %vm1471, %v3012, %v3009
    %v3014 = vmul.f32 %v3013, 0.0021367522
    %v3015 = vadd.f32 %v3014, 1e-05
    %v3016 = vrsqrt.pop %v3015
    %v3017 = vmul.f32 %v3016, %v3015
    %v3018 = vmul.f32 %v3017, %v3016
    %v3019 = vmul.f32 0.5, %v3018
    %v3020 = vsub.f32 1.5, %v3019
    %v3021 = vmul.f32 %v3016, %v3020
    %vm3022 = vweird.f32 %v3015
    %vm3023 = vweird.f32 %v3016
    %vm3024 = vmor %vm3022, %vm3023
    %v3025 = vsel %vm3024, %v3016, %v3021
    %v3026 = vperm.slane %v3025, 0
    %v3027 = vmul.f32 %v2937, %v3026
    %v3028 = vmul.f32 %v2938, %v3026
    %v3029 = vmul.f32 %v2939, %v3026
    %v3030 = vmul.f32 %v2940, %v3026
    %v3031 = vmul.f32 %v2941, %v3026
    %v3032 = vmul.f32 %v2942, %v3026
    %v3033 = vmul.f32 %v2943, %v3026
    %v3034 = vmul.f32 %v2944, %v3026
    %v3035 = vmul.f32 %v2945, %v3026
    %v3036 = vmul.f32 %v2946, %v3026
    %v3037 = vmul.f32 %v2947, %v3026
    %v3038 = vmul.f32 %v2948, %v3026
    %v3039 = vmul.f32 %v2949, %v3026
    %v3040 = vmul.f32 %v2950, %v3026
    %v3041 = vmul.f32 %v2951, %v3026
    %v3043 = vperm.slane %v2885, 0
    %v3045 = vmul.f32 %v3027, %v3043
    %v3046 = vmul.f32 %v3028, %v3043
    %v3047 = vmul.f32 %v3029, %v3043
    %v3048 = vmul.f32 %v3030, %v3043
    %v3049 = vmul.f32 %v3031, %v3043
    %v3050 = vmul.f32 %v3032, %v3043
    %v3051 = vmul.f32 %v3033, %v3043
    %v3052 = vmul.f32 %v3034, %v3043
    %v3053 = vmul.f32 %v3035, %v3043
    %v3054 = vmul.f32 %v3036, %v3043
    %v3055 = vmul.f32 %v3037, %v3043
    %v3056 = vmul.f32 %v3038, %v3043
    %v3057 = vmul.f32 %v3039, %v3043
    %v3058 = vmul.f32 %v3040, %v3043
    %v3059 = vmul.f32 %v3041, %v3043
    %v3061 = vperm.slane %v2886, 0
    %v3063 = vadd.f32 %v3045, %v3061
    %v3064 = vadd.f32 %v3046, %v3061
    %v3065 = vadd.f32 %v3047, %v3061
    %v3066 = vadd.f32 %v3048, %v3061
    %v3067 = vadd.f32 %v3049, %v3061
    %v3068 = vadd.f32 %v3050, %v3061
    %v3069 = vadd.f32 %v3051, %v3061
    %v3070 = vadd.f32 %v3052, %v3061
    %v3071 = vadd.f32 %v3053, %v3061
    %v3072 = vadd.f32 %v3054, %v3061
    %v3073 = vadd.f32 %v3055, %v3061
    %v3074 = vadd.f32 %v3056, %v3061
    %v3075 = vadd.f32 %v3057, %v3061
    %v3076 = vadd.f32 %v3058, %v3061
    %v3077 = vadd.f32 %v3059, %v3061
    %v3078 = vmax.f32 %v3063, 0.0
    %v3079 = vmax.f32 %v3064, 0.0
    %v3080 = vmax.f32 %v3065, 0.0
    %v3081 = vmax.f32 %v3066, 0.0
    %v3082 = vmax.f32 %v3067, 0.0
    %v3083 = vmax.f32 %v3068, 0.0
    %v3084 = vmax.f32 %v3069, 0.0
    %v3085 = vmax.f32 %v3070, 0.0
    %v3086 = vmax.f32 %v3071, 0.0
    %v3087 = vmax.f32 %v3072, 0.0
    %v3088 = vmax.f32 %v3073, 0.0
    %v3089 = vmax.f32 %v3074, 0.0
    %v3090 = vmax.f32 %v3075, 0.0
    %v3091 = vmax.f32 %v3076, 0.0
    %v3092 = vmax.f32 %v3077, 0.0
    %3093 = vst [vmem:[#allocation2] sm:$0xff] %v3078
    %3094 = vst [vmem:[#allocation2 + $0x8] sm:$0xff] %v3079
    %3095 = vst [vmem:[#allocation2 + $0x10] sm:$0xff] %v3080
    %3096 = vst [vmem:[#allocation2 + $0x18] sm:$0xff] %v3081
    %3097 = vst [vmem:[#allocation2 + $0x20] sm:$0xff] %v3082
    %3098 = vst [vmem:[#allocation2 + $0x28] sm:$0xff] %v3083
    %3099 = vst [vmem:[#allocation2 + $0x30] sm:$0xff] %v3084
    %3100 = vst [vmem:[#allocation2 + $0x38] sm:$0xff] %v3085
    %3101 = vst [vmem:[#allocation2 + $0x40] sm:$0xff] %v3086
    %3102 = vst [vmem:[#allocation2 + $0x48] sm:$0xff] %v3087
    %3103 = vst [vmem:[#allocation2 + $0x50] sm:$0xff] %v3088
    %3104 = vst [vmem:[#allocation2 + $0x58] sm:$0xff] %v3089
    %3105 = vst [vmem:[#allocation2 + $0x60] sm:$0xff] %v3090
    %3106 = vst [vmem:[#allocation2 + $0x68] sm:$0xff] %v3091
    %3107 = vst [vmem:[#allocation2 + $0x70] sm:$0x1f] %v3092
    %v3108 = vld [vmem:[#allocation2] ss:$5 sm:$0xff]
    %v3109 = vld [vmem:[%s2127] ss:$5 sm:$0xff]
    %v3110 = vld [vmem:[%s2129] ss:$5 sm:$0x7f]
    %v3111 = vld [vmem:[%s2155] ss:$5 sm:$0xff]
    %v3112 = vld [vmem:[%s2157] ss:$5 sm:$0xff]
    %v3113 = vld [vmem:[%s2159] ss:$5 sm:$0x7f]
    %v3114 = vmax.f32 %v3108, %v3111
    %v3115 = vmax.f32 %v3109, %v3112
    %v3116 = vmax.f32 %v3110, %v3113
    %v3117 = vld [vmem:[%s2200] ss:$5 sm:$0xff]
    %v3118 = vld [vmem:[%s2202] ss:$5 sm:$0xff]
    %v3119 = vld [vmem:[%s2204] ss:$5 sm:$0x7f]
    %v3120 = vmax.f32 %v3114, %v3117
    %v3121 = vmax.f32 %v3115, %v3118
    %v3122 = vmax.f32 %v3116, %v3119
    %s3123 = scalar_lea.vmem [#allocation2], 3
    %v3124 = vld [vmem:[%s3123] ss:$5 sm:$0xff]
    %s3125 = scalar_lea.vmem [#allocation2], 43
    %v3126 = vld [vmem:[%s3125] ss:$5 sm:$0xff]
    %s3127 = scalar_lea.vmem [#allocation2], 83
    %v3128 = vld [vmem:[%s3127] ss:$5 sm:$0x7f]
    %v3129 = vmax.f32 %v3120, %v3124
    %v3130 = vmax.f32 %v3121, %v3126
    %v3131 = vmax.f32 %v3122, %v3128
    %v3132 = vld [vmem:[%s2290] ss:$5 sm:$0xff]
    %v3133 = vld [vmem:[%s2292] ss:$5 sm:$0xff]
    %v3134 = vld [vmem:[%s2294] ss:$5 sm:$0x7f]
    %v3135 = vmax.f32 %v3129, %v3132
    %v3136 = vmax.f32 %v3130, %v3133
    %v3137 = vmax.f32 %v3131, %v3134
    %3138 = vst [vmem:[#allocation4] sm:$0xff] %v3135
    %3139 = vst [vmem:[#allocation4 + $0x8] sm:$0xff] %v3136
    %3140 = vst [vmem:[#allocation4 + $0x10] sm:$0x7f] %v3137
    %v3141 = vld [vmem:[#allocation4] sm:$0x1]
    %vm3142 = vcmask 253952
    %3143 = vst.msk [vmem:[#allocation5] sm:$0x1] %vm3142, %v3141
    %v3144 = vld [vmem:[#allocation4 + $0x1] sm:$0x1]
    %3146 = vrot.lane.b32.xlu0 %v3144, 32
    %v3147 = vpop.permute.xlu0 %3146
    %vm3149 = vcmask 516352
    %3150 = vst.msk [vmem:[#allocation5] sm:$0x1] %vm3149, %v3147
    %v3151 = vld [vmem:[#allocation4 + $0x2] sm:$0x1]
    %3153 = vrot.lane.b32.xlu0 %v3151, 64
    %v3154 = vpop.permute.xlu0 %3153
    %vm3156 = vcmask 778752
    %3157 = vst.msk [vmem:[#allocation5] sm:$0x1] %vm3156, %v3154
    %v3158 = vld [vmem:[#allocation4 + $0x3] sm:$0x1]
    %3160 = vrot.lane.b32.xlu0 %v3158, 96
    %v3161 = vpop.permute.xlu0 %3160
    %vm3163 = vcmask 1041152
    %3164 = vst.msk [vmem:[#allocation5] sm:$0x1] %vm3163, %v3161
    %v3165 = vld [vmem:[#allocation4 + $0x4] sm:$0x1]
    %3166 = vst.msk [vmem:[#allocation5 + $0x4] sm:$0x1] %vm3142, %v3165
    %v3167 = vld [vmem:[#allocation4 + $0x5] sm:$0x1]
    %3169 = vrot.lane.b32.xlu0 %v3167, 32
    %v3170 = vpop.permute.xlu0 %3169
    %3172 = vst.msk [vmem:[#allocation5 + $0x4] sm:$0x1] %vm3149, %v3170
    %v3173 = vld [vmem:[#allocation4 + $0x6] sm:$0x1]
    %3175 = vrot.lane.b32.xlu0 %v3173, 64
    %v3176 = vpop.permute.xlu0 %3175
    %3178 = vst.msk [vmem:[#allocation5 + $0x4] sm:$0x1] %vm3156, %v3176
    %v3179 = vld [vmem:[#allocation4 + $0x7] sm:$0x1]
    %3181 = vrot.lane.b32.xlu0 %v3179, 96
    %v3182 = vpop.permute.xlu0 %3181
    %3184 = vst.msk [vmem:[#allocation5 + $0x4] sm:$0x1] %vm3163, %v3182
    %v3185 = vld [vmem:[#allocation4 + $0x8] sm:$0x1]
    %3186 = vst.msk [vmem:[#allocation5 + $0x8] sm:$0x1] %vm3142, %v3185
    %v3187 = vld [vmem:[#allocation4 + $0x9] sm:$0x1]
    %3189 = vrot.lane.b32.xlu0 %v3187, 32
    %v3190 = vpop.permute.xlu0 %3189
    %3192 = vst.msk [vmem:[#allocation5 + $0x8] sm:$0x1] %vm3149, %v3190
    %v3193 = vld [vmem:[#allocation4 + $0xa] sm:$0x1]
    %3195 = vrot.lane.b32.xlu0 %v3193, 64
    %v3196 = vpop.permute.xlu0 %3195
    %3198 = vst.msk [vmem:[#allocation5 + $0x8] sm:$0x1] %vm3156, %v3196
    %v3199 = vld [vmem:[#allocation4 + $0xb] sm:$0x1]
    %3201 = vrot.lane.b32.xlu0 %v3199, 96
    %v3202 = vpop.permute.xlu0 %3201
    %3204 = vst.msk [vmem:[#allocation5 + $0x8] sm:$0x1] %vm3163, %v3202
    %v3205 = vld [vmem:[#allocation4 + $0xc] sm:$0x1]
    %3206 = vst.msk [vmem:[#allocation5 + $0xc] sm:$0x1] %vm3142, %v3205
    %v3207 = vld [vmem:[#allocation4 + $0xd] sm:$0x1]
    %3209 = vrot.lane.b32.xlu0 %v3207, 32
    %v3210 = vpop.permute.xlu0 %3209
    %3212 = vst.msk [vmem:[#allocation5 + $0xc] sm:$0x1] %vm3149, %v3210
    %v3213 = vld [vmem:[#allocation4 + $0xe] sm:$0x1]
    %3215 = vrot.lane.b32.xlu0 %v3213, 64
    %v3216 = vpop.permute.xlu0 %3215
    %3218 = vst.msk [vmem:[#allocation5 + $0xc] sm:$0x1] %vm3156, %v3216
    %v3219 = vld [vmem:[#allocation4 + $0xf] sm:$0x1]
    %3221 = vrot.lane.b32.xlu0 %v3219, 96
    %v3222 = vpop.permute.xlu0 %3221
    %3224 = vst.msk [vmem:[#allocation5 + $0xc] sm:$0x1] %vm3163, %v3222
    %v3225 = vld [vmem:[#allocation4 + $0x10] sm:$0x1]
    %3226 = vst.msk [vmem:[#allocation5 + $0x10] sm:$0x1] %vm3142, %v3225
    %v3227 = vld [vmem:[#allocation4 + $0x11] sm:$0x1]
    %3229 = vrot.lane.b32.xlu0 %v3227, 32
    %v3230 = vpop.permute.xlu0 %3229
    %3232 = vst.msk [vmem:[#allocation5 + $0x10] sm:$0x1] %vm3149, %v3230
    %v3233 = vld [vmem:[#allocation4 + $0x12] sm:$0x1]
    %3235 = vrot.lane.b32.xlu0 %v3233, 64
    %v3236 = vpop.permute.xlu0 %3235
    %3238 = vst.msk [vmem:[#allocation5 + $0x10] sm:$0x1] %vm3156, %v3236
    %v3239 = vld [vmem:[#allocation4 + $0x13] sm:$0x1]
    %3241 = vrot.lane.b32.xlu0 %v3239, 96
    %v3242 = vpop.permute.xlu0 %3241
    %3244 = vst.msk [vmem:[#allocation5 + $0x10] sm:$0x1] %vm3163, %v3242
    %v3245 = vld [vmem:[#allocation4 + $0x14] sm:$0x1]
    %3246 = vst.msk [vmem:[#allocation5 + $0x14] sm:$0x1] %vm3142, %v3245
    %v3247 = vld [vmem:[#allocation4 + $0x15] sm:$0x1]
    %3249 = vrot.lane.b32.xlu0 %v3247, 32
    %v3250 = vpop.permute.xlu0 %3249
    %3252 = vst.msk [vmem:[#allocation5 + $0x14] sm:$0x1] %vm3149, %v3250
    %v3253 = vld [vmem:[#allocation4 + $0x16] sm:$0x1]
    %3255 = vrot.lane.b32.xlu0 %v3253, 64
    %v3256 = vpop.permute.xlu0 %3255
    %3258 = vst.msk [vmem:[#allocation5 + $0x14] sm:$0x1] %vm3156, %v3256
    %v3259 = vld [vmem:[#allocation4] sm:$0x1]
    %3261 = vrot.lane.b32.xlu0 %v3259, 96
    %v3262 = vpop.permute.xlu0 %3261
    %3264 = vst.msk [vmem:[#allocation5 + $0x1] sm:$0x1] %vm3142, %v3262
    %v3265 = vld [vmem:[#allocation4 + $0x1] sm:$0x1]
    %3266 = vst.msk [vmem:[#allocation5 + $0x1] sm:$0x1] %vm3149, %v3265
    %v3267 = vld [vmem:[#allocation4 + $0x2] sm:$0x1]
    %3269 = vrot.lane.b32.xlu0 %v3267, 32
    %v3270 = vpop.permute.xlu0 %3269
    %3272 = vst.msk [vmem:[#allocation5 + $0x1] sm:$0x1] %vm3156, %v3270
    %v3273 = vld [vmem:[#allocation4 + $0x3] sm:$0x1]
    %3275 = vrot.lane.b32.xlu0 %v3273, 64
    %v3276 = vpop.permute.xlu0 %3275
    %3278 = vst.msk [vmem:[#allocation5 + $0x1] sm:$0x1] %vm3163, %v3276
    %v3279 = vld [vmem:[#allocation4 + $0x4] sm:$0x1]
    %3281 = vrot.lane.b32.xlu0 %v3279, 96
    %v3282 = vpop.permute.xlu0 %3281
    %3284 = vst.msk [vmem:[#allocation5 + $0x5] sm:$0x1] %vm3142, %v3282
    %v3285 = vld [vmem:[#allocation4 + $0x5] sm:$0x1]
    %3286 = vst.msk [vmem:[#allocation5 + $0x5] sm:$0x1] %vm3149, %v3285
    %v3287 = vld [vmem:[#allocation4 + $0x6] sm:$0x1]
    %3289 = vrot.lane.b32.xlu0 %v3287, 32
    %v3290 = vpop.permute.xlu0 %3289
    %3292 = vst.msk [vmem:[#allocation5 + $0x5] sm:$0x1] %vm3156, %v3290
    %v3293 = vld [vmem:[#allocation4 + $0x7] sm:$0x1]
    %3295 = vrot.lane.b32.xlu0 %v3293, 64
    %v3296 = vpop.permute.xlu0 %3295
    %3298 = vst.msk [vmem:[#allocation5 + $0x5] sm:$0x1] %vm3163, %v3296
    %v3299 = vld [vmem:[#allocation4 + $0x8] sm:$0x1]
    %3301 = vrot.lane.b32.xlu0 %v3299, 96
    %v3302 = vpop.permute.xlu0 %3301
    %3304 = vst.msk [vmem:[#allocation5 + $0x9] sm:$0x1] %vm3142, %v3302
    %v3305 = vld [vmem:[#allocation4 + $0x9] sm:$0x1]
    %3306 = vst.msk [vmem:[#allocation5 + $0x9] sm:$0x1] %vm3149, %v3305
    %v3307 = vld [vmem:[#allocation4 + $0xa] sm:$0x1]
    %3309 = vrot.lane.b32.xlu0 %v3307, 32
    %v3310 = vpop.permute.xlu0 %3309
    %3312 = vst.msk [vmem:[#allocation5 + $0x9] sm:$0x1] %vm3156, %v3310
    %v3313 = vld [vmem:[#allocation4 + $0xb] sm:$0x1]
    %3315 = vrot.lane.b32.xlu0 %v3313, 64
    %v3316 = vpop.permute.xlu0 %3315
    %3318 = vst.msk [vmem:[#allocation5 + $0x9] sm:$0x1] %vm3163, %v3316
    %v3319 = vld [vmem:[#allocation4 + $0xc] sm:$0x1]
    %3321 = vrot.lane.b32.xlu0 %v3319, 96
    %v3322 = vpop.permute.xlu0 %3321
    %3324 = vst.msk [vmem:[#allocation5 + $0xd] sm:$0x1] %vm3142, %v3322
    %v3325 = vld [vmem:[#allocation4 + $0xd] sm:$0x1]
    %3326 = vst.msk [vmem:[#allocation5 + $0xd] sm:$0x1] %vm3149, %v3325
    %v3327 = vld [vmem:[#allocation4 + $0xe] sm:$0x1]
    %3329 = vrot.lane.b32.xlu0 %v3327, 32
    %v3330 = vpop.permute.xlu0 %3329
    %3332 = vst.msk [vmem:[#allocation5 + $0xd] sm:$0x1] %vm3156, %v3330
    %v3333 = vld [vmem:[#allocation4 + $0xf] sm:$0x1]
    %3335 = vrot.lane.b32.xlu0 %v3333, 64
    %v3336 = vpop.permute.xlu0 %3335
    %3338 = vst.msk [vmem:[#allocation5 + $0xd] sm:$0x1] %vm3163, %v3336
    %v3339 = vld [vmem:[#allocation4 + $0x10] sm:$0x1]
    %3341 = vrot.lane.b32.xlu0 %v3339, 96
    %v3342 = vpop.permute.xlu0 %3341
    %3344 = vst.msk [vmem:[#allocation5 + $0x11] sm:$0x1] %vm3142, %v3342
    %v3345 = vld [vmem:[#allocation4 + $0x11] sm:$0x1]
    %3346 = vst.msk [vmem:[#allocation5 + $0x11] sm:$0x1] %vm3149, %v3345
    %v3347 = vld [vmem:[#allocation4 + $0x12] sm:$0x1]
    %3349 = vrot.lane.b32.xlu0 %v3347, 32
    %v3350 = vpop.permute.xlu0 %3349
    %3352 = vst.msk [vmem:[#allocation5 + $0x11] sm:$0x1] %vm3156, %v3350
    %v3353 = vld [vmem:[#allocation4 + $0x13] sm:$0x1]
    %3355 = vrot.lane.b32.xlu0 %v3353, 64
    %v3356 = vpop.permute.xlu0 %3355
    %3358 = vst.msk [vmem:[#allocation5 + $0x11] sm:$0x1] %vm3163, %v3356
    %v3359 = vld [vmem:[#allocation4 + $0x14] sm:$0x1]
    %3361 = vrot.lane.b32.xlu0 %v3359, 96
    %v3362 = vpop.permute.xlu0 %3361
    %3364 = vst.msk [vmem:[#allocation5 + $0x15] sm:$0x1] %vm3142, %v3362
    %v3365 = vld [vmem:[#allocation4 + $0x15] sm:$0x1]
    %3366 = vst.msk [vmem:[#allocation5 + $0x15] sm:$0x1] %vm3149, %v3365
    %v3367 = vld [vmem:[#allocation4 + $0x16] sm:$0x1]
    %3369 = vrot.lane.b32.xlu0 %v3367, 32
    %v3370 = vpop.permute.xlu0 %3369
    %3372 = vst.msk [vmem:[#allocation5 + $0x15] sm:$0x1] %vm3156, %v3370
    %v3373 = vld [vmem:[#allocation4] sm:$0x1]
    %3375 = vrot.lane.b32.xlu0 %v3373, 64
    %v3376 = vpop.permute.xlu0 %3375
    %3378 = vst.msk [vmem:[#allocation5 + $0x2] sm:$0x1] %vm3142, %v3376
    %v3379 = vld [vmem:[#allocation4 + $0x1] sm:$0x1]
    %3381 = vrot.lane.b32.xlu0 %v3379, 96
    %v3382 = vpop.permute.xlu0 %3381
    %3384 = vst.msk [vmem:[#allocation5 + $0x2] sm:$0x1] %vm3149, %v3382
    %v3385 = vld [vmem:[#allocation4 + $0x2] sm:$0x1]
    %3386 = vst.msk [vmem:[#allocation5 + $0x2] sm:$0x1] %vm3156, %v3385
    %v3387 = vld [vmem:[#allocation4 + $0x3] sm:$0x1]
    %3389 = vrot.lane.b32.xlu0 %v3387, 32
    %v3390 = vpop.permute.xlu0 %3389
    %3392 = vst.msk [vmem:[#allocation5 + $0x2] sm:$0x1] %vm3163, %v3390
    %v3393 = vld [vmem:[#allocation4 + $0x4] sm:$0x1]
    %3395 = vrot.lane.b32.xlu0 %v3393, 64
    %v3396 = vpop.permute.xlu0 %3395
    %3398 = vst.msk [vmem:[#allocation5 + $0x6] sm:$0x1] %vm3142, %v3396
    %v3399 = vld [vmem:[#allocation4 + $0x5] sm:$0x1]
    %3401 = vrot.lane.b32.xlu0 %v3399, 96
    %v3402 = vpop.permute.xlu0 %3401
    %3404 = vst.msk [vmem:[#allocation5 + $0x6] sm:$0x1] %vm3149, %v3402
    %v3405 = vld [vmem:[#allocation4 + $0x6] sm:$0x1]
    %3406 = vst.msk [vmem:[#allocation5 + $0x6] sm:$0x1] %vm3156, %v3405
    %v3407 = vld [vmem:[#allocation4 + $0x7] sm:$0x1]
    %3409 = vrot.lane.b32.xlu0 %v3407, 32
    %v3410 = vpop.permute.xlu0 %3409
    %3412 = vst.msk [vmem:[#allocation5 + $0x6] sm:$0x1] %vm3163, %v3410
    %v3413 = vld [vmem:[#allocation4 + $0x8] sm:$0x1]
    %3415 = vrot.lane.b32.xlu0 %v3413, 64
    %v3416 = vpop.permute.xlu0 %3415
    %3418 = vst.msk [vmem:[#allocation5 + $0xa] sm:$0x1] %vm3142, %v3416
    %v3419 = vld [vmem:[#allocation4 + $0x9] sm:$0x1]
    %3421 = vrot.lane.b32.xlu0 %v3419, 96
    %v3422 = vpop.permute.xlu0 %3421
    %3424 = vst.msk [vmem:[#allocation5 + $0xa] sm:$0x1] %vm3149, %v3422
    %v3425 = vld [vmem:[#allocation4 + $0xa] sm:$0x1]
    %3426 = vst.msk [vmem:[#allocation5 + $0xa] sm:$0x1] %vm3156, %v3425
    %v3427 = vld [vmem:[#allocation4 + $0xb] sm:$0x1]
    %3429 = vrot.lane.b32.xlu0 %v3427, 32
    %v3430 = vpop.permute.xlu0 %3429
    %3432 = vst.msk [vmem:[#allocation5 + $0xa] sm:$0x1] %vm3163, %v3430
    %v3433 = vld [vmem:[#allocation4 + $0xc] sm:$0x1]
    %3435 = vrot.lane.b32.xlu0 %v3433, 64
    %v3436 = vpop.permute.xlu0 %3435
    %3438 = vst.msk [vmem:[#allocation5 + $0xe] sm:$0x1] %vm3142, %v3436
    %v3439 = vld [vmem:[#allocation4 + $0xd] sm:$0x1]
    %3441 = vrot.lane.b32.xlu0 %v3439, 96
    %v3442 = vpop.permute.xlu0 %3441
    %3444 = vst.msk [vmem:[#allocation5 + $0xe] sm:$0x1] %vm3149, %v3442
    %v3445 = vld [vmem:[#allocation4 + $0xe] sm:$0x1]
    %3446 = vst.msk [vmem:[#allocation5 + $0xe] sm:$0x1] %vm3156, %v3445
    %v3447 = vld [vmem:[#allocation4 + $0xf] sm:$0x1]
    %3449 = vrot.lane.b32.xlu0 %v3447, 32
    %v3450 = vpop.permute.xlu0 %3449
    %3452 = vst.msk [vmem:[#allocation5 + $0xe] sm:$0x1] %vm3163, %v3450
    %v3453 = vld [vmem:[#allocation4 + $0x10] sm:$0x1]
    %3455 = vrot.lane.b32.xlu0 %v3453, 64
    %v3456 = vpop.permute.xlu0 %3455
    %3458 = vst.msk [vmem:[#allocation5 + $0x12] sm:$0x1] %vm3142, %v3456
    %v3459 = vld [vmem:[#allocation4 + $0x11] sm:$0x1]
    %3461 = vrot.lane.b32.xlu0 %v3459, 96
    %v3462 = vpop.permute.xlu0 %3461
    %3464 = vst.msk [vmem:[#allocation5 + $0x12] sm:$0x1] %vm3149, %v3462
    %v3465 = vld [vmem:[#allocation4 + $0x12] sm:$0x1]
    %3466 = vst.msk [vmem:[#allocation5 + $0x12] sm:$0x1] %vm3156, %v3465
    %v3467 = vld [vmem:[#allocation4 + $0x13] sm:$0x1]
    %3469 = vrot.lane.b32.xlu0 %v3467, 32
    %v3470 = vpop.permute.xlu0 %3469
    %3472 = vst.msk [vmem:[#allocation5 + $0x12] sm:$0x1] %vm3163, %v3470
    %v3473 = vld [vmem:[#allocation4 + $0x14] sm:$0x1]
    %3475 = vrot.lane.b32.xlu0 %v3473, 64
    %v3476 = vpop.permute.xlu0 %3475
    %3478 = vst.msk [vmem:[#allocation5 + $0x16] sm:$0x1] %vm3142, %v3476
    %v3479 = vld [vmem:[#allocation4 + $0x15] sm:$0x1]
    %3481 = vrot.lane.b32.xlu0 %v3479, 96
    %v3482 = vpop.permute.xlu0 %3481
    %3484 = vst.msk [vmem:[#allocation5 + $0x16] sm:$0x1] %vm3149, %v3482
    %v3485 = vld [vmem:[#allocation4 + $0x16] sm:$0x1]
    %3486 = vst.msk [vmem:[#allocation5 + $0x16] sm:$0x1] %vm3156, %v3485
    %v3487 = vld [vmem:[#allocation4] sm:$0x1]
    %3489 = vrot.lane.b32.xlu0 %v3487, 32
    %v3490 = vpop.permute.xlu0 %3489
    %3492 = vst.msk [vmem:[#allocation5 + $0x3] sm:$0x1] %vm3142, %v3490
    %v3493 = vld [vmem:[#allocation4 + $0x1] sm:$0x1]
    %3495 = vrot.lane.b32.xlu0 %v3493, 64
    %v3496 = vpop.permute.xlu0 %3495
    %3498 = vst.msk [vmem:[#allocation5 + $0x3] sm:$0x1] %vm3149, %v3496
    %v3499 = vld [vmem:[#allocation4 + $0x2] sm:$0x1]
    %3501 = vrot.lane.b32.xlu0 %v3499, 96
    %v3502 = vpop.permute.xlu0 %3501
    %3504 = vst.msk [vmem:[#allocation5 + $0x3] sm:$0x1] %vm3156, %v3502
    %v3505 = vld [vmem:[#allocation4 + $0x3] sm:$0x1]
    %3506 = vst.msk [vmem:[#allocation5 + $0x3] sm:$0x1] %vm3163, %v3505
    %v3507 = vld [vmem:[#allocation4 + $0x4] sm:$0x1]
    %3509 = vrot.lane.b32.xlu0 %v3507, 32
    %v3510 = vpop.permute.xlu0 %3509
    %3512 = vst.msk [vmem:[#allocation5 + $0x7] sm:$0x1] %vm3142, %v3510
    %v3513 = vld [vmem:[#allocation4 + $0x5] sm:$0x1]
    %3515 = vrot.lane.b32.xlu0 %v3513, 64
    %v3516 = vpop.permute.xlu0 %3515
    %3518 = vst.msk [vmem:[#allocation5 + $0x7] sm:$0x1] %vm3149, %v3516
    %v3519 = vld [vmem:[#allocation4 + $0x6] sm:$0x1]
    %3521 = vrot.lane.b32.xlu0 %v3519, 96
    %v3522 = vpop.permute.xlu0 %3521
    %3524 = vst.msk [vmem:[#allocation5 + $0x7] sm:$0x1] %vm3156, %v3522
    %v3525 = vld [vmem:[#allocation4 + $0x7] sm:$0x1]
    %3526 = vst.msk [vmem:[#allocation5 + $0x7] sm:$0x1] %vm3163, %v3525
    %v3527 = vld [vmem:[#allocation4 + $0x8] sm:$0x1]
    %3529 = vrot.lane.b32.xlu0 %v3527, 32
    %v3530 = vpop.permute.xlu0 %3529
    %3532 = vst.msk [vmem:[#allocation5 + $0xb] sm:$0x1] %vm3142, %v3530
    %v3533 = vld [vmem:[#allocation4 + $0x9] sm:$0x1]
    %3535 = vrot.lane.b32.xlu0 %v3533, 64
    %v3536 = vpop.permute.xlu0 %3535
    %3538 = vst.msk [vmem:[#allocation5 + $0xb] sm:$0x1] %vm3149, %v3536
    %v3539 = vld [vmem:[#allocation4 + $0xa] sm:$0x1]
    %3541 = vrot.lane.b32.xlu0 %v3539, 96
    %v3542 = vpop.permute.xlu0 %3541
    %3544 = vst.msk [vmem:[#allocation5 + $0xb] sm:$0x1] %vm3156, %v3542
    %v3545 = vld [vmem:[#allocation4 + $0xb] sm:$0x1]
    %3546 = vst.msk [vmem:[#allocation5 + $0xb] sm:$0x1] %vm3163, %v3545
    %v3547 = vld [vmem:[#allocation4 + $0xc] sm:$0x1]
    %3549 = vrot.lane.b32.xlu0 %v3547, 32
    %v3550 = vpop.permute.xlu0 %3549
    %3552 = vst.msk [vmem:[#allocation5 + $0xf] sm:$0x1] %vm3142, %v3550
    %v3553 = vld [vmem:[#allocation4 + $0xd] sm:$0x1]
    %3555 = vrot.lane.b32.xlu0 %v3553, 64
    %v3556 = vpop.permute.xlu0 %3555
    %3558 = vst.msk [vmem:[#allocation5 + $0xf] sm:$0x1] %vm3149, %v3556
    %v3559 = vld [vmem:[#allocation4 + $0xe] sm:$0x1]
    %3561 = vrot.lane.b32.xlu0 %v3559, 96
    %v3562 = vpop.permute.xlu0 %3561
    %3564 = vst.msk [vmem:[#allocation5 + $0xf] sm:$0x1] %vm3156, %v3562
    %v3565 = vld [vmem:[#allocation4 + $0xf] sm:$0x1]
    %3566 = vst.msk [vmem:[#allocation5 + $0xf] sm:$0x1] %vm3163, %v3565
    %v3567 = vld [vmem:[#allocation4 + $0x10] sm:$0x1]
    %3569 = vrot.lane.b32.xlu0 %v3567, 32
    %v3570 = vpop.permute.xlu0 %3569
    %3572 = vst.msk [vmem:[#allocation5 + $0x13] sm:$0x1] %vm3142, %v3570
    %v3573 = vld [vmem:[#allocation4 + $0x11] sm:$0x1]
    %3575 = vrot.lane.b32.xlu0 %v3573, 64
    %v3576 = vpop.permute.xlu0 %3575
    %3578 = vst.msk [vmem:[#allocation5 + $0x13] sm:$0x1] %vm3149, %v3576
    %v3579 = vld [vmem:[#allocation4 + $0x12] sm:$0x1]
    %3581 = vrot.lane.b32.xlu0 %v3579, 96
    %v3582 = vpop.permute.xlu0 %3581
    %3584 = vst.msk [vmem:[#allocation5 + $0x13] sm:$0x1] %vm3156, %v3582
    %v3585 = vld [vmem:[#allocation4 + $0x13] sm:$0x1]
    %3586 = vst.msk [vmem:[#allocation5 + $0x13] sm:$0x1] %vm3163, %v3585
    %v3587 = vld [vmem:[#allocation4 + $0x14] sm:$0x1]
    %3589 = vrot.lane.b32.xlu0 %v3587, 32
    %v3590 = vpop.permute.xlu0 %3589
    %3592 = vst.msk [vmem:[#allocation5 + $0x17] sm:$0x1] %vm3142, %v3590
    %v3593 = vld [vmem:[#allocation4 + $0x15] sm:$0x1]
    %3595 = vrot.lane.b32.xlu0 %v3593, 64
    %v3596 = vpop.permute.xlu0 %3595
    %3598 = vst.msk [vmem:[#allocation5 + $0x17] sm:$0x1] %vm3149, %v3596
    %v3599 = vld [vmem:[#allocation4 + $0x16] sm:$0x1]
    %3601 = vrot.lane.b32.xlu0 %v3599, 96
    %v3602 = vpop.permute.xlu0 %3601
    %3604 = vst.msk [vmem:[#allocation5 + $0x17] sm:$0x1] %vm3156, %v3602
    %v3605 = vld [vmem:[#allocation5] sm:$0xff]
    %v3606 = vld [vmem:[#allocation5 + $0x8] sm:$0xff]
    %v3607 = vld [vmem:[#allocation5 + $0x10] sm:$0xff]
    %v3608 = vld [vmem:[#allocation21] sm:$0xff]
    %v3609 = vld [vmem:[#allocation21 + $0x8] sm:$0xff]
    %v3610 = vld [vmem:[#allocation21 + $0x10] sm:$0xff]
    %v3611 = vld [vmem:[#allocation21 + $0x18] sm:$0xff]
    %v3612 = vld [vmem:[#allocation21 + $0x20] sm:$0xff]
    %v3613 = vld [vmem:[#allocation21 + $0x28] sm:$0xff]
    %v3614 = vld [vmem:[#allocation21 + $0x30] sm:$0xff]
    %v3615 = vld [vmem:[#allocation21 + $0x38] sm:$0xff]
    %v3616 = vld [vmem:[#allocation21 + $0x40] sm:$0xff]
    %v3617 = vld [vmem:[#allocation21 + $0x48] sm:$0xff]
    %v3618 = vld [vmem:[#allocation21 + $0x50] sm:$0xff]
    %v3619 = vld [vmem:[#allocation21 + $0x58] sm:$0xff]
    %v3620 = vld [vmem:[#allocation21 + $0x60] sm:$0xff]
    %v3621 = vld [vmem:[#allocation21 + $0x68] sm:$0xff]
    %v3622 = vld [vmem:[#allocation21 + $0x70] sm:$0xff]
    %v3623 = vld [vmem:[#allocation21 + $0x78] sm:$0xff]
    %v3624 = vld [vmem:[#allocation21 + $0x80] sm:$0xff]
    %v3625 = vld [vmem:[#allocation21 + $0x88] sm:$0xff]
    %v3626 = vld [vmem:[#allocation21 + $0x90] sm:$0xff]
    %v3627 = vld [vmem:[#allocation21 + $0x98] sm:$0xff]
    %v3628 = vld [vmem:[#allocation21 + $0xa0] sm:$0xff]
    %v3629 = vld [vmem:[#allocation21 + $0xa8] sm:$0xff]
    %v3630 = vld [vmem:[#allocation21 + $0xb0] sm:$0xff]
    %v3631 = vld [vmem:[#allocation21 + $0xb8] sm:$0xff]
    %v3632 = vld [vmem:[#allocation21 + $0xc0] sm:$0xff]
    %v3633 = vld [vmem:[#allocation21 + $0xc8] sm:$0xff]
    %v3634 = vld [vmem:[#allocation21 + $0xd0] sm:$0xff]
    %v3635 = vld [vmem:[#allocation21 + $0xd8] sm:$0xff]
    %v3636 = vld [vmem:[#allocation21 + $0xe0] sm:$0xff]
    %v3637 = vld [vmem:[#allocation21 + $0xe8] sm:$0xff]
    %v3638 = vld [vmem:[#allocation21 + $0xf0] sm:$0xff]
    %v3639 = vld [vmem:[#allocation21 + $0xf8] sm:$0xff]
    %v3640 = vld [vmem:[#allocation21 + $0x100] sm:$0xff]
    %v3641 = vld [vmem:[#allocation21 + $0x108] sm:$0xff]
    %v3642 = vld [vmem:[#allocation21 + $0x110] sm:$0xff]
    %v3643 = vld [vmem:[#allocation21 + $0x118] sm:$0xff]
    %v3644 = vld [vmem:[#allocation21 + $0x120] sm:$0xff]
    %v3645 = vld [vmem:[#allocation21 + $0x128] sm:$0xff]
    %v3646 = vld [vmem:[#allocation21 + $0x130] sm:$0xff]
    %v3647 = vld [vmem:[#allocation21 + $0x138] sm:$0xff]
    %v3648 = vld [vmem:[#allocation21 + $0x140] sm:$0xff]
    %v3649 = vld [vmem:[#allocation21 + $0x148] sm:$0xff]
    %v3650 = vld [vmem:[#allocation21 + $0x150] sm:$0xff]
    %v3651 = vld [vmem:[#allocation21 + $0x158] sm:$0xff]
    %v3652 = vld [vmem:[#allocation21 + $0x160] sm:$0xff]
    %v3653 = vld [vmem:[#allocation21 + $0x168] sm:$0xff]
    %v3654 = vld [vmem:[#allocation21 + $0x170] sm:$0xff]
    %v3655 = vld [vmem:[#allocation21 + $0x178] sm:$0xff]
    %v3656 = vld [vmem:[#allocation21 + $0x180] sm:$0xff]
    %v3657 = vld [vmem:[#allocation21 + $0x188] sm:$0xff]
    %v3658 = vld [vmem:[#allocation21 + $0x190] sm:$0xff]
    %v3659 = vld [vmem:[#allocation21 + $0x198] sm:$0xff]
    %v3660 = vld [vmem:[#allocation21 + $0x1a0] sm:$0xff]
    %v3661 = vld [vmem:[#allocation21 + $0x1a8] sm:$0xff]
    %v3662 = vld [vmem:[#allocation21 + $0x1b0] sm:$0xff]
    %v3663 = vld [vmem:[#allocation21 + $0x1b8] sm:$0xff]
    %v3664 = vld [vmem:[#allocation21 + $0x1c0] sm:$0xff]
    %v3665 = vld [vmem:[#allocation21 + $0x1c8] sm:$0xff]
    %v3666 = vld [vmem:[#allocation21 + $0x1d0] sm:$0xff]
    %v3667 = vld [vmem:[#allocation21 + $0x1d8] sm:$0xff]
    %v3668 = vld [vmem:[#allocation21 + $0x1e0] sm:$0xff]
    %v3669 = vld [vmem:[#allocation21 + $0x1e8] sm:$0xff]
    %v3670 = vld [vmem:[#allocation21 + $0x1f0] sm:$0xff]
    %v3671 = vld [vmem:[#allocation21 + $0x1f8] sm:$0xff]
    %v3672 = vld [vmem:[#allocation21 + $0x200] sm:$0xff]
    %v3673 = vld [vmem:[#allocation21 + $0x208] sm:$0xff]
    %v3674 = vld [vmem:[#allocation21 + $0x210] sm:$0xff]
    %v3675 = vld [vmem:[#allocation21 + $0x218] sm:$0xff]
    %v3676 = vld [vmem:[#allocation21 + $0x220] sm:$0xff]
    %v3677 = vld [vmem:[#allocation21 + $0x228] sm:$0xff]
    %v3678 = vld [vmem:[#allocation21 + $0x230] sm:$0xff]
    %v3679 = vld [vmem:[#allocation21 + $0x238] sm:$0xff]
    %v3680 = vld [vmem:[#allocation21 + $0x240] sm:$0xff]
    %v3681 = vld [vmem:[#allocation21 + $0x248] sm:$0xff]
    %v3682 = vld [vmem:[#allocation21 + $0x250] sm:$0xff]
    %v3683 = vld [vmem:[#allocation21 + $0x258] sm:$0xff]
    %v3684 = vld [vmem:[#allocation21 + $0x260] sm:$0xff]
    %v3685 = vld [vmem:[#allocation21 + $0x268] sm:$0xff]
    %v3686 = vld [vmem:[#allocation21 + $0x270] sm:$0xff]
    %v3687 = vld [vmem:[#allocation21 + $0x278] sm:$0xff]
    %v3688 = vld [vmem:[#allocation21 + $0x280] sm:$0xff]
    %v3689 = vld [vmem:[#allocation21 + $0x288] sm:$0xff]
    %v3690 = vld [vmem:[#allocation21 + $0x290] sm:$0xff]
    %v3691 = vld [vmem:[#allocation21 + $0x298] sm:$0xff]
    %v3692 = vld [vmem:[#allocation21 + $0x2a0] sm:$0xff]
    %v3693 = vld [vmem:[#allocation21 + $0x2a8] sm:$0xff]
    %v3694 = vld [vmem:[#allocation21 + $0x2b0] sm:$0xff]
    %v3695 = vld [vmem:[#allocation21 + $0x2b8] sm:$0xff]
    %v3696 = vld [vmem:[#allocation21 + $0x2c0] sm:$0xff]
    %v3697 = vld [vmem:[#allocation21 + $0x2c8] sm:$0xff]
    %v3698 = vld [vmem:[#allocation21 + $0x2d0] sm:$0xff]
    %v3699 = vld [vmem:[#allocation21 + $0x2d8] sm:$0xff]
    %v3700 = vld [vmem:[#allocation21 + $0x2e0] sm:$0xff]
    %v3701 = vld [vmem:[#allocation21 + $0x2e8] sm:$0xff]
    %v3702 = vld [vmem:[#allocation21 + $0x2f0] sm:$0xff]
    %v3703 = vld [vmem:[#allocation21 + $0x2f8] sm:$0xff]
    %v3704 = vld [vmem:[#allocation21 + $0x300] sm:$0xff]
    %v3705 = vld [vmem:[#allocation21 + $0x308] sm:$0xff]
    %v3706 = vld [vmem:[#allocation21 + $0x310] sm:$0xff]
    %v3707 = vld [vmem:[#allocation21 + $0x318] sm:$0xff]
    %v3708 = vld [vmem:[#allocation21 + $0x320] sm:$0xff]
    %v3709 = vld [vmem:[#allocation21 + $0x328] sm:$0xff]
    %v3710 = vld [vmem:[#allocation21 + $0x330] sm:$0xff]
    %v3711 = vld [vmem:[#allocation21 + $0x338] sm:$0xff]
    %v3712 = vld [vmem:[#allocation21 + $0x340] sm:$0xff]
    %v3713 = vld [vmem:[#allocation21 + $0x348] sm:$0xff]
    %v3714 = vld [vmem:[#allocation21 + $0x350] sm:$0xff]
    %v3715 = vld [vmem:[#allocation21 + $0x358] sm:$0xff]
    %v3716 = vld [vmem:[#allocation21 + $0x360] sm:$0xff]
    %v3717 = vld [vmem:[#allocation21 + $0x368] sm:$0xff]
    %v3718 = vld [vmem:[#allocation21 + $0x370] sm:$0xff]
    %v3719 = vld [vmem:[#allocation21 + $0x378] sm:$0xff]
    %v3720 = vld [vmem:[#allocation21 + $0x380] sm:$0xff]
    %v3721 = vld [vmem:[#allocation21 + $0x388] sm:$0xff]
    %v3722 = vld [vmem:[#allocation21 + $0x390] sm:$0xff]
    %v3723 = vld [vmem:[#allocation21 + $0x398] sm:$0xff]
    %v3724 = vld [vmem:[#allocation21 + $0x3a0] sm:$0xff]
    %v3725 = vld [vmem:[#allocation21 + $0x3a8] sm:$0xff]
    %v3726 = vld [vmem:[#allocation21 + $0x3b0] sm:$0xff]
    %v3727 = vld [vmem:[#allocation21 + $0x3b8] sm:$0xff]
    %v3728 = vld [vmem:[#allocation21 + $0x3c0] sm:$0xff]
    %v3729 = vld [vmem:[#allocation21 + $0x3c8] sm:$0xff]
    %v3730 = vld [vmem:[#allocation21 + $0x3d0] sm:$0xff]
    %v3731 = vld [vmem:[#allocation21 + $0x3d8] sm:$0xff]
    %v3732 = vld [vmem:[#allocation21 + $0x3e0] sm:$0xff]
    %v3733 = vld [vmem:[#allocation21 + $0x3e8] sm:$0xff]
    %v3734 = vld [vmem:[#allocation21 + $0x3f0] sm:$0xff]
    %v3735 = vld [vmem:[#allocation21 + $0x3f8] sm:$0xff]
    %v3736 = vld [vmem:[#allocation21 + $0x400] sm:$0xff]
    %v3737 = vld [vmem:[#allocation21 + $0x408] sm:$0xff]
    %v3738 = vld [vmem:[#allocation21 + $0x410] sm:$0xff]
    %v3739 = vld [vmem:[#allocation21 + $0x418] sm:$0xff]
    %v3740 = vld [vmem:[#allocation21 + $0x420] sm:$0xff]
    %v3741 = vld [vmem:[#allocation21 + $0x428] sm:$0xff]
    %v3742 = vld [vmem:[#allocation21 + $0x430] sm:$0xff]
    %v3743 = vld [vmem:[#allocation21 + $0x438] sm:$0xff]
    %v3744 = vld [vmem:[#allocation21 + $0x440] sm:$0xff]
    %v3745 = vld [vmem:[#allocation21 + $0x448] sm:$0xff]
    %v3746 = vld [vmem:[#allocation21 + $0x450] sm:$0xff]
    %v3747 = vld [vmem:[#allocation21 + $0x458] sm:$0xff]
    %v3748 = vld [vmem:[#allocation21 + $0x460] sm:$0xff]
    %v3749 = vld [vmem:[#allocation21 + $0x468] sm:$0xff]
    %v3750 = vld [vmem:[#allocation21 + $0x470] sm:$0xff]
    %v3751 = vld [vmem:[#allocation21 + $0x478] sm:$0xff]
    %v3752 = vld [vmem:[#allocation21 + $0x480] sm:$0xff]
    %v3753 = vld [vmem:[#allocation21 + $0x488] sm:$0xff]
    %v3754 = vld [vmem:[#allocation21 + $0x490] sm:$0xff]
    %v3755 = vld [vmem:[#allocation21 + $0x498] sm:$0xff]
    %v3756 = vld [vmem:[#allocation21 + $0x4a0] sm:$0xff]
    %v3757 = vld [vmem:[#allocation21 + $0x4a8] sm:$0xff]
    %v3758 = vld [vmem:[#allocation21 + $0x4b0] sm:$0xff]
    %v3759 = vld [vmem:[#allocation21 + $0x4b8] sm:$0xff]
    %v3760 = vld [vmem:[#allocation21 + $0x4c0] sm:$0xff]
    %v3761 = vld [vmem:[#allocation21 + $0x4c8] sm:$0xff]
    %v3762 = vld [vmem:[#allocation21 + $0x4d0] sm:$0xff]
    %v3763 = vld [vmem:[#allocation21 + $0x4d8] sm:$0xff]
    %v3764 = vld [vmem:[#allocation21 + $0x4e0] sm:$0xff]
    %v3765 = vld [vmem:[#allocation21 + $0x4e8] sm:$0xff]
    %v3766 = vld [vmem:[#allocation21 + $0x4f0] sm:$0xff]
    %v3767 = vld [vmem:[#allocation21 + $0x4f8] sm:$0xff]
    %v3768 = vld [vmem:[#allocation21 + $0x500] sm:$0xff]
    %v3769 = vld [vmem:[#allocation21 + $0x508] sm:$0xff]
    %v3770 = vld [vmem:[#allocation21 + $0x510] sm:$0xff]
    %v3771 = vld [vmem:[#allocation21 + $0x518] sm:$0xff]
    %v3772 = vld [vmem:[#allocation21 + $0x520] sm:$0xff]
    %v3773 = vld [vmem:[#allocation21 + $0x528] sm:$0xff]
    %v3774 = vld [vmem:[#allocation21 + $0x530] sm:$0xff]
    %v3775 = vld [vmem:[#allocation21 + $0x538] sm:$0xff]
    %v3776 = vld [vmem:[#allocation21 + $0x540] sm:$0xff]
    %v3777 = vld [vmem:[#allocation21 + $0x548] sm:$0xff]
    %v3778 = vld [vmem:[#allocation21 + $0x550] sm:$0xff]
    %v3779 = vld [vmem:[#allocation21 + $0x558] sm:$0xff]
    %v3780 = vld [vmem:[#allocation21 + $0x560] sm:$0xff]
    %v3781 = vld [vmem:[#allocation21 + $0x568] sm:$0xff]
    %v3782 = vld [vmem:[#allocation21 + $0x570] sm:$0xff]
    %v3783 = vld [vmem:[#allocation21 + $0x578] sm:$0xff]
    %v3784 = vld [vmem:[#allocation21 + $0x580] sm:$0xff]
    %v3785 = vld [vmem:[#allocation21 + $0x588] sm:$0xff]
    %v3786 = vld [vmem:[#allocation21 + $0x590] sm:$0xff]
    %v3787 = vld [vmem:[#allocation21 + $0x598] sm:$0xff]
    %v3788 = vld [vmem:[#allocation21 + $0x5a0] sm:$0xff]
    %v3789 = vld [vmem:[#allocation21 + $0x5a8] sm:$0xff]
    %v3790 = vld [vmem:[#allocation21 + $0x5b0] sm:$0xff]
    %v3791 = vld [vmem:[#allocation21 + $0x5b8] sm:$0xff]
    %v3792 = vld [vmem:[#allocation21 + $0x5c0] sm:$0xff]
    %v3793 = vld [vmem:[#allocation21 + $0x5c8] sm:$0xff]
    %v3794 = vld [vmem:[#allocation21 + $0x5d0] sm:$0xff]
    %v3795 = vld [vmem:[#allocation21 + $0x5d8] sm:$0xff]
    %v3796 = vld [vmem:[#allocation21 + $0x5e0] sm:$0xff]
    %v3797 = vld [vmem:[#allocation21 + $0x5e8] sm:$0xff]
    %v3798 = vld [vmem:[#allocation21 + $0x5f0] sm:$0xff]
    %v3799 = vld [vmem:[#allocation21 + $0x5f8] sm:$0xff]
    %v3800 = vld [vmem:[#allocation21 + $0x600] sm:$0xff]
    %v3801 = vld [vmem:[#allocation21 + $0x608] sm:$0xff]
    %v3802 = vld [vmem:[#allocation21 + $0x610] sm:$0xff]
    %v3803 = vld [vmem:[#allocation21 + $0x618] sm:$0xff]
    %v3804 = vld [vmem:[#allocation21 + $0x620] sm:$0xff]
    %v3805 = vld [vmem:[#allocation21 + $0x628] sm:$0xff]
    %v3806 = vld [vmem:[#allocation21 + $0x630] sm:$0xff]
    %v3807 = vld [vmem:[#allocation21 + $0x638] sm:$0xff]
    %v3808 = vld [vmem:[#allocation21 + $0x640] sm:$0xff]
    %v3809 = vld [vmem:[#allocation21 + $0x648] sm:$0xff]
    %v3810 = vld [vmem:[#allocation21 + $0x650] sm:$0xff]
    %v3811 = vld [vmem:[#allocation21 + $0x658] sm:$0xff]
    %v3812 = vld [vmem:[#allocation21 + $0x660] sm:$0xff]
    %v3813 = vld [vmem:[#allocation21 + $0x668] sm:$0xff]
    %v3814 = vld [vmem:[#allocation21 + $0x670] sm:$0xff]
    %v3815 = vld [vmem:[#allocation21 + $0x678] sm:$0xff]
    %v3816 = vld [vmem:[#allocation21 + $0x680] sm:$0xff]
    %v3817 = vld [vmem:[#allocation21 + $0x688] sm:$0xff]
    %v3818 = vld [vmem:[#allocation21 + $0x690] sm:$0xff]
    %v3819 = vld [vmem:[#allocation21 + $0x698] sm:$0xff]
    %v3820 = vld [vmem:[#allocation21 + $0x6a0] sm:$0xff]
    %v3821 = vld [vmem:[#allocation21 + $0x6a8] sm:$0xff]
    %v3822 = vld [vmem:[#allocation21 + $0x6b0] sm:$0xff]
    %v3823 = vld [vmem:[#allocation21 + $0x6b8] sm:$0xff]
    %v3824 = vld [vmem:[#allocation21 + $0x6c0] sm:$0xff]
    %v3825 = vld [vmem:[#allocation21 + $0x6c8] sm:$0xff]
    %v3826 = vld [vmem:[#allocation21 + $0x6d0] sm:$0xff]
    %v3827 = vld [vmem:[#allocation21 + $0x6d8] sm:$0xff]
    %v3828 = vld [vmem:[#allocation21 + $0x6e0] sm:$0xff]
    %v3829 = vld [vmem:[#allocation21 + $0x6e8] sm:$0xff]
    %v3830 = vld [vmem:[#allocation21 + $0x6f0] sm:$0xff]
    %v3831 = vld [vmem:[#allocation21 + $0x6f8] sm:$0xff]
    %v3832 = vld [vmem:[#allocation21 + $0x700] sm:$0xff]
    %v3833 = vld [vmem:[#allocation21 + $0x708] sm:$0xff]
    %v3834 = vld [vmem:[#allocation21 + $0x710] sm:$0xff]
    %v3835 = vld [vmem:[#allocation21 + $0x718] sm:$0xff]
    %v3836 = vld [vmem:[#allocation21 + $0x720] sm:$0xff]
    %v3837 = vld [vmem:[#allocation21 + $0x728] sm:$0xff]
    %v3838 = vld [vmem:[#allocation21 + $0x730] sm:$0xff]
    %v3839 = vld [vmem:[#allocation21 + $0x738] sm:$0xff]
    %v3840 = vld [vmem:[#allocation21 + $0x740] sm:$0xff]
    %v3841 = vld [vmem:[#allocation21 + $0x748] sm:$0xff]
    %v3842 = vld [vmem:[#allocation21 + $0x750] sm:$0xff]
    %v3843 = vld [vmem:[#allocation21 + $0x758] sm:$0xff]
    %v3844 = vld [vmem:[#allocation21 + $0x760] sm:$0xff]
    %v3845 = vld [vmem:[#allocation21 + $0x768] sm:$0xff]
    %v3846 = vld [vmem:[#allocation21 + $0x770] sm:$0xff]
    %v3847 = vld [vmem:[#allocation21 + $0x778] sm:$0xff]
    %v3848 = vld [vmem:[#allocation21 + $0x780] sm:$0xff]
    %v3849 = vld [vmem:[#allocation21 + $0x788] sm:$0xff]
    %v3850 = vld [vmem:[#allocation21 + $0x790] sm:$0xff]
    %v3851 = vld [vmem:[#allocation21 + $0x798] sm:$0xff]
    %v3852 = vld [vmem:[#allocation21 + $0x7a0] sm:$0xff]
    %v3853 = vld [vmem:[#allocation21 + $0x7a8] sm:$0xff]
    %v3854 = vld [vmem:[#allocation21 + $0x7b0] sm:$0xff]
    %v3855 = vld [vmem:[#allocation21 + $0x7b8] sm:$0xff]
    %v3856 = vld [vmem:[#allocation21 + $0x7c0] sm:$0xff]
    %v3857 = vld [vmem:[#allocation21 + $0x7c8] sm:$0xff]
    %v3858 = vld [vmem:[#allocation21 + $0x7d0] sm:$0xff]
    %v3859 = vld [vmem:[#allocation21 + $0x7d8] sm:$0xff]
    %v3860 = vld [vmem:[#allocation21 + $0x7e0] sm:$0xff]
    %v3861 = vld [vmem:[#allocation21 + $0x7e8] sm:$0xff]
    %v3862 = vld [vmem:[#allocation21 + $0x7f0] sm:$0xff]
    %v3863 = vld [vmem:[#allocation21 + $0x7f8] sm:$0xff]
    %v3864 = vld [vmem:[#allocation21 + $0x800] sm:$0xff]
    %v3865 = vld [vmem:[#allocation21 + $0x808] sm:$0xff]
    %v3866 = vld [vmem:[#allocation21 + $0x810] sm:$0xff]
    %v3867 = vld [vmem:[#allocation21 + $0x818] sm:$0xff]
    %v3868 = vld [vmem:[#allocation21 + $0x820] sm:$0xff]
    %v3869 = vld [vmem:[#allocation21 + $0x828] sm:$0xff]
    %v3870 = vld [vmem:[#allocation21 + $0x830] sm:$0xff]
    %v3871 = vld [vmem:[#allocation21 + $0x838] sm:$0xff]
    %v3872 = vld [vmem:[#allocation21 + $0x840] sm:$0xff]
    %v3873 = vld [vmem:[#allocation21 + $0x848] sm:$0xff]
    %v3874 = vld [vmem:[#allocation21 + $0x850] sm:$0xff]
    %v3875 = vld [vmem:[#allocation21 + $0x858] sm:$0xff]
    %v3876 = vld [vmem:[#allocation21 + $0x860] sm:$0xff]
    %v3877 = vld [vmem:[#allocation21 + $0x868] sm:$0xff]
    %v3878 = vld [vmem:[#allocation21 + $0x870] sm:$0xff]
    %v3879 = vld [vmem:[#allocation21 + $0x878] sm:$0xff]
    %v3880 = vld [vmem:[#allocation21 + $0x880] sm:$0xff]
    %v3881 = vld [vmem:[#allocation21 + $0x888] sm:$0xff]
    %v3882 = vld [vmem:[#allocation21 + $0x890] sm:$0xff]
    %v3883 = vld [vmem:[#allocation21 + $0x898] sm:$0xff]
    %v3884 = vld [vmem:[#allocation21 + $0x8a0] sm:$0xff]
    %v3885 = vld [vmem:[#allocation21 + $0x8a8] sm:$0xff]
    %v3886 = vld [vmem:[#allocation21 + $0x8b0] sm:$0xff]
    %v3887 = vld [vmem:[#allocation21 + $0x8b8] sm:$0xff]
    %v3888 = vld [vmem:[#allocation21 + $0x8c0] sm:$0xff]
    %v3889 = vld [vmem:[#allocation21 + $0x8c8] sm:$0xff]
    %v3890 = vld [vmem:[#allocation21 + $0x8d0] sm:$0xff]
    %v3891 = vld [vmem:[#allocation21 + $0x8d8] sm:$0xff]
    %v3892 = vld [vmem:[#allocation21 + $0x8e0] sm:$0xff]
    %v3893 = vld [vmem:[#allocation21 + $0x8e8] sm:$0xff]
    %v3894 = vld [vmem:[#allocation21 + $0x8f0] sm:$0xff]
    %v3895 = vld [vmem:[#allocation21 + $0x8f8] sm:$0xff]
    %v3896 = vld [vmem:[#allocation21 + $0x900] sm:$0xff]
    %v3897 = vld [vmem:[#allocation21 + $0x908] sm:$0xff]
    %v3898 = vld [vmem:[#allocation21 + $0x910] sm:$0xff]
    %v3899 = vld [vmem:[#allocation21 + $0x918] sm:$0xff]
    %v3900 = vld [vmem:[#allocation21 + $0x920] sm:$0xff]
    %v3901 = vld [vmem:[#allocation21 + $0x928] sm:$0xff]
    %v3902 = vld [vmem:[#allocation21 + $0x930] sm:$0xff]
    %v3903 = vld [vmem:[#allocation21 + $0x938] sm:$0xff]
    %v3904 = vld [vmem:[#allocation21 + $0x940] sm:$0xff]
    %v3905 = vld [vmem:[#allocation21 + $0x948] sm:$0xff]
    %v3906 = vld [vmem:[#allocation21 + $0x950] sm:$0xff]
    %v3907 = vld [vmem:[#allocation21 + $0x958] sm:$0xff]
    %v3908 = vld [vmem:[#allocation21 + $0x960] sm:$0xff]
    %v3909 = vld [vmem:[#allocation21 + $0x968] sm:$0xff]
    %v3910 = vld [vmem:[#allocation21 + $0x970] sm:$0xff]
    %v3911 = vld [vmem:[#allocation21 + $0x978] sm:$0xff]
    %v3912 = vld [vmem:[#allocation21 + $0x980] sm:$0xff]
    %v3913 = vld [vmem:[#allocation21 + $0x988] sm:$0xff]
    %v3914 = vld [vmem:[#allocation21 + $0x990] sm:$0xff]
    %v3915 = vld [vmem:[#allocation21 + $0x998] sm:$0xff]
    %v3916 = vld [vmem:[#allocation21 + $0x9a0] sm:$0xff]
    %v3917 = vld [vmem:[#allocation21 + $0x9a8] sm:$0xff]
    %v3918 = vld [vmem:[#allocation21 + $0x9b0] sm:$0xff]
    %v3919 = vld [vmem:[#allocation21 + $0x9b8] sm:$0xff]
    %v3920 = vld [vmem:[#allocation21 + $0x9c0] sm:$0xff]
    %v3921 = vld [vmem:[#allocation21 + $0x9c8] sm:$0xff]
    %v3922 = vld [vmem:[#allocation21 + $0x9d0] sm:$0xff]
    %v3923 = vld [vmem:[#allocation21 + $0x9d8] sm:$0xff]
    %v3924 = vld [vmem:[#allocation21 + $0x9e0] sm:$0xff]
    %v3925 = vld [vmem:[#allocation21 + $0x9e8] sm:$0xff]
    %v3926 = vld [vmem:[#allocation21 + $0x9f0] sm:$0xff]
    %v3927 = vld [vmem:[#allocation21 + $0x9f8] sm:$0xff]
    %v3928 = vld [vmem:[#allocation21 + $0xa00] sm:$0xff]
    %v3929 = vld [vmem:[#allocation21 + $0xa08] sm:$0xff]
    %v3930 = vld [vmem:[#allocation21 + $0xa10] sm:$0xff]
    %v3931 = vld [vmem:[#allocation21 + $0xa18] sm:$0xff]
    %v3932 = vld [vmem:[#allocation21 + $0xa20] sm:$0xff]
    %v3933 = vld [vmem:[#allocation21 + $0xa28] sm:$0xff]
    %v3934 = vld [vmem:[#allocation21 + $0xa30] sm:$0xff]
    %v3935 = vld [vmem:[#allocation21 + $0xa38] sm:$0xff]
    %v3936 = vld [vmem:[#allocation21 + $0xa40] sm:$0xff]
    %v3937 = vld [vmem:[#allocation21 + $0xa48] sm:$0xff]
    %v3938 = vld [vmem:[#allocation21 + $0xa50] sm:$0xff]
    %v3939 = vld [vmem:[#allocation21 + $0xa58] sm:$0xff]
    %v3940 = vld [vmem:[#allocation21 + $0xa60] sm:$0xff]
    %v3941 = vld [vmem:[#allocation21 + $0xa68] sm:$0xff]
    %v3942 = vld [vmem:[#allocation21 + $0xa70] sm:$0xff]
    %v3943 = vld [vmem:[#allocation21 + $0xa78] sm:$0xff]
    %v3944 = vld [vmem:[#allocation21 + $0xa80] sm:$0xff]
    %v3945 = vld [vmem:[#allocation21 + $0xa88] sm:$0xff]
    %v3946 = vld [vmem:[#allocation21 + $0xa90] sm:$0xff]
    %v3947 = vld [vmem:[#allocation21 + $0xa98] sm:$0xff]
    %v3948 = vld [vmem:[#allocation21 + $0xaa0] sm:$0xff]
    %v3949 = vld [vmem:[#allocation21 + $0xaa8] sm:$0xff]
    %v3950 = vld [vmem:[#allocation21 + $0xab0] sm:$0xff]
    %v3951 = vld [vmem:[#allocation21 + $0xab8] sm:$0xff]
    %v3952 = vld [vmem:[#allocation21 + $0xac0] sm:$0xff]
    %v3953 = vld [vmem:[#allocation21 + $0xac8] sm:$0xff]
    %v3954 = vld [vmem:[#allocation21 + $0xad0] sm:$0xff]
    %v3955 = vld [vmem:[#allocation21 + $0xad8] sm:$0xff]
    %v3956 = vld [vmem:[#allocation21 + $0xae0] sm:$0xff]
    %v3957 = vld [vmem:[#allocation21 + $0xae8] sm:$0xff]
    %v3958 = vld [vmem:[#allocation21 + $0xaf0] sm:$0xff]
    %v3959 = vld [vmem:[#allocation21 + $0xaf8] sm:$0xff]
    %v3960 = vld [vmem:[#allocation21 + $0xb00] sm:$0xff]
    %v3961 = vld [vmem:[#allocation21 + $0xb08] sm:$0xff]
    %v3962 = vld [vmem:[#allocation21 + $0xb10] sm:$0xff]
    %v3963 = vld [vmem:[#allocation21 + $0xb18] sm:$0xff]
    %v3964 = vld [vmem:[#allocation21 + $0xb20] sm:$0xff]
    %v3965 = vld [vmem:[#allocation21 + $0xb28] sm:$0xff]
    %v3966 = vld [vmem:[#allocation21 + $0xb30] sm:$0xff]
    %v3967 = vld [vmem:[#allocation21 + $0xb38] sm:$0xff]
    %v3968 = vld [vmem:[#allocation21 + $0xb40] sm:$0xff]
    %v3969 = vld [vmem:[#allocation21 + $0xb48] sm:$0xff]
    %v3970 = vld [vmem:[#allocation21 + $0xb50] sm:$0xff]
    %v3971 = vld [vmem:[#allocation21 + $0xb58] sm:$0xff]
    %v3972 = vld [vmem:[#allocation21 + $0xb60] sm:$0xff]
    %v3973 = vld [vmem:[#allocation21 + $0xb68] sm:$0xff]
    %v3974 = vld [vmem:[#allocation21 + $0xb70] sm:$0xff]
    %v3975 = vld [vmem:[#allocation21 + $0xb78] sm:$0xff]
    %v3976 = vld [vmem:[#allocation23] sm:$0xf]
    %v3978 = vperm.slane %v3976, 0
    %v3979 = vperm.slane %v3976, 1
    %v3980 = vperm.slane %v3976, 2
    %v3981 = vperm.slane %v3976, 3
    %3989 = vst [vmem:[#allocation1] ss:$2 sm:$0xff] %v3605
    %s3990 = scalar_lea.vmem [#allocation1], 16
    %3991 = vst [vmem:[%s3990] ss:$2 sm:$0xff] %v3606
    %s3992 = scalar_lea.vmem [#allocation1], 32
    %3993 = vst [vmem:[%s3992] ss:$2 sm:$0xff] %v3607
    %v3994 = vld.sshfl [vmem:[#allocation1] sm:$0xff pattern:$0x75316420]
    %v3995 = vld.sshfl [vmem:[#allocation1 + $0x8] sm:$0xff pattern:$0x75316420]
    %v3996 = vld.sshfl [vmem:[#allocation1 + $0x10] sm:$0xff pattern:$0x75316420]
    %v3997 = vld.sshfl [vmem:[#allocation1 + $0x18] sm:$0xff pattern:$0x75316420]
    %v3998 = vld.sshfl [vmem:[#allocation1 + $0x20] sm:$0xff pattern:$0x75316420]
    %v3999 = vld.sshfl [vmem:[#allocation1 + $0x28] sm:$0xff pattern:$0x75316420]
    %v4005 = vsel %vm1471, %v3999, 0
    %4007 = vmatpush.msra.mxu0 %v3668
    %4008 = vmatpush.msra.mxu0 %v3664
    %4009 = vmatpush.msra.mxu0 %v3660
    %4010 = vmatpush.msra.mxu0 %v3656
    %4011 = vmatpush.msra.mxu0 %v3652
    %4012 = vmatpush.msra.mxu0 %v3648
    %4013 = vmatpush.msra.mxu0 %v3644
    %4014 = vmatpush.msra.mxu0 %v3640
    %4015 = vmatpush.msra.mxu0 %v3636
    %4016 = vmatpush.msra.mxu0 %v3632
    %4017 = vmatpush.msra.mxu0 %v3628
    %4018 = vmatpush.msra.mxu0 %v3624
    %4019 = vmatpush.msra.mxu0 %v3620
    %4020 = vmatpush.msra.mxu0 %v3616
    %4021 = vmatpush.msra.mxu0 %v3612
    %4022 = vmatpush.msra.mxu0 %v3608
    %4023 = vmatmul.f32.gmra.mxu0 %v3994
    %v4024 = vpop.f32.mrf.mxu0
    %v4025 = vadd.f32 %v3978, %v4024
    %4026 = vdwg.mxu0
    %4027 = vmatpush.msra.mxu0 %v3732
    %4028 = vmatpush.msra.mxu0 %v3728
    %4029 = vmatpush.msra.mxu0 %v3724
    %4030 = vmatpush.msra.mxu0 %v3720
    %4031 = vmatpush.msra.mxu0 %v3716
    %4032 = vmatpush.msra.mxu0 %v3712
    %4033 = vmatpush.msra.mxu0 %v3708
    %4034 = vmatpush.msra.mxu0 %v3704
    %4035 = vmatpush.msra.mxu0 %v3700
    %4036 = vmatpush.msra.mxu0 %v3696
    %4037 = vmatpush.msra.mxu0 %v3692
    %4038 = vmatpush.msra.mxu0 %v3688
    %4039 = vmatpush.msra.mxu0 %v3684
    %4040 = vmatpush.msra.mxu0 %v3680
    %4041 = vmatpush.msra.mxu0 %v3676
    %4042 = vmatpush.msra.mxu0 %v3672
    %4043 = vmatmul.f32.gmra.mxu0 %v3995
    %v4044 = vpop.f32.mrf.mxu0
    %v4045 = vadd.f32 %v4025, %v4044
    %4046 = vdwg.mxu0
    %4047 = vmatpush.msra.mxu0 %v3796
    %4048 = vmatpush.msra.mxu0 %v3792
    %4049 = vmatpush.msra.mxu0 %v3788
    %4050 = vmatpush.msra.mxu0 %v3784
    %4051 = vmatpush.msra.mxu0 %v3780
    %4052 = vmatpush.msra.mxu0 %v3776
    %4053 = vmatpush.msra.mxu0 %v3772
    %4054 = vmatpush.msra.mxu0 %v3768
    %4055 = vmatpush.msra.mxu0 %v3764
    %4056 = vmatpush.msra.mxu0 %v3760
    %4057 = vmatpush.msra.mxu0 %v3756
    %4058 = vmatpush.msra.mxu0 %v3752
    %4059 = vmatpush.msra.mxu0 %v3748
    %4060 = vmatpush.msra.mxu0 %v3744
    %4061 = vmatpush.msra.mxu0 %v3740
    %4062 = vmatpush.msra.mxu0 %v3736
    %4063 = vmatmul.f32.gmra.mxu0 %v3996
    %v4064 = vpop.f32.mrf.mxu0
    %v4065 = vadd.f32 %v4045, %v4064
    %4066 = vdwg.mxu0
    %4067 = vmatpush.msra.mxu0 %v3860
    %4068 = vmatpush.msra.mxu0 %v3856
    %4069 = vmatpush.msra.mxu0 %v3852
    %4070 = vmatpush.msra.mxu0 %v3848
    %4071 = vmatpush.msra.mxu0 %v3844
    %4072 = vmatpush.msra.mxu0 %v3840
    %4073 = vmatpush.msra.mxu0 %v3836
    %4074 = vmatpush.msra.mxu0 %v3832
    %4075 = vmatpush.msra.mxu0 %v3828
    %4076 = vmatpush.msra.mxu0 %v3824
    %4077 = vmatpush.msra.mxu0 %v3820
    %4078 = vmatpush.msra.mxu0 %v3816
    %4079 = vmatpush.msra.mxu0 %v3812
    %4080 = vmatpush.msra.mxu0 %v3808
    %4081 = vmatpush.msra.mxu0 %v3804
    %4082 = vmatpush.msra.mxu0 %v3800
    %4083 = vmatmul.f32.gmra.mxu0 %v3997
    %v4084 = vpop.f32.mrf.mxu0
    %v4085 = vadd.f32 %v4065, %v4084
    %4086 = vdwg.mxu0
    %4087 = vmatpush.msra.mxu0 %v3924
    %4088 = vmatpush.msra.mxu0 %v3920
    %4089 = vmatpush.msra.mxu0 %v3916
    %4090 = vmatpush.msra.mxu0 %v3912
    %4091 = vmatpush.msra.mxu0 %v3908
    %4092 = vmatpush.msra.mxu0 %v3904
    %4093 = vmatpush.msra.mxu0 %v3900
    %4094 = vmatpush.msra.mxu0 %v3896
    %4095 = vmatpush.msra.mxu0 %v3892
    %4096 = vmatpush.msra.mxu0 %v3888
    %4097 = vmatpush.msra.mxu0 %v3884
    %4098 = vmatpush.msra.mxu0 %v3880
    %4099 = vmatpush.msra.mxu0 %v3876
    %4100 = vmatpush.msra.mxu0 %v3872
    %4101 = vmatpush.msra.mxu0 %v3868
    %4102 = vmatpush.msra.mxu0 %v3864
    %4103 = vmatmul.f32.gmra.mxu0 %v3998
    %v4104 = vpop.f32.mrf.mxu0
    %v4105 = vadd.f32 %v4085, %v4104
    %4106 = vdwg.mxu0
    %4107 = vmatpush.msra.mxu0 0.0
    %4108 = vmatpush.msra.mxu0 0.0
    %4109 = vmatpush.msra.mxu0 0.0
    %4110 = vmatpush.msra.mxu0 0.0
    %4111 = vmatpush.msra.mxu0 %v3972
    %4112 = vmatpush.msra.mxu0 %v3968
    %4113 = vmatpush.msra.mxu0 %v3964
    %4114 = vmatpush.msra.mxu0 %v3960
    %4115 = vmatpush.msra.mxu0 %v3956
    %4116 = vmatpush.msra.mxu0 %v3952
    %4117 = vmatpush.msra.mxu0 %v3948
    %4118 = vmatpush.msra.mxu0 %v3944
    %4119 = vmatpush.msra.mxu0 %v3940
    %4120 = vmatpush.msra.mxu0 %v3936
    %4121 = vmatpush.msra.mxu0 %v3932
    %4122 = vmatpush.msra.mxu0 %v3928
    %4123 = vmatmul.f32.gmra.mxu0 %v4005
    %v4124 = vpop.f32.mrf.mxu0
    %v4125 = vadd.f32 %v4105, %v4124
    %4126 = vdwg.mxu0
    %4127 = vmatpush.msra.mxu0 %v3669
    %4128 = vmatpush.msra.mxu0 %v3665
    %4129 = vmatpush.msra.mxu0 %v3661
    %4130 = vmatpush.msra.mxu0 %v3657
    %4131 = vmatpush.msra.mxu0 %v3653
    %4132 = vmatpush.msra.mxu0 %v3649
    %4133 = vmatpush.msra.mxu0 %v3645
    %4134 = vmatpush.msra.mxu0 %v3641
    %4135 = vmatpush.msra.mxu0 %v3637
    %4136 = vmatpush.msra.mxu0 %v3633
    %4137 = vmatpush.msra.mxu0 %v3629
    %4138 = vmatpush.msra.mxu0 %v3625
    %4139 = vmatpush.msra.mxu0 %v3621
    %4140 = vmatpush.msra.mxu0 %v3617
    %4141 = vmatpush.msra.mxu0 %v3613
    %4142 = vmatpush.msra.mxu0 %v3609
    %4143 = vmatmul.f32.gmra.mxu0 %v3994
    %v4144 = vpop.f32.mrf.mxu0
    %v4145 = vadd.f32 %v3979, %v4144
    %4146 = vdwg.mxu0
    %4147 = vmatpush.msra.mxu0 %v3733
    %4148 = vmatpush.msra.mxu0 %v3729
    %4149 = vmatpush.msra.mxu0 %v3725
    %4150 = vmatpush.msra.mxu0 %v3721
    %4151 = vmatpush.msra.mxu0 %v3717
    %4152 = vmatpush.msra.mxu0 %v3713
    %4153 = vmatpush.msra.mxu0 %v3709
    %4154 = vmatpush.msra.mxu0 %v3705
    %4155 = vmatpush.msra.mxu0 %v3701
    %4156 = vmatpush.msra.mxu0 %v3697
    %4157 = vmatpush.msra.mxu0 %v3693
    %4158 = vmatpush.msra.mxu0 %v3689
    %4159 = vmatpush.msra.mxu0 %v3685
    %4160 = vmatpush.msra.mxu0 %v3681
    %4161 = vmatpush.msra.mxu0 %v3677
    %4162 = vmatpush.msra.mxu0 %v3673
    %4163 = vmatmul.f32.gmra.mxu0 %v3995
    %v4164 = vpop.f32.mrf.mxu0
    %v4165 = vadd.f32 %v4145, %v4164
    %4166 = vdwg.mxu0
    %4167 = vmatpush.msra.mxu0 %v3797
    %4168 = vmatpush.msra.mxu0 %v3793
    %4169 = vmatpush.msra.mxu0 %v3789
    %4170 = vmatpush.msra.mxu0 %v3785
    %4171 = vmatpush.msra.mxu0 %v3781
    %4172 = vmatpush.msra.mxu0 %v3777
    %4173 = vmatpush.msra.mxu0 %v3773
    %4174 = vmatpush.msra.mxu0 %v3769
    %4175 = vmatpush.msra.mxu0 %v3765
    %4176 = vmatpush.msra.mxu0 %v3761
    %4177 = vmatpush.msra.mxu0 %v3757
    %4178 = vmatpush.msra.mxu0 %v3753
    %4179 = vmatpush.msra.mxu0 %v3749
    %4180 = vmatpush.msra.mxu0 %v3745
    %4181 = vmatpush.msra.mxu0 %v3741
    %4182 = vmatpush.msra.mxu0 %v3737
    %4183 = vmatmul.f32.gmra.mxu0 %v3996
    %v4184 = vpop.f32.mrf.mxu0
    %v4185 = vadd.f32 %v4165, %v4184
    %4186 = vdwg.mxu0
    %4187 = vmatpush.msra.mxu0 %v3861
    %4188 = vmatpush.msra.mxu0 %v3857
    %4189 = vmatpush.msra.mxu0 %v3853
    %4190 = vmatpush.msra.mxu0 %v3849
    %4191 = vmatpush.msra.mxu0 %v3845
    %4192 = vmatpush.msra.mxu0 %v3841
    %4193 = vmatpush.msra.mxu0 %v3837
    %4194 = vmatpush.msra.mxu0 %v3833
    %4195 = vmatpush.msra.mxu0 %v3829
    %4196 = vmatpush.msra.mxu0 %v3825
    %4197 = vmatpush.msra.mxu0 %v3821
    %4198 = vmatpush.msra.mxu0 %v3817
    %4199 = vmatpush.msra.mxu0 %v3813
    %4200 = vmatpush.msra.mxu0 %v3809
    %4201 = vmatpush.msra.mxu0 %v3805
    %4202 = vmatpush.msra.mxu0 %v3801
    %4203 = vmatmul.f32.gmra.mxu0 %v3997
    %v4204 = vpop.f32.mrf.mxu0
    %v4205 = vadd.f32 %v4185, %v4204
    %4206 = vdwg.mxu0
    %4207 = vmatpush.msra.mxu0 %v3925
    %4208 = vmatpush.msra.mxu0 %v3921
    %4209 = vmatpush.msra.mxu0 %v3917
    %4210 = vmatpush.msra.mxu0 %v3913
    %4211 = vmatpush.msra.mxu0 %v3909
    %4212 = vmatpush.msra.mxu0 %v3905
    %4213 = vmatpush.msra.mxu0 %v3901
    %4214 = vmatpush.msra.mxu0 %v3897
    %4215 = vmatpush.msra.mxu0 %v3893
    %4216 = vmatpush.msra.mxu0 %v3889
    %4217 = vmatpush.msra.mxu0 %v3885
    %4218 = vmatpush.msra.mxu0 %v3881
    %4219 = vmatpush.msra.mxu0 %v3877
    %4220 = vmatpush.msra.mxu0 %v3873
    %4221 = vmatpush.msra.mxu0 %v3869
    %4222 = vmatpush.msra.mxu0 %v3865
    %4223 = vmatmul.f32.gmra.mxu0 %v3998
    %v4224 = vpop.f32.mrf.mxu0
    %v4225 = vadd.f32 %v4205, %v4224
    %4226 = vdwg.mxu0
    %4227 = vmatpush.msra.mxu0 0.0
    %4228 = vmatpush.msra.mxu0 0.0
    %4229 = vmatpush.msra.mxu0 0.0
    %4230 = vmatpush.msra.mxu0 0.0
    %4231 = vmatpush.msra.mxu0 %v3973
    %4232 = vmatpush.msra.mxu0 %v3969
    %4233 = vmatpush.msra.mxu0 %v3965
    %4234 = vmatpush.msra.mxu0 %v3961
    %4235 = vmatpush.msra.mxu0 %v3957
    %4236 = vmatpush.msra.mxu0 %v3953
    %4237 = vmatpush.msra.mxu0 %v3949
    %4238 = vmatpush.msra.mxu0 %v3945
    %4239 = vmatpush.msra.mxu0 %v3941
    %4240 = vmatpush.msra.mxu0 %v3937
    %4241 = vmatpush.msra.mxu0 %v3933
    %4242 = vmatpush.msra.mxu0 %v3929
    %4243 = vmatmul.f32.gmra.mxu0 %v4005
    %v4244 = vpop.f32.mrf.mxu0
    %v4245 = vadd.f32 %v4225, %v4244
    %4246 = vdwg.mxu0
    %4247 = vmatpush.msra.mxu0 %v3670
    %4248 = vmatpush.msra.mxu0 %v3666
    %4249 = vmatpush.msra.mxu0 %v3662
    %4250 = vmatpush.msra.mxu0 %v3658
    %4251 = vmatpush.msra.mxu0 %v3654
    %4252 = vmatpush.msra.mxu0 %v3650
    %4253 = vmatpush.msra.mxu0 %v3646
    %4254 = vmatpush.msra.mxu0 %v3642
    %4255 = vmatpush.msra.mxu0 %v3638
    %4256 = vmatpush.msra.mxu0 %v3634
    %4257 = vmatpush.msra.mxu0 %v3630
    %4258 = vmatpush.msra.mxu0 %v3626
    %4259 = vmatpush.msra.mxu0 %v3622
    %4260 = vmatpush.msra.mxu0 %v3618
    %4261 = vmatpush.msra.mxu0 %v3614
    %4262 = vmatpush.msra.mxu0 %v3610
    %4263 = vmatmul.f32.gmra.mxu0 %v3994
    %v4264 = vpop.f32.mrf.mxu0
    %v4265 = vadd.f32 %v3980, %v4264
    %4266 = vdwg.mxu0
    %4267 = vmatpush.msra.mxu0 %v3734
    %4268 = vmatpush.msra.mxu0 %v3730
    %4269 = vmatpush.msra.mxu0 %v3726
    %4270 = vmatpush.msra.mxu0 %v3722
    %4271 = vmatpush.msra.mxu0 %v3718
    %4272 = vmatpush.msra.mxu0 %v3714
    %4273 = vmatpush.msra.mxu0 %v3710
    %4274 = vmatpush.msra.mxu0 %v3706
    %4275 = vmatpush.msra.mxu0 %v3702
    %4276 = vmatpush.msra.mxu0 %v3698
    %4277 = vmatpush.msra.mxu0 %v3694
    %4278 = vmatpush.msra.mxu0 %v3690
    %4279 = vmatpush.msra.mxu0 %v3686
    %4280 = vmatpush.msra.mxu0 %v3682
    %4281 = vmatpush.msra.mxu0 %v3678
    %4282 = vmatpush.msra.mxu0 %v3674
    %4283 = vmatmul.f32.gmra.mxu0 %v3995
    %v4284 = vpop.f32.mrf.mxu0
    %v4285 = vadd.f32 %v4265, %v4284
    %4286 = vdwg.mxu0
    %4287 = vmatpush.msra.mxu0 %v3798
    %4288 = vmatpush.msra.mxu0 %v3794
    %4289 = vmatpush.msra.mxu0 %v3790
    %4290 = vmatpush.msra.mxu0 %v3786
    %4291 = vmatpush.msra.mxu0 %v3782
    %4292 = vmatpush.msra.mxu0 %v3778
    %4293 = vmatpush.msra.mxu0 %v3774
    %4294 = vmatpush.msra.mxu0 %v3770
    %4295 = vmatpush.msra.mxu0 %v3766
    %4296 = vmatpush.msra.mxu0 %v3762
    %4297 = vmatpush.msra.mxu0 %v3758
    %4298 = vmatpush.msra.mxu0 %v3754
    %4299 = vmatpush.msra.mxu0 %v3750
    %4300 = vmatpush.msra.mxu0 %v3746
    %4301 = vmatpush.msra.mxu0 %v3742
    %4302 = vmatpush.msra.mxu0 %v3738
    %4303 = vmatmul.f32.gmra.mxu0 %v3996
    %v4304 = vpop.f32.mrf.mxu0
    %v4305 = vadd.f32 %v4285, %v4304
    %4306 = vdwg.mxu0
    %4307 = vmatpush.msra.mxu0 %v3862
    %4308 = vmatpush.msra.mxu0 %v3858
    %4309 = vmatpush.msra.mxu0 %v3854
    %4310 = vmatpush.msra.mxu0 %v3850
    %4311 = vmatpush.msra.mxu0 %v3846
    %4312 = vmatpush.msra.mxu0 %v3842
    %4313 = vmatpush.msra.mxu0 %v3838
    %4314 = vmatpush.msra.mxu0 %v3834
    %4315 = vmatpush.msra.mxu0 %v3830
    %4316 = vmatpush.msra.mxu0 %v3826
    %4317 = vmatpush.msra.mxu0 %v3822
    %4318 = vmatpush.msra.mxu0 %v3818
    %4319 = vmatpush.msra.mxu0 %v3814
    %4320 = vmatpush.msra.mxu0 %v3810
    %4321 = vmatpush.msra.mxu0 %v3806
    %4322 = vmatpush.msra.mxu0 %v3802
    %4323 = vmatmul.f32.gmra.mxu0 %v3997
    %v4324 = vpop.f32.mrf.mxu0
    %v4325 = vadd.f32 %v4305, %v4324
    %4326 = vdwg.mxu0
    %4327 = vmatpush.msra.mxu0 %v3926
    %4328 = vmatpush.msra.mxu0 %v3922
    %4329 = vmatpush.msra.mxu0 %v3918
    %4330 = vmatpush.msra.mxu0 %v3914
    %4331 = vmatpush.msra.mxu0 %v3910
    %4332 = vmatpush.msra.mxu0 %v3906
    %4333 = vmatpush.msra.mxu0 %v3902
    %4334 = vmatpush.msra.mxu0 %v3898
    %4335 = vmatpush.msra.mxu0 %v3894
    %4336 = vmatpush.msra.mxu0 %v3890
    %4337 = vmatpush.msra.mxu0 %v3886
    %4338 = vmatpush.msra.mxu0 %v3882
    %4339 = vmatpush.msra.mxu0 %v3878
    %4340 = vmatpush.msra.mxu0 %v3874
    %4341 = vmatpush.msra.mxu0 %v3870
    %4342 = vmatpush.msra.mxu0 %v3866
    %4343 = vmatmul.f32.gmra.mxu0 %v3998
    %v4344 = vpop.f32.mrf.mxu0
    %v4345 = vadd.f32 %v4325, %v4344
    %4346 = vdwg.mxu0
    %4347 = vmatpush.msra.mxu0 0.0
    %4348 = vmatpush.msra.mxu0 0.0
    %4349 = vmatpush.msra.mxu0 0.0
    %4350 = vmatpush.msra.mxu0 0.0
    %4351 = vmatpush.msra.mxu0 %v3974
    %4352 = vmatpush.msra.mxu0 %v3970
    %4353 = vmatpush.msra.mxu0 %v3966
    %4354 = vmatpush.msra.mxu0 %v3962
    %4355 = vmatpush.msra.mxu0 %v3958
    %4356 = vmatpush.msra.mxu0 %v3954
    %4357 = vmatpush.msra.mxu0 %v3950
    %4358 = vmatpush.msra.mxu0 %v3946
    %4359 = vmatpush.msra.mxu0 %v3942
    %4360 = vmatpush.msra.mxu0 %v3938
    %4361 = vmatpush.msra.mxu0 %v3934
    %4362 = vmatpush.msra.mxu0 %v3930
    %4363 = vmatmul.f32.gmra.mxu0 %v4005
    %v4364 = vpop.f32.mrf.mxu0
    %v4365 = vadd.f32 %v4345, %v4364
    %4366 = vdwg.mxu0
    %4367 = vmatpush.msra.mxu0 %v3671
    %4368 = vmatpush.msra.mxu0 %v3667
    %4369 = vmatpush.msra.mxu0 %v3663
    %4370 = vmatpush.msra.mxu0 %v3659
    %4371 = vmatpush.msra.mxu0 %v3655
    %4372 = vmatpush.msra.mxu0 %v3651
    %4373 = vmatpush.msra.mxu0 %v3647
    %4374 = vmatpush.msra.mxu0 %v3643
    %4375 = vmatpush.msra.mxu0 %v3639
    %4376 = vmatpush.msra.mxu0 %v3635
    %4377 = vmatpush.msra.mxu0 %v3631
    %4378 = vmatpush.msra.mxu0 %v3627
    %4379 = vmatpush.msra.mxu0 %v3623
    %4380 = vmatpush.msra.mxu0 %v3619
    %4381 = vmatpush.msra.mxu0 %v3615
    %4382 = vmatpush.msra.mxu0 %v3611
    %4383 = vmatmul.f32.gmra.mxu0 %v3994
    %v4384 = vpop.f32.mrf.mxu0
    %v4385 = vadd.f32 %v3981, %v4384
    %4386 = vdwg.mxu0
    %4387 = vmatpush.msra.mxu0 %v3735
    %4388 = vmatpush.msra.mxu0 %v3731
    %4389 = vmatpush.msra.mxu0 %v3727
    %4390 = vmatpush.msra.mxu0 %v3723
    %4391 = vmatpush.msra.mxu0 %v3719
    %4392 = vmatpush.msra.mxu0 %v3715
    %4393 = vmatpush.msra.mxu0 %v3711
    %4394 = vmatpush.msra.mxu0 %v3707
    %4395 = vmatpush.msra.mxu0 %v3703
    %4396 = vmatpush.msra.mxu0 %v3699
    %4397 = vmatpush.msra.mxu0 %v3695
    %4398 = vmatpush.msra.mxu0 %v3691
    %4399 = vmatpush.msra.mxu0 %v3687
    %4400 = vmatpush.msra.mxu0 %v3683
    %4401 = vmatpush.msra.mxu0 %v3679
    %4402 = vmatpush.msra.mxu0 %v3675
    %4403 = vmatmul.f32.gmra.mxu0 %v3995
    %v4404 = vpop.f32.mrf.mxu0
    %v4405 = vadd.f32 %v4385, %v4404
    %4406 = vdwg.mxu0
    %4407 = vmatpush.msra.mxu0 %v3799
    %4408 = vmatpush.msra.mxu0 %v3795
    %4409 = vmatpush.msra.mxu0 %v3791
    %4410 = vmatpush.msra.mxu0 %v3787
    %4411 = vmatpush.msra.mxu0 %v3783
    %4412 = vmatpush.msra.mxu0 %v3779
    %4413 = vmatpush.msra.mxu0 %v3775
    %4414 = vmatpush.msra.mxu0 %v3771
    %4415 = vmatpush.msra.mxu0 %v3767
    %4416 = vmatpush.msra.mxu0 %v3763
    %4417 = vmatpush.msra.mxu0 %v3759
    %4418 = vmatpush.msra.mxu0 %v3755
    %4419 = vmatpush.msra.mxu0 %v3751
    %4420 = vmatpush.msra.mxu0 %v3747
    %4421 = vmatpush.msra.mxu0 %v3743
    %4422 = vmatpush.msra.mxu0 %v3739
    %4423 = vmatmul.f32.gmra.mxu0 %v3996
    %v4424 = vpop.f32.mrf.mxu0
    %v4425 = vadd.f32 %v4405, %v4424
    %4426 = vdwg.mxu0
    %4427 = vmatpush.msra.mxu0 %v3863
    %4428 = vmatpush.msra.mxu0 %v3859
    %4429 = vmatpush.msra.mxu0 %v3855
    %4430 = vmatpush.msra.mxu0 %v3851
    %4431 = vmatpush.msra.mxu0 %v3847
    %4432 = vmatpush.msra.mxu0 %v3843
    %4433 = vmatpush.msra.mxu0 %v3839
    %4434 = vmatpush.msra.mxu0 %v3835
    %4435 = vmatpush.msra.mxu0 %v3831
    %4436 = vmatpush.msra.mxu0 %v3827
    %4437 = vmatpush.msra.mxu0 %v3823
    %4438 = vmatpush.msra.mxu0 %v3819
    %4439 = vmatpush.msra.mxu0 %v3815
    %4440 = vmatpush.msra.mxu0 %v3811
    %4441 = vmatpush.msra.mxu0 %v3807
    %4442 = vmatpush.msra.mxu0 %v3803
    %4443 = vmatmul.f32.gmra.mxu0 %v3997
    %v4444 = vpop.f32.mrf.mxu0
    %v4445 = vadd.f32 %v4425, %v4444
    %4446 = vdwg.mxu0
    %4447 = vmatpush.msra.mxu0 %v3927
    %4448 = vmatpush.msra.mxu0 %v3923
    %4449 = vmatpush.msra.mxu0 %v3919
    %4450 = vmatpush.msra.mxu0 %v3915
    %4451 = vmatpush.msra.mxu0 %v3911
    %4452 = vmatpush.msra.mxu0 %v3907
    %4453 = vmatpush.msra.mxu0 %v3903
    %4454 = vmatpush.msra.mxu0 %v3899
    %4455 = vmatpush.msra.mxu0 %v3895
    %4456 = vmatpush.msra.mxu0 %v3891
    %4457 = vmatpush.msra.mxu0 %v3887
    %4458 = vmatpush.msra.mxu0 %v3883
    %4459 = vmatpush.msra.mxu0 %v3879
    %4460 = vmatpush.msra.mxu0 %v3875
    %4461 = vmatpush.msra.mxu0 %v3871
    %4462 = vmatpush.msra.mxu0 %v3867
    %4463 = vmatmul.f32.gmra.mxu0 %v3998
    %v4464 = vpop.f32.mrf.mxu0
    %v4465 = vadd.f32 %v4445, %v4464
    %4466 = vdwg.mxu0
    %4467 = vmatpush.msra.mxu0 0.0
    %4468 = vmatpush.msra.mxu0 0.0
    %4469 = vmatpush.msra.mxu0 0.0
    %4470 = vmatpush.msra.mxu0 0.0
    %4471 = vmatpush.msra.mxu0 %v3975
    %4472 = vmatpush.msra.mxu0 %v3971
    %4473 = vmatpush.msra.mxu0 %v3967
    %4474 = vmatpush.msra.mxu0 %v3963
    %4475 = vmatpush.msra.mxu0 %v3959
    %4476 = vmatpush.msra.mxu0 %v3955
    %4477 = vmatpush.msra.mxu0 %v3951
    %4478 = vmatpush.msra.mxu0 %v3947
    %4479 = vmatpush.msra.mxu0 %v3943
    %4480 = vmatpush.msra.mxu0 %v3939
    %4481 = vmatpush.msra.mxu0 %v3935
    %4482 = vmatpush.msra.mxu0 %v3931
    %4483 = vmatmul.f32.gmra.mxu0 %v4005
    %v4484 = vpop.f32.mrf.mxu0
    %v4485 = vadd.f32 %v4465, %v4484
    %4486 = vdwg.mxu0
    %v4487 = vmax.f32 %v4125, 0.0
    %v4488 = vmax.f32 %v4245, 0.0
    %v4489 = vmax.f32 %v4365, 0.0
    %v4490 = vmax.f32 %v4485, 0.0
    %v4491 = vld [vmem:[%s11] sm:$0xff]
    %v4492 = vld [vmem:[%s11 + $0x8] sm:$0xff]
    %v4493 = vld [vmem:[%s11 + $0x10] sm:$0xff]
    %v4494 = vld [vmem:[%s11 + $0x18] sm:$0xff]
    %v4495 = vld [vmem:[%s11 + $0x20] sm:$0xff]
    %v4496 = vld [vmem:[%s11 + $0x28] sm:$0xff]
    %v4497 = vld [vmem:[%s11 + $0x30] sm:$0xff]
    %v4498 = vld [vmem:[%s11 + $0x38] sm:$0xff]
    %v4499 = vld [vmem:[%s11 + $0x40] sm:$0xff]
    %v4500 = vld [vmem:[%s11 + $0x48] sm:$0xff]
    %v4501 = vld [vmem:[%s11 + $0x50] sm:$0xff]
    %v4502 = vld [vmem:[%s11 + $0x58] sm:$0xff]
    %v4503 = vld [vmem:[%s11 + $0x60] sm:$0xff]
    %v4504 = vld [vmem:[%s11 + $0x68] sm:$0xff]
    %v4505 = vld [vmem:[%s11 + $0x70] sm:$0xff]
    %v4506 = vld [vmem:[%s11 + $0x78] sm:$0xff]
    %v4507 = vld [vmem:[%s11 + $0x80] sm:$0xff]
    %v4508 = vld [vmem:[%s11 + $0x88] sm:$0xff]
    %v4509 = vld [vmem:[%s11 + $0x90] sm:$0xff]
    %v4510 = vld [vmem:[%s11 + $0x98] sm:$0xff]
    %v4511 = vld [vmem:[%s11 + $0xa0] sm:$0xff]
    %v4512 = vld [vmem:[%s11 + $0xa8] sm:$0xff]
    %v4513 = vld [vmem:[%s11 + $0xb0] sm:$0xff]
    %v4514 = vld [vmem:[%s11 + $0xb8] sm:$0xff]
    %v4515 = vld [vmem:[%s11 + $0xc0] sm:$0xff]
    %v4516 = vld [vmem:[%s11 + $0xc8] sm:$0xff]
    %v4517 = vld [vmem:[%s11 + $0xd0] sm:$0xff]
    %v4518 = vld [vmem:[%s11 + $0xd8] sm:$0xff]
    %v4519 = vld [vmem:[%s11 + $0xe0] sm:$0xff]
    %v4520 = vld [vmem:[%s11 + $0xe8] sm:$0xff]
    %v4521 = vld [vmem:[%s11 + $0xf0] sm:$0xff]
    %v4522 = vld [vmem:[%s11 + $0xf8] sm:$0xff]
    %v4523 = vld [vmem:[%s11 + $0x100] sm:$0xff]
    %v4524 = vld [vmem:[%s11 + $0x108] sm:$0xff]
    %v4525 = vld [vmem:[%s11 + $0x110] sm:$0xff]
    %v4526 = vld [vmem:[%s11 + $0x118] sm:$0xff]
    %v4527 = vld [vmem:[%s11 + $0x120] sm:$0xff]
    %v4528 = vld [vmem:[%s11 + $0x128] sm:$0xff]
    %v4529 = vld [vmem:[%s11 + $0x130] sm:$0xff]
    %v4530 = vld [vmem:[%s11 + $0x138] sm:$0xff]
    %v4531 = vld [vmem:[%s11 + $0x140] sm:$0xff]
    %v4532 = vld [vmem:[%s11 + $0x148] sm:$0xff]
    %v4533 = vld [vmem:[%s11 + $0x150] sm:$0xff]
    %v4534 = vld [vmem:[%s11 + $0x158] sm:$0xff]
    %v4535 = vld [vmem:[%s11 + $0x160] sm:$0xff]
    %v4536 = vld [vmem:[%s11 + $0x168] sm:$0xff]
    %v4537 = vld [vmem:[%s11 + $0x170] sm:$0xff]
    %v4538 = vld [vmem:[%s11 + $0x178] sm:$0xff]
    %v4539 = vld [vmem:[%s11 + $0x180] sm:$0xff]
    %v4540 = vld [vmem:[%s11 + $0x188] sm:$0xff]
    %v4541 = vld [vmem:[%s11 + $0x190] sm:$0xff]
    %v4542 = vld [vmem:[%s11 + $0x198] sm:$0xff]
    %v4543 = vld [vmem:[%s11 + $0x1a0] sm:$0xff]
    %v4544 = vld [vmem:[%s11 + $0x1a8] sm:$0xff]
    %v4545 = vld [vmem:[%s11 + $0x1b0] sm:$0xff]
    %v4546 = vld [vmem:[%s11 + $0x1b8] sm:$0xff]
    %v4547 = vld [vmem:[%s11 + $0x1c0] sm:$0xff]
    %v4548 = vld [vmem:[%s11 + $0x1c8] sm:$0xff]
    %v4549 = vld [vmem:[%s11 + $0x1d0] sm:$0xff]
    %v4550 = vld [vmem:[%s11 + $0x1d8] sm:$0xff]
    %v4551 = vld [vmem:[%s11 + $0x1e0] sm:$0xff]
    %v4552 = vld [vmem:[%s11 + $0x1e8] sm:$0xff]
    %v4553 = vld [vmem:[%s11 + $0x1f0] sm:$0xff]
    %v4554 = vld [vmem:[%s11 + $0x1f8] sm:$0xff]
    %v4555 = vld [vmem:[%s11 + $0x200] sm:$0xff]
    %v4556 = vld [vmem:[%s11 + $0x208] sm:$0xff]
    %v4557 = vld [vmem:[%s11 + $0x210] sm:$0xff]
    %v4558 = vld [vmem:[%s11 + $0x218] sm:$0xff]
    %v4559 = vld [vmem:[%s11 + $0x220] sm:$0xff]
    %v4560 = vld [vmem:[%s11 + $0x228] sm:$0xff]
    %v4561 = vld [vmem:[%s11 + $0x230] sm:$0xff]
    %v4562 = vld [vmem:[%s11 + $0x238] sm:$0xff]
    %v4563 = vld [vmem:[%s11 + $0x240] sm:$0xff]
    %v4564 = vld [vmem:[%s11 + $0x248] sm:$0xff]
    %v4565 = vld [vmem:[%s11 + $0x250] sm:$0xff]
    %v4566 = vld [vmem:[%s11 + $0x258] sm:$0xff]
    %v4567 = vld [vmem:[%s11 + $0x260] sm:$0xff]
    %v4568 = vld [vmem:[%s11 + $0x268] sm:$0xff]
    %v4569 = vld [vmem:[%s11 + $0x270] sm:$0xff]
    %v4570 = vld [vmem:[%s11 + $0x278] sm:$0xff]
    %v4571 = vld [vmem:[%s11 + $0x280] sm:$0xff]
    %v4572 = vld [vmem:[%s11 + $0x288] sm:$0xff]
    %v4573 = vld [vmem:[%s11 + $0x290] sm:$0xff]
    %v4574 = vld [vmem:[%s11 + $0x298] sm:$0xff]
    %v4575 = vld [vmem:[%s11 + $0x2a0] sm:$0xff]
    %v4576 = vld [vmem:[%s11 + $0x2a8] sm:$0xff]
    %v4577 = vld [vmem:[%s11 + $0x2b0] sm:$0xff]
    %v4578 = vld [vmem:[%s11 + $0x2b8] sm:$0xff]
    %v4579 = vld [vmem:[%s11 + $0x2c0] sm:$0xff]
    %v4580 = vld [vmem:[%s11 + $0x2c8] sm:$0xff]
    %v4581 = vld [vmem:[%s11 + $0x2d0] sm:$0xff]
    %v4582 = vld [vmem:[%s11 + $0x2d8] sm:$0xff]
    %v4583 = vld [vmem:[%s11 + $0x2e0] sm:$0xff]
    %v4584 = vld [vmem:[%s11 + $0x2e8] sm:$0xff]
    %v4585 = vld [vmem:[%s11 + $0x2f0] sm:$0xff]
    %v4586 = vld [vmem:[%s11 + $0x2f8] sm:$0xff]
    %v4587 = vld [vmem:[%s11 + $0x300] sm:$0xff]
    %v4588 = vld [vmem:[%s11 + $0x308] sm:$0xff]
    %v4589 = vld [vmem:[%s11 + $0x310] sm:$0xff]
    %v4590 = vld [vmem:[%s11 + $0x318] sm:$0xff]
    %v4591 = vld [vmem:[%s11 + $0x320] sm:$0xff]
    %v4592 = vld [vmem:[%s11 + $0x328] sm:$0xff]
    %v4593 = vld [vmem:[%s11 + $0x330] sm:$0xff]
    %v4594 = vld [vmem:[%s11 + $0x338] sm:$0xff]
    %v4595 = vld [vmem:[%s11 + $0x340] sm:$0xff]
    %v4596 = vld [vmem:[%s11 + $0x348] sm:$0xff]
    %v4597 = vld [vmem:[%s11 + $0x350] sm:$0xff]
    %v4598 = vld [vmem:[%s11 + $0x358] sm:$0xff]
    %v4599 = vld [vmem:[%s11 + $0x360] sm:$0xff]
    %v4600 = vld [vmem:[%s11 + $0x368] sm:$0xff]
    %v4601 = vld [vmem:[%s11 + $0x370] sm:$0xff]
    %v4602 = vld [vmem:[%s11 + $0x378] sm:$0xff]
    %v4603 = vld [vmem:[%s11 + $0x380] sm:$0xff]
    %v4604 = vld [vmem:[%s11 + $0x388] sm:$0xff]
    %v4605 = vld [vmem:[%s11 + $0x390] sm:$0xff]
    %v4606 = vld [vmem:[%s11 + $0x398] sm:$0xff]
    %v4607 = vld [vmem:[%s11 + $0x3a0] sm:$0xff]
    %v4608 = vld [vmem:[%s11 + $0x3a8] sm:$0xff]
    %v4609 = vld [vmem:[%s11 + $0x3b0] sm:$0xff]
    %v4610 = vld [vmem:[%s11 + $0x3b8] sm:$0xff]
    %v4611 = vld [vmem:[%s11 + $0x3c0] sm:$0xff]
    %v4612 = vld [vmem:[%s11 + $0x3c8] sm:$0xff]
    %v4613 = vld [vmem:[%s11 + $0x3d0] sm:$0xff]
    %v4614 = vld [vmem:[%s11 + $0x3d8] sm:$0xff]
    %v4615 = vld [vmem:[%s11 + $0x3e0] sm:$0xf]
    %v4616 = vld [vmem:[%s11 + $0x3e8] sm:$0xf]
    %v4617 = vld [vmem:[#allocation24] sm:$0x3]
    %v4619 = vperm.slane %v4617, 0
    %v4620 = vperm.slane %v4617, 1
    %vm4623 = vcmask 949248
    %v4625 = vsel %vm4623, %v4490, 0
    %vm4627 = vcmask 1043456
    %v4629 = vsel %vm4627, %v4615, 0
    %v4632 = vsel %vm4627, %v4616, 0
    %4634 = vmatpush.msra.mxu0 %v4521
    %4635 = vmatpush.msra.mxu0 %v4519
    %4636 = vmatpush.msra.mxu0 %v4517
    %4637 = vmatpush.msra.mxu0 %v4515
    %4638 = vmatpush.msra.mxu0 %v4513
    %4639 = vmatpush.msra.mxu0 %v4511
    %4640 = vmatpush.msra.mxu0 %v4509
    %4641 = vmatpush.msra.mxu0 %v4507
    %4642 = vmatpush.msra.mxu0 %v4505
    %4643 = vmatpush.msra.mxu0 %v4503
    %4644 = vmatpush.msra.mxu0 %v4501
    %4645 = vmatpush.msra.mxu0 %v4499
    %4646 = vmatpush.msra.mxu0 %v4497
    %4647 = vmatpush.msra.mxu0 %v4495
    %4648 = vmatpush.msra.mxu0 %v4493
    %4649 = vmatpush.msra.mxu0 %v4491
    %4650 = vmatmul.f32.gmra.mxu0 %v4487
    %v4651 = vpop.f32.mrf.mxu0
    %v4652 = vadd.f32 %v4619, %v4651
    %4653 = vdwg.mxu0
    %4654 = vmatpush.msra.mxu0 %v4553
    %4655 = vmatpush.msra.mxu0 %v4551
    %4656 = vmatpush.msra.mxu0 %v4549
    %4657 = vmatpush.msra.mxu0 %v4547
    %4658 = vmatpush.msra.mxu0 %v4545
    %4659 = vmatpush.msra.mxu0 %v4543
    %4660 = vmatpush.msra.mxu0 %v4541
    %4661 = vmatpush.msra.mxu0 %v4539
    %4662 = vmatpush.msra.mxu0 %v4537
    %4663 = vmatpush.msra.mxu0 %v4535
    %4664 = vmatpush.msra.mxu0 %v4533
    %4665 = vmatpush.msra.mxu0 %v4531
    %4666 = vmatpush.msra.mxu0 %v4529
    %4667 = vmatpush.msra.mxu0 %v4527
    %4668 = vmatpush.msra.mxu0 %v4525
    %4669 = vmatpush.msra.mxu0 %v4523
    %4670 = vmatmul.f32.gmra.mxu0 %v4488
    %v4671 = vpop.f32.mrf.mxu0
    %v4672 = vadd.f32 %v4652, %v4671
    %4673 = vdwg.mxu0
    %4674 = vmatpush.msra.mxu0 %v4585
    %4675 = vmatpush.msra.mxu0 %v4583
    %4676 = vmatpush.msra.mxu0 %v4581
    %4677 = vmatpush.msra.mxu0 %v4579
    %4678 = vmatpush.msra.mxu0 %v4577
    %4679 = vmatpush.msra.mxu0 %v4575
    %4680 = vmatpush.msra.mxu0 %v4573
    %4681 = vmatpush.msra.mxu0 %v4571
    %4682 = vmatpush.msra.mxu0 %v4569
    %4683 = vmatpush.msra.mxu0 %v4567
    %4684 = vmatpush.msra.mxu0 %v4565
    %4685 = vmatpush.msra.mxu0 %v4563
    %4686 = vmatpush.msra.mxu0 %v4561
    %4687 = vmatpush.msra.mxu0 %v4559
    %4688 = vmatpush.msra.mxu0 %v4557
    %4689 = vmatpush.msra.mxu0 %v4555
    %4690 = vmatmul.f32.gmra.mxu0 %v4489
    %v4691 = vpop.f32.mrf.mxu0
    %v4692 = vadd.f32 %v4672, %v4691
    %4693 = vdwg.mxu0
    %4694 = vmatpush.msra.mxu0 0.0
    %4695 = vmatpush.msra.mxu0 %v4629
    %4696 = vmatpush.msra.mxu0 %v4613
    %4697 = vmatpush.msra.mxu0 %v4611
    %4698 = vmatpush.msra.mxu0 %v4609
    %4699 = vmatpush.msra.mxu0 %v4607
    %4700 = vmatpush.msra.mxu0 %v4605
    %4701 = vmatpush.msra.mxu0 %v4603
    %4702 = vmatpush.msra.mxu0 %v4601
    %4703 = vmatpush.msra.mxu0 %v4599
    %4704 = vmatpush.msra.mxu0 %v4597
    %4705 = vmatpush.msra.mxu0 %v4595
    %4706 = vmatpush.msra.mxu0 %v4593
    %4707 = vmatpush.msra.mxu0 %v4591
    %4708 = vmatpush.msra.mxu0 %v4589
    %4709 = vmatpush.msra.mxu0 %v4587
    %4710 = vmatmul.f32.gmra.mxu0 %v4625
    %v4711 = vpop.f32.mrf.mxu0
    %v4712 = vadd.f32 %v4692, %v4711
    %4713 = vdwg.mxu0
    %4714 = vmatpush.msra.mxu0 %v4522
    %4715 = vmatpush.msra.mxu0 %v4520
    %4716 = vmatpush.msra.mxu0 %v4518
    %4717 = vmatpush.msra.mxu0 %v4516
    %4718 = vmatpush.msra.mxu0 %v4514
    %4719 = vmatpush.msra.mxu0 %v4512
    %4720 = vmatpush.msra.mxu0 %v4510
    %4721 = vmatpush.msra.mxu0 %v4508
    %4722 = vmatpush.msra.mxu0 %v4506
    %4723 = vmatpush.msra.mxu0 %v4504
    %4724 = vmatpush.msra.mxu0 %v4502
    %4725 = vmatpush.msra.mxu0 %v4500
    %4726 = vmatpush.msra.mxu0 %v4498
    %4727 = vmatpush.msra.mxu0 %v4496
    %4728 = vmatpush.msra.mxu0 %v4494
    %4729 = vmatpush.msra.mxu0 %v4492
    %4730 = vmatmul.f32.gmra.mxu0 %v4487
    %v4731 = vpop.f32.mrf.mxu0
    %v4732 = vadd.f32 %v4620, %v4731
    %4733 = vdwg.mxu0
    %4734 = vmatpush.msra.mxu0 %v4554
    %4735 = vmatpush.msra.mxu0 %v4552
    %4736 = vmatpush.msra.mxu0 %v4550
    %4737 = vmatpush.msra.mxu0 %v4548
    %4738 = vmatpush.msra.mxu0 %v4546
    %4739 = vmatpush.msra.mxu0 %v4544
    %4740 = vmatpush.msra.mxu0 %v4542
    %4741 = vmatpush.msra.mxu0 %v4540
    %4742 = vmatpush.msra.mxu0 %v4538
    %4743 = vmatpush.msra.mxu0 %v4536
    %4744 = vmatpush.msra.mxu0 %v4534
    %4745 = vmatpush.msra.mxu0 %v4532
    %4746 = vmatpush.msra.mxu0 %v4530
    %4747 = vmatpush.msra.mxu0 %v4528
    %4748 = vmatpush.msra.mxu0 %v4526
    %4749 = vmatpush.msra.mxu0 %v4524
    %4750 = vmatmul.f32.gmra.mxu0 %v4488
    %v4751 = vpop.f32.mrf.mxu0
    %v4752 = vadd.f32 %v4732, %v4751
    %4753 = vdwg.mxu0
    %4754 = vmatpush.msra.mxu0 %v4586
    %4755 = vmatpush.msra.mxu0 %v4584
    %4756 = vmatpush.msra.mxu0 %v4582
    %4757 = vmatpush.msra.mxu0 %v4580
    %4758 = vmatpush.msra.mxu0 %v4578
    %4759 = vmatpush.msra.mxu0 %v4576
    %4760 = vmatpush.msra.mxu0 %v4574
    %4761 = vmatpush.msra.mxu0 %v4572
    %4762 = vmatpush.msra.mxu0 %v4570
    %4763 = vmatpush.msra.mxu0 %v4568
    %4764 = vmatpush.msra.mxu0 %v4566
    %4765 = vmatpush.msra.mxu0 %v4564
    %4766 = vmatpush.msra.mxu0 %v4562
    %4767 = vmatpush.msra.mxu0 %v4560
    %4768 = vmatpush.msra.mxu0 %v4558
    %4769 = vmatpush.msra.mxu0 %v4556
    %4770 = vmatmul.f32.gmra.mxu0 %v4489
    %v4771 = vpop.f32.mrf.mxu0
    %v4772 = vadd.f32 %v4752, %v4771
    %4773 = vdwg.mxu0
    %4774 = vmatpush.msra.mxu0 0.0
    %4775 = vmatpush.msra.mxu0 %v4632
    %4776 = vmatpush.msra.mxu0 %v4614
    %4777 = vmatpush.msra.mxu0 %v4612
    %4778 = vmatpush.msra.mxu0 %v4610
    %4779 = vmatpush.msra.mxu0 %v4608
    %4780 = vmatpush.msra.mxu0 %v4606
    %4781 = vmatpush.msra.mxu0 %v4604
    %4782 = vmatpush.msra.mxu0 %v4602
    %4783 = vmatpush.msra.mxu0 %v4600
    %4784 = vmatpush.msra.mxu0 %v4598
    %4785 = vmatpush.msra.mxu0 %v4596
    %4786 = vmatpush.msra.mxu0 %v4594
    %4787 = vmatpush.msra.mxu0 %v4592
    %4788 = vmatpush.msra.mxu0 %v4590
    %4789 = vmatpush.msra.mxu0 %v4588
    %4790 = vmatmul.f32.gmra.mxu0 %v4625
    %v4791 = vpop.f32.mrf.mxu0
    %v4792 = vadd.f32 %v4772, %v4791
    %4793 = vdwg.mxu0
    %v4794 = vmax.f32 %v4712, 0.0
    %v4795 = vmax.f32 %v4792, 0.0
    %v4796 = vld [vmem:[%s13] sm:$0xff]
    %v4797 = vld [vmem:[%s13 + $0x8] sm:$0xff]
    %v4798 = vld [vmem:[%s13 + $0x10] sm:$0xff]
    %v4799 = vld [vmem:[%s13 + $0x18] sm:$0xff]
    %v4800 = vld [vmem:[%s13 + $0x20] sm:$0xff]
    %v4801 = vld [vmem:[%s13 + $0x28] sm:$0xff]
    %v4802 = vld [vmem:[%s13 + $0x30] sm:$0xff]
    %v4803 = vld [vmem:[%s13 + $0x38] sm:$0xff]
    %v4804 = vld [vmem:[%s13 + $0x40] sm:$0xff]
    %v4805 = vld [vmem:[%s13 + $0x48] sm:$0xff]
    %v4806 = vld [vmem:[%s13 + $0x50] sm:$0xff]
    %v4807 = vld [vmem:[%s13 + $0x58] sm:$0xff]
    %v4808 = vld [vmem:[%s13 + $0x60] sm:$0xff]
    %v4809 = vld [vmem:[%s13 + $0x68] sm:$0xff]
    %v4810 = vld [vmem:[%s13 + $0x70] sm:$0xff]
    %v4811 = vld [vmem:[%s13 + $0x78] sm:$0xff]
    %v4812 = vld [vmem:[%s13 + $0x80] sm:$0xff]
    %v4813 = vld [vmem:[%s13 + $0x88] sm:$0xff]
    %v4814 = vld [vmem:[%s13 + $0x90] sm:$0xff]
    %v4815 = vld [vmem:[%s13 + $0x98] sm:$0xff]
    %v4816 = vld [vmem:[%s13 + $0xa0] sm:$0xff]
    %v4817 = vld [vmem:[%s13 + $0xa8] sm:$0xff]
    %v4818 = vld [vmem:[%s13 + $0xb0] sm:$0xff]
    %v4819 = vld [vmem:[%s13 + $0xb8] sm:$0xff]
    %v4820 = vld [vmem:[%s13 + $0xc0] sm:$0xff]
    %v4821 = vld [vmem:[#allocation6] sm:$0x1]
    %v4823 = vperm.slane %v4821, 0
    %vm4825 = vcmask 588800
    %v4827 = vsel %vm4825, %v4795, 0
    %4829 = vmatpush.msra.mxu0 %v4811
    %4830 = vmatpush.msra.mxu0 %v4810
    %4831 = vmatpush.msra.mxu0 %v4809
    %4832 = vmatpush.msra.mxu0 %v4808
    %4833 = vmatpush.msra.mxu0 %v4807
    %4834 = vmatpush.msra.mxu0 %v4806
    %4835 = vmatpush.msra.mxu0 %v4805
    %4836 = vmatpush.msra.mxu0 %v4804
    %4837 = vmatpush.msra.mxu0 %v4803
    %4838 = vmatpush.msra.mxu0 %v4802
    %4839 = vmatpush.msra.mxu0 %v4801
    %4840 = vmatpush.msra.mxu0 %v4800
    %4841 = vmatpush.msra.mxu0 %v4799
    %4842 = vmatpush.msra.mxu0 %v4798
    %4843 = vmatpush.msra.mxu0 %v4797
    %4844 = vmatpush.msra.mxu0 %v4796
    %4845 = vmatmul.f32.gmra.mxu0 %v4794
    %v4846 = vpop.f32.mrf.mxu0
    %v4847 = vadd.f32 %v4823, %v4846
    %4848 = vdwg.mxu0
    %4849 = vmatpush.msra.mxu0 0.0
    %4850 = vmatpush.msra.mxu0 0.0
    %4851 = vmatpush.msra.mxu0 0.0
    %4852 = vmatpush.msra.mxu0 0.0
    %4853 = vmatpush.msra.mxu0 0.0
    %4854 = vmatpush.msra.mxu0 0.0
    %4855 = vmatpush.msra.mxu0 0.0
    %4856 = vmatpush.msra.mxu0 %v4820
    %4857 = vmatpush.msra.mxu0 %v4819
    %4858 = vmatpush.msra.mxu0 %v4818
    %4859 = vmatpush.msra.mxu0 %v4817
    %4860 = vmatpush.msra.mxu0 %v4816
    %4861 = vmatpush.msra.mxu0 %v4815
    %4862 = vmatpush.msra.mxu0 %v4814
    %4863 = vmatpush.msra.mxu0 %v4813
    %4864 = vmatpush.msra.mxu0 %v4812
    %4865 = vmatmul.f32.gmra.mxu0 %v4827
    %v4866 = vpop.f32.mrf.mxu0
    %v4867 = vadd.f32 %v4847, %v4866
    %4868 = vdwg.mxu0
    %v4869 = vsub.f32 0.0, %v4867
    %v4870 = vmul.f32 %v4869, 1.442695
    %v4871 = vpow.pop %v4870
    %v4872 = vadd.f32 %v4871, 1.0
    %v4873 = vrcp.pop %v4872
    %v4874 = vmul.f32 %v4872, %v4873
    %v4875 = vsub.f32 1.0, %v4874
    %v4876 = vmul.f32 %v4873, %v4875
    %v4877 = vadd.f32 %v4873, %v4876
    %vm4878 = vweird.f32 %v4872
    %vm4879 = vweird.f32 %v4873
    %vm4880 = vmor %vm4878, %vm4879
    %v4881 = vsel %vm4880, %v4873, %v4877
    %v4882 = vand.u32 2147483647, %v4872
    %vm4883 = vcmp.eq.f32.partialorder %v4882, 8.507059e+37
    %v4884 = vand.u32 %v4872, 2147483648
    %v4885 = vor.u32 1.1754944e-38, %v4884
    %v4886 = vsel %vm4883, %v4885, %v4881
    %v4887 = vmul.f32 1.0, %v4886
    %vm4888 = vcmask 3072
    %4889 = vst.msk [vmem:[%s15] sm:$0xf] %vm4888, %v4887
    // Predicated region
    $region110: #{tpu_custom_call.1} parent=1 // pred_check
      _
    $region111: #{tpu_custom_call.1} parent=1 // pred_check_branch
      %4891 = sbr.rel (0) target = $region113
    $region112: #{tpu_custom_call.1} parent=1 // pred_region
      _
    $region113: #{tpu_custom_call.1} parent=1 // pred_fallthru
      _
    // Predicated region
    $region114: #{tpu_custom_call.1} parent=1 // pred_check
      _
    $region115: #{tpu_custom_call.1} parent=1 // pred_check_branch
      %4893 = sbr.rel (0) target = $region117
    $region116: #{tpu_custom_call.1} parent=1 // pred_region
      _
    $region117: #{tpu_custom_call.1} parent=1 // pred_fallthru
      _
    %4894 = vsyncpa [#allocation8], 1
    %4895 = vsyncpa [#allocation10], 1
    %4896 = vsyncpa [#allocation13], 1
    %4897 = vsyncpa [#allocation16], 1
    %4898 = vsyncpa [#allocation19], 1
    %4899 = vsyncpa [#allocation22], 1
    %4900 = vsyncpa [#allocation25], 1

</llo_original>
